<compile_context>
chip_gen: v7x
topology: tpu7x:2x2x1
jax: 0.10.0
libtpu: 0.0.40
codegen_flags: <defaults>
</compile_context>

<pallas_src>
import numpy as np

import jax
import jax.numpy as jnp
from jax.experimental import pallas as pl
from jax.experimental.pallas import tpu as pltpu


# ---------------------------------------------------------------------------
# Pallas kernels
# ---------------------------------------------------------------------------

def _vmem():
    return pl.BlockSpec(memory_space=pltpu.MemorySpace.VMEM)


def _conv0_kernel(p_ref, w_ref, b_ref, o_ref):
    # First conv as im2col GEMM: (B*Ho*Wo, k*k*Cin) @ (k*k*Cin, C0) + bias, LeakyReLU(0.01).
    y = jnp.dot(p_ref[...], w_ref[...], preferred_element_type=jnp.float32)
    y = y + b_ref[...]
    o_ref[...] = jnp.where(y >= 0.0, y, 0.01 * y).astype(jnp.bfloat16)


def _make_tail_kernel(n_dense):
    """Fused kernel: convs 2..repeat_num (as dense conv-matrices) + conv1 + BN + FC + Sigmoid."""

    def kernel(*refs):
        x_ref = refs[0]
        dense = refs[1:1 + 2 * n_dense]                       # (M_l, bias_l) pairs
        mc1_ref, g_ref, be_ref, fw_ref, fb_ref, o_ref = refs[1 + 2 * n_dense:]

        h = x_ref[...]                                        # (B, H*W*C) bf16
        for l in range(n_dense):
            m_ref = dense[2 * l]
            b_ref = dense[2 * l + 1]
            y = jnp.dot(h, m_ref[...], preferred_element_type=jnp.float32)
            y = y + b_ref[...]
            y = jnp.where(y >= 0.0, y, 0.01 * y)              # LeakyReLU(0.01)
            h = y.astype(jnp.bfloat16)                        # stays in VMEM as a value

        # self.conv1 (k=3, s=1, p=1, bias-free) as a dense conv matrix.
        z = jnp.dot(h, mc1_ref[...], preferred_element_type=jnp.float32)   # (B, F) f32

        # self.fc: BatchNorm1d (training-mode batch stats, eps=1e-5) + Linear + Sigmoid.
        mean = jnp.mean(z, axis=0, keepdims=True)
        var = jnp.mean((z - mean) ** 2, axis=0, keepdims=True)             # biased variance
        zn = (z - mean) * jax.lax.rsqrt(var + 1e-5)
        zn = zn * g_ref[...] + be_ref[...]
        y = jnp.dot(zn, fw_ref[...], preferred_element_type=jnp.float32) + fb_ref[...]
        # sigmoid: exp on EUP, reciprocal on EUP (approx vrcp)
        o_ref[...] = pl.reciprocal(1.0 + jnp.exp(-y), approx=True)

    return kernel


def _conv0(patches, w0, b0):
    m, k = patches.shape
    n = w0.shape[1]
    ce = pl.CostEstimate(
        flops=2 * m * k * n,
        transcendentals=0,
        bytes_accessed=int(patches.size * 2 + w0.size * 2 + b0.size * 4 + m * n * 2),
    )
    return pl.pallas_call(
        _conv0_kernel,
        out_shape=jax.ShapeDtypeStruct((m, n), jnp.bfloat16),
        in_specs=[_vmem()] * 3,
        out_specs=_vmem(),
        cost_estimate=ce,
    )(patches, w0, b0)


def _tail(x, dense_mats, dense_biases, mc1, gamma, beta, fc_w, fc_b):
    B = x.shape[0]
    args = [x]
    for m, b in zip(dense_mats, dense_biases):
        args += [m, b]
    args += [mc1, gamma, beta, fc_w, fc_b]

    flops = 0
    for m in dense_mats:
        flops += 2 * B * m.shape[0] * m.shape[1]
    flops += 2 * B * mc1.shape[0] * mc1.shape[1] + 2 * B * fc_w.shape[0]
    bytes_acc = sum(int(a.size) * a.dtype.itemsize for a in args) + B * 4
    ce = pl.CostEstimate(flops=int(flops), transcendentals=2 * B, bytes_accessed=int(bytes_acc))

    return pl.pallas_call(
        _make_tail_kernel(len(dense_mats)),
        out_shape=jax.ShapeDtypeStruct((B, 1), jnp.float32),
        in_specs=[_vmem()] * len(args),
        out_specs=_vmem(),
        cost_estimate=ce,
    )(*args)


# ---------------------------------------------------------------------------
# Parameter construction / packing (runs once, outside jit)
# ---------------------------------------------------------------------------

def _conv_dense_matrix(w_hwio, H, W, stride, pad):
    """Unrolled conv matrix: NHWC-flattened input (H*W*Cin) -> NHWC-flattened output."""
    kh_, kw_, cin, cout = w_hwio.shape
    Ho = (H + 2 * pad - kh_) // stride + 1
    Wo = (W + 2 * pad - kw_) // stride + 1
    M = np.zeros((H * W * cin, Ho * Wo * cout), np.float32)
    for oh in range(Ho):
        for ow in range(Wo):
            c0 = (oh * Wo + ow) * cout
            for kh in range(kh_):
                ih = stride * oh + kh - pad
                if ih < 0 or ih >= H:
                    continue
                for kw in range(kw_):
                    iw = stride * ow + kw - pad
                    if iw < 0 or iw >= W:
                        continue
                    r0 = (ih * W + iw) * cin
                    M[r0:r0 + cin, c0:c0 + cout] = w_hwio[kh, kw]
    return M, Ho, Wo


def init_params(key, input_dim, conv_dim, repeat_num, imsize):
    keys = jax.random.split(key, 2 * repeat_num + 3)
    ki = 0
    convs = []
    cin, cout = input_dim, conv_dim
    for _ in range(repeat_num):
        w = jax.random.normal(keys[ki], (4, 4, cin, cout), jnp.float32) / np.sqrt(16.0 * cin)
        ki += 1
        b = 0.01 * jax.random.normal(keys[ki], (cout,), jnp.float32)
        ki += 1
        convs.append((np.asarray(w), np.asarray(b)))
        cin, cout = cout, cout * 2
    curr = cin
    w_c1 = np.asarray(jax.random.normal(keys[ki], (3, 3, curr, curr), jnp.float32)) / np.sqrt(9.0 * curr)
    ki += 1
    k_size = imsize // (2 ** repeat_num)
    F = k_size * k_size * curr
    fc_w = np.asarray(jax.random.normal(keys[ki], (F, 1), jnp.float32)) / np.sqrt(float(F))
    ki += 1
    fc_b = 0.01 * np.asarray(jax.random.normal(keys[ki], (1, 1), jnp.float32))

    # ---- pack for the kernels (done once; no per-call reshapes inside jit) ----
    packed = {}
    w0, b0 = convs[0]
    packed["w0"] = jnp.asarray(w0.reshape(-1, w0.shape[-1]), jnp.bfloat16)   # (k*k*Cin, C0)
    packed["b0"] = jnp.asarray(b0[None, :], jnp.float32)

    H = imsize // 2                                   # spatial size entering layer 2
    dense_mats, dense_biases = [], []
    for (w, b) in convs[1:]:
        M, Ho, Wo = _conv_dense_matrix(w, H, H, stride=2, pad=1)
        dense_mats.append(jnp.asarray(M, jnp.bfloat16))
        dense_biases.append(jnp.asarray(np.tile(b, Ho * Wo)[None, :], jnp.float32))
        H = Ho
    packed["dense_mats"] = dense_mats
    packed["dense_biases"] = dense_biases

    # conv1 as a dense matrix over the final k_size x k_size map (k_size=1 here,
    # so only the center tap contributes and the HWC/CHW flatten orders coincide).
    # TODO(synk): for k_size > 1 the PyTorch .view(B,-1) uses NCHW order; a column
    # permutation of bn/fc params would be needed for exact parity.
    Mc1, _, _ = _conv_dense_matrix(w_c1, H, H, stride=1, pad=1)
    packed["mc1"] = jnp.asarray(Mc1, jnp.bfloat16)

    packed["bn_gamma"] = jnp.ones((1, F), jnp.float32)     # PyTorch BN default init
    packed["bn_beta"] = jnp.zeros((1, F), jnp.float32)
    packed["fc_w"] = jnp.asarray(fc_w, jnp.float32)
    packed["fc_b"] = jnp.asarray(fc_b, jnp.float32)
    return packed


# ---------------------------------------------------------------------------
# Forward pass
# ---------------------------------------------------------------------------

def _im2col(x, k, stride, pad):
    """Input-layer-only patch extraction (XLA glue on the raw input; tiny)."""
    B, H, W, C = x.shape
    xp = jnp.pad(x, ((0, 0), (pad, pad), (pad, pad), (0, 0)))
    Ho = (H + 2 * pad - k) // stride + 1
    Wo = (W + 2 * pad - k) // stride + 1
    cols = []
    for kh in range(k):
        for kw in range(k):
            cols.append(xp[:, kh:kh + stride * Ho:stride, kw:kw + stride * Wo:stride, :])
    patches = jnp.stack(cols, axis=3)                  # (B, Ho, Wo, k*k, C)
    return patches.reshape(B * Ho * Wo, k * k * C)


@jax.jit
def discriminator_forward(params, ab_img, l_img, color_feat):
    # torch: x = cat([ab_img, l_img, color_feat], dim=1)  (NCHW channel concat)
    x = jnp.concatenate([ab_img, l_img, color_feat], axis=1)   # (B, C, H, W)
    x = jnp.transpose(x, (0, 2, 3, 1)).astype(jnp.float32)     # -> NHWC
    B = x.shape[0]

    # Layer 1: Conv2d(k=4,s=2,p=1) + LeakyReLU as an im2col GEMM kernel (bf16 MXU).
    patches = _im2col(x, k=4, stride=2, pad=1).astype(jnp.bfloat16)
    y0 = _conv0(patches, params["w0"], params["b0"])           # (B*Ho*Wo, C0) bf16

    # Free, contiguous reshape to the NHWC-flattened form the fused kernel consumes.
    h = y0.reshape(B, -1)                                       # (B, Ho*Wo*C0)

    # Layers 2..5 + conv1 + BN + Linear + Sigmoid: one fused Pallas kernel,
    # all intermediates stay in VMEM.
    return _tail(h, params["dense_mats"], params["dense_biases"],
                 params["mc1"], params["bn_gamma"], params["bn_beta"],
                 params["fc_w"], params["fc_b"])


# ---------------------------------------------------------------------------
# Driver
# ---------------------------------------------------------------------------

if __name__ == "__main__":
    B = 2
    imsize = 32
    ab_ch, l_ch, feature_dim = 2, 1, 5          # img_dim = 3, feature_dim = 5
    input_dim = ab_ch + l_ch + feature_dim      # = 8
    conv_dim, repeat_num = 8, 5

    key = jax.random.PRNGKey(0)
    kp, ka, kl, kc = jax.random.split(key, 4)

    params = init_params(kp, input_dim, conv_dim, repeat_num, imsize)

    ab_img = jax.random.normal(ka, (B, ab_ch, imsize, imsize), jnp.float32)
    l_img = jax.random.normal(kl, (B, l_ch, imsize, imsize), jnp.float32)
    color_feat = jax.random.normal(kc, (B, feature_dim, imsize, imsize), jnp.float32)

    out = discriminator_forward(params, ab_img, l_img, color_feat)
    out = jax.block_until_ready(out)
    assert out.shape == (B, 1)
    assert bool(jnp.all(jnp.isfinite(out)))
    assert bool(jnp.all((out >= 0.0) & (out <= 1.0)))
    print("KERNEL_OK")
</pallas_src>

<mosaic_0001>
module attributes {stable_mosaic.version = 11 : i64} {
  func.func @_conv0_kernel(%arg0: memref<512x128xbf16, #tpu.memory_space<vmem>>, %arg1: memref<128x8xbf16, #tpu.memory_space<vmem>>, %arg2: memref<1x8xf32, #tpu.memory_space<vmem>>, %arg3: memref<512x8xbf16, #tpu.memory_space<vmem>>) attributes {dimension_semantics = [], scalar_prefetch = 0 : i64, scratch_operands = 0 : i64, tpu.core_type = #tpu.core_type<tc>} {
    %c0 = arith.constant 0 : index
    %c0_0 = arith.constant 0 : index
    %0 = vector.load %arg0[%c0, %c0_0] : memref<512x128xbf16, #tpu.memory_space<vmem>>, vector<512x128xbf16>
    %c0_1 = arith.constant 0 : index
    %c0_2 = arith.constant 0 : index
    %1 = vector.load %arg1[%c0_1, %c0_2] : memref<128x8xbf16, #tpu.memory_space<vmem>>, vector<128x8xbf16>
    %cst = arith.constant dense<0.000000e+00> : vector<512x8xf32>
    %2 = tpu.matmul %0, %1, %cst {dimension_numbers = #tpu.dot_dimension_numbers<[1], [0], [0], [1], [0, 0, 1, 1], [], []>} : vector<512x128xbf16>, vector<128x8xbf16>, vector<512x8xf32> -> vector<512x8xf32>
    %c0_3 = arith.constant 0 : index
    %c0_4 = arith.constant 0 : index
    %3 = vector.load %arg2[%c0_3, %c0_4] : memref<1x8xf32, #tpu.memory_space<vmem>>, vector<1x8xf32>
    %4 = vector.broadcast %3 : vector<1x8xf32> to vector<512x8xf32>
    %5 = arith.addf %2, %4 : vector<512x8xf32>
    %cst_5 = arith.constant 0.000000e+00 : f32
    %6 = vector.broadcast %cst_5 : f32 to vector<512x8xf32>
    %7 = arith.cmpf oge, %5, %6 : vector<512x8xf32>
    %cst_6 = arith.constant 0.00999999977 : f32
    %8 = vector.broadcast %cst_6 : f32 to vector<512x8xf32>
    %9 = arith.mulf %8, %5 : vector<512x8xf32>
    %10 = arith.select %7, %5, %9 : vector<512x8xi1>, vector<512x8xf32>
    %11 = arith.truncf %10 : vector<512x8xf32> to vector<512x8xbf16>
    %c0_7 = arith.constant 0 : index
    %c0_8 = arith.constant 0 : index
    %12 = vector.load %arg3[%c0_7, %c0_8] : memref<512x8xbf16, #tpu.memory_space<vmem>>, vector<512x8xbf16>
    tpu.vector_store %arg3[%c0_7, %c0_8], %11 {strides = array<i32>} : memref<512x8xbf16, #tpu.memory_space<vmem>>, vector<512x8xbf16>,
    return
  }
}

module attributes {stable_mosaic.version = 11 : i64} {
  func.func @kernel(%arg0: memref<2x2048xbf16, #tpu.memory_space<vmem>>, %arg1: memref<2048x1024xbf16, #tpu.memory_space<vmem>>, %arg2: memref<1x1024xf32, #tpu.memory_space<vmem>>, %arg3: memref<1024x512xbf16, #tpu.memory_space<vmem>>, %arg4: memref<1x512xf32, #tpu.memory_space<vmem>>, %arg5: memref<512x256xbf16, #tpu.memory_space<vmem>>, %arg6: memref<1x256xf32, #tpu.memory_space<vmem>>, %arg7: memref<256x128xbf16, #tpu.memory_space<vmem>>, %arg8: memref<1x128xf32, #tpu.memory_space<vmem>>, %arg9: memref<128x128xbf16, #tpu.memory_space<vmem>>, %arg10: memref<1x128xf32, #tpu.memory_space<vmem>>, %arg11: memref<1x128xf32, #tpu.memory_space<vmem>>, %arg12: memref<128x1xf32, #tpu.memory_space<vmem>>, %arg13: memref<1x1xf32, #tpu.memory_space<vmem>>, %arg14: memref<2x1xf32, #tpu.memory_space<vmem>>) attributes {dimension_semantics = [], scalar_prefetch = 0 : i64, scratch_operands = 0 : i64, tpu.core_type = #tpu.core_type<tc>} {
    %c0 = arith.constant 0 : index
    %c0_0 = arith.constant 0 : index
    %0 = vector.load %arg0[%c0, %c0_0] : memref<2x2048xbf16, #tpu.memory_space<vmem>>, vector<2x2048xbf16>
    %c0_1 = arith.constant 0 : index
    %c0_2 = arith.constant 0 : index
    %1 = vector.load %arg1[%c0_1, %c0_2] : memref<2048x1024xbf16, #tpu.memory_space<vmem>>, vector<2048x1024xbf16>
    %cst = arith.constant dense<0.000000e+00> : vector<2x1024xf32>
    %2 = tpu.matmul %0, %1, %cst {dimension_numbers = #tpu.dot_dimension_numbers<[1], [0], [0], [1], [0, 0, 1, 1], [], []>} : vector<2x2048xbf16>, vector<2048x1024xbf16>, vector<2x1024xf32> -> vector<2x1024xf32>
    %c0_3 = arith.constant 0 : index
    %c0_4 = arith.constant 0 : index
    %3 = vector.load %arg2[%c0_3, %c0_4] : memref<1x1024xf32, #tpu.memory_space<vmem>>, vector<1x1024xf32>
    %4 = vector.broadcast %3 : vector<1x1024xf32> to vector<2x1024xf32>
    %5 = arith.addf %2, %4 : vector<2x1024xf32>
    %cst_5 = arith.constant 0.000000e+00 : f32
    %6 = vector.broadcast %cst_5 : f32 to vector<2x1024xf32>
    %7 = arith.cmpf oge, %5, %6 : vector<2x1024xf32>
    %cst_6 = arith.constant 0.00999999977 : f32
    %8 = vector.broadcast %cst_6 : f32 to vector<2x1024xf32>
    %9 = arith.mulf %8, %5 : vector<2x1024xf32>
    %10 = arith.select %7, %5, %9 : vector<2x1024xi1>, vector<2x1024xf32>
    %11 = arith.truncf %10 : vector<2x1024xf32> to vector<2x1024xbf16>
    %c0_7 = arith.constant 0 : index
    %c0_8 = arith.constant 0 : index
    %12 = vector.load %arg3[%c0_7, %c0_8] : memref<1024x512xbf16, #tpu.memory_space<vmem>>, vector<1024x512xbf16>
    %cst_9 = arith.constant dense<0.000000e+00> : vector<2x512xf32>
    %13 = tpu.matmul %11, %12, %cst_9 {dimension_numbers = #tpu.dot_dimension_numbers<[1], [0], [0], [1], [0, 0, 1, 1], [], []>} : vector<2x1024xbf16>, vector<1024x512xbf16>, vector<2x512xf32> -> vector<2x512xf32>
    %c0_10 = arith.constant 0 : index
    %c0_11 = arith.constant 0 : index
    %14 = vector.load %arg4[%c0_10, %c0_11] : memref<1x512xf32, #tpu.memory_space<vmem>>, vector<1x512xf32>
    %15 = vector.broadcast %14 : vector<1x512xf32> to vector<2x512xf32>
    %16 = arith.addf %13, %15 : vector<2x512xf32>
    %cst_12 = arith.constant 0.000000e+00 : f32
    %17 = vector.broadcast %cst_12 : f32 to vector<2x512xf32>
    %18 = arith.cmpf oge, %16, %17 : vector<2x512xf32>
    %cst_13 = arith.constant 0.00999999977 : f32
    %19 = vector.broadcast %cst_13 : f32 to vector<2x512xf32>
    %20 = arith.mulf %19, %16 : vector<2x512xf32>
    %21 = arith.select %18, %16, %20 : vector<2x512xi1>, vector<2x512xf32>
    %22 = arith.truncf %21 : vector<2x512xf32> to vector<2x512xbf16>
    %c0_14 = arith.constant 0 : index
    %c0_15 = arith.constant 0 : index
    %23 = vector.load %arg5[%c0_14, %c0_15] : memref<512x256xbf16, #tpu.memory_space<vmem>>, vector<512x256xbf16>
    %cst_16 = arith.constant dense<0.000000e+00> : vector<2x256xf32>
    %24 = tpu.matmul %22, %23, %cst_16 {dimension_numbers = #tpu.dot_dimension_numbers<[1], [0], [0], [1], [0, 0, 1, 1], [], []>} : vector<2x512xbf16>, vector<512x256xbf16>, vector<2x256xf32> -> vector<2x256xf32>
    %c0_17 = arith.constant 0 : index
    %c0_18 = arith.constant 0 : index
    %25 = vector.load %arg6[%c0_17, %c0_18] : memref<1x256xf32, #tpu.memory_space<vmem>>, vector<1x256xf32>
    %26 = vector.broadcast %25 : vector<1x256xf32> to vector<2x256xf32>
    %27 = arith.addf %24, %26 : vector<2x256xf32>
    %cst_19 = arith.constant 0.000000e+00 : f32
    %28 = vector.broadcast %cst_19 : f32 to vector<2x256xf32>
    %29 = arith.cmpf oge, %27, %28 : vector<2x256xf32>
    %cst_20 = arith.constant 0.00999999977 : f32
    %30 = vector.broadcast %cst_20 : f32 to vector<2x256xf32>
    %31 = arith.mulf %30, %27 : vector<2x256xf32>
    %32 = arith.select %29, %27, %31 : vector<2x256xi1>, vector<2x256xf32>
    %33 = arith.truncf %32 : vector<2x256xf32> to vector<2x256xbf16>
    %c0_21 = arith.constant 0 : index
    %c0_22 = arith.constant 0 : index
    %34 = vector.load %arg7[%c0_21, %c0_22] : memref<256x128xbf16, #tpu.memory_space<vmem>>, vector<256x128xbf16>
    %cst_23 = arith.constant dense<0.000000e+00> : vector<2x128xf32>
    %35 = tpu.matmul %33, %34, %cst_23 {dimension_numbers = #tpu.dot_dimension_numbers<[1], [0], [0], [1], [0, 0, 1, 1], [], []>} : vector<2x256xbf16>, vector<256x128xbf16>, vector<2x128xf32> -> vector<2x128xf32>
    %c0_24 = arith.constant 0 : index
    %c0_25 = arith.constant 0 : index
    %36 = vector.load %arg8[%c0_24, %c0_25] : memref<1x128xf32, #tpu.memory_space<vmem>>, vector<1x128xf32>
    %37 = vector.broadcast %36 : vector<1x128xf32> to vector<2x128xf32>
    %38 = arith.addf %35, %37 : vector<2x128xf32>
    %cst_26 = arith.constant 0.000000e+00 : f32
    %39 = vector.broadcast %cst_26 : f32 to vector<2x128xf32>
    %40 = arith.cmpf oge, %38, %39 : vector<2x128xf32>
    %cst_27 = arith.constant 0.00999999977 : f32
    %41 = vector.broadcast %cst_27 : f32 to vector<2x128xf32>
    %42 = arith.mulf %41, %38 : vector<2x128xf32>
    %43 = arith.select %40, %38, %42 : vector<2x128xi1>, vector<2x128xf32>
    %44 = arith.truncf %43 : vector<2x128xf32> to vector<2x128xbf16>
    %c0_28 = arith.constant 0 : index
    %c0_29 = arith.constant 0 : index
    %45 = vector.load %arg9[%c0_28, %c0_29] : memref<128x128xbf16, #tpu.memory_space<vmem>>, vector<128x128xbf16>
    %cst_30 = arith.constant dense<0.000000e+00> : vector<2x128xf32>
    %46 = tpu.matmul %44, %45, %cst_30 {dimension_numbers = #tpu.dot_dimension_numbers<[1], [0], [0], [1], [0, 0, 1, 1], [], []>} : vector<2x128xbf16>, vector<128x128xbf16>, vector<2x128xf32> -> vector<2x128xf32>
    %cst_31 = arith.constant dense<0.000000e+00> : vector<128xf32>
    %47 = vector.multi_reduction <add>, %46, %cst_31 [0] : vector<2x128xf32> to vector<128xf32>
    %48 = vector.shape_cast %47 : vector<128xf32> to vector<1x128xf32>
    %cst_32 = arith.constant 2.000000e+00 : f32
    %49 = vector.broadcast %cst_32 : f32 to vector<1x128xf32>
    %50 = arith.divf %48, %49 : vector<1x128xf32>
    %51 = vector.broadcast %50 : vector<1x128xf32> to vector<2x128xf32>
    %52 = arith.subf %46, %51 : vector<2x128xf32>
    %53 = arith.mulf %52, %52 : vector<2x128xf32>
    %cst_33 = arith.constant dense<0.000000e+00> : vector<128xf32>
    %54 = vector.multi_reduction <add>, %53, %cst_33 [0] : vector<2x128xf32> to vector<128xf32>
    %55 = vector.shape_cast %54 : vector<128xf32> to vector<1x128xf32>
    %cst_34 = arith.constant 2.000000e+00 : f32
    %56 = vector.broadcast %cst_34 : f32 to vector<1x128xf32>
    %57 = arith.divf %55, %56 : vector<1x128xf32>
    %58 = vector.broadcast %50 : vector<1x128xf32> to vector<2x128xf32>
    %59 = arith.subf %46, %58 : vector<2x128xf32>
    %cst_35 = arith.constant 9.99999974E-6 : f32
    %60 = vector.broadcast %cst_35 : f32 to vector<1x128xf32>
    %61 = arith.addf %57, %60 : vector<1x128xf32>
    %62 = math.rsqrt %61 : vector<1x128xf32>
    %63 = vector.broadcast %62 : vector<1x128xf32> to vector<2x128xf32>
    %64 = arith.mulf %59, %63 : vector<2x128xf32>
    %c0_36 = arith.constant 0 : index
    %c0_37 = arith.constant 0 : index
    %65 = vector.load %arg10[%c0_36, %c0_37] : memref<1x128xf32, #tpu.memory_space<vmem>>, vector<1x128xf32>
    %66 = vector.broadcast %65 : vector<1x128xf32> to vector<2x128xf32>
    %67 = arith.mulf %64, %66 : vector<2x128xf32>
    %c0_38 = arith.constant 0 : index
    %c0_39 = arith.constant 0 : index
    %68 = vector.load %arg11[%c0_38, %c0_39] : memref<1x128xf32, #tpu.memory_space<vmem>>, vector<1x128xf32>
    %69 = vector.broadcast %68 : vector<1x128xf32> to vector<2x128xf32>
    %70 = arith.addf %67, %69 : vector<2x128xf32>
    %c0_40 = arith.constant 0 : index
    %c0_41 = arith.constant 0 : index
    %71 = vector.load %arg12[%c0_40, %c0_41] : memref<128x1xf32, #tpu.memory_space<vmem>>, vector<128x1xf32>
    %cst_42 = arith.constant dense<0.000000e+00> : vector<2x1xf32>
    %72 = tpu.matmul %70, %71, %cst_42 {dimension_numbers = #tpu.dot_dimension_numbers<[1], [0], [0], [1], [0, 0, 1, 1], [], []>} : vector<2x128xf32>, vector<128x1xf32>, vector<2x1xf32> -> vector<2x1xf32>
    %c0_43 = arith.constant 0 : index
    %c0_44 = arith.constant 0 : index
    %73 = vector.load %arg13[%c0_43, %c0_44] : memref<1x1xf32, #tpu.memory_space<vmem>>, vector<1x1xf32>
    %74 = vector.broadcast %73 : vector<1x1xf32> to vector<2x1xf32>
    %75 = arith.addf %72, %74 : vector<2x1xf32>
    %cst_45 = arith.constant 0.000000e+00 : f32
    %76 = vector.broadcast %cst_45 : f32 to vector<2x1xf32>
    %77 = arith.subf %76, %75 : vector<2x1xf32>
    %78 = math.exp %77 : vector<2x1xf32>
    %cst_46 = arith.constant 1.000000e+00 : f32
    %79 = vector.broadcast %cst_46 : f32 to vector<2x1xf32>
    %80 = arith.addf %79, %78 : vector<2x1xf32>
    %81 = tpu.reciprocal %80 {approx = true} : vector<2x1xf32> -> vector<2x1xf32>
    %c0_47 = arith.constant 0 : index
    %c0_48 = arith.constant 0 : index
    %82 = vector.load %arg14[%c0_47, %c0_48] : memref<2x1xf32, #tpu.memory_space<vmem>>, vector<2x1xf32>
    tpu.vector_store %arg14[%c0_47, %c0_48], %81 {strides = array<i32>} : memref<2x1xf32, #tpu.memory_space<vmem>>, vector<2x1xf32>,
    return
  }
}

</mosaic_0001>

<llo_original>
// kernel: discriminator_forward.2
$region0: #{discriminator_forward.2}
  #allocation0 [shape = 'u32[]', space=smem, size = 0x4, offset = 0x4, fixed_abs, tag = 'smem constant byte address 0x4 - core index']
  #allocation1 [shape = 'u32[144,128]{1,0:T(1,128)}', space=vmem, size = 0x12000, scoped, tag = 'internal scratch']
  %s0 = inlined_call_operand.vmem [shape: bf16[512,128], index: 0, kind: input, shape index: {}]
  %s1 = inlined_call_operand.vmem [shape: bf16[128,8], index: 1, kind: input, shape index: {}]
  %s2 = inlined_call_operand.vmem [shape: f32[1,8], index: 2, kind: input, shape index: {}]
  %s3 = inlined_call_operand.vmem [shape: bf16[512,8], index: 3, kind: output, shape index: {}]
  %s4 = sld [smem:[#allocation0]]
  $region22: #{discriminator_forward.2} parent=0
    _
  %s6 = ssub.s32 1, %s4
  %s7 = scalar_select 0, %s6, %s4
  // Predicated region
  $region2: #{discriminator_forward.2} parent=0 // pred_check
    _
  $region3: #{discriminator_forward.2} parent=0 // pred_check_branch
    %9 = sbr.rel (0) target = $region5
  $region4: #{discriminator_forward.2} parent=0 // pred_region
    _
  $region5: #{discriminator_forward.2} parent=0 // pred_fallthru
    _
  // Predicated region
  $region6: #{discriminator_forward.2} parent=0 // pred_check
    _
  $region7: #{discriminator_forward.2} parent=0 // pred_check_branch
    %11 = sbr.rel (0) target = $region9
  $region8: #{discriminator_forward.2} parent=0 // pred_region
    _
  $region9: #{discriminator_forward.2} parent=0 // pred_fallthru
    _
  // Predicated region
  $region10: #{discriminator_forward.2} parent=0 // pred_check
    _
  $region11: #{discriminator_forward.2} parent=0 // pred_check_branch
    %13 = sbr.rel (0) target = $region13
  $region12: #{discriminator_forward.2} parent=0 // pred_region
    _
  $region13: #{discriminator_forward.2} parent=0 // pred_fallthru
    _
  %v15 = vld [vmem:[%s0] sm:$0xf]
  %v16 = vld [vmem:[%s0 + $0x4] sm:$0xf]
  %v17 = vld [vmem:[%s0 + $0x8] sm:$0xf]
  %v18 = vld [vmem:[%s0 + $0xc] sm:$0xf]
  %v19 = vld [vmem:[%s0 + $0x10] sm:$0xf]
  %v20 = vld [vmem:[%s0 + $0x14] sm:$0xf]
  %v21 = vld [vmem:[%s0 + $0x18] sm:$0xf]
  %v22 = vld [vmem:[%s0 + $0x1c] sm:$0xf]
  %v23 = vld [vmem:[%s0 + $0x20] sm:$0xf]
  %v24 = vld [vmem:[%s0 + $0x24] sm:$0xf]
  %v25 = vld [vmem:[%s0 + $0x28] sm:$0xf]
  %v26 = vld [vmem:[%s0 + $0x2c] sm:$0xf]
  %v27 = vld [vmem:[%s0 + $0x30] sm:$0xf]
  %v28 = vld [vmem:[%s0 + $0x34] sm:$0xf]
  %v29 = vld [vmem:[%s0 + $0x38] sm:$0xf]
  %v30 = vld [vmem:[%s0 + $0x3c] sm:$0xf]
  %v31 = vld [vmem:[%s0 + $0x40] sm:$0xf]
  %v32 = vld [vmem:[%s0 + $0x44] sm:$0xf]
  %v33 = vld [vmem:[%s0 + $0x48] sm:$0xf]
  %v34 = vld [vmem:[%s0 + $0x4c] sm:$0xf]
  %v35 = vld [vmem:[%s0 + $0x50] sm:$0xf]
  %v36 = vld [vmem:[%s0 + $0x54] sm:$0xf]
  %v37 = vld [vmem:[%s0 + $0x58] sm:$0xf]
  %v38 = vld [vmem:[%s0 + $0x5c] sm:$0xf]
  %v39 = vld [vmem:[%s0 + $0x60] sm:$0xf]
  %v40 = vld [vmem:[%s0 + $0x64] sm:$0xf]
  %v41 = vld [vmem:[%s0 + $0x68] sm:$0xf]
  %v42 = vld [vmem:[%s0 + $0x6c] sm:$0xf]
  %v43 = vld [vmem:[%s0 + $0x70] sm:$0xf]
  %v44 = vld [vmem:[%s0 + $0x74] sm:$0xf]
  %v45 = vld [vmem:[%s0 + $0x78] sm:$0xf]
  %v46 = vld [vmem:[%s0 + $0x7c] sm:$0xf]
  %v47 = vld [vmem:[%s0 + $0x80] sm:$0xf]
  %v48 = vld [vmem:[%s0 + $0x84] sm:$0xf]
  %v49 = vld [vmem:[%s0 + $0x88] sm:$0xf]
  %v50 = vld [vmem:[%s0 + $0x8c] sm:$0xf]
  %v51 = vld [vmem:[%s0 + $0x90] sm:$0xf]
  %v52 = vld [vmem:[%s0 + $0x94] sm:$0xf]
  %v53 = vld [vmem:[%s0 + $0x98] sm:$0xf]
  %v54 = vld [vmem:[%s0 + $0x9c] sm:$0xf]
  %v55 = vld [vmem:[%s0 + $0xa0] sm:$0xf]
  %v56 = vld [vmem:[%s0 + $0xa4] sm:$0xf]
  %v57 = vld [vmem:[%s0 + $0xa8] sm:$0xf]
  %v58 = vld [vmem:[%s0 + $0xac] sm:$0xf]
  %v59 = vld [vmem:[%s0 + $0xb0] sm:$0xf]
  %v60 = vld [vmem:[%s0 + $0xb4] sm:$0xf]
  %v61 = vld [vmem:[%s0 + $0xb8] sm:$0xf]
  %v62 = vld [vmem:[%s0 + $0xbc] sm:$0xf]
  %v63 = vld [vmem:[%s0 + $0xc0] sm:$0xf]
  %v64 = vld [vmem:[%s0 + $0xc4] sm:$0xf]
  %v65 = vld [vmem:[%s0 + $0xc8] sm:$0xf]
  %v66 = vld [vmem:[%s0 + $0xcc] sm:$0xf]
  %v67 = vld [vmem:[%s0 + $0xd0] sm:$0xf]
  %v68 = vld [vmem:[%s0 + $0xd4] sm:$0xf]
  %v69 = vld [vmem:[%s0 + $0xd8] sm:$0xf]
  %v70 = vld [vmem:[%s0 + $0xdc] sm:$0xf]
  %v71 = vld [vmem:[%s0 + $0xe0] sm:$0xf]
  %v72 = vld [vmem:[%s0 + $0xe4] sm:$0xf]
  %v73 = vld [vmem:[%s0 + $0xe8] sm:$0xf]
  %v74 = vld [vmem:[%s0 + $0xec] sm:$0xf]
  %v75 = vld [vmem:[%s0 + $0xf0] sm:$0xf]
  %v76 = vld [vmem:[%s0 + $0xf4] sm:$0xf]
  %v77 = vld [vmem:[%s0 + $0xf8] sm:$0xf]
  %v78 = vld [vmem:[%s0 + $0xfc] sm:$0xf]
  %v79 = vld [vmem:[%s1] sm:$0xf]
  %v80 = vld [vmem:[%s1 + $0x4] sm:$0xf]
  %v81 = vld [vmem:[%s1 + $0x8] sm:$0xf]
  %v82 = vld [vmem:[%s1 + $0xc] sm:$0xf]
  %v83 = vld [vmem:[%s1 + $0x10] sm:$0xf]
  %v84 = vld [vmem:[%s1 + $0x14] sm:$0xf]
  %v85 = vld [vmem:[%s1 + $0x18] sm:$0xf]
  %v86 = vld [vmem:[%s1 + $0x1c] sm:$0xf]
  %v87 = vld [vmem:[%s1 + $0x20] sm:$0xf]
  %v88 = vld [vmem:[%s1 + $0x24] sm:$0xf]
  %v89 = vld [vmem:[%s1 + $0x28] sm:$0xf]
  %v90 = vld [vmem:[%s1 + $0x2c] sm:$0xf]
  %v91 = vld [vmem:[%s1 + $0x30] sm:$0xf]
  %v92 = vld [vmem:[%s1 + $0x34] sm:$0xf]
  %v93 = vld [vmem:[%s1 + $0x38] sm:$0xf]
  %v94 = vld [vmem:[%s1 + $0x3c] sm:$0xf]
  %v95 = vld [vmem:[%s2] sm:$0x1]
  %v97 = vlaneseq
  %v98 = vshrl.u32 %v97, 7
  %v99 = vsub.s32 0, %v98
  %v100 = vrot.slane %v95, %v99
  %v166 = vunpack.c.l.b16 %v15
  %v167 = vunpack.c.l.b16 %v16
  %v168 = vunpack.c.l.b16 %v17
  %v169 = vunpack.c.l.b16 %v18
  %v170 = vunpack.c.l.b16 %v19
  %v171 = vunpack.c.l.b16 %v20
  %v172 = vunpack.c.l.b16 %v21
  %v173 = vunpack.c.l.b16 %v22
  %v174 = vunpack.c.l.b16 %v23
  %v175 = vunpack.c.l.b16 %v24
  %v176 = vunpack.c.l.b16 %v25
  %v177 = vunpack.c.l.b16 %v26
  %v178 = vunpack.c.l.b16 %v27
  %v179 = vunpack.c.l.b16 %v28
  %v180 = vunpack.c.l.b16 %v29
  %v181 = vunpack.c.l.b16 %v30
  %v182 = vunpack.c.l.b16 %v31
  %v183 = vunpack.c.l.b16 %v32
  %v184 = vunpack.c.l.b16 %v33
  %v185 = vunpack.c.l.b16 %v34
  %v186 = vunpack.c.l.b16 %v35
  %v187 = vunpack.c.l.b16 %v36
  %v188 = vunpack.c.l.b16 %v37
  %v189 = vunpack.c.l.b16 %v38
  %v190 = vunpack.c.l.b16 %v39
  %v191 = vunpack.c.l.b16 %v40
  %v192 = vunpack.c.l.b16 %v41
  %v193 = vunpack.c.l.b16 %v42
  %v194 = vunpack.c.l.b16 %v43
  %v195 = vunpack.c.l.b16 %v44
  %v196 = vunpack.c.l.b16 %v45
  %v197 = vunpack.c.l.b16 %v46
  %v198 = vunpack.c.l.b16 %v47
  %v199 = vunpack.c.l.b16 %v48
  %v200 = vunpack.c.l.b16 %v49
  %v201 = vunpack.c.l.b16 %v50
  %v202 = vunpack.c.l.b16 %v51
  %v203 = vunpack.c.l.b16 %v52
  %v204 = vunpack.c.l.b16 %v53
  %v205 = vunpack.c.l.b16 %v54
  %v206 = vunpack.c.l.b16 %v55
  %v207 = vunpack.c.l.b16 %v56
  %v208 = vunpack.c.l.b16 %v57
  %v209 = vunpack.c.l.b16 %v58
  %v210 = vunpack.c.l.b16 %v59
  %v211 = vunpack.c.l.b16 %v60
  %v212 = vunpack.c.l.b16 %v61
  %v213 = vunpack.c.l.b16 %v62
  %v214 = vunpack.c.l.b16 %v63
  %v215 = vunpack.c.l.b16 %v64
  %v216 = vunpack.c.l.b16 %v65
  %v217 = vunpack.c.l.b16 %v66
  %v218 = vunpack.c.l.b16 %v67
  %v219 = vunpack.c.l.b16 %v68
  %v220 = vunpack.c.l.b16 %v69
  %v221 = vunpack.c.l.b16 %v70
  %v222 = vunpack.c.l.b16 %v71
  %v223 = vunpack.c.l.b16 %v72
  %v224 = vunpack.c.l.b16 %v73
  %v225 = vunpack.c.l.b16 %v74
  %v226 = vunpack.c.l.b16 %v75
  %v227 = vunpack.c.l.b16 %v76
  %v228 = vunpack.c.l.b16 %v77
  %v229 = vunpack.c.l.b16 %v78
  %v230 = vpack.c.b16 %v167, %v166
  %v231 = vpack.c.b16 %v169, %v168
  %v232 = vpack.c.b16 %v171, %v170
  %v233 = vpack.c.b16 %v173, %v172
  %v234 = vpack.c.b16 %v175, %v174
  %v235 = vpack.c.b16 %v177, %v176
  %v236 = vpack.c.b16 %v179, %v178
  %v237 = vpack.c.b16 %v181, %v180
  %v238 = vpack.c.b16 %v183, %v182
  %v239 = vpack.c.b16 %v185, %v184
  %v240 = vpack.c.b16 %v187, %v186
  %v241 = vpack.c.b16 %v189, %v188
  %v242 = vpack.c.b16 %v191, %v190
  %v243 = vpack.c.b16 %v193, %v192
  %v244 = vpack.c.b16 %v195, %v194
  %v245 = vpack.c.b16 %v197, %v196
  %v246 = vpack.c.b16 %v199, %v198
  %v247 = vpack.c.b16 %v201, %v200
  %v248 = vpack.c.b16 %v203, %v202
  %v249 = vpack.c.b16 %v205, %v204
  %v250 = vpack.c.b16 %v207, %v206
  %v251 = vpack.c.b16 %v209, %v208
  %v252 = vpack.c.b16 %v211, %v210
  %v253 = vpack.c.b16 %v213, %v212
  %v254 = vpack.c.b16 %v215, %v214
  %v255 = vpack.c.b16 %v217, %v216
  %v256 = vpack.c.b16 %v219, %v218
  %v257 = vpack.c.b16 %v221, %v220
  %v258 = vpack.c.b16 %v223, %v222
  %v259 = vpack.c.b16 %v225, %v224
  %v260 = vpack.c.b16 %v227, %v226
  %v261 = vpack.c.b16 %v229, %v228
  %v310 = vunpack.c.l.b16 %v79
  %v311 = vunpack.c.l.b16 %v80
  %v312 = vunpack.c.l.b16 %v81
  %v313 = vunpack.c.l.b16 %v82
  %v314 = vunpack.c.l.b16 %v83
  %v315 = vunpack.c.l.b16 %v84
  %v316 = vunpack.c.l.b16 %v85
  %v317 = vunpack.c.l.b16 %v86
  %v318 = vunpack.c.l.b16 %v87
  %v319 = vunpack.c.l.b16 %v88
  %v320 = vunpack.c.l.b16 %v89
  %v321 = vunpack.c.l.b16 %v90
  %v322 = vunpack.c.l.b16 %v91
  %v323 = vunpack.c.l.b16 %v92
  %v324 = vunpack.c.l.b16 %v93
  %v325 = vunpack.c.l.b16 %v94
  %v326 = vpack.c.b16 %v311, %v310
  %v327 = vpack.c.b16 %v313, %v312
  %v328 = vpack.c.b16 %v315, %v314
  %v329 = vpack.c.b16 %v317, %v316
  %v330 = vpack.c.b16 %v319, %v318
  %v331 = vpack.c.b16 %v321, %v320
  %v332 = vpack.c.b16 %v323, %v322
  %v333 = vpack.c.b16 %v325, %v324
  %342 = vmatprep.subr.bf16.mxu0 0
  %343 = vmatpush1.bf16.msra.mxu0 %v326
  %344 = vmatprep.subr.bf16.mxu0 0
  %345 = vmatpush1.bf16.msra.mxu0 %v327
  %346 = vmatprep.subr.bf16.mxu0 0
  %347 = vmatpush1.bf16.msra.mxu0 %v328
  %348 = vmatprep.subr.bf16.mxu0 0
  %349 = vmatpush1.bf16.msra.mxu0 %v329
  %350 = vmatprep.subr.bf16.mxu0 0
  %351 = vmatpush1.bf16.msra.mxu0 %v330
  %352 = vmatprep.subr.bf16.mxu0 0
  %353 = vmatpush1.bf16.msra.mxu0 %v331
  %354 = vmatprep.subr.bf16.mxu0 0
  %355 = vmatpush1.bf16.msra.mxu0 %v332
  %356 = vmatprep.subr.bf16.mxu0 0
  %357 = vmatpush1.bf16.msra.mxu0 %v333
  %358 = vmatprep.subr.bf16.mxu0 0
  %359 = vmatpush1.bf16.msra.mxu0 0
  %360 = vmatprep.subr.bf16.mxu0 0
  %361 = vmatpush1.bf16.msra.mxu0 0
  %362 = vmatprep.subr.bf16.mxu0 0
  %363 = vmatpush1.bf16.msra.mxu0 0
  %364 = vmatprep.subr.bf16.mxu0 0
  %365 = vmatpush1.bf16.msra.mxu0 0
  %366 = vmatprep.subr.bf16.mxu0 0
  %367 = vmatpush1.bf16.msra.mxu0 0
  %368 = vmatprep.subr.bf16.mxu0 0
  %369 = vmatpush1.bf16.msra.mxu0 0
  %370 = vmatprep.subr.bf16.mxu0 0
  %371 = vmatpush1.bf16.msra.mxu0 0
  %372 = vmatprep.subr.bf16.mxu0 0
  %373 = vmatpush1.bf16.msra.mxu0 0
  %374 = vmatprep.mubr.bf16.mxu0 0
  %375 = vmatmul.mubr.bf16.gmra.mrb[0].mxu0 %v230
  %v376 = vpop.f32.mrb[0].mxu0
  %v377 = vadd.f32 %v100, %v376
  %v378 = vpop.f32.mrb[0].mxu0
  %v379 = vpop.f32.mrb[0].mxu0
  %v380 = vadd.f32 %v100, %v379
  %v381 = vpop.f32.mrb[0].mxu0
  %382 = vmatprep.mubr.bf16.mxu0 0
  %383 = vmatmul.mubr.bf16.gmra.mrb[0].mxu0 %v231
  %v384 = vpop.f32.mrb[0].mxu0
  %v385 = vadd.f32 %v100, %v384
  %v386 = vpop.f32.mrb[0].mxu0
  %v387 = vpop.f32.mrb[0].mxu0
  %v388 = vadd.f32 %v100, %v387
  %v389 = vpop.f32.mrb[0].mxu0
  %390 = vmatprep.mubr.bf16.mxu0 0
  %391 = vmatmul.mubr.bf16.gmra.mrb[0].mxu0 %v232
  %v392 = vpop.f32.mrb[0].mxu0
  %v393 = vadd.f32 %v100, %v392
  %v394 = vpop.f32.mrb[0].mxu0
  %v395 = vpop.f32.mrb[0].mxu0
  %v396 = vadd.f32 %v100, %v395
  %v397 = vpop.f32.mrb[0].mxu0
  %398 = vmatprep.mubr.bf16.mxu0 0
  %399 = vmatmul.mubr.bf16.gmra.mrb[0].mxu0 %v233
  %v400 = vpop.f32.mrb[0].mxu0
  %v401 = vadd.f32 %v100, %v400
  %v402 = vpop.f32.mrb[0].mxu0
  %v403 = vpop.f32.mrb[0].mxu0
  %v404 = vadd.f32 %v100, %v403
  %v405 = vpop.f32.mrb[0].mxu0
  %406 = vmatprep.mubr.bf16.mxu0 0
  %407 = vmatmul.mubr.bf16.gmra.mrb[0].mxu0 %v234
  %v408 = vpop.f32.mrb[0].mxu0
  %v409 = vadd.f32 %v100, %v408
  %v410 = vpop.f32.mrb[0].mxu0
  %v411 = vpop.f32.mrb[0].mxu0
  %v412 = vadd.f32 %v100, %v411
  %v413 = vpop.f32.mrb[0].mxu0
  %414 = vmatprep.mubr.bf16.mxu0 0
  %415 = vmatmul.mubr.bf16.gmra.mrb[0].mxu0 %v235
  %v416 = vpop.f32.mrb[0].mxu0
  %v417 = vadd.f32 %v100, %v416
  %v418 = vpop.f32.mrb[0].mxu0
  %v419 = vpop.f32.mrb[0].mxu0
  %v420 = vadd.f32 %v100, %v419
  %v421 = vpop.f32.mrb[0].mxu0
  %422 = vmatprep.mubr.bf16.mxu0 0
  %423 = vmatmul.mubr.bf16.gmra.mrb[0].mxu0 %v236
  %v424 = vpop.f32.mrb[0].mxu0
  %v425 = vadd.f32 %v100, %v424
  %v426 = vpop.f32.mrb[0].mxu0
  %v427 = vpop.f32.mrb[0].mxu0
  %v428 = vadd.f32 %v100, %v427
  %v429 = vpop.f32.mrb[0].mxu0
  %430 = vmatprep.mubr.bf16.mxu0 0
  %431 = vmatmul.mubr.bf16.gmra.mrb[0].mxu0 %v237
  %v432 = vpop.f32.mrb[0].mxu0
  %v433 = vadd.f32 %v100, %v432
  %v434 = vpop.f32.mrb[0].mxu0
  %v435 = vpop.f32.mrb[0].mxu0
  %v436 = vadd.f32 %v100, %v435
  %v437 = vpop.f32.mrb[0].mxu0
  %438 = vmatprep.mubr.bf16.mxu0 0
  %439 = vmatmul.mubr.bf16.gmra.mrb[0].mxu0 %v238
  %v440 = vpop.f32.mrb[0].mxu0
  %v441 = vadd.f32 %v100, %v440
  %v442 = vpop.f32.mrb[0].mxu0
  %v443 = vpop.f32.mrb[0].mxu0
  %v444 = vadd.f32 %v100, %v443
  %v445 = vpop.f32.mrb[0].mxu0
  %446 = vmatprep.mubr.bf16.mxu0 0
  %447 = vmatmul.mubr.bf16.gmra.mrb[0].mxu0 %v239
  %v448 = vpop.f32.mrb[0].mxu0
  %v449 = vadd.f32 %v100, %v448
  %v450 = vpop.f32.mrb[0].mxu0
  %v451 = vpop.f32.mrb[0].mxu0
  %v452 = vadd.f32 %v100, %v451
  %v453 = vpop.f32.mrb[0].mxu0
  %454 = vmatprep.mubr.bf16.mxu0 0
  %455 = vmatmul.mubr.bf16.gmra.mrb[0].mxu0 %v240
  %v456 = vpop.f32.mrb[0].mxu0
  %v457 = vadd.f32 %v100, %v456
  %v458 = vpop.f32.mrb[0].mxu0
  %v459 = vpop.f32.mrb[0].mxu0
  %v460 = vadd.f32 %v100, %v459
  %v461 = vpop.f32.mrb[0].mxu0
  %462 = vmatprep.mubr.bf16.mxu0 0
  %463 = vmatmul.mubr.bf16.gmra.mrb[0].mxu0 %v241
  %v464 = vpop.f32.mrb[0].mxu0
  %v465 = vadd.f32 %v100, %v464
  %v466 = vpop.f32.mrb[0].mxu0
  %v467 = vpop.f32.mrb[0].mxu0
  %v468 = vadd.f32 %v100, %v467
  %v469 = vpop.f32.mrb[0].mxu0
  %470 = vmatprep.mubr.bf16.mxu0 0
  %471 = vmatmul.mubr.bf16.gmra.mrb[0].mxu0 %v242
  %v472 = vpop.f32.mrb[0].mxu0
  %v473 = vadd.f32 %v100, %v472
  %v474 = vpop.f32.mrb[0].mxu0
  %v475 = vpop.f32.mrb[0].mxu0
  %v476 = vadd.f32 %v100, %v475
  %v477 = vpop.f32.mrb[0].mxu0
  %478 = vmatprep.mubr.bf16.mxu0 0
  %479 = vmatmul.mubr.bf16.gmra.mrb[0].mxu0 %v243
  %v480 = vpop.f32.mrb[0].mxu0
  %v481 = vadd.f32 %v100, %v480
  %v482 = vpop.f32.mrb[0].mxu0
  %v483 = vpop.f32.mrb[0].mxu0
  %v484 = vadd.f32 %v100, %v483
  %v485 = vpop.f32.mrb[0].mxu0
  %486 = vmatprep.mubr.bf16.mxu0 0
  %487 = vmatmul.mubr.bf16.gmra.mrb[0].mxu0 %v244
  %v488 = vpop.f32.mrb[0].mxu0
  %v489 = vadd.f32 %v100, %v488
  %v490 = vpop.f32.mrb[0].mxu0
  %v491 = vpop.f32.mrb[0].mxu0
  %v492 = vadd.f32 %v100, %v491
  %v493 = vpop.f32.mrb[0].mxu0
  %494 = vmatprep.mubr.bf16.mxu0 0
  %495 = vmatmul.mubr.bf16.gmra.mrb[0].mxu0 %v245
  %v496 = vpop.f32.mrb[0].mxu0
  %v497 = vadd.f32 %v100, %v496
  %v498 = vpop.f32.mrb[0].mxu0
  %v499 = vpop.f32.mrb[0].mxu0
  %v500 = vadd.f32 %v100, %v499
  %v501 = vpop.f32.mrb[0].mxu0
  %502 = vmatprep.mubr.bf16.mxu0 0
  %503 = vmatmul.mubr.bf16.gmra.mrb[0].mxu0 %v246
  %v504 = vpop.f32.mrb[0].mxu0
  %v505 = vadd.f32 %v100, %v504
  %v506 = vpop.f32.mrb[0].mxu0
  %v507 = vpop.f32.mrb[0].mxu0
  %v508 = vadd.f32 %v100, %v507
  %v509 = vpop.f32.mrb[0].mxu0
  %510 = vmatprep.mubr.bf16.mxu0 0
  %511 = vmatmul.mubr.bf16.gmra.mrb[0].mxu0 %v247
  %v512 = vpop.f32.mrb[0].mxu0
  %v513 = vadd.f32 %v100, %v512
  %v514 = vpop.f32.mrb[0].mxu0
  %v515 = vpop.f32.mrb[0].mxu0
  %v516 = vadd.f32 %v100, %v515
  %v517 = vpop.f32.mrb[0].mxu0
  %518 = vmatprep.mubr.bf16.mxu0 0
  %519 = vmatmul.mubr.bf16.gmra.mrb[0].mxu0 %v248
  %v520 = vpop.f32.mrb[0].mxu0
  %v521 = vadd.f32 %v100, %v520
  %v522 = vpop.f32.mrb[0].mxu0
  %v523 = vpop.f32.mrb[0].mxu0
  %v524 = vadd.f32 %v100, %v523
  %v525 = vpop.f32.mrb[0].mxu0
  %526 = vmatprep.mubr.bf16.mxu0 0
  %527 = vmatmul.mubr.bf16.gmra.mrb[0].mxu0 %v249
  %v528 = vpop.f32.mrb[0].mxu0
  %v529 = vadd.f32 %v100, %v528
  %v530 = vpop.f32.mrb[0].mxu0
  %v531 = vpop.f32.mrb[0].mxu0
  %v532 = vadd.f32 %v100, %v531
  %v533 = vpop.f32.mrb[0].mxu0
  %534 = vmatprep.mubr.bf16.mxu0 0
  %535 = vmatmul.mubr.bf16.gmra.mrb[0].mxu0 %v250
  %v536 = vpop.f32.mrb[0].mxu0
  %v537 = vadd.f32 %v100, %v536
  %v538 = vpop.f32.mrb[0].mxu0
  %v539 = vpop.f32.mrb[0].mxu0
  %v540 = vadd.f32 %v100, %v539
  %v541 = vpop.f32.mrb[0].mxu0
  %542 = vmatprep.mubr.bf16.mxu0 0
  %543 = vmatmul.mubr.bf16.gmra.mrb[0].mxu0 %v251
  %v544 = vpop.f32.mrb[0].mxu0
  %v545 = vadd.f32 %v100, %v544
  %v546 = vpop.f32.mrb[0].mxu0
  %v547 = vpop.f32.mrb[0].mxu0
  %v548 = vadd.f32 %v100, %v547
  %v549 = vpop.f32.mrb[0].mxu0
  %550 = vmatprep.mubr.bf16.mxu0 0
  %551 = vmatmul.mubr.bf16.gmra.mrb[0].mxu0 %v252
  %v552 = vpop.f32.mrb[0].mxu0
  %v553 = vadd.f32 %v100, %v552
  %v554 = vpop.f32.mrb[0].mxu0
  %v555 = vpop.f32.mrb[0].mxu0
  %v556 = vadd.f32 %v100, %v555
  %v557 = vpop.f32.mrb[0].mxu0
  %558 = vmatprep.mubr.bf16.mxu0 0
  %559 = vmatmul.mubr.bf16.gmra.mrb[0].mxu0 %v253
  %v560 = vpop.f32.mrb[0].mxu0
  %v561 = vadd.f32 %v100, %v560
  %v562 = vpop.f32.mrb[0].mxu0
  %v563 = vpop.f32.mrb[0].mxu0
  %v564 = vadd.f32 %v100, %v563
  %v565 = vpop.f32.mrb[0].mxu0
  %566 = vmatprep.mubr.bf16.mxu0 0
  %567 = vmatmul.mubr.bf16.gmra.mrb[0].mxu0 %v254
  %v568 = vpop.f32.mrb[0].mxu0
  %v569 = vadd.f32 %v100, %v568
  %v570 = vpop.f32.mrb[0].mxu0
  %v571 = vpop.f32.mrb[0].mxu0
  %v572 = vadd.f32 %v100, %v571
  %v573 = vpop.f32.mrb[0].mxu0
  %574 = vmatprep.mubr.bf16.mxu0 0
  %575 = vmatmul.mubr.bf16.gmra.mrb[0].mxu0 %v255
  %v576 = vpop.f32.mrb[0].mxu0
  %v577 = vadd.f32 %v100, %v576
  %v578 = vpop.f32.mrb[0].mxu0
  %v579 = vpop.f32.mrb[0].mxu0
  %v580 = vadd.f32 %v100, %v579
  %v581 = vpop.f32.mrb[0].mxu0
  %582 = vmatprep.mubr.bf16.mxu0 0
  %583 = vmatmul.mubr.bf16.gmra.mrb[0].mxu0 %v256
  %v584 = vpop.f32.mrb[0].mxu0
  %v585 = vadd.f32 %v100, %v584
  %v586 = vpop.f32.mrb[0].mxu0
  %v587 = vpop.f32.mrb[0].mxu0
  %v588 = vadd.f32 %v100, %v587
  %v589 = vpop.f32.mrb[0].mxu0
  %590 = vmatprep.mubr.bf16.mxu0 0
  %591 = vmatmul.mubr.bf16.gmra.mrb[0].mxu0 %v257
  %v592 = vpop.f32.mrb[0].mxu0
  %v593 = vadd.f32 %v100, %v592
  %v594 = vpop.f32.mrb[0].mxu0
  %v595 = vpop.f32.mrb[0].mxu0
  %v596 = vadd.f32 %v100, %v595
  %v597 = vpop.f32.mrb[0].mxu0
  %598 = vmatprep.mubr.bf16.mxu0 0
  %599 = vmatmul.mubr.bf16.gmra.mrb[0].mxu0 %v258
  %v600 = vpop.f32.mrb[0].mxu0
  %v601 = vadd.f32 %v100, %v600
  %v602 = vpop.f32.mrb[0].mxu0
  %v603 = vpop.f32.mrb[0].mxu0
  %v604 = vadd.f32 %v100, %v603
  %v605 = vpop.f32.mrb[0].mxu0
  %606 = vmatprep.mubr.bf16.mxu0 0
  %607 = vmatmul.mubr.bf16.gmra.mrb[0].mxu0 %v259
  %v608 = vpop.f32.mrb[0].mxu0
  %v609 = vadd.f32 %v100, %v608
  %v610 = vpop.f32.mrb[0].mxu0
  %v611 = vpop.f32.mrb[0].mxu0
  %v612 = vadd.f32 %v100, %v611
  %v613 = vpop.f32.mrb[0].mxu0
  %614 = vmatprep.mubr.bf16.mxu0 0
  %615 = vmatmul.mubr.bf16.gmra.mrb[0].mxu0 %v260
  %v616 = vpop.f32.mrb[0].mxu0
  %v617 = vadd.f32 %v100, %v616
  %v618 = vpop.f32.mrb[0].mxu0
  %v619 = vpop.f32.mrb[0].mxu0
  %v620 = vadd.f32 %v100, %v619
  %v621 = vpop.f32.mrb[0].mxu0
  %622 = vmatprep.mubr.bf16.mxu0 0
  %623 = vmatmul.mubr.bf16.gmra.mrb[0].mxu0 %v261
  %v624 = vpop.f32.mrb[0].mxu0
  %v625 = vadd.f32 %v100, %v624
  %v626 = vpop.f32.mrb[0].mxu0
  %v627 = vpop.f32.mrb[0].mxu0
  %v628 = vadd.f32 %v100, %v627
  %v629 = vpop.f32.mrb[0].mxu0
  %630 = vdwg.mxu0
  %vm631 = vcmp.ge.f32.partialorder %v377, 0.0
  %vm632 = vcmp.ge.f32.partialorder %v380, 0.0
  %vm633 = vcmp.ge.f32.partialorder %v385, 0.0
  %vm634 = vcmp.ge.f32.partialorder %v388, 0.0
  %vm635 = vcmp.ge.f32.partialorder %v393, 0.0
  %vm636 = vcmp.ge.f32.partialorder %v396, 0.0
  %vm637 = vcmp.ge.f32.partialorder %v401, 0.0
  %vm638 = vcmp.ge.f32.partialorder %v404, 0.0
  %vm639 = vcmp.ge.f32.partialorder %v409, 0.0
  %vm640 = vcmp.ge.f32.partialorder %v412, 0.0
  %vm641 = vcmp.ge.f32.partialorder %v417, 0.0
  %vm642 = vcmp.ge.f32.partialorder %v420, 0.0
  %vm643 = vcmp.ge.f32.partialorder %v425, 0.0
  %vm644 = vcmp.ge.f32.partialorder %v428, 0.0
  %vm645 = vcmp.ge.f32.partialorder %v433, 0.0
  %vm646 = vcmp.ge.f32.partialorder %v436, 0.0
  %vm647 = vcmp.ge.f32.partialorder %v441, 0.0
  %vm648 = vcmp.ge.f32.partialorder %v444, 0.0
  %vm649 = vcmp.ge.f32.partialorder %v449, 0.0
  %vm650 = vcmp.ge.f32.partialorder %v452, 0.0
  %vm651 = vcmp.ge.f32.partialorder %v457, 0.0
  %vm652 = vcmp.ge.f32.partialorder %v460, 0.0
  %vm653 = vcmp.ge.f32.partialorder %v465, 0.0
  %vm654 = vcmp.ge.f32.partialorder %v468, 0.0
  %vm655 = vcmp.ge.f32.partialorder %v473, 0.0
  %vm656 = vcmp.ge.f32.partialorder %v476, 0.0
  %vm657 = vcmp.ge.f32.partialorder %v481, 0.0
  %vm658 = vcmp.ge.f32.partialorder %v484, 0.0
  %vm659 = vcmp.ge.f32.partialorder %v489, 0.0
  %vm660 = vcmp.ge.f32.partialorder %v492, 0.0
  %vm661 = vcmp.ge.f32.partialorder %v497, 0.0
  %vm662 = vcmp.ge.f32.partialorder %v500, 0.0
  %vm663 = vcmp.ge.f32.partialorder %v505, 0.0
  %vm664 = vcmp.ge.f32.partialorder %v508, 0.0
  %vm665 = vcmp.ge.f32.partialorder %v513, 0.0
  %vm666 = vcmp.ge.f32.partialorder %v516, 0.0
  %vm667 = vcmp.ge.f32.partialorder %v521, 0.0
  %vm668 = vcmp.ge.f32.partialorder %v524, 0.0
  %vm669 = vcmp.ge.f32.partialorder %v529, 0.0
  %vm670 = vcmp.ge.f32.partialorder %v532, 0.0
  %vm671 = vcmp.ge.f32.partialorder %v537, 0.0
  %vm672 = vcmp.ge.f32.partialorder %v540, 0.0
  %vm673 = vcmp.ge.f32.partialorder %v545, 0.0
  %vm674 = vcmp.ge.f32.partialorder %v548, 0.0
  %vm675 = vcmp.ge.f32.partialorder %v553, 0.0
  %vm676 = vcmp.ge.f32.partialorder %v556, 0.0
  %vm677 = vcmp.ge.f32.partialorder %v561, 0.0
  %vm678 = vcmp.ge.f32.partialorder %v564, 0.0
  %vm679 = vcmp.ge.f32.partialorder %v569, 0.0
  %vm680 = vcmp.ge.f32.partialorder %v572, 0.0
  %vm681 = vcmp.ge.f32.partialorder %v577, 0.0
  %vm682 = vcmp.ge.f32.partialorder %v580, 0.0
  %vm683 = vcmp.ge.f32.partialorder %v585, 0.0
  %vm684 = vcmp.ge.f32.partialorder %v588, 0.0
  %vm685 = vcmp.ge.f32.partialorder %v593, 0.0
  %vm686 = vcmp.ge.f32.partialorder %v596, 0.0
  %vm687 = vcmp.ge.f32.partialorder %v601, 0.0
  %vm688 = vcmp.ge.f32.partialorder %v604, 0.0
  %vm689 = vcmp.ge.f32.partialorder %v609, 0.0
  %vm690 = vcmp.ge.f32.partialorder %v612, 0.0
  %vm691 = vcmp.ge.f32.partialorder %v617, 0.0
  %vm692 = vcmp.ge.f32.partialorder %v620, 0.0
  %vm693 = vcmp.ge.f32.partialorder %v625, 0.0
  %vm694 = vcmp.ge.f32.partialorder %v628, 0.0
  %v695 = vmul.f32 %v377, 0.01
  %v696 = vmul.f32 %v380, 0.01
  %v697 = vmul.f32 %v385, 0.01
  %v698 = vmul.f32 %v388, 0.01
  %v699 = vmul.f32 %v393, 0.01
  %v700 = vmul.f32 %v396, 0.01
  %v701 = vmul.f32 %v401, 0.01
  %v702 = vmul.f32 %v404, 0.01
  %v703 = vmul.f32 %v409, 0.01
  %v704 = vmul.f32 %v412, 0.01
  %v705 = vmul.f32 %v417, 0.01
  %v706 = vmul.f32 %v420, 0.01
  %v707 = vmul.f32 %v425, 0.01
  %v708 = vmul.f32 %v428, 0.01
  %v709 = vmul.f32 %v433, 0.01
  %v710 = vmul.f32 %v436, 0.01
  %v711 = vmul.f32 %v441, 0.01
  %v712 = vmul.f32 %v444, 0.01
  %v713 = vmul.f32 %v449, 0.01
  %v714 = vmul.f32 %v452, 0.01
  %v715 = vmul.f32 %v457, 0.01
  %v716 = vmul.f32 %v460, 0.01
  %v717 = vmul.f32 %v465, 0.01
  %v718 = vmul.f32 %v468, 0.01
  %v719 = vmul.f32 %v473, 0.01
  %v720 = vmul.f32 %v476, 0.01
  %v721 = vmul.f32 %v481, 0.01
  %v722 = vmul.f32 %v484, 0.01
  %v723 = vmul.f32 %v489, 0.01
  %v724 = vmul.f32 %v492, 0.01
  %v725 = vmul.f32 %v497, 0.01
  %v726 = vmul.f32 %v500, 0.01
  %v727 = vmul.f32 %v505, 0.01
  %v728 = vmul.f32 %v508, 0.01
  %v729 = vmul.f32 %v513, 0.01
  %v730 = vmul.f32 %v516, 0.01
  %v731 = vmul.f32 %v521, 0.01
  %v732 = vmul.f32 %v524, 0.01
  %v733 = vmul.f32 %v529, 0.01
  %v734 = vmul.f32 %v532, 0.01
  %v735 = vmul.f32 %v537, 0.01
  %v736 = vmul.f32 %v540, 0.01
  %v737 = vmul.f32 %v545, 0.01
  %v738 = vmul.f32 %v548, 0.01
  %v739 = vmul.f32 %v553, 0.01
  %v740 = vmul.f32 %v556, 0.01
  %v741 = vmul.f32 %v561, 0.01
  %v742 = vmul.f32 %v564, 0.01
  %v743 = vmul.f32 %v569, 0.01
  %v744 = vmul.f32 %v572, 0.01
  %v745 = vmul.f32 %v577, 0.01
  %v746 = vmul.f32 %v580, 0.01
  %v747 = vmul.f32 %v585, 0.01
  %v748 = vmul.f32 %v588, 0.01
  %v749 = vmul.f32 %v593, 0.01
  %v750 = vmul.f32 %v596, 0.01
  %v751 = vmul.f32 %v601, 0.01
  %v752 = vmul.f32 %v604, 0.01
  %v753 = vmul.f32 %v609, 0.01
  %v754 = vmul.f32 %v612, 0.01
  %v755 = vmul.f32 %v617, 0.01
  %v756 = vmul.f32 %v620, 0.01
  %v757 = vmul.f32 %v625, 0.01
  %v758 = vmul.f32 %v628, 0.01
  %v759 = vsel %vm631, %v377, %v695
  %v760 = vsel %vm632, %v380, %v696
  %v761 = vsel %vm633, %v385, %v697
  %v762 = vsel %vm634, %v388, %v698
  %v763 = vsel %vm635, %v393, %v699
  %v764 = vsel %vm636, %v396, %v700
  %v765 = vsel %vm637, %v401, %v701
  %v766 = vsel %vm638, %v404, %v702
  %v767 = vsel %vm639, %v409, %v703
  %v768 = vsel %vm640, %v412, %v704
  %v769 = vsel %vm641, %v417, %v705
  %v770 = vsel %vm642, %v420, %v706
  %v771 = vsel %vm643, %v425, %v707
  %v772 = vsel %vm644, %v428, %v708
  %v773 = vsel %vm645, %v433, %v709
  %v774 = vsel %vm646, %v436, %v710
  %v775 = vsel %vm647, %v441, %v711
  %v776 = vsel %vm648, %v444, %v712
  %v777 = vsel %vm649, %v449, %v713
  %v778 = vsel %vm650, %v452, %v714
  %v779 = vsel %vm651, %v457, %v715
  %v780 = vsel %vm652, %v460, %v716
  %v781 = vsel %vm653, %v465, %v717
  %v782 = vsel %vm654, %v468, %v718
  %v783 = vsel %vm655, %v473, %v719
  %v784 = vsel %vm656, %v476, %v720
  %v785 = vsel %vm657, %v481, %v721
  %v786 = vsel %vm658, %v484, %v722
  %v787 = vsel %vm659, %v489, %v723
  %v788 = vsel %vm660, %v492, %v724
  %v789 = vsel %vm661, %v497, %v725
  %v790 = vsel %vm662, %v500, %v726
  %v791 = vsel %vm663, %v505, %v727
  %v792 = vsel %vm664, %v508, %v728
  %v793 = vsel %vm665, %v513, %v729
  %v794 = vsel %vm666, %v516, %v730
  %v795 = vsel %vm667, %v521, %v731
  %v796 = vsel %vm668, %v524, %v732
  %v797 = vsel %vm669, %v529, %v733
  %v798 = vsel %vm670, %v532, %v734
  %v799 = vsel %vm671, %v537, %v735
  %v800 = vsel %vm672, %v540, %v736
  %v801 = vsel %vm673, %v545, %v737
  %v802 = vsel %vm674, %v548, %v738
  %v803 = vsel %vm675, %v553, %v739
  %v804 = vsel %vm676, %v556, %v740
  %v805 = vsel %vm677, %v561, %v741
  %v806 = vsel %vm678, %v564, %v742
  %v807 = vsel %vm679, %v569, %v743
  %v808 = vsel %vm680, %v572, %v744
  %v809 = vsel %vm681, %v577, %v745
  %v810 = vsel %vm682, %v580, %v746
  %v811 = vsel %vm683, %v585, %v747
  %v812 = vsel %vm684, %v588, %v748
  %v813 = vsel %vm685, %v593, %v749
  %v814 = vsel %vm686, %v596, %v750
  %v815 = vsel %vm687, %v601, %v751
  %v816 = vsel %vm688, %v604, %v752
  %v817 = vsel %vm689, %v609, %v753
  %v818 = vsel %vm690, %v612, %v754
  %v819 = vsel %vm691, %v617, %v755
  %v820 = vsel %vm692, %v620, %v756
  %v821 = vsel %vm693, %v625, %v757
  %v822 = vsel %vm694, %v628, %v758
  %v823 = vpack.c.bf16 %v760, %v759
  %v824 = vpack.c.bf16 %v762, %v761
  %v825 = vpack.c.bf16 %v764, %v763
  %v826 = vpack.c.bf16 %v766, %v765
  %v827 = vpack.c.bf16 %v768, %v767
  %v828 = vpack.c.bf16 %v770, %v769
  %v829 = vpack.c.bf16 %v772, %v771
  %v830 = vpack.c.bf16 %v774, %v773
  %v831 = vpack.c.bf16 %v776, %v775
  %v832 = vpack.c.bf16 %v778, %v777
  %v833 = vpack.c.bf16 %v780, %v779
  %v834 = vpack.c.bf16 %v782, %v781
  %v835 = vpack.c.bf16 %v784, %v783
  %v836 = vpack.c.bf16 %v786, %v785
  %v837 = vpack.c.bf16 %v788, %v787
  %v838 = vpack.c.bf16 %v790, %v789
  %v839 = vpack.c.bf16 %v792, %v791
  %v840 = vpack.c.bf16 %v794, %v793
  %v841 = vpack.c.bf16 %v796, %v795
  %v842 = vpack.c.bf16 %v798, %v797
  %v843 = vpack.c.bf16 %v800, %v799
  %v844 = vpack.c.bf16 %v802, %v801
  %v845 = vpack.c.bf16 %v804, %v803
  %v846 = vpack.c.bf16 %v806, %v805
  %v847 = vpack.c.bf16 %v808, %v807
  %v848 = vpack.c.bf16 %v810, %v809
  %v849 = vpack.c.bf16 %v812, %v811
  %v850 = vpack.c.bf16 %v814, %v813
  %v851 = vpack.c.bf16 %v816, %v815
  %v852 = vpack.c.bf16 %v818, %v817
  %v853 = vpack.c.bf16 %v820, %v819
  %v854 = vpack.c.bf16 %v822, %v821
  %v887 = vunpack.c.l.b16 %v823
  %v888 = vunpack.c.h.b16 %v823
  %v889 = vunpack.c.l.b16 %v824
  %v890 = vunpack.c.h.b16 %v824
  %v891 = vunpack.c.l.b16 %v825
  %v892 = vunpack.c.h.b16 %v825
  %v893 = vunpack.c.l.b16 %v826
  %v894 = vunpack.c.h.b16 %v826
  %v895 = vunpack.c.l.b16 %v827
  %v896 = vunpack.c.h.b16 %v827
  %v897 = vunpack.c.l.b16 %v828
  %v898 = vunpack.c.h.b16 %v828
  %v899 = vunpack.c.l.b16 %v829
  %v900 = vunpack.c.h.b16 %v829
  %v901 = vunpack.c.l.b16 %v830
  %v902 = vunpack.c.h.b16 %v830
  %v903 = vunpack.c.l.b16 %v831
  %v904 = vunpack.c.h.b16 %v831
  %v905 = vunpack.c.l.b16 %v832
  %v906 = vunpack.c.h.b16 %v832
  %v907 = vunpack.c.l.b16 %v833
  %v908 = vunpack.c.h.b16 %v833
  %v909 = vunpack.c.l.b16 %v834
  %v910 = vunpack.c.h.b16 %v834
  %v911 = vunpack.c.l.b16 %v835
  %v912 = vunpack.c.h.b16 %v835
  %v913 = vunpack.c.l.b16 %v836
  %v914 = vunpack.c.h.b16 %v836
  %v915 = vunpack.c.l.b16 %v837
  %v916 = vunpack.c.h.b16 %v837
  %v917 = vunpack.c.l.b16 %v838
  %v918 = vunpack.c.h.b16 %v838
  %v919 = vunpack.c.l.b16 %v839
  %v920 = vunpack.c.h.b16 %v839
  %v921 = vunpack.c.l.b16 %v840
  %v922 = vunpack.c.h.b16 %v840
  %v923 = vunpack.c.l.b16 %v841
  %v924 = vunpack.c.h.b16 %v841
  %v925 = vunpack.c.l.b16 %v842
  %v926 = vunpack.c.h.b16 %v842
  %v927 = vunpack.c.l.b16 %v843
  %v928 = vunpack.c.h.b16 %v843
  %v929 = vunpack.c.l.b16 %v844
  %v930 = vunpack.c.h.b16 %v844
  %v931 = vunpack.c.l.b16 %v845
  %v932 = vunpack.c.h.b16 %v845
  %v933 = vunpack.c.l.b16 %v846
  %v934 = vunpack.c.h.b16 %v846
  %v935 = vunpack.c.l.b16 %v847
  %v936 = vunpack.c.h.b16 %v847
  %v937 = vunpack.c.l.b16 %v848
  %v938 = vunpack.c.h.b16 %v848
  %v939 = vunpack.c.l.b16 %v849
  %v940 = vunpack.c.h.b16 %v849
  %v941 = vunpack.c.l.b16 %v850
  %v942 = vunpack.c.h.b16 %v850
  %v943 = vunpack.c.l.b16 %v851
  %v944 = vunpack.c.h.b16 %v851
  %v945 = vunpack.c.l.b16 %v852
  %v946 = vunpack.c.h.b16 %v852
  %v947 = vunpack.c.l.b16 %v853
  %v948 = vunpack.c.h.b16 %v853
  %v949 = vunpack.c.l.b16 %v854
  %v950 = vunpack.c.h.b16 %v854
  %v951 = vpack.c.b16 %v887, %v887
  %v952 = vpack.c.b16 %v888, %v888
  %v953 = vpack.c.b16 %v889, %v889
  %v954 = vpack.c.b16 %v890, %v890
  %v955 = vpack.c.b16 %v891, %v891
  %v956 = vpack.c.b16 %v892, %v892
  %v957 = vpack.c.b16 %v893, %v893
  %v958 = vpack.c.b16 %v894, %v894
  %v959 = vpack.c.b16 %v895, %v895
  %v960 = vpack.c.b16 %v896, %v896
  %v961 = vpack.c.b16 %v897, %v897
  %v962 = vpack.c.b16 %v898, %v898
  %v963 = vpack.c.b16 %v899, %v899
  %v964 = vpack.c.b16 %v900, %v900
  %v965 = vpack.c.b16 %v901, %v901
  %v966 = vpack.c.b16 %v902, %v902
  %v967 = vpack.c.b16 %v903, %v903
  %v968 = vpack.c.b16 %v904, %v904
  %v969 = vpack.c.b16 %v905, %v905
  %v970 = vpack.c.b16 %v906, %v906
  %v971 = vpack.c.b16 %v907, %v907
  %v972 = vpack.c.b16 %v908, %v908
  %v973 = vpack.c.b16 %v909, %v909
  %v974 = vpack.c.b16 %v910, %v910
  %v975 = vpack.c.b16 %v911, %v911
  %v976 = vpack.c.b16 %v912, %v912
  %v977 = vpack.c.b16 %v913, %v913
  %v978 = vpack.c.b16 %v914, %v914
  %v979 = vpack.c.b16 %v915, %v915
  %v980 = vpack.c.b16 %v916, %v916
  %v981 = vpack.c.b16 %v917, %v917
  %v982 = vpack.c.b16 %v918, %v918
  %v983 = vpack.c.b16 %v919, %v919
  %v984 = vpack.c.b16 %v920, %v920
  %v985 = vpack.c.b16 %v921, %v921
  %v986 = vpack.c.b16 %v922, %v922
  %v987 = vpack.c.b16 %v923, %v923
  %v988 = vpack.c.b16 %v924, %v924
  %v989 = vpack.c.b16 %v925, %v925
  %v990 = vpack.c.b16 %v926, %v926
  %v991 = vpack.c.b16 %v927, %v927
  %v992 = vpack.c.b16 %v928, %v928
  %v993 = vpack.c.b16 %v929, %v929
  %v994 = vpack.c.b16 %v930, %v930
  %v995 = vpack.c.b16 %v931, %v931
  %v996 = vpack.c.b16 %v932, %v932
  %v997 = vpack.c.b16 %v933, %v933
  %v998 = vpack.c.b16 %v934, %v934
  %v999 = vpack.c.b16 %v935, %v935
  %v1000 = vpack.c.b16 %v936, %v936
  %v1001 = vpack.c.b16 %v937, %v937
  %v1002 = vpack.c.b16 %v938, %v938
  %v1003 = vpack.c.b16 %v939, %v939
  %v1004 = vpack.c.b16 %v940, %v940
  %v1005 = vpack.c.b16 %v941, %v941
  %v1006 = vpack.c.b16 %v942, %v942
  %v1007 = vpack.c.b16 %v943, %v943
  %v1008 = vpack.c.b16 %v944, %v944
  %v1009 = vpack.c.b16 %v945, %v945
  %v1010 = vpack.c.b16 %v946, %v946
  %v1011 = vpack.c.b16 %v947, %v947
  %v1012 = vpack.c.b16 %v948, %v948
  %v1013 = vpack.c.b16 %v949, %v949
  %v1014 = vpack.c.b16 %v950, %v950
  %vm1079 = vcmask 60416
  %1080 = vst.msk [vmem:[%s3] sm:$0xf] %vm1079, %v951
  %1081 = vst.msk [vmem:[%s3 + $0x4] sm:$0xf] %vm1079, %v952
  %1082 = vst.msk [vmem:[%s3 + $0x8] sm:$0xf] %vm1079, %v953
  %1083 = vst.msk [vmem:[%s3 + $0xc] sm:$0xf] %vm1079, %v954
  %1084 = vst.msk [vmem:[%s3 + $0x10] sm:$0xf] %vm1079, %v955
  %1085 = vst.msk [vmem:[%s3 + $0x14] sm:$0xf] %vm1079, %v956
  %1086 = vst.msk [vmem:[%s3 + $0x18] sm:$0xf] %vm1079, %v957
  %1087 = vst.msk [vmem:[%s3 + $0x1c] sm:$0xf] %vm1079, %v958
  %1088 = vst.msk [vmem:[%s3 + $0x20] sm:$0xf] %vm1079, %v959
  %1089 = vst.msk [vmem:[%s3 + $0x24] sm:$0xf] %vm1079, %v960
  %1090 = vst.msk [vmem:[%s3 + $0x28] sm:$0xf] %vm1079, %v961
  %1091 = vst.msk [vmem:[%s3 + $0x2c] sm:$0xf] %vm1079, %v962
  %1092 = vst.msk [vmem:[%s3 + $0x30] sm:$0xf] %vm1079, %v963
  %1093 = vst.msk [vmem:[%s3 + $0x34] sm:$0xf] %vm1079, %v964
  %1094 = vst.msk [vmem:[%s3 + $0x38] sm:$0xf] %vm1079, %v965
  %1095 = vst.msk [vmem:[%s3 + $0x3c] sm:$0xf] %vm1079, %v966
  %1096 = vst.msk [vmem:[%s3 + $0x40] sm:$0xf] %vm1079, %v967
  %1097 = vst.msk [vmem:[%s3 + $0x44] sm:$0xf] %vm1079, %v968
  %1098 = vst.msk [vmem:[%s3 + $0x48] sm:$0xf] %vm1079, %v969
  %1099 = vst.msk [vmem:[%s3 + $0x4c] sm:$0xf] %vm1079, %v970
  %1100 = vst.msk [vmem:[%s3 + $0x50] sm:$0xf] %vm1079, %v971
  %1101 = vst.msk [vmem:[%s3 + $0x54] sm:$0xf] %vm1079, %v972
  %1102 = vst.msk [vmem:[%s3 + $0x58] sm:$0xf] %vm1079, %v973
  %1103 = vst.msk [vmem:[%s3 + $0x5c] sm:$0xf] %vm1079, %v974
  %1104 = vst.msk [vmem:[%s3 + $0x60] sm:$0xf] %vm1079, %v975
  %1105 = vst.msk [vmem:[%s3 + $0x64] sm:$0xf] %vm1079, %v976
  %1106 = vst.msk [vmem:[%s3 + $0x68] sm:$0xf] %vm1079, %v977
  %1107 = vst.msk [vmem:[%s3 + $0x6c] sm:$0xf] %vm1079, %v978
  %1108 = vst.msk [vmem:[%s3 + $0x70] sm:$0xf] %vm1079, %v979
  %1109 = vst.msk [vmem:[%s3 + $0x74] sm:$0xf] %vm1079, %v980
  %1110 = vst.msk [vmem:[%s3 + $0x78] sm:$0xf] %vm1079, %v981
  %1111 = vst.msk [vmem:[%s3 + $0x7c] sm:$0xf] %vm1079, %v982
  %1112 = vst.msk [vmem:[%s3 + $0x80] sm:$0xf] %vm1079, %v983
  %1113 = vst.msk [vmem:[%s3 + $0x84] sm:$0xf] %vm1079, %v984
  %1114 = vst.msk [vmem:[%s3 + $0x88] sm:$0xf] %vm1079, %v985
  %1115 = vst.msk [vmem:[%s3 + $0x8c] sm:$0xf] %vm1079, %v986
  %1116 = vst.msk [vmem:[%s3 + $0x90] sm:$0xf] %vm1079, %v987
  %1117 = vst.msk [vmem:[%s3 + $0x94] sm:$0xf] %vm1079, %v988
  %1118 = vst.msk [vmem:[%s3 + $0x98] sm:$0xf] %vm1079, %v989
  %1119 = vst.msk [vmem:[%s3 + $0x9c] sm:$0xf] %vm1079, %v990
  %1120 = vst.msk [vmem:[%s3 + $0xa0] sm:$0xf] %vm1079, %v991
  %1121 = vst.msk [vmem:[%s3 + $0xa4] sm:$0xf] %vm1079, %v992
  %1122 = vst.msk [vmem:[%s3 + $0xa8] sm:$0xf] %vm1079, %v993
  %1123 = vst.msk [vmem:[%s3 + $0xac] sm:$0xf] %vm1079, %v994
  %1124 = vst.msk [vmem:[%s3 + $0xb0] sm:$0xf] %vm1079, %v995
  %1125 = vst.msk [vmem:[%s3 + $0xb4] sm:$0xf] %vm1079, %v996
  %1126 = vst.msk [vmem:[%s3 + $0xb8] sm:$0xf] %vm1079, %v997
  %1127 = vst.msk [vmem:[%s3 + $0xbc] sm:$0xf] %vm1079, %v998
  %1128 = vst.msk [vmem:[%s3 + $0xc0] sm:$0xf] %vm1079, %v999
  %1129 = vst.msk [vmem:[%s3 + $0xc4] sm:$0xf] %vm1079, %v1000
  %1130 = vst.msk [vmem:[%s3 + $0xc8] sm:$0xf] %vm1079, %v1001
  %1131 = vst.msk [vmem:[%s3 + $0xcc] sm:$0xf] %vm1079, %v1002
  %1132 = vst.msk [vmem:[%s3 + $0xd0] sm:$0xf] %vm1079, %v1003
  %1133 = vst.msk [vmem:[%s3 + $0xd4] sm:$0xf] %vm1079, %v1004
  %1134 = vst.msk [vmem:[%s3 + $0xd8] sm:$0xf] %vm1079, %v1005
  %1135 = vst.msk [vmem:[%s3 + $0xdc] sm:$0xf] %vm1079, %v1006
  %1136 = vst.msk [vmem:[%s3 + $0xe0] sm:$0xf] %vm1079, %v1007
  %1137 = vst.msk [vmem:[%s3 + $0xe4] sm:$0xf] %vm1079, %v1008
  %1138 = vst.msk [vmem:[%s3 + $0xe8] sm:$0xf] %vm1079, %v1009
  %1139 = vst.msk [vmem:[%s3 + $0xec] sm:$0xf] %vm1079, %v1010
  %1140 = vst.msk [vmem:[%s3 + $0xf0] sm:$0xf] %vm1079, %v1011
  %1141 = vst.msk [vmem:[%s3 + $0xf4] sm:$0xf] %vm1079, %v1012
  %1142 = vst.msk [vmem:[%s3 + $0xf8] sm:$0xf] %vm1079, %v1013
  %1143 = vst.msk [vmem:[%s3 + $0xfc] sm:$0xf] %vm1079, %v1014
  // Predicated region
  $region14: #{discriminator_forward.2} parent=0 // pred_check
    _
  $region15: #{discriminator_forward.2} parent=0 // pred_check_branch
    %1145 = sbr.rel (0) target = $region17
  $region16: #{discriminator_forward.2} parent=0 // pred_region
    _
  $region17: #{discriminator_forward.2} parent=0 // pred_fallthru
    _
  // Predicated region
  $region18: #{discriminator_forward.2} parent=0 // pred_check
    _
  $region19: #{discriminator_forward.2} parent=0 // pred_check_branch
    %1147 = sbr.rel (0) target = $region21
  $region20: #{discriminator_forward.2} parent=0 // pred_region
    _
  $region21: #{discriminator_forward.2} parent=0 // pred_fallthru
    _

// kernel: discriminator_forward.3
$region0: #{discriminator_forward.3}
  #allocation0 [shape = 'u32[]', space=smem, size = 0x4, offset = 0x4, fixed_abs, tag = 'smem constant byte address 0x4 - core index']
  #allocation1 [shape = 'u32[144,128]{1,0:T(1,128)}', space=vmem, size = 0x12000, scoped, tag = 'internal scratch']
  #allocation2 [shape = 'f32[1,1]{1,0:T(1,128)S(1)}', space=vmem, size = 0x200, scoped, tag = 'scoped memory for discriminator_forward.3']
  %s0 = inlined_call_operand.vmem [shape: bf16[2,2048], index: 0, kind: input, shape index: {}]
  %s1 = inlined_call_operand.vmem [shape: bf16[2048,1024], index: 1, kind: input, shape index: {}]
  %s2 = inlined_call_operand.vmem [shape: f32[1,1024], index: 2, kind: input, shape index: {}]
  %s3 = inlined_call_operand.vmem [shape: bf16[1024,512], index: 3, kind: input, shape index: {}]
  %s4 = inlined_call_operand.vmem [shape: f32[1,512], index: 4, kind: input, shape index: {}]
  %s5 = inlined_call_operand.vmem [shape: bf16[512,256], index: 5, kind: input, shape index: {}]
  %s6 = inlined_call_operand.vmem [shape: f32[1,256], index: 6, kind: input, shape index: {}]
  %s7 = inlined_call_operand.vmem [shape: bf16[256,128], index: 7, kind: input, shape index: {}]
  %s8 = inlined_call_operand.vmem [shape: f32[1,128], index: 8, kind: input, shape index: {}]
  %s9 = inlined_call_operand.vmem [shape: bf16[128,128], index: 9, kind: input, shape index: {}]
  %s10 = inlined_call_operand.vmem [shape: f32[1,128], index: 10, kind: input, shape index: {}]
  %s11 = inlined_call_operand.vmem [shape: f32[1,128], index: 11, kind: input, shape index: {}]
  %s12 = inlined_call_operand.vmem [shape: f32[128,1], index: 12, kind: input, shape index: {}]
  %s13 = inlined_call_operand.<no memory space> [shape: f32[1,1], index: 13, kind: input, shape index: {}]
  %s14 = inlined_call_operand.vmem [shape: f32[2,1], index: 14, kind: output, shape index: {}]
  %s15 = sld [smem:[#allocation0]]
  $region66: #{discriminator_forward.3} parent=0
    _
  %s17 = ssub.s32 1, %s15
  %s18 = scalar_select 0, %s17, %s15
  %v19 = vstv %s13
  %20 = vst [vmem:[#allocation2] sm:$0x1] %v19
  // Predicated region
  $region2: #{discriminator_forward.3} parent=0 // pred_check
    _
  $region3: #{discriminator_forward.3} parent=0 // pred_check_branch
    %22 = sbr.rel (0) target = $region5
  $region4: #{discriminator_forward.3} parent=0 // pred_region
    _
  $region5: #{discriminator_forward.3} parent=0 // pred_fallthru
    _
  // Predicated region
  $region6: #{discriminator_forward.3} parent=0 // pred_check
    _
  $region7: #{discriminator_forward.3} parent=0 // pred_check_branch
    %24 = sbr.rel (0) target = $region9
  $region8: #{discriminator_forward.3} parent=0 // pred_region
    _
  $region9: #{discriminator_forward.3} parent=0 // pred_fallthru
    _
  // Predicated region
  $region10: #{discriminator_forward.3} parent=0 // pred_check
    _
  $region11: #{discriminator_forward.3} parent=0 // pred_check_branch
    %26 = sbr.rel (0) target = $region13
  $region12: #{discriminator_forward.3} parent=0 // pred_region
    _
  $region13: #{discriminator_forward.3} parent=0 // pred_fallthru
    _
  // Predicated region
  $region14: #{discriminator_forward.3} parent=0 // pred_check
    _
  $region15: #{discriminator_forward.3} parent=0 // pred_check_branch
    %28 = sbr.rel (0) target = $region17
  $region16: #{discriminator_forward.3} parent=0 // pred_region
    _
  $region17: #{discriminator_forward.3} parent=0 // pred_fallthru
    _
  // Predicated region
  $region18: #{discriminator_forward.3} parent=0 // pred_check
    _
  $region19: #{discriminator_forward.3} parent=0 // pred_check_branch
    %30 = sbr.rel (0) target = $region21
  $region20: #{discriminator_forward.3} parent=0 // pred_region
    _
  $region21: #{discriminator_forward.3} parent=0 // pred_fallthru
    _
  // Predicated region
  $region22: #{discriminator_forward.3} parent=0 // pred_check
    _
  $region23: #{discriminator_forward.3} parent=0 // pred_check_branch
    %32 = sbr.rel (0) target = $region25
  $region24: #{discriminator_forward.3} parent=0 // pred_region
    _
  $region25: #{discriminator_forward.3} parent=0 // pred_fallthru
    _
  // Predicated region
  $region26: #{discriminator_forward.3} parent=0 // pred_check
    _
  $region27: #{discriminator_forward.3} parent=0 // pred_check_branch
    %34 = sbr.rel (0) target = $region29
  $region28: #{discriminator_forward.3} parent=0 // pred_region
    _
  $region29: #{discriminator_forward.3} parent=0 // pred_fallthru
    _
  // Predicated region
  $region30: #{discriminator_forward.3} parent=0 // pred_check
    _
  $region31: #{discriminator_forward.3} parent=0 // pred_check_branch
    %36 = sbr.rel (0) target = $region33
  $region32: #{discriminator_forward.3} parent=0 // pred_region
    _
  $region33: #{discriminator_forward.3} parent=0 // pred_fallthru
    _
  // Predicated region
  $region34: #{discriminator_forward.3} parent=0 // pred_check
    _
  $region35: #{discriminator_forward.3} parent=0 // pred_check_branch
    %38 = sbr.rel (0) target = $region37
  $region36: #{discriminator_forward.3} parent=0 // pred_region
    _
  $region37: #{discriminator_forward.3} parent=0 // pred_fallthru
    _
  // Predicated region
  $region38: #{discriminator_forward.3} parent=0 // pred_check
    _
  $region39: #{discriminator_forward.3} parent=0 // pred_check_branch
    %40 = sbr.rel (0) target = $region41
  $region40: #{discriminator_forward.3} parent=0 // pred_region
    _
  $region41: #{discriminator_forward.3} parent=0 // pred_fallthru
    _
  // Predicated region
  $region42: #{discriminator_forward.3} parent=0 // pred_check
    _
  $region43: #{discriminator_forward.3} parent=0 // pred_check_branch
    %42 = sbr.rel (0) target = $region45
  $region44: #{discriminator_forward.3} parent=0 // pred_region
    _
  $region45: #{discriminator_forward.3} parent=0 // pred_fallthru
    _
  // Predicated region
  $region46: #{discriminator_forward.3} parent=0 // pred_check
    _
  $region47: #{discriminator_forward.3} parent=0 // pred_check_branch
    %44 = sbr.rel (0) target = $region49
  $region48: #{discriminator_forward.3} parent=0 // pred_region
    _
  $region49: #{discriminator_forward.3} parent=0 // pred_fallthru
    _
  // Predicated region
  $region50: #{discriminator_forward.3} parent=0 // pred_check
    _
  $region51: #{discriminator_forward.3} parent=0 // pred_check_branch
    %46 = sbr.rel (0) target = $region53
  $region52: #{discriminator_forward.3} parent=0 // pred_region
    _
  $region53: #{discriminator_forward.3} parent=0 // pred_fallthru
    _
  // Predicated region
  $region54: #{discriminator_forward.3} parent=0 // pred_check
    _
  $region55: #{discriminator_forward.3} parent=0 // pred_check_branch
    %48 = sbr.rel (0) target = $region57
  $region56: #{discriminator_forward.3} parent=0 // pred_region
    _
  $region57: #{discriminator_forward.3} parent=0 // pred_fallthru
    _
  %v50 = vld [vmem:[%s0] sm:$0xff]
  %v51 = vld [vmem:[%s0 + $0x8] sm:$0xff]
  %v52 = vld [vmem:[%s1] sm:$0xff]
  %v53 = vld [vmem:[%s1 + $0x8] sm:$0xff]
  %v54 = vld [vmem:[%s1 + $0x10] sm:$0xff]
  %v55 = vld [vmem:[%s1 + $0x18] sm:$0xff]
  %v56 = vld [vmem:[%s1 + $0x20] sm:$0xff]
  %v57 = vld [vmem:[%s1 + $0x28] sm:$0xff]
  %v58 = vld [vmem:[%s1 + $0x30] sm:$0xff]
  %v59 = vld [vmem:[%s1 + $0x38] sm:$0xff]
  %v60 = vld [vmem:[%s1 + $0x40] sm:$0xff]
  %v61 = vld [vmem:[%s1 + $0x48] sm:$0xff]
  %v62 = vld [vmem:[%s1 + $0x50] sm:$0xff]
  %v63 = vld [vmem:[%s1 + $0x58] sm:$0xff]
  %v64 = vld [vmem:[%s1 + $0x60] sm:$0xff]
  %v65 = vld [vmem:[%s1 + $0x68] sm:$0xff]
  %v66 = vld [vmem:[%s1 + $0x70] sm:$0xff]
  %v67 = vld [vmem:[%s1 + $0x78] sm:$0xff]
  %v68 = vld [vmem:[%s1 + $0x80] sm:$0xff]
  %v69 = vld [vmem:[%s1 + $0x88] sm:$0xff]
  %v70 = vld [vmem:[%s1 + $0x90] sm:$0xff]
  %v71 = vld [vmem:[%s1 + $0x98] sm:$0xff]
  %v72 = vld [vmem:[%s1 + $0xa0] sm:$0xff]
  %v73 = vld [vmem:[%s1 + $0xa8] sm:$0xff]
  %v74 = vld [vmem:[%s1 + $0xb0] sm:$0xff]
  %v75 = vld [vmem:[%s1 + $0xb8] sm:$0xff]
  %v76 = vld [vmem:[%s1 + $0xc0] sm:$0xff]
  %v77 = vld [vmem:[%s1 + $0xc8] sm:$0xff]
  %v78 = vld [vmem:[%s1 + $0xd0] sm:$0xff]
  %v79 = vld [vmem:[%s1 + $0xd8] sm:$0xff]
  %v80 = vld [vmem:[%s1 + $0xe0] sm:$0xff]
  %v81 = vld [vmem:[%s1 + $0xe8] sm:$0xff]
  %v82 = vld [vmem:[%s1 + $0xf0] sm:$0xff]
  %v83 = vld [vmem:[%s1 + $0xf8] sm:$0xff]
  %v84 = vld [vmem:[%s1 + $0x100] sm:$0xff]
  %v85 = vld [vmem:[%s1 + $0x108] sm:$0xff]
  %v86 = vld [vmem:[%s1 + $0x110] sm:$0xff]
  %v87 = vld [vmem:[%s1 + $0x118] sm:$0xff]
  %v88 = vld [vmem:[%s1 + $0x120] sm:$0xff]
  %v89 = vld [vmem:[%s1 + $0x128] sm:$0xff]
  %v90 = vld [vmem:[%s1 + $0x130] sm:$0xff]
  %v91 = vld [vmem:[%s1 + $0x138] sm:$0xff]
  %v92 = vld [vmem:[%s1 + $0x140] sm:$0xff]
  %v93 = vld [vmem:[%s1 + $0x148] sm:$0xff]
  %v94 = vld [vmem:[%s1 + $0x150] sm:$0xff]
  %v95 = vld [vmem:[%s1 + $0x158] sm:$0xff]
  %v96 = vld [vmem:[%s1 + $0x160] sm:$0xff]
  %v97 = vld [vmem:[%s1 + $0x168] sm:$0xff]
  %v98 = vld [vmem:[%s1 + $0x170] sm:$0xff]
  %v99 = vld [vmem:[%s1 + $0x178] sm:$0xff]
  %v100 = vld [vmem:[%s1 + $0x180] sm:$0xff]
  %v101 = vld [vmem:[%s1 + $0x188] sm:$0xff]
  %v102 = vld [vmem:[%s1 + $0x190] sm:$0xff]
  %v103 = vld [vmem:[%s1 + $0x198] sm:$0xff]
  %v104 = vld [vmem:[%s1 + $0x1a0] sm:$0xff]
  %v105 = vld [vmem:[%s1 + $0x1a8] sm:$0xff]
  %v106 = vld [vmem:[%s1 + $0x1b0] sm:$0xff]
  %v107 = vld [vmem:[%s1 + $0x1b8] sm:$0xff]
  %v108 = vld [vmem:[%s1 + $0x1c0] sm:$0xff]
  %v109 = vld [vmem:[%s1 + $0x1c8] sm:$0xff]
  %v110 = vld [vmem:[%s1 + $0x1d0] sm:$0xff]
  %v111 = vld [vmem:[%s1 + $0x1d8] sm:$0xff]
  %v112 = vld [vmem:[%s1 + $0x1e0] sm:$0xff]
  %v113 = vld [vmem:[%s1 + $0x1e8] sm:$0xff]
  %v114 = vld [vmem:[%s1 + $0x1f0] sm:$0xff]
  %v115 = vld [vmem:[%s1 + $0x1f8] sm:$0xff]
  %v116 = vld [vmem:[%s1 + $0x200] sm:$0xff]
  %v117 = vld [vmem:[%s1 + $0x208] sm:$0xff]
  %v118 = vld [vmem:[%s1 + $0x210] sm:$0xff]
  %v119 = vld [vmem:[%s1 + $0x218] sm:$0xff]
  %v120 = vld [vmem:[%s1 + $0x220] sm:$0xff]
  %v121 = vld [vmem:[%s1 + $0x228] sm:$0xff]
  %v122 = vld [vmem:[%s1 + $0x230] sm:$0xff]
  %v123 = vld [vmem:[%s1 + $0x238] sm:$0xff]
  %v124 = vld [vmem:[%s1 + $0x240] sm:$0xff]
  %v125 = vld [vmem:[%s1 + $0x248] sm:$0xff]
  %v126 = vld [vmem:[%s1 + $0x250] sm:$0xff]
  %v127 = vld [vmem:[%s1 + $0x258] sm:$0xff]
  %v128 = vld [vmem:[%s1 + $0x260] sm:$0xff]
  %v129 = vld [vmem:[%s1 + $0x268] sm:$0xff]
  %v130 = vld [vmem:[%s1 + $0x270] sm:$0xff]
  %v131 = vld [vmem:[%s1 + $0x278] sm:$0xff]
  %v132 = vld [vmem:[%s1 + $0x280] sm:$0xff]
  %v133 = vld [vmem:[%s1 + $0x288] sm:$0xff]
  %v134 = vld [vmem:[%s1 + $0x290] sm:$0xff]
  %v135 = vld [vmem:[%s1 + $0x298] sm:$0xff]
  %v136 = vld [vmem:[%s1 + $0x2a0] sm:$0xff]
  %v137 = vld [vmem:[%s1 + $0x2a8] sm:$0xff]
  %v138 = vld [vmem:[%s1 + $0x2b0] sm:$0xff]
  %v139 = vld [vmem:[%s1 + $0x2b8] sm:$0xff]
  %v140 = vld [vmem:[%s1 + $0x2c0] sm:$0xff]
  %v141 = vld [vmem:[%s1 + $0x2c8] sm:$0xff]
  %v142 = vld [vmem:[%s1 + $0x2d0] sm:$0xff]
  %v143 = vld [vmem:[%s1 + $0x2d8] sm:$0xff]
  %v144 = vld [vmem:[%s1 + $0x2e0] sm:$0xff]
  %v145 = vld [vmem:[%s1 + $0x2e8] sm:$0xff]
  %v146 = vld [vmem:[%s1 + $0x2f0] sm:$0xff]
  %v147 = vld [vmem:[%s1 + $0x2f8] sm:$0xff]
  %v148 = vld [vmem:[%s1 + $0x300] sm:$0xff]
  %v149 = vld [vmem:[%s1 + $0x308] sm:$0xff]
  %v150 = vld [vmem:[%s1 + $0x310] sm:$0xff]
  %v151 = vld [vmem:[%s1 + $0x318] sm:$0xff]
  %v152 = vld [vmem:[%s1 + $0x320] sm:$0xff]
  %v153 = vld [vmem:[%s1 + $0x328] sm:$0xff]
  %v154 = vld [vmem:[%s1 + $0x330] sm:$0xff]
  %v155 = vld [vmem:[%s1 + $0x338] sm:$0xff]
  %v156 = vld [vmem:[%s1 + $0x340] sm:$0xff]
  %v157 = vld [vmem:[%s1 + $0x348] sm:$0xff]
  %v158 = vld [vmem:[%s1 + $0x350] sm:$0xff]
  %v159 = vld [vmem:[%s1 + $0x358] sm:$0xff]
  %v160 = vld [vmem:[%s1 + $0x360] sm:$0xff]
  %v161 = vld [vmem:[%s1 + $0x368] sm:$0xff]
  %v162 = vld [vmem:[%s1 + $0x370] sm:$0xff]
  %v163 = vld [vmem:[%s1 + $0x378] sm:$0xff]
  %v164 = vld [vmem:[%s1 + $0x380] sm:$0xff]
  %v165 = vld [vmem:[%s1 + $0x388] sm:$0xff]
  %v166 = vld [vmem:[%s1 + $0x390] sm:$0xff]
  %v167 = vld [vmem:[%s1 + $0x398] sm:$0xff]
  %v168 = vld [vmem:[%s1 + $0x3a0] sm:$0xff]
  %v169 = vld [vmem:[%s1 + $0x3a8] sm:$0xff]
  %v170 = vld [vmem:[%s1 + $0x3b0] sm:$0xff]
  %v171 = vld [vmem:[%s1 + $0x3b8] sm:$0xff]
  %v172 = vld [vmem:[%s1 + $0x3c0] sm:$0xff]
  %v173 = vld [vmem:[%s1 + $0x3c8] sm:$0xff]
  %v174 = vld [vmem:[%s1 + $0x3d0] sm:$0xff]
  %v175 = vld [vmem:[%s1 + $0x3d8] sm:$0xff]
  %v176 = vld [vmem:[%s1 + $0x3e0] sm:$0xff]
  %v177 = vld [vmem:[%s1 + $0x3e8] sm:$0xff]
  %v178 = vld [vmem:[%s1 + $0x3f0] sm:$0xff]
  %v179 = vld [vmem:[%s1 + $0x3f8] sm:$0xff]
  %v180 = vld [vmem:[%s1 + $0x400] sm:$0xff]
  %v181 = vld [vmem:[%s1 + $0x408] sm:$0xff]
  %v182 = vld [vmem:[%s1 + $0x410] sm:$0xff]
  %v183 = vld [vmem:[%s1 + $0x418] sm:$0xff]
  %v184 = vld [vmem:[%s1 + $0x420] sm:$0xff]
  %v185 = vld [vmem:[%s1 + $0x428] sm:$0xff]
  %v186 = vld [vmem:[%s1 + $0x430] sm:$0xff]
  %v187 = vld [vmem:[%s1 + $0x438] sm:$0xff]
  %v188 = vld [vmem:[%s1 + $0x440] sm:$0xff]
  %v189 = vld [vmem:[%s1 + $0x448] sm:$0xff]
  %v190 = vld [vmem:[%s1 + $0x450] sm:$0xff]
  %v191 = vld [vmem:[%s1 + $0x458] sm:$0xff]
  %v192 = vld [vmem:[%s1 + $0x460] sm:$0xff]
  %v193 = vld [vmem:[%s1 + $0x468] sm:$0xff]
  %v194 = vld [vmem:[%s1 + $0x470] sm:$0xff]
  %v195 = vld [vmem:[%s1 + $0x478] sm:$0xff]
  %v196 = vld [vmem:[%s1 + $0x480] sm:$0xff]
  %v197 = vld [vmem:[%s1 + $0x488] sm:$0xff]
  %v198 = vld [vmem:[%s1 + $0x490] sm:$0xff]
  %v199 = vld [vmem:[%s1 + $0x498] sm:$0xff]
  %v200 = vld [vmem:[%s1 + $0x4a0] sm:$0xff]
  %v201 = vld [vmem:[%s1 + $0x4a8] sm:$0xff]
  %v202 = vld [vmem:[%s1 + $0x4b0] sm:$0xff]
  %v203 = vld [vmem:[%s1 + $0x4b8] sm:$0xff]
  %v204 = vld [vmem:[%s1 + $0x4c0] sm:$0xff]
  %v205 = vld [vmem:[%s1 + $0x4c8] sm:$0xff]
  %v206 = vld [vmem:[%s1 + $0x4d0] sm:$0xff]
  %v207 = vld [vmem:[%s1 + $0x4d8] sm:$0xff]
  %v208 = vld [vmem:[%s1 + $0x4e0] sm:$0xff]
  %v209 = vld [vmem:[%s1 + $0x4e8] sm:$0xff]
  %v210 = vld [vmem:[%s1 + $0x4f0] sm:$0xff]
  %v211 = vld [vmem:[%s1 + $0x4f8] sm:$0xff]
  %v212 = vld [vmem:[%s1 + $0x500] sm:$0xff]
  %v213 = vld [vmem:[%s1 + $0x508] sm:$0xff]
  %v214 = vld [vmem:[%s1 + $0x510] sm:$0xff]
  %v215 = vld [vmem:[%s1 + $0x518] sm:$0xff]
  %v216 = vld [vmem:[%s1 + $0x520] sm:$0xff]
  %v217 = vld [vmem:[%s1 + $0x528] sm:$0xff]
  %v218 = vld [vmem:[%s1 + $0x530] sm:$0xff]
  %v219 = vld [vmem:[%s1 + $0x538] sm:$0xff]
  %v220 = vld [vmem:[%s1 + $0x540] sm:$0xff]
  %v221 = vld [vmem:[%s1 + $0x548] sm:$0xff]
  %v222 = vld [vmem:[%s1 + $0x550] sm:$0xff]
  %v223 = vld [vmem:[%s1 + $0x558] sm:$0xff]
  %v224 = vld [vmem:[%s1 + $0x560] sm:$0xff]
  %v225 = vld [vmem:[%s1 + $0x568] sm:$0xff]
  %v226 = vld [vmem:[%s1 + $0x570] sm:$0xff]
  %v227 = vld [vmem:[%s1 + $0x578] sm:$0xff]
  %v228 = vld [vmem:[%s1 + $0x580] sm:$0xff]
  %v229 = vld [vmem:[%s1 + $0x588] sm:$0xff]
  %v230 = vld [vmem:[%s1 + $0x590] sm:$0xff]
  %v231 = vld [vmem:[%s1 + $0x598] sm:$0xff]
  %v232 = vld [vmem:[%s1 + $0x5a0] sm:$0xff]
  %v233 = vld [vmem:[%s1 + $0x5a8] sm:$0xff]
  %v234 = vld [vmem:[%s1 + $0x5b0] sm:$0xff]
  %v235 = vld [vmem:[%s1 + $0x5b8] sm:$0xff]
  %v236 = vld [vmem:[%s1 + $0x5c0] sm:$0xff]
  %v237 = vld [vmem:[%s1 + $0x5c8] sm:$0xff]
  %v238 = vld [vmem:[%s1 + $0x5d0] sm:$0xff]
  %v239 = vld [vmem:[%s1 + $0x5d8] sm:$0xff]
  %v240 = vld [vmem:[%s1 + $0x5e0] sm:$0xff]
  %v241 = vld [vmem:[%s1 + $0x5e8] sm:$0xff]
  %v242 = vld [vmem:[%s1 + $0x5f0] sm:$0xff]
  %v243 = vld [vmem:[%s1 + $0x5f8] sm:$0xff]
  %v244 = vld [vmem:[%s1 + $0x600] sm:$0xff]
  %v245 = vld [vmem:[%s1 + $0x608] sm:$0xff]
  %v246 = vld [vmem:[%s1 + $0x610] sm:$0xff]
  %v247 = vld [vmem:[%s1 + $0x618] sm:$0xff]
  %v248 = vld [vmem:[%s1 + $0x620] sm:$0xff]
  %v249 = vld [vmem:[%s1 + $0x628] sm:$0xff]
  %v250 = vld [vmem:[%s1 + $0x630] sm:$0xff]
  %v251 = vld [vmem:[%s1 + $0x638] sm:$0xff]
  %v252 = vld [vmem:[%s1 + $0x640] sm:$0xff]
  %v253 = vld [vmem:[%s1 + $0x648] sm:$0xff]
  %v254 = vld [vmem:[%s1 + $0x650] sm:$0xff]
  %v255 = vld [vmem:[%s1 + $0x658] sm:$0xff]
  %v256 = vld [vmem:[%s1 + $0x660] sm:$0xff]
  %v257 = vld [vmem:[%s1 + $0x668] sm:$0xff]
  %v258 = vld [vmem:[%s1 + $0x670] sm:$0xff]
  %v259 = vld [vmem:[%s1 + $0x678] sm:$0xff]
  %v260 = vld [vmem:[%s1 + $0x680] sm:$0xff]
  %v261 = vld [vmem:[%s1 + $0x688] sm:$0xff]
  %v262 = vld [vmem:[%s1 + $0x690] sm:$0xff]
  %v263 = vld [vmem:[%s1 + $0x698] sm:$0xff]
  %v264 = vld [vmem:[%s1 + $0x6a0] sm:$0xff]
  %v265 = vld [vmem:[%s1 + $0x6a8] sm:$0xff]
  %v266 = vld [vmem:[%s1 + $0x6b0] sm:$0xff]
  %v267 = vld [vmem:[%s1 + $0x6b8] sm:$0xff]
  %v268 = vld [vmem:[%s1 + $0x6c0] sm:$0xff]
  %v269 = vld [vmem:[%s1 + $0x6c8] sm:$0xff]
  %v270 = vld [vmem:[%s1 + $0x6d0] sm:$0xff]
  %v271 = vld [vmem:[%s1 + $0x6d8] sm:$0xff]
  %v272 = vld [vmem:[%s1 + $0x6e0] sm:$0xff]
  %v273 = vld [vmem:[%s1 + $0x6e8] sm:$0xff]
  %v274 = vld [vmem:[%s1 + $0x6f0] sm:$0xff]
  %v275 = vld [vmem:[%s1 + $0x6f8] sm:$0xff]
  %v276 = vld [vmem:[%s1 + $0x700] sm:$0xff]
  %v277 = vld [vmem:[%s1 + $0x708] sm:$0xff]
  %v278 = vld [vmem:[%s1 + $0x710] sm:$0xff]
  %v279 = vld [vmem:[%s1 + $0x718] sm:$0xff]
  %v280 = vld [vmem:[%s1 + $0x720] sm:$0xff]
  %v281 = vld [vmem:[%s1 + $0x728] sm:$0xff]
  %v282 = vld [vmem:[%s1 + $0x730] sm:$0xff]
  %v283 = vld [vmem:[%s1 + $0x738] sm:$0xff]
  %v284 = vld [vmem:[%s1 + $0x740] sm:$0xff]
  %v285 = vld [vmem:[%s1 + $0x748] sm:$0xff]
  %v286 = vld [vmem:[%s1 + $0x750] sm:$0xff]
  %v287 = vld [vmem:[%s1 + $0x758] sm:$0xff]
  %v288 = vld [vmem:[%s1 + $0x760] sm:$0xff]
  %v289 = vld [vmem:[%s1 + $0x768] sm:$0xff]
  %v290 = vld [vmem:[%s1 + $0x770] sm:$0xff]
  %v291 = vld [vmem:[%s1 + $0x778] sm:$0xff]
  %v292 = vld [vmem:[%s1 + $0x780] sm:$0xff]
  %v293 = vld [vmem:[%s1 + $0x788] sm:$0xff]
  %v294 = vld [vmem:[%s1 + $0x790] sm:$0xff]
  %v295 = vld [vmem:[%s1 + $0x798] sm:$0xff]
  %v296 = vld [vmem:[%s1 + $0x7a0] sm:$0xff]
  %v297 = vld [vmem:[%s1 + $0x7a8] sm:$0xff]
  %v298 = vld [vmem:[%s1 + $0x7b0] sm:$0xff]
  %v299 = vld [vmem:[%s1 + $0x7b8] sm:$0xff]
  %v300 = vld [vmem:[%s1 + $0x7c0] sm:$0xff]
  %v301 = vld [vmem:[%s1 + $0x7c8] sm:$0xff]
  %v302 = vld [vmem:[%s1 + $0x7d0] sm:$0xff]
  %v303 = vld [vmem:[%s1 + $0x7d8] sm:$0xff]
  %v304 = vld [vmem:[%s1 + $0x7e0] sm:$0xff]
  %v305 = vld [vmem:[%s1 + $0x7e8] sm:$0xff]
  %v306 = vld [vmem:[%s1 + $0x7f0] sm:$0xff]
  %v307 = vld [vmem:[%s1 + $0x7f8] sm:$0xff]
  %v308 = vld [vmem:[%s1 + $0x800] sm:$0xff]
  %v309 = vld [vmem:[%s1 + $0x808] sm:$0xff]
  %v310 = vld [vmem:[%s1 + $0x810] sm:$0xff]
  %v311 = vld [vmem:[%s1 + $0x818] sm:$0xff]
  %v312 = vld [vmem:[%s1 + $0x820] sm:$0xff]
  %v313 = vld [vmem:[%s1 + $0x828] sm:$0xff]
  %v314 = vld [vmem:[%s1 + $0x830] sm:$0xff]
  %v315 = vld [vmem:[%s1 + $0x838] sm:$0xff]
  %v316 = vld [vmem:[%s1 + $0x840] sm:$0xff]
  %v317 = vld [vmem:[%s1 + $0x848] sm:$0xff]
  %v318 = vld [vmem:[%s1 + $0x850] sm:$0xff]
  %v319 = vld [vmem:[%s1 + $0x858] sm:$0xff]
  %v320 = vld [vmem:[%s1 + $0x860] sm:$0xff]
  %v321 = vld [vmem:[%s1 + $0x868] sm:$0xff]
  %v322 = vld [vmem:[%s1 + $0x870] sm:$0xff]
  %v323 = vld [vmem:[%s1 + $0x878] sm:$0xff]
  %v324 = vld [vmem:[%s1 + $0x880] sm:$0xff]
  %v325 = vld [vmem:[%s1 + $0x888] sm:$0xff]
  %v326 = vld [vmem:[%s1 + $0x890] sm:$0xff]
  %v327 = vld [vmem:[%s1 + $0x898] sm:$0xff]
  %v328 = vld [vmem:[%s1 + $0x8a0] sm:$0xff]
  %v329 = vld [vmem:[%s1 + $0x8a8] sm:$0xff]
  %v330 = vld [vmem:[%s1 + $0x8b0] sm:$0xff]
  %v331 = vld [vmem:[%s1 + $0x8b8] sm:$0xff]
  %v332 = vld [vmem:[%s1 + $0x8c0] sm:$0xff]
  %v333 = vld [vmem:[%s1 + $0x8c8] sm:$0xff]
  %v334 = vld [vmem:[%s1 + $0x8d0] sm:$0xff]
  %v335 = vld [vmem:[%s1 + $0x8d8] sm:$0xff]
  %v336 = vld [vmem:[%s1 + $0x8e0] sm:$0xff]
  %v337 = vld [vmem:[%s1 + $0x8e8] sm:$0xff]
  %v338 = vld [vmem:[%s1 + $0x8f0] sm:$0xff]
  %v339 = vld [vmem:[%s1 + $0x8f8] sm:$0xff]
  %v340 = vld [vmem:[%s1 + $0x900] sm:$0xff]
  %v341 = vld [vmem:[%s1 + $0x908] sm:$0xff]
  %v342 = vld [vmem:[%s1 + $0x910] sm:$0xff]
  %v343 = vld [vmem:[%s1 + $0x918] sm:$0xff]
  %v344 = vld [vmem:[%s1 + $0x920] sm:$0xff]
  %v345 = vld [vmem:[%s1 + $0x928] sm:$0xff]
  %v346 = vld [vmem:[%s1 + $0x930] sm:$0xff]
  %v347 = vld [vmem:[%s1 + $0x938] sm:$0xff]
  %v348 = vld [vmem:[%s1 + $0x940] sm:$0xff]
  %v349 = vld [vmem:[%s1 + $0x948] sm:$0xff]
  %v350 = vld [vmem:[%s1 + $0x950] sm:$0xff]
  %v351 = vld [vmem:[%s1 + $0x958] sm:$0xff]
  %v352 = vld [vmem:[%s1 + $0x960] sm:$0xff]
  %v353 = vld [vmem:[%s1 + $0x968] sm:$0xff]
  %v354 = vld [vmem:[%s1 + $0x970] sm:$0xff]
  %v355 = vld [vmem:[%s1 + $0x978] sm:$0xff]
  %v356 = vld [vmem:[%s1 + $0x980] sm:$0xff]
  %v357 = vld [vmem:[%s1 + $0x988] sm:$0xff]
  %v358 = vld [vmem:[%s1 + $0x990] sm:$0xff]
  %v359 = vld [vmem:[%s1 + $0x998] sm:$0xff]
  %v360 = vld [vmem:[%s1 + $0x9a0] sm:$0xff]
  %v361 = vld [vmem:[%s1 + $0x9a8] sm:$0xff]
  %v362 = vld [vmem:[%s1 + $0x9b0] sm:$0xff]
  %v363 = vld [vmem:[%s1 + $0x9b8] sm:$0xff]
  %v364 = vld [vmem:[%s1 + $0x9c0] sm:$0xff]
  %v365 = vld [vmem:[%s1 + $0x9c8] sm:$0xff]
  %v366 = vld [vmem:[%s1 + $0x9d0] sm:$0xff]
  %v367 = vld [vmem:[%s1 + $0x9d8] sm:$0xff]
  %v368 = vld [vmem:[%s1 + $0x9e0] sm:$0xff]
  %v369 = vld [vmem:[%s1 + $0x9e8] sm:$0xff]
  %v370 = vld [vmem:[%s1 + $0x9f0] sm:$0xff]
  %v371 = vld [vmem:[%s1 + $0x9f8] sm:$0xff]
  %v372 = vld [vmem:[%s1 + $0xa00] sm:$0xff]
  %v373 = vld [vmem:[%s1 + $0xa08] sm:$0xff]
  %v374 = vld [vmem:[%s1 + $0xa10] sm:$0xff]
  %v375 = vld [vmem:[%s1 + $0xa18] sm:$0xff]
  %v376 = vld [vmem:[%s1 + $0xa20] sm:$0xff]
  %v377 = vld [vmem:[%s1 + $0xa28] sm:$0xff]
  %v378 = vld [vmem:[%s1 + $0xa30] sm:$0xff]
  %v379 = vld [vmem:[%s1 + $0xa38] sm:$0xff]
  %v380 = vld [vmem:[%s1 + $0xa40] sm:$0xff]
  %v381 = vld [vmem:[%s1 + $0xa48] sm:$0xff]
  %v382 = vld [vmem:[%s1 + $0xa50] sm:$0xff]
  %v383 = vld [vmem:[%s1 + $0xa58] sm:$0xff]
  %v384 = vld [vmem:[%s1 + $0xa60] sm:$0xff]
  %v385 = vld [vmem:[%s1 + $0xa68] sm:$0xff]
  %v386 = vld [vmem:[%s1 + $0xa70] sm:$0xff]
  %v387 = vld [vmem:[%s1 + $0xa78] sm:$0xff]
  %v388 = vld [vmem:[%s1 + $0xa80] sm:$0xff]
  %v389 = vld [vmem:[%s1 + $0xa88] sm:$0xff]
  %v390 = vld [vmem:[%s1 + $0xa90] sm:$0xff]
  %v391 = vld [vmem:[%s1 + $0xa98] sm:$0xff]
  %v392 = vld [vmem:[%s1 + $0xaa0] sm:$0xff]
  %v393 = vld [vmem:[%s1 + $0xaa8] sm:$0xff]
  %v394 = vld [vmem:[%s1 + $0xab0] sm:$0xff]
  %v395 = vld [vmem:[%s1 + $0xab8] sm:$0xff]
  %v396 = vld [vmem:[%s1 + $0xac0] sm:$0xff]
  %v397 = vld [vmem:[%s1 + $0xac8] sm:$0xff]
  %v398 = vld [vmem:[%s1 + $0xad0] sm:$0xff]
  %v399 = vld [vmem:[%s1 + $0xad8] sm:$0xff]
  %v400 = vld [vmem:[%s1 + $0xae0] sm:$0xff]
  %v401 = vld [vmem:[%s1 + $0xae8] sm:$0xff]
  %v402 = vld [vmem:[%s1 + $0xaf0] sm:$0xff]
  %v403 = vld [vmem:[%s1 + $0xaf8] sm:$0xff]
  %v404 = vld [vmem:[%s1 + $0xb00] sm:$0xff]
  %v405 = vld [vmem:[%s1 + $0xb08] sm:$0xff]
  %v406 = vld [vmem:[%s1 + $0xb10] sm:$0xff]
  %v407 = vld [vmem:[%s1 + $0xb18] sm:$0xff]
  %v408 = vld [vmem:[%s1 + $0xb20] sm:$0xff]
  %v409 = vld [vmem:[%s1 + $0xb28] sm:$0xff]
  %v410 = vld [vmem:[%s1 + $0xb30] sm:$0xff]
  %v411 = vld [vmem:[%s1 + $0xb38] sm:$0xff]
  %v412 = vld [vmem:[%s1 + $0xb40] sm:$0xff]
  %v413 = vld [vmem:[%s1 + $0xb48] sm:$0xff]
  %v414 = vld [vmem:[%s1 + $0xb50] sm:$0xff]
  %v415 = vld [vmem:[%s1 + $0xb58] sm:$0xff]
  %v416 = vld [vmem:[%s1 + $0xb60] sm:$0xff]
  %v417 = vld [vmem:[%s1 + $0xb68] sm:$0xff]
  %v418 = vld [vmem:[%s1 + $0xb70] sm:$0xff]
  %v419 = vld [vmem:[%s1 + $0xb78] sm:$0xff]
  %v420 = vld [vmem:[%s1 + $0xb80] sm:$0xff]
  %v421 = vld [vmem:[%s1 + $0xb88] sm:$0xff]
  %v422 = vld [vmem:[%s1 + $0xb90] sm:$0xff]
  %v423 = vld [vmem:[%s1 + $0xb98] sm:$0xff]
  %v424 = vld [vmem:[%s1 + $0xba0] sm:$0xff]
  %v425 = vld [vmem:[%s1 + $0xba8] sm:$0xff]
  %v426 = vld [vmem:[%s1 + $0xbb0] sm:$0xff]
  %v427 = vld [vmem:[%s1 + $0xbb8] sm:$0xff]
  %v428 = vld [vmem:[%s1 + $0xbc0] sm:$0xff]
  %v429 = vld [vmem:[%s1 + $0xbc8] sm:$0xff]
  %v430 = vld [vmem:[%s1 + $0xbd0] sm:$0xff]
  %v431 = vld [vmem:[%s1 + $0xbd8] sm:$0xff]
  %v432 = vld [vmem:[%s1 + $0xbe0] sm:$0xff]
  %v433 = vld [vmem:[%s1 + $0xbe8] sm:$0xff]
  %v434 = vld [vmem:[%s1 + $0xbf0] sm:$0xff]
  %v435 = vld [vmem:[%s1 + $0xbf8] sm:$0xff]
  %v436 = vld [vmem:[%s1 + $0xc00] sm:$0xff]
  %v437 = vld [vmem:[%s1 + $0xc08] sm:$0xff]
  %v438 = vld [vmem:[%s1 + $0xc10] sm:$0xff]
  %v439 = vld [vmem:[%s1 + $0xc18] sm:$0xff]
  %v440 = vld [vmem:[%s1 + $0xc20] sm:$0xff]
  %v441 = vld [vmem:[%s1 + $0xc28] sm:$0xff]
  %v442 = vld [vmem:[%s1 + $0xc30] sm:$0xff]
  %v443 = vld [vmem:[%s1 + $0xc38] sm:$0xff]
  %v444 = vld [vmem:[%s1 + $0xc40] sm:$0xff]
  %v445 = vld [vmem:[%s1 + $0xc48] sm:$0xff]
  %v446 = vld [vmem:[%s1 + $0xc50] sm:$0xff]
  %v447 = vld [vmem:[%s1 + $0xc58] sm:$0xff]
  %v448 = vld [vmem:[%s1 + $0xc60] sm:$0xff]
  %v449 = vld [vmem:[%s1 + $0xc68] sm:$0xff]
  %v450 = vld [vmem:[%s1 + $0xc70] sm:$0xff]
  %v451 = vld [vmem:[%s1 + $0xc78] sm:$0xff]
  %v452 = vld [vmem:[%s1 + $0xc80] sm:$0xff]
  %v453 = vld [vmem:[%s1 + $0xc88] sm:$0xff]
  %v454 = vld [vmem:[%s1 + $0xc90] sm:$0xff]
  %v455 = vld [vmem:[%s1 + $0xc98] sm:$0xff]
  %v456 = vld [vmem:[%s1 + $0xca0] sm:$0xff]
  %v457 = vld [vmem:[%s1 + $0xca8] sm:$0xff]
  %v458 = vld [vmem:[%s1 + $0xcb0] sm:$0xff]
  %v459 = vld [vmem:[%s1 + $0xcb8] sm:$0xff]
  %v460 = vld [vmem:[%s1 + $0xcc0] sm:$0xff]
  %v461 = vld [vmem:[%s1 + $0xcc8] sm:$0xff]
  %v462 = vld [vmem:[%s1 + $0xcd0] sm:$0xff]
  %v463 = vld [vmem:[%s1 + $0xcd8] sm:$0xff]
  %v464 = vld [vmem:[%s1 + $0xce0] sm:$0xff]
  %v465 = vld [vmem:[%s1 + $0xce8] sm:$0xff]
  %v466 = vld [vmem:[%s1 + $0xcf0] sm:$0xff]
  %v467 = vld [vmem:[%s1 + $0xcf8] sm:$0xff]
  %v468 = vld [vmem:[%s1 + $0xd00] sm:$0xff]
  %v469 = vld [vmem:[%s1 + $0xd08] sm:$0xff]
  %v470 = vld [vmem:[%s1 + $0xd10] sm:$0xff]
  %v471 = vld [vmem:[%s1 + $0xd18] sm:$0xff]
  %v472 = vld [vmem:[%s1 + $0xd20] sm:$0xff]
  %v473 = vld [vmem:[%s1 + $0xd28] sm:$0xff]
  %v474 = vld [vmem:[%s1 + $0xd30] sm:$0xff]
  %v475 = vld [vmem:[%s1 + $0xd38] sm:$0xff]
  %v476 = vld [vmem:[%s1 + $0xd40] sm:$0xff]
  %v477 = vld [vmem:[%s1 + $0xd48] sm:$0xff]
  %v478 = vld [vmem:[%s1 + $0xd50] sm:$0xff]
  %v479 = vld [vmem:[%s1 + $0xd58] sm:$0xff]
  %v480 = vld [vmem:[%s1 + $0xd60] sm:$0xff]
  %v481 = vld [vmem:[%s1 + $0xd68] sm:$0xff]
  %v482 = vld [vmem:[%s1 + $0xd70] sm:$0xff]
  %v483 = vld [vmem:[%s1 + $0xd78] sm:$0xff]
  %v484 = vld [vmem:[%s1 + $0xd80] sm:$0xff]
  %v485 = vld [vmem:[%s1 + $0xd88] sm:$0xff]
  %v486 = vld [vmem:[%s1 + $0xd90] sm:$0xff]
  %v487 = vld [vmem:[%s1 + $0xd98] sm:$0xff]
  %v488 = vld [vmem:[%s1 + $0xda0] sm:$0xff]
  %v489 = vld [vmem:[%s1 + $0xda8] sm:$0xff]
  %v490 = vld [vmem:[%s1 + $0xdb0] sm:$0xff]
  %v491 = vld [vmem:[%s1 + $0xdb8] sm:$0xff]
  %v492 = vld [vmem:[%s1 + $0xdc0] sm:$0xff]
  %v493 = vld [vmem:[%s1 + $0xdc8] sm:$0xff]
  %v494 = vld [vmem:[%s1 + $0xdd0] sm:$0xff]
  %v495 = vld [vmem:[%s1 + $0xdd8] sm:$0xff]
  %v496 = vld [vmem:[%s1 + $0xde0] sm:$0xff]
  %v497 = vld [vmem:[%s1 + $0xde8] sm:$0xff]
  %v498 = vld [vmem:[%s1 + $0xdf0] sm:$0xff]
  %v499 = vld [vmem:[%s1 + $0xdf8] sm:$0xff]
  %v500 = vld [vmem:[%s1 + $0xe00] sm:$0xff]
  %v501 = vld [vmem:[%s1 + $0xe08] sm:$0xff]
  %v502 = vld [vmem:[%s1 + $0xe10] sm:$0xff]
  %v503 = vld [vmem:[%s1 + $0xe18] sm:$0xff]
  %v504 = vld [vmem:[%s1 + $0xe20] sm:$0xff]
  %v505 = vld [vmem:[%s1 + $0xe28] sm:$0xff]
  %v506 = vld [vmem:[%s1 + $0xe30] sm:$0xff]
  %v507 = vld [vmem:[%s1 + $0xe38] sm:$0xff]
  %v508 = vld [vmem:[%s1 + $0xe40] sm:$0xff]
  %v509 = vld [vmem:[%s1 + $0xe48] sm:$0xff]
  %v510 = vld [vmem:[%s1 + $0xe50] sm:$0xff]
  %v511 = vld [vmem:[%s1 + $0xe58] sm:$0xff]
  %v512 = vld [vmem:[%s1 + $0xe60] sm:$0xff]
  %v513 = vld [vmem:[%s1 + $0xe68] sm:$0xff]
  %v514 = vld [vmem:[%s1 + $0xe70] sm:$0xff]
  %v515 = vld [vmem:[%s1 + $0xe78] sm:$0xff]
  %v516 = vld [vmem:[%s1 + $0xe80] sm:$0xff]
  %v517 = vld [vmem:[%s1 + $0xe88] sm:$0xff]
  %v518 = vld [vmem:[%s1 + $0xe90] sm:$0xff]
  %v519 = vld [vmem:[%s1 + $0xe98] sm:$0xff]
  %v520 = vld [vmem:[%s1 + $0xea0] sm:$0xff]
  %v521 = vld [vmem:[%s1 + $0xea8] sm:$0xff]
  %v522 = vld [vmem:[%s1 + $0xeb0] sm:$0xff]
  %v523 = vld [vmem:[%s1 + $0xeb8] sm:$0xff]
  %v524 = vld [vmem:[%s1 + $0xec0] sm:$0xff]
  %v525 = vld [vmem:[%s1 + $0xec8] sm:$0xff]
  %v526 = vld [vmem:[%s1 + $0xed0] sm:$0xff]
  %v527 = vld [vmem:[%s1 + $0xed8] sm:$0xff]
  %v528 = vld [vmem:[%s1 + $0xee0] sm:$0xff]
  %v529 = vld [vmem:[%s1 + $0xee8] sm:$0xff]
  %v530 = vld [vmem:[%s1 + $0xef0] sm:$0xff]
  %v531 = vld [vmem:[%s1 + $0xef8] sm:$0xff]
  %v532 = vld [vmem:[%s1 + $0xf00] sm:$0xff]
  %v533 = vld [vmem:[%s1 + $0xf08] sm:$0xff]
  %v534 = vld [vmem:[%s1 + $0xf10] sm:$0xff]
  %v535 = vld [vmem:[%s1 + $0xf18] sm:$0xff]
  %v536 = vld [vmem:[%s1 + $0xf20] sm:$0xff]
  %v537 = vld [vmem:[%s1 + $0xf28] sm:$0xff]
  %v538 = vld [vmem:[%s1 + $0xf30] sm:$0xff]
  %v539 = vld [vmem:[%s1 + $0xf38] sm:$0xff]
  %v540 = vld [vmem:[%s1 + $0xf40] sm:$0xff]
  %v541 = vld [vmem:[%s1 + $0xf48] sm:$0xff]
  %v542 = vld [vmem:[%s1 + $0xf50] sm:$0xff]
  %v543 = vld [vmem:[%s1 + $0xf58] sm:$0xff]
  %v544 = vld [vmem:[%s1 + $0xf60] sm:$0xff]
  %v545 = vld [vmem:[%s1 + $0xf68] sm:$0xff]
  %v546 = vld [vmem:[%s1 + $0xf70] sm:$0xff]
  %v547 = vld [vmem:[%s1 + $0xf78] sm:$0xff]
  %v548 = vld [vmem:[%s1 + $0xf80] sm:$0xff]
  %v549 = vld [vmem:[%s1 + $0xf88] sm:$0xff]
  %v550 = vld [vmem:[%s1 + $0xf90] sm:$0xff]
  %v551 = vld [vmem:[%s1 + $0xf98] sm:$0xff]
  %v552 = vld [vmem:[%s1 + $0xfa0] sm:$0xff]
  %v553 = vld [vmem:[%s1 + $0xfa8] sm:$0xff]
  %v554 = vld [vmem:[%s1 + $0xfb0] sm:$0xff]
  %v555 = vld [vmem:[%s1 + $0xfb8] sm:$0xff]
  %v556 = vld [vmem:[%s1 + $0xfc0] sm:$0xff]
  %v557 = vld [vmem:[%s1 + $0xfc8] sm:$0xff]
  %v558 = vld [vmem:[%s1 + $0xfd0] sm:$0xff]
  %v559 = vld [vmem:[%s1 + $0xfd8] sm:$0xff]
  %v560 = vld [vmem:[%s1 + $0xfe0] sm:$0xff]
  %v561 = vld [vmem:[%s1 + $0xfe8] sm:$0xff]
  %v562 = vld [vmem:[%s1 + $0xff0] sm:$0xff]
  %v563 = vld [vmem:[%s1 + $0xff8] sm:$0xff]
  %v564 = vld [vmem:[%s1 + $0x1000] sm:$0xff]
  %v565 = vld [vmem:[%s1 + $0x1008] sm:$0xff]
  %v566 = vld [vmem:[%s1 + $0x1010] sm:$0xff]
  %v567 = vld [vmem:[%s1 + $0x1018] sm:$0xff]
  %v568 = vld [vmem:[%s1 + $0x1020] sm:$0xff]
  %v569 = vld [vmem:[%s1 + $0x1028] sm:$0xff]
  %v570 = vld [vmem:[%s1 + $0x1030] sm:$0xff]
  %v571 = vld [vmem:[%s1 + $0x1038] sm:$0xff]
  %v572 = vld [vmem:[%s1 + $0x1040] sm:$0xff]
  %v573 = vld [vmem:[%s1 + $0x1048] sm:$0xff]
  %v574 = vld [vmem:[%s1 + $0x1050] sm:$0xff]
  %v575 = vld [vmem:[%s1 + $0x1058] sm:$0xff]
  %v576 = vld [vmem:[%s1 + $0x1060] sm:$0xff]
  %v577 = vld [vmem:[%s1 + $0x1068] sm:$0xff]
  %v578 = vld [vmem:[%s1 + $0x1070] sm:$0xff]
  %v579 = vld [vmem:[%s1 + $0x1078] sm:$0xff]
  %v580 = vld [vmem:[%s1 + $0x1080] sm:$0xff]
  %v581 = vld [vmem:[%s1 + $0x1088] sm:$0xff]
  %v582 = vld [vmem:[%s1 + $0x1090] sm:$0xff]
  %v583 = vld [vmem:[%s1 + $0x1098] sm:$0xff]
  %v584 = vld [vmem:[%s1 + $0x10a0] sm:$0xff]
  %v585 = vld [vmem:[%s1 + $0x10a8] sm:$0xff]
  %v586 = vld [vmem:[%s1 + $0x10b0] sm:$0xff]
  %v587 = vld [vmem:[%s1 + $0x10b8] sm:$0xff]
  %v588 = vld [vmem:[%s1 + $0x10c0] sm:$0xff]
  %v589 = vld [vmem:[%s1 + $0x10c8] sm:$0xff]
  %v590 = vld [vmem:[%s1 + $0x10d0] sm:$0xff]
  %v591 = vld [vmem:[%s1 + $0x10d8] sm:$0xff]
  %v592 = vld [vmem:[%s1 + $0x10e0] sm:$0xff]
  %v593 = vld [vmem:[%s1 + $0x10e8] sm:$0xff]
  %v594 = vld [vmem:[%s1 + $0x10f0] sm:$0xff]
  %v595 = vld [vmem:[%s1 + $0x10f8] sm:$0xff]
  %v596 = vld [vmem:[%s1 + $0x1100] sm:$0xff]
  %v597 = vld [vmem:[%s1 + $0x1108] sm:$0xff]
  %v598 = vld [vmem:[%s1 + $0x1110] sm:$0xff]
  %v599 = vld [vmem:[%s1 + $0x1118] sm:$0xff]
  %v600 = vld [vmem:[%s1 + $0x1120] sm:$0xff]
  %v601 = vld [vmem:[%s1 + $0x1128] sm:$0xff]
  %v602 = vld [vmem:[%s1 + $0x1130] sm:$0xff]
  %v603 = vld [vmem:[%s1 + $0x1138] sm:$0xff]
  %v604 = vld [vmem:[%s1 + $0x1140] sm:$0xff]
  %v605 = vld [vmem:[%s1 + $0x1148] sm:$0xff]
  %v606 = vld [vmem:[%s1 + $0x1150] sm:$0xff]
  %v607 = vld [vmem:[%s1 + $0x1158] sm:$0xff]
  %v608 = vld [vmem:[%s1 + $0x1160] sm:$0xff]
  %v609 = vld [vmem:[%s1 + $0x1168] sm:$0xff]
  %v610 = vld [vmem:[%s1 + $0x1170] sm:$0xff]
  %v611 = vld [vmem:[%s1 + $0x1178] sm:$0xff]
  %v612 = vld [vmem:[%s1 + $0x1180] sm:$0xff]
  %v613 = vld [vmem:[%s1 + $0x1188] sm:$0xff]
  %v614 = vld [vmem:[%s1 + $0x1190] sm:$0xff]
  %v615 = vld [vmem:[%s1 + $0x1198] sm:$0xff]
  %v616 = vld [vmem:[%s1 + $0x11a0] sm:$0xff]
  %v617 = vld [vmem:[%s1 + $0x11a8] sm:$0xff]
  %v618 = vld [vmem:[%s1 + $0x11b0] sm:$0xff]
  %v619 = vld [vmem:[%s1 + $0x11b8] sm:$0xff]
  %v620 = vld [vmem:[%s1 + $0x11c0] sm:$0xff]
  %v621 = vld [vmem:[%s1 + $0x11c8] sm:$0xff]
  %v622 = vld [vmem:[%s1 + $0x11d0] sm:$0xff]
  %v623 = vld [vmem:[%s1 + $0x11d8] sm:$0xff]
  %v624 = vld [vmem:[%s1 + $0x11e0] sm:$0xff]
  %v625 = vld [vmem:[%s1 + $0x11e8] sm:$0xff]
  %v626 = vld [vmem:[%s1 + $0x11f0] sm:$0xff]
  %v627 = vld [vmem:[%s1 + $0x11f8] sm:$0xff]
  %v628 = vld [vmem:[%s1 + $0x1200] sm:$0xff]
  %v629 = vld [vmem:[%s1 + $0x1208] sm:$0xff]
  %v630 = vld [vmem:[%s1 + $0x1210] sm:$0xff]
  %v631 = vld [vmem:[%s1 + $0x1218] sm:$0xff]
  %v632 = vld [vmem:[%s1 + $0x1220] sm:$0xff]
  %v633 = vld [vmem:[%s1 + $0x1228] sm:$0xff]
  %v634 = vld [vmem:[%s1 + $0x1230] sm:$0xff]
  %v635 = vld [vmem:[%s1 + $0x1238] sm:$0xff]
  %v636 = vld [vmem:[%s1 + $0x1240] sm:$0xff]
  %v637 = vld [vmem:[%s1 + $0x1248] sm:$0xff]
  %v638 = vld [vmem:[%s1 + $0x1250] sm:$0xff]
  %v639 = vld [vmem:[%s1 + $0x1258] sm:$0xff]
  %v640 = vld [vmem:[%s1 + $0x1260] sm:$0xff]
  %v641 = vld [vmem:[%s1 + $0x1268] sm:$0xff]
  %v642 = vld [vmem:[%s1 + $0x1270] sm:$0xff]
  %v643 = vld [vmem:[%s1 + $0x1278] sm:$0xff]
  %v644 = vld [vmem:[%s1 + $0x1280] sm:$0xff]
  %v645 = vld [vmem:[%s1 + $0x1288] sm:$0xff]
  %v646 = vld [vmem:[%s1 + $0x1290] sm:$0xff]
  %v647 = vld [vmem:[%s1 + $0x1298] sm:$0xff]
  %v648 = vld [vmem:[%s1 + $0x12a0] sm:$0xff]
  %v649 = vld [vmem:[%s1 + $0x12a8] sm:$0xff]
  %v650 = vld [vmem:[%s1 + $0x12b0] sm:$0xff]
  %v651 = vld [vmem:[%s1 + $0x12b8] sm:$0xff]
  %v652 = vld [vmem:[%s1 + $0x12c0] sm:$0xff]
  %v653 = vld [vmem:[%s1 + $0x12c8] sm:$0xff]
  %v654 = vld [vmem:[%s1 + $0x12d0] sm:$0xff]
  %v655 = vld [vmem:[%s1 + $0x12d8] sm:$0xff]
  %v656 = vld [vmem:[%s1 + $0x12e0] sm:$0xff]
  %v657 = vld [vmem:[%s1 + $0x12e8] sm:$0xff]
  %v658 = vld [vmem:[%s1 + $0x12f0] sm:$0xff]
  %v659 = vld [vmem:[%s1 + $0x12f8] sm:$0xff]
  %v660 = vld [vmem:[%s1 + $0x1300] sm:$0xff]
  %v661 = vld [vmem:[%s1 + $0x1308] sm:$0xff]
  %v662 = vld [vmem:[%s1 + $0x1310] sm:$0xff]
  %v663 = vld [vmem:[%s1 + $0x1318] sm:$0xff]
  %v664 = vld [vmem:[%s1 + $0x1320] sm:$0xff]
  %v665 = vld [vmem:[%s1 + $0x1328] sm:$0xff]
  %v666 = vld [vmem:[%s1 + $0x1330] sm:$0xff]
  %v667 = vld [vmem:[%s1 + $0x1338] sm:$0xff]
  %v668 = vld [vmem:[%s1 + $0x1340] sm:$0xff]
  %v669 = vld [vmem:[%s1 + $0x1348] sm:$0xff]
  %v670 = vld [vmem:[%s1 + $0x1350] sm:$0xff]
  %v671 = vld [vmem:[%s1 + $0x1358] sm:$0xff]
  %v672 = vld [vmem:[%s1 + $0x1360] sm:$0xff]
  %v673 = vld [vmem:[%s1 + $0x1368] sm:$0xff]
  %v674 = vld [vmem:[%s1 + $0x1370] sm:$0xff]
  %v675 = vld [vmem:[%s1 + $0x1378] sm:$0xff]
  %v676 = vld [vmem:[%s1 + $0x1380] sm:$0xff]
  %v677 = vld [vmem:[%s1 + $0x1388] sm:$0xff]
  %v678 = vld [vmem:[%s1 + $0x1390] sm:$0xff]
  %v679 = vld [vmem:[%s1 + $0x1398] sm:$0xff]
  %v680 = vld [vmem:[%s1 + $0x13a0] sm:$0xff]
  %v681 = vld [vmem:[%s1 + $0x13a8] sm:$0xff]
  %v682 = vld [vmem:[%s1 + $0x13b0] sm:$0xff]
  %v683 = vld [vmem:[%s1 + $0x13b8] sm:$0xff]
  %v684 = vld [vmem:[%s1 + $0x13c0] sm:$0xff]
  %v685 = vld [vmem:[%s1 + $0x13c8] sm:$0xff]
  %v686 = vld [vmem:[%s1 + $0x13d0] sm:$0xff]
  %v687 = vld [vmem:[%s1 + $0x13d8] sm:$0xff]
  %v688 = vld [vmem:[%s1 + $0x13e0] sm:$0xff]
  %v689 = vld [vmem:[%s1 + $0x13e8] sm:$0xff]
  %v690 = vld [vmem:[%s1 + $0x13f0] sm:$0xff]
  %v691 = vld [vmem:[%s1 + $0x13f8] sm:$0xff]
  %v692 = vld [vmem:[%s1 + $0x1400] sm:$0xff]
  %v693 = vld [vmem:[%s1 + $0x1408] sm:$0xff]
  %v694 = vld [vmem:[%s1 + $0x1410] sm:$0xff]
  %v695 = vld [vmem:[%s1 + $0x1418] sm:$0xff]
  %v696 = vld [vmem:[%s1 + $0x1420] sm:$0xff]
  %v697 = vld [vmem:[%s1 + $0x1428] sm:$0xff]
  %v698 = vld [vmem:[%s1 + $0x1430] sm:$0xff]
  %v699 = vld [vmem:[%s1 + $0x1438] sm:$0xff]
  %v700 = vld [vmem:[%s1 + $0x1440] sm:$0xff]
  %v701 = vld [vmem:[%s1 + $0x1448] sm:$0xff]
  %v702 = vld [vmem:[%s1 + $0x1450] sm:$0xff]
  %v703 = vld [vmem:[%s1 + $0x1458] sm:$0xff]
  %v704 = vld [vmem:[%s1 + $0x1460] sm:$0xff]
  %v705 = vld [vmem:[%s1 + $0x1468] sm:$0xff]
  %v706 = vld [vmem:[%s1 + $0x1470] sm:$0xff]
  %v707 = vld [vmem:[%s1 + $0x1478] sm:$0xff]
  %v708 = vld [vmem:[%s1 + $0x1480] sm:$0xff]
  %v709 = vld [vmem:[%s1 + $0x1488] sm:$0xff]
  %v710 = vld [vmem:[%s1 + $0x1490] sm:$0xff]
  %v711 = vld [vmem:[%s1 + $0x1498] sm:$0xff]
  %v712 = vld [vmem:[%s1 + $0x14a0] sm:$0xff]
  %v713 = vld [vmem:[%s1 + $0x14a8] sm:$0xff]
  %v714 = vld [vmem:[%s1 + $0x14b0] sm:$0xff]
  %v715 = vld [vmem:[%s1 + $0x14b8] sm:$0xff]
  %v716 = vld [vmem:[%s1 + $0x14c0] sm:$0xff]
  %v717 = vld [vmem:[%s1 + $0x14c8] sm:$0xff]
  %v718 = vld [vmem:[%s1 + $0x14d0] sm:$0xff]
  %v719 = vld [vmem:[%s1 + $0x14d8] sm:$0xff]
  %v720 = vld [vmem:[%s1 + $0x14e0] sm:$0xff]
  %v721 = vld [vmem:[%s1 + $0x14e8] sm:$0xff]
  %v722 = vld [vmem:[%s1 + $0x14f0] sm:$0xff]
  %v723 = vld [vmem:[%s1 + $0x14f8] sm:$0xff]
  %v724 = vld [vmem:[%s1 + $0x1500] sm:$0xff]
  %v725 = vld [vmem:[%s1 + $0x1508] sm:$0xff]
  %v726 = vld [vmem:[%s1 + $0x1510] sm:$0xff]
  %v727 = vld [vmem:[%s1 + $0x1518] sm:$0xff]
  %v728 = vld [vmem:[%s1 + $0x1520] sm:$0xff]
  %v729 = vld [vmem:[%s1 + $0x1528] sm:$0xff]
  %v730 = vld [vmem:[%s1 + $0x1530] sm:$0xff]
  %v731 = vld [vmem:[%s1 + $0x1538] sm:$0xff]
  %v732 = vld [vmem:[%s1 + $0x1540] sm:$0xff]
  %v733 = vld [vmem:[%s1 + $0x1548] sm:$0xff]
  %v734 = vld [vmem:[%s1 + $0x1550] sm:$0xff]
  %v735 = vld [vmem:[%s1 + $0x1558] sm:$0xff]
  %v736 = vld [vmem:[%s1 + $0x1560] sm:$0xff]
  %v737 = vld [vmem:[%s1 + $0x1568] sm:$0xff]
  %v738 = vld [vmem:[%s1 + $0x1570] sm:$0xff]
  %v739 = vld [vmem:[%s1 + $0x1578] sm:$0xff]
  %v740 = vld [vmem:[%s1 + $0x1580] sm:$0xff]
  %v741 = vld [vmem:[%s1 + $0x1588] sm:$0xff]
  %v742 = vld [vmem:[%s1 + $0x1590] sm:$0xff]
  %v743 = vld [vmem:[%s1 + $0x1598] sm:$0xff]
  %v744 = vld [vmem:[%s1 + $0x15a0] sm:$0xff]
  %v745 = vld [vmem:[%s1 + $0x15a8] sm:$0xff]
  %v746 = vld [vmem:[%s1 + $0x15b0] sm:$0xff]
  %v747 = vld [vmem:[%s1 + $0x15b8] sm:$0xff]
  %v748 = vld [vmem:[%s1 + $0x15c0] sm:$0xff]
  %v749 = vld [vmem:[%s1 + $0x15c8] sm:$0xff]
  %v750 = vld [vmem:[%s1 + $0x15d0] sm:$0xff]
  %v751 = vld [vmem:[%s1 + $0x15d8] sm:$0xff]
  %v752 = vld [vmem:[%s1 + $0x15e0] sm:$0xff]
  %v753 = vld [vmem:[%s1 + $0x15e8] sm:$0xff]
  %v754 = vld [vmem:[%s1 + $0x15f0] sm:$0xff]
  %v755 = vld [vmem:[%s1 + $0x15f8] sm:$0xff]
  %v756 = vld [vmem:[%s1 + $0x1600] sm:$0xff]
  %v757 = vld [vmem:[%s1 + $0x1608] sm:$0xff]
  %v758 = vld [vmem:[%s1 + $0x1610] sm:$0xff]
  %v759 = vld [vmem:[%s1 + $0x1618] sm:$0xff]
  %v760 = vld [vmem:[%s1 + $0x1620] sm:$0xff]
  %v761 = vld [vmem:[%s1 + $0x1628] sm:$0xff]
  %v762 = vld [vmem:[%s1 + $0x1630] sm:$0xff]
  %v763 = vld [vmem:[%s1 + $0x1638] sm:$0xff]
  %v764 = vld [vmem:[%s1 + $0x1640] sm:$0xff]
  %v765 = vld [vmem:[%s1 + $0x1648] sm:$0xff]
  %v766 = vld [vmem:[%s1 + $0x1650] sm:$0xff]
  %v767 = vld [vmem:[%s1 + $0x1658] sm:$0xff]
  %v768 = vld [vmem:[%s1 + $0x1660] sm:$0xff]
  %v769 = vld [vmem:[%s1 + $0x1668] sm:$0xff]
  %v770 = vld [vmem:[%s1 + $0x1670] sm:$0xff]
  %v771 = vld [vmem:[%s1 + $0x1678] sm:$0xff]
  %v772 = vld [vmem:[%s1 + $0x1680] sm:$0xff]
  %v773 = vld [vmem:[%s1 + $0x1688] sm:$0xff]
  %v774 = vld [vmem:[%s1 + $0x1690] sm:$0xff]
  %v775 = vld [vmem:[%s1 + $0x1698] sm:$0xff]
  %v776 = vld [vmem:[%s1 + $0x16a0] sm:$0xff]
  %v777 = vld [vmem:[%s1 + $0x16a8] sm:$0xff]
  %v778 = vld [vmem:[%s1 + $0x16b0] sm:$0xff]
  %v779 = vld [vmem:[%s1 + $0x16b8] sm:$0xff]
  %v780 = vld [vmem:[%s1 + $0x16c0] sm:$0xff]
  %v781 = vld [vmem:[%s1 + $0x16c8] sm:$0xff]
  %v782 = vld [vmem:[%s1 + $0x16d0] sm:$0xff]
  %v783 = vld [vmem:[%s1 + $0x16d8] sm:$0xff]
  %v784 = vld [vmem:[%s1 + $0x16e0] sm:$0xff]
  %v785 = vld [vmem:[%s1 + $0x16e8] sm:$0xff]
  %v786 = vld [vmem:[%s1 + $0x16f0] sm:$0xff]
  %v787 = vld [vmem:[%s1 + $0x16f8] sm:$0xff]
  %v788 = vld [vmem:[%s1 + $0x1700] sm:$0xff]
  %v789 = vld [vmem:[%s1 + $0x1708] sm:$0xff]
  %v790 = vld [vmem:[%s1 + $0x1710] sm:$0xff]
  %v791 = vld [vmem:[%s1 + $0x1718] sm:$0xff]
  %v792 = vld [vmem:[%s1 + $0x1720] sm:$0xff]
  %v793 = vld [vmem:[%s1 + $0x1728] sm:$0xff]
  %v794 = vld [vmem:[%s1 + $0x1730] sm:$0xff]
  %v795 = vld [vmem:[%s1 + $0x1738] sm:$0xff]
  %v796 = vld [vmem:[%s1 + $0x1740] sm:$0xff]
  %v797 = vld [vmem:[%s1 + $0x1748] sm:$0xff]
  %v798 = vld [vmem:[%s1 + $0x1750] sm:$0xff]
  %v799 = vld [vmem:[%s1 + $0x1758] sm:$0xff]
  %v800 = vld [vmem:[%s1 + $0x1760] sm:$0xff]
  %v801 = vld [vmem:[%s1 + $0x1768] sm:$0xff]
  %v802 = vld [vmem:[%s1 + $0x1770] sm:$0xff]
  %v803 = vld [vmem:[%s1 + $0x1778] sm:$0xff]
  %v804 = vld [vmem:[%s1 + $0x1780] sm:$0xff]
  %v805 = vld [vmem:[%s1 + $0x1788] sm:$0xff]
  %v806 = vld [vmem:[%s1 + $0x1790] sm:$0xff]
  %v807 = vld [vmem:[%s1 + $0x1798] sm:$0xff]
  %v808 = vld [vmem:[%s1 + $0x17a0] sm:$0xff]
  %v809 = vld [vmem:[%s1 + $0x17a8] sm:$0xff]
  %v810 = vld [vmem:[%s1 + $0x17b0] sm:$0xff]
  %v811 = vld [vmem:[%s1 + $0x17b8] sm:$0xff]
  %v812 = vld [vmem:[%s1 + $0x17c0] sm:$0xff]
  %v813 = vld [vmem:[%s1 + $0x17c8] sm:$0xff]
  %v814 = vld [vmem:[%s1 + $0x17d0] sm:$0xff]
  %v815 = vld [vmem:[%s1 + $0x17d8] sm:$0xff]
  %v816 = vld [vmem:[%s1 + $0x17e0] sm:$0xff]
  %v817 = vld [vmem:[%s1 + $0x17e8] sm:$0xff]
  %v818 = vld [vmem:[%s1 + $0x17f0] sm:$0xff]
  %v819 = vld [vmem:[%s1 + $0x17f8] sm:$0xff]
  %v820 = vld [vmem:[%s1 + $0x1800] sm:$0xff]
  %v821 = vld [vmem:[%s1 + $0x1808] sm:$0xff]
  %v822 = vld [vmem:[%s1 + $0x1810] sm:$0xff]
  %v823 = vld [vmem:[%s1 + $0x1818] sm:$0xff]
  %v824 = vld [vmem:[%s1 + $0x1820] sm:$0xff]
  %v825 = vld [vmem:[%s1 + $0x1828] sm:$0xff]
  %v826 = vld [vmem:[%s1 + $0x1830] sm:$0xff]
  %v827 = vld [vmem:[%s1 + $0x1838] sm:$0xff]
  %v828 = vld [vmem:[%s1 + $0x1840] sm:$0xff]
  %v829 = vld [vmem:[%s1 + $0x1848] sm:$0xff]
  %v830 = vld [vmem:[%s1 + $0x1850] sm:$0xff]
  %v831 = vld [vmem:[%s1 + $0x1858] sm:$0xff]
  %v832 = vld [vmem:[%s1 + $0x1860] sm:$0xff]
  %v833 = vld [vmem:[%s1 + $0x1868] sm:$0xff]
  %v834 = vld [vmem:[%s1 + $0x1870] sm:$0xff]
  %v835 = vld [vmem:[%s1 + $0x1878] sm:$0xff]
  %v836 = vld [vmem:[%s1 + $0x1880] sm:$0xff]
  %v837 = vld [vmem:[%s1 + $0x1888] sm:$0xff]
  %v838 = vld [vmem:[%s1 + $0x1890] sm:$0xff]
  %v839 = vld [vmem:[%s1 + $0x1898] sm:$0xff]
  %v840 = vld [vmem:[%s1 + $0x18a0] sm:$0xff]
  %v841 = vld [vmem:[%s1 + $0x18a8] sm:$0xff]
  %v842 = vld [vmem:[%s1 + $0x18b0] sm:$0xff]
  %v843 = vld [vmem:[%s1 + $0x18b8] sm:$0xff]
  %v844 = vld [vmem:[%s1 + $0x18c0] sm:$0xff]
  %v845 = vld [vmem:[%s1 + $0x18c8] sm:$0xff]
  %v846 = vld [vmem:[%s1 + $0x18d0] sm:$0xff]
  %v847 = vld [vmem:[%s1 + $0x18d8] sm:$0xff]
  %v848 = vld [vmem:[%s1 + $0x18e0] sm:$0xff]
  %v849 = vld [vmem:[%s1 + $0x18e8] sm:$0xff]
  %v850 = vld [vmem:[%s1 + $0x18f0] sm:$0xff]
  %v851 = vld [vmem:[%s1 + $0x18f8] sm:$0xff]
  %v852 = vld [vmem:[%s1 + $0x1900] sm:$0xff]
  %v853 = vld [vmem:[%s1 + $0x1908] sm:$0xff]
  %v854 = vld [vmem:[%s1 + $0x1910] sm:$0xff]
  %v855 = vld [vmem:[%s1 + $0x1918] sm:$0xff]
  %v856 = vld [vmem:[%s1 + $0x1920] sm:$0xff]
  %v857 = vld [vmem:[%s1 + $0x1928] sm:$0xff]
  %v858 = vld [vmem:[%s1 + $0x1930] sm:$0xff]
  %v859 = vld [vmem:[%s1 + $0x1938] sm:$0xff]
  %v860 = vld [vmem:[%s1 + $0x1940] sm:$0xff]
  %v861 = vld [vmem:[%s1 + $0x1948] sm:$0xff]
  %v862 = vld [vmem:[%s1 + $0x1950] sm:$0xff]
  %v863 = vld [vmem:[%s1 + $0x1958] sm:$0xff]
  %v864 = vld [vmem:[%s1 + $0x1960] sm:$0xff]
  %v865 = vld [vmem:[%s1 + $0x1968] sm:$0xff]
  %v866 = vld [vmem:[%s1 + $0x1970] sm:$0xff]
  %v867 = vld [vmem:[%s1 + $0x1978] sm:$0xff]
  %v868 = vld [vmem:[%s1 + $0x1980] sm:$0xff]
  %v869 = vld [vmem:[%s1 + $0x1988] sm:$0xff]
  %v870 = vld [vmem:[%s1 + $0x1990] sm:$0xff]
  %v871 = vld [vmem:[%s1 + $0x1998] sm:$0xff]
  %v872 = vld [vmem:[%s1 + $0x19a0] sm:$0xff]
  %v873 = vld [vmem:[%s1 + $0x19a8] sm:$0xff]
  %v874 = vld [vmem:[%s1 + $0x19b0] sm:$0xff]
  %v875 = vld [vmem:[%s1 + $0x19b8] sm:$0xff]
  %v876 = vld [vmem:[%s1 + $0x19c0] sm:$0xff]
  %v877 = vld [vmem:[%s1 + $0x19c8] sm:$0xff]
  %v878 = vld [vmem:[%s1 + $0x19d0] sm:$0xff]
  %v879 = vld [vmem:[%s1 + $0x19d8] sm:$0xff]
  %v880 = vld [vmem:[%s1 + $0x19e0] sm:$0xff]
  %v881 = vld [vmem:[%s1 + $0x19e8] sm:$0xff]
  %v882 = vld [vmem:[%s1 + $0x19f0] sm:$0xff]
  %v883 = vld [vmem:[%s1 + $0x19f8] sm:$0xff]
  %v884 = vld [vmem:[%s1 + $0x1a00] sm:$0xff]
  %v885 = vld [vmem:[%s1 + $0x1a08] sm:$0xff]
  %v886 = vld [vmem:[%s1 + $0x1a10] sm:$0xff]
  %v887 = vld [vmem:[%s1 + $0x1a18] sm:$0xff]
  %v888 = vld [vmem:[%s1 + $0x1a20] sm:$0xff]
  %v889 = vld [vmem:[%s1 + $0x1a28] sm:$0xff]
  %v890 = vld [vmem:[%s1 + $0x1a30] sm:$0xff]
  %v891 = vld [vmem:[%s1 + $0x1a38] sm:$0xff]
  %v892 = vld [vmem:[%s1 + $0x1a40] sm:$0xff]
  %v893 = vld [vmem:[%s1 + $0x1a48] sm:$0xff]
  %v894 = vld [vmem:[%s1 + $0x1a50] sm:$0xff]
  %v895 = vld [vmem:[%s1 + $0x1a58] sm:$0xff]
  %v896 = vld [vmem:[%s1 + $0x1a60] sm:$0xff]
  %v897 = vld [vmem:[%s1 + $0x1a68] sm:$0xff]
  %v898 = vld [vmem:[%s1 + $0x1a70] sm:$0xff]
  %v899 = vld [vmem:[%s1 + $0x1a78] sm:$0xff]
  %v900 = vld [vmem:[%s1 + $0x1a80] sm:$0xff]
  %v901 = vld [vmem:[%s1 + $0x1a88] sm:$0xff]
  %v902 = vld [vmem:[%s1 + $0x1a90] sm:$0xff]
  %v903 = vld [vmem:[%s1 + $0x1a98] sm:$0xff]
  %v904 = vld [vmem:[%s1 + $0x1aa0] sm:$0xff]
  %v905 = vld [vmem:[%s1 + $0x1aa8] sm:$0xff]
  %v906 = vld [vmem:[%s1 + $0x1ab0] sm:$0xff]
  %v907 = vld [vmem:[%s1 + $0x1ab8] sm:$0xff]
  %v908 = vld [vmem:[%s1 + $0x1ac0] sm:$0xff]
  %v909 = vld [vmem:[%s1 + $0x1ac8] sm:$0xff]
  %v910 = vld [vmem:[%s1 + $0x1ad0] sm:$0xff]
  %v911 = vld [vmem:[%s1 + $0x1ad8] sm:$0xff]
  %v912 = vld [vmem:[%s1 + $0x1ae0] sm:$0xff]
  %v913 = vld [vmem:[%s1 + $0x1ae8] sm:$0xff]
  %v914 = vld [vmem:[%s1 + $0x1af0] sm:$0xff]
  %v915 = vld [vmem:[%s1 + $0x1af8] sm:$0xff]
  %v916 = vld [vmem:[%s1 + $0x1b00] sm:$0xff]
  %v917 = vld [vmem:[%s1 + $0x1b08] sm:$0xff]
  %v918 = vld [vmem:[%s1 + $0x1b10] sm:$0xff]
  %v919 = vld [vmem:[%s1 + $0x1b18] sm:$0xff]
  %v920 = vld [vmem:[%s1 + $0x1b20] sm:$0xff]
  %v921 = vld [vmem:[%s1 + $0x1b28] sm:$0xff]
  %v922 = vld [vmem:[%s1 + $0x1b30] sm:$0xff]
  %v923 = vld [vmem:[%s1 + $0x1b38] sm:$0xff]
  %v924 = vld [vmem:[%s1 + $0x1b40] sm:$0xff]
  %v925 = vld [vmem:[%s1 + $0x1b48] sm:$0xff]
  %v926 = vld [vmem:[%s1 + $0x1b50] sm:$0xff]
  %v927 = vld [vmem:[%s1 + $0x1b58] sm:$0xff]
  %v928 = vld [vmem:[%s1 + $0x1b60] sm:$0xff]
  %v929 = vld [vmem:[%s1 + $0x1b68] sm:$0xff]
  %v930 = vld [vmem:[%s1 + $0x1b70] sm:$0xff]
  %v931 = vld [vmem:[%s1 + $0x1b78] sm:$0xff]
  %v932 = vld [vmem:[%s1 + $0x1b80] sm:$0xff]
  %v933 = vld [vmem:[%s1 + $0x1b88] sm:$0xff]
  %v934 = vld [vmem:[%s1 + $0x1b90] sm:$0xff]
  %v935 = vld [vmem:[%s1 + $0x1b98] sm:$0xff]
  %v936 = vld [vmem:[%s1 + $0x1ba0] sm:$0xff]
  %v937 = vld [vmem:[%s1 + $0x1ba8] sm:$0xff]
  %v938 = vld [vmem:[%s1 + $0x1bb0] sm:$0xff]
  %v939 = vld [vmem:[%s1 + $0x1bb8] sm:$0xff]
  %v940 = vld [vmem:[%s1 + $0x1bc0] sm:$0xff]
  %v941 = vld [vmem:[%s1 + $0x1bc8] sm:$0xff]
  %v942 = vld [vmem:[%s1 + $0x1bd0] sm:$0xff]
  %v943 = vld [vmem:[%s1 + $0x1bd8] sm:$0xff]
  %v944 = vld [vmem:[%s1 + $0x1be0] sm:$0xff]
  %v945 = vld [vmem:[%s1 + $0x1be8] sm:$0xff]
  %v946 = vld [vmem:[%s1 + $0x1bf0] sm:$0xff]
  %v947 = vld [vmem:[%s1 + $0x1bf8] sm:$0xff]
  %v948 = vld [vmem:[%s1 + $0x1c00] sm:$0xff]
  %v949 = vld [vmem:[%s1 + $0x1c08] sm:$0xff]
  %v950 = vld [vmem:[%s1 + $0x1c10] sm:$0xff]
  %v951 = vld [vmem:[%s1 + $0x1c18] sm:$0xff]
  %v952 = vld [vmem:[%s1 + $0x1c20] sm:$0xff]
  %v953 = vld [vmem:[%s1 + $0x1c28] sm:$0xff]
  %v954 = vld [vmem:[%s1 + $0x1c30] sm:$0xff]
  %v955 = vld [vmem:[%s1 + $0x1c38] sm:$0xff]
  %v956 = vld [vmem:[%s1 + $0x1c40] sm:$0xff]
  %v957 = vld [vmem:[%s1 + $0x1c48] sm:$0xff]
  %v958 = vld [vmem:[%s1 + $0x1c50] sm:$0xff]
  %v959 = vld [vmem:[%s1 + $0x1c58] sm:$0xff]
  %v960 = vld [vmem:[%s1 + $0x1c60] sm:$0xff]
  %v961 = vld [vmem:[%s1 + $0x1c68] sm:$0xff]
  %v962 = vld [vmem:[%s1 + $0x1c70] sm:$0xff]
  %v963 = vld [vmem:[%s1 + $0x1c78] sm:$0xff]
  %v964 = vld [vmem:[%s1 + $0x1c80] sm:$0xff]
  %v965 = vld [vmem:[%s1 + $0x1c88] sm:$0xff]
  %v966 = vld [vmem:[%s1 + $0x1c90] sm:$0xff]
  %v967 = vld [vmem:[%s1 + $0x1c98] sm:$0xff]
  %v968 = vld [vmem:[%s1 + $0x1ca0] sm:$0xff]
  %v969 = vld [vmem:[%s1 + $0x1ca8] sm:$0xff]
  %v970 = vld [vmem:[%s1 + $0x1cb0] sm:$0xff]
  %v971 = vld [vmem:[%s1 + $0x1cb8] sm:$0xff]
  %v972 = vld [vmem:[%s1 + $0x1cc0] sm:$0xff]
  %v973 = vld [vmem:[%s1 + $0x1cc8] sm:$0xff]
  %v974 = vld [vmem:[%s1 + $0x1cd0] sm:$0xff]
  %v975 = vld [vmem:[%s1 + $0x1cd8] sm:$0xff]
  %v976 = vld [vmem:[%s1 + $0x1ce0] sm:$0xff]
  %v977 = vld [vmem:[%s1 + $0x1ce8] sm:$0xff]
  %v978 = vld [vmem:[%s1 + $0x1cf0] sm:$0xff]
  %v979 = vld [vmem:[%s1 + $0x1cf8] sm:$0xff]
  %v980 = vld [vmem:[%s1 + $0x1d00] sm:$0xff]
  %v981 = vld [vmem:[%s1 + $0x1d08] sm:$0xff]
  %v982 = vld [vmem:[%s1 + $0x1d10] sm:$0xff]
  %v983 = vld [vmem:[%s1 + $0x1d18] sm:$0xff]
  %v984 = vld [vmem:[%s1 + $0x1d20] sm:$0xff]
  %v985 = vld [vmem:[%s1 + $0x1d28] sm:$0xff]
  %v986 = vld [vmem:[%s1 + $0x1d30] sm:$0xff]
  %v987 = vld [vmem:[%s1 + $0x1d38] sm:$0xff]
  %v988 = vld [vmem:[%s1 + $0x1d40] sm:$0xff]
  %v989 = vld [vmem:[%s1 + $0x1d48] sm:$0xff]
  %v990 = vld [vmem:[%s1 + $0x1d50] sm:$0xff]
  %v991 = vld [vmem:[%s1 + $0x1d58] sm:$0xff]
  %v992 = vld [vmem:[%s1 + $0x1d60] sm:$0xff]
  %v993 = vld [vmem:[%s1 + $0x1d68] sm:$0xff]
  %v994 = vld [vmem:[%s1 + $0x1d70] sm:$0xff]
  %v995 = vld [vmem:[%s1 + $0x1d78] sm:$0xff]
  %v996 = vld [vmem:[%s1 + $0x1d80] sm:$0xff]
  %v997 = vld [vmem:[%s1 + $0x1d88] sm:$0xff]
  %v998 = vld [vmem:[%s1 + $0x1d90] sm:$0xff]
  %v999 = vld [vmem:[%s1 + $0x1d98] sm:$0xff]
  %v1000 = vld [vmem:[%s1 + $0x1da0] sm:$0xff]
  %v1001 = vld [vmem:[%s1 + $0x1da8] sm:$0xff]
  %v1002 = vld [vmem:[%s1 + $0x1db0] sm:$0xff]
  %v1003 = vld [vmem:[%s1 + $0x1db8] sm:$0xff]
  %v1004 = vld [vmem:[%s1 + $0x1dc0] sm:$0xff]
  %v1005 = vld [vmem:[%s1 + $0x1dc8] sm:$0xff]
  %v1006 = vld [vmem:[%s1 + $0x1dd0] sm:$0xff]
  %v1007 = vld [vmem:[%s1 + $0x1dd8] sm:$0xff]
  %v1008 = vld [vmem:[%s1 + $0x1de0] sm:$0xff]
  %v1009 = vld [vmem:[%s1 + $0x1de8] sm:$0xff]
  %v1010 = vld [vmem:[%s1 + $0x1df0] sm:$0xff]
  %v1011 = vld [vmem:[%s1 + $0x1df8] sm:$0xff]
  %v1012 = vld [vmem:[%s1 + $0x1e00] sm:$0xff]
  %v1013 = vld [vmem:[%s1 + $0x1e08] sm:$0xff]
  %v1014 = vld [vmem:[%s1 + $0x1e10] sm:$0xff]
  %v1015 = vld [vmem:[%s1 + $0x1e18] sm:$0xff]
  %v1016 = vld [vmem:[%s1 + $0x1e20] sm:$0xff]
  %v1017 = vld [vmem:[%s1 + $0x1e28] sm:$0xff]
  %v1018 = vld [vmem:[%s1 + $0x1e30] sm:$0xff]
  %v1019 = vld [vmem:[%s1 + $0x1e38] sm:$0xff]
  %v1020 = vld [vmem:[%s1 + $0x1e40] sm:$0xff]
  %v1021 = vld [vmem:[%s1 + $0x1e48] sm:$0xff]
  %v1022 = vld [vmem:[%s1 + $0x1e50] sm:$0xff]
  %v1023 = vld [vmem:[%s1 + $0x1e58] sm:$0xff]
  %v1024 = vld [vmem:[%s1 + $0x1e60] sm:$0xff]
  %v1025 = vld [vmem:[%s1 + $0x1e68] sm:$0xff]
  %v1026 = vld [vmem:[%s1 + $0x1e70] sm:$0xff]
  %v1027 = vld [vmem:[%s1 + $0x1e78] sm:$0xff]
  %v1028 = vld [vmem:[%s1 + $0x1e80] sm:$0xff]
  %v1029 = vld [vmem:[%s1 + $0x1e88] sm:$0xff]
  %v1030 = vld [vmem:[%s1 + $0x1e90] sm:$0xff]
  %v1031 = vld [vmem:[%s1 + $0x1e98] sm:$0xff]
  %v1032 = vld [vmem:[%s1 + $0x1ea0] sm:$0xff]
  %v1033 = vld [vmem:[%s1 + $0x1ea8] sm:$0xff]
  %v1034 = vld [vmem:[%s1 + $0x1eb0] sm:$0xff]
  %v1035 = vld [vmem:[%s1 + $0x1eb8] sm:$0xff]
  %v1036 = vld [vmem:[%s1 + $0x1ec0] sm:$0xff]
  %v1037 = vld [vmem:[%s1 + $0x1ec8] sm:$0xff]
  %v1038 = vld [vmem:[%s1 + $0x1ed0] sm:$0xff]
  %v1039 = vld [vmem:[%s1 + $0x1ed8] sm:$0xff]
  %v1040 = vld [vmem:[%s1 + $0x1ee0] sm:$0xff]
  %v1041 = vld [vmem:[%s1 + $0x1ee8] sm:$0xff]
  %v1042 = vld [vmem:[%s1 + $0x1ef0] sm:$0xff]
  %v1043 = vld [vmem:[%s1 + $0x1ef8] sm:$0xff]
  %v1044 = vld [vmem:[%s1 + $0x1f00] sm:$0xff]
  %v1045 = vld [vmem:[%s1 + $0x1f08] sm:$0xff]
  %v1046 = vld [vmem:[%s1 + $0x1f10] sm:$0xff]
  %v1047 = vld [vmem:[%s1 + $0x1f18] sm:$0xff]
  %v1048 = vld [vmem:[%s1 + $0x1f20] sm:$0xff]
  %v1049 = vld [vmem:[%s1 + $0x1f28] sm:$0xff]
  %v1050 = vld [vmem:[%s1 + $0x1f30] sm:$0xff]
  %v1051 = vld [vmem:[%s1 + $0x1f38] sm:$0xff]
  %v1052 = vld [vmem:[%s1 + $0x1f40] sm:$0xff]
  %v1053 = vld [vmem:[%s1 + $0x1f48] sm:$0xff]
  %v1054 = vld [vmem:[%s1 + $0x1f50] sm:$0xff]
  %v1055 = vld [vmem:[%s1 + $0x1f58] sm:$0xff]
  %v1056 = vld [vmem:[%s1 + $0x1f60] sm:$0xff]
  %v1057 = vld [vmem:[%s1 + $0x1f68] sm:$0xff]
  %v1058 = vld [vmem:[%s1 + $0x1f70] sm:$0xff]
  %v1059 = vld [vmem:[%s1 + $0x1f78] sm:$0xff]
  %v1060 = vld [vmem:[%s1 + $0x1f80] sm:$0xff]
  %v1061 = vld [vmem:[%s1 + $0x1f88] sm:$0xff]
  %v1062 = vld [vmem:[%s1 + $0x1f90] sm:$0xff]
  %v1063 = vld [vmem:[%s1 + $0x1f98] sm:$0xff]
  %v1064 = vld [vmem:[%s1 + $0x1fa0] sm:$0xff]
  %v1065 = vld [vmem:[%s1 + $0x1fa8] sm:$0xff]
  %v1066 = vld [vmem:[%s1 + $0x1fb0] sm:$0xff]
  %v1067 = vld [vmem:[%s1 + $0x1fb8] sm:$0xff]
  %v1068 = vld [vmem:[%s1 + $0x1fc0] sm:$0xff]
  %v1069 = vld [vmem:[%s1 + $0x1fc8] sm:$0xff]
  %v1070 = vld [vmem:[%s1 + $0x1fd0] sm:$0xff]
  %v1071 = vld [vmem:[%s1 + $0x1fd8] sm:$0xff]
  %v1072 = vld [vmem:[%s1 + $0x1fe0] sm:$0xff]
  %v1073 = vld [vmem:[%s1 + $0x1fe8] sm:$0xff]
  %v1074 = vld [vmem:[%s1 + $0x1ff0] sm:$0xff]
  %v1075 = vld [vmem:[%s1 + $0x1ff8] sm:$0xff]
  %v1076 = vld [vmem:[%s2] sm:$0xff]
  %v1078 = vlaneseq
  %v1079 = vshrl.u32 %v1078, 7
  %v1080 = vsub.s32 0, %v1079
  %v1081 = vrot.slane %v1076, %v1080
  %v1082 = vlaneseq
  %v1083 = vshrl.u32 %v1082, 7
  %v1084 = vsub.s32 1, %v1083
  %v1085 = vrot.slane %v1076, %v1084
  %v1086 = vlaneseq
  %v1087 = vshrl.u32 %v1086, 7
  %v1088 = vsub.s32 2, %v1087
  %v1089 = vrot.slane %v1076, %v1088
  %v1090 = vlaneseq
  %v1091 = vshrl.u32 %v1090, 7
  %v1092 = vsub.s32 3, %v1091
  %v1093 = vrot.slane %v1076, %v1092
  %v1094 = vlaneseq
  %v1095 = vshrl.u32 %v1094, 7
  %v1096 = vsub.s32 4, %v1095
  %v1097 = vrot.slane %v1076, %v1096
  %v1098 = vlaneseq
  %v1099 = vshrl.u32 %v1098, 7
  %v1100 = vsub.s32 5, %v1099
  %v1101 = vrot.slane %v1076, %v1100
  %v1102 = vlaneseq
  %v1103 = vshrl.u32 %v1102, 7
  %v1104 = vsub.s32 6, %v1103
  %v1105 = vrot.slane %v1076, %v1104
  %v1106 = vlaneseq
  %v1107 = vshrl.u32 %v1106, 7
  %v1108 = vsub.s32 7, %v1107
  %v1109 = vrot.slane %v1076, %v1108
  %v1120 = vcombine.high %v50, %v50
  %v1122 = vunpack.c.l.s4 1966171168
  %v1123 = vunpack.c.0.s8 %v1122
  %v1124 = vlaneseq
  %v1125 = vshrl.u32 %v1124, 7
  %v1126 = vsub.s32 %v1123, %v1125
  %v1127 = vrot.slane %v50, %v1126
  %v1129 = vunpack.c.l.s4 1966171168
  %v1130 = vunpack.c.0.s8 %v1129
  %v1131 = vlaneseq
  %v1132 = vshrl.u32 %v1131, 7
  %v1133 = vsub.s32 %v1130, %v1132
  %v1134 = vrot.slane %v1120, %v1133
  %v1135 = vcombine.high %v1127, %v1127
  %v1136 = vcombine.high %v1134, %v1134
  %v1138 = vunpack.c.l.s4 1966171168
  %v1139 = vunpack.c.0.s8 %v1138
  %v1140 = vlaneseq
  %v1141 = vshrl.u32 %v1140, 7
  %v1142 = vsub.s32 %v1139, %v1141
  %v1143 = vrot.slane %v1127, %v1142
  %v1145 = vunpack.c.l.s4 1966171168
  %v1146 = vunpack.c.0.s8 %v1145
  %v1147 = vlaneseq
  %v1148 = vshrl.u32 %v1147, 7
  %v1149 = vsub.s32 %v1146, %v1148
  %v1150 = vrot.slane %v1134, %v1149
  %v1152 = vunpack.c.l.s4 1966171168
  %v1153 = vunpack.c.0.s8 %v1152
  %v1154 = vlaneseq
  %v1155 = vshrl.u32 %v1154, 7
  %v1156 = vsub.s32 %v1153, %v1155
  %v1157 = vrot.slane %v1135, %v1156
  %v1159 = vunpack.c.l.s4 1966171168
  %v1160 = vunpack.c.0.s8 %v1159
  %v1161 = vlaneseq
  %v1162 = vshrl.u32 %v1161, 7
  %v1163 = vsub.s32 %v1160, %v1162
  %v1164 = vrot.slane %v1136, %v1163
  %v1165 = vcombine.high %v1143, %v1143
  %v1166 = vcombine.high %v1150, %v1150
  %v1167 = vcombine.high %v1157, %v1157
  %v1168 = vcombine.high %v1164, %v1164
  %v1169 = vcombine.high %v51, %v51
  %v1171 = vunpack.c.l.s4 1966171168
  %v1172 = vunpack.c.0.s8 %v1171
  %v1173 = vlaneseq
  %v1174 = vshrl.u32 %v1173, 7
  %v1175 = vsub.s32 %v1172, %v1174
  %v1176 = vrot.slane %v51, %v1175
  %v1178 = vunpack.c.l.s4 1966171168
  %v1179 = vunpack.c.0.s8 %v1178
  %v1180 = vlaneseq
  %v1181 = vshrl.u32 %v1180, 7
  %v1182 = vsub.s32 %v1179, %v1181
  %v1183 = vrot.slane %v1169, %v1182
  %v1184 = vcombine.high %v1176, %v1176
  %v1185 = vcombine.high %v1183, %v1183
  %v1187 = vunpack.c.l.s4 1966171168
  %v1188 = vunpack.c.0.s8 %v1187
  %v1189 = vlaneseq
  %v1190 = vshrl.u32 %v1189, 7
  %v1191 = vsub.s32 %v1188, %v1190
  %v1192 = vrot.slane %v1176, %v1191
  %v1194 = vunpack.c.l.s4 1966171168
  %v1195 = vunpack.c.0.s8 %v1194
  %v1196 = vlaneseq
  %v1197 = vshrl.u32 %v1196, 7
  %v1198 = vsub.s32 %v1195, %v1197
  %v1199 = vrot.slane %v1183, %v1198
  %v1201 = vunpack.c.l.s4 1966171168
  %v1202 = vunpack.c.0.s8 %v1201
  %v1203 = vlaneseq
  %v1204 = vshrl.u32 %v1203, 7
  %v1205 = vsub.s32 %v1202, %v1204
  %v1206 = vrot.slane %v1184, %v1205
  %v1208 = vunpack.c.l.s4 1966171168
  %v1209 = vunpack.c.0.s8 %v1208
  %v1210 = vlaneseq
  %v1211 = vshrl.u32 %v1210, 7
  %v1212 = vsub.s32 %v1209, %v1211
  %v1213 = vrot.slane %v1185, %v1212
  %v1214 = vcombine.high %v1192, %v1192
  %v1215 = vcombine.high %v1199, %v1199
  %v1216 = vcombine.high %v1206, %v1206
  %v1217 = vcombine.high %v1213, %v1213
  %v2258 = vunpack.c.l.b16 %v52
  %v2259 = vunpack.c.h.b16 %v52
  %v2260 = vunpack.c.l.b16 %v53
  %v2261 = vunpack.c.h.b16 %v53
  %v2262 = vunpack.c.l.b16 %v54
  %v2263 = vunpack.c.h.b16 %v54
  %v2264 = vunpack.c.l.b16 %v55
  %v2265 = vunpack.c.h.b16 %v55
  %v2266 = vunpack.c.l.b16 %v56
  %v2267 = vunpack.c.h.b16 %v56
  %v2268 = vunpack.c.l.b16 %v57
  %v2269 = vunpack.c.h.b16 %v57
  %v2270 = vunpack.c.l.b16 %v58
  %v2271 = vunpack.c.h.b16 %v58
  %v2272 = vunpack.c.l.b16 %v59
  %v2273 = vunpack.c.h.b16 %v59
  %v2274 = vunpack.c.l.b16 %v60
  %v2275 = vunpack.c.h.b16 %v60
  %v2276 = vunpack.c.l.b16 %v61
  %v2277 = vunpack.c.h.b16 %v61
  %v2278 = vunpack.c.l.b16 %v62
  %v2279 = vunpack.c.h.b16 %v62
  %v2280 = vunpack.c.l.b16 %v63
  %v2281 = vunpack.c.h.b16 %v63
  %v2282 = vunpack.c.l.b16 %v64
  %v2283 = vunpack.c.h.b16 %v64
  %v2284 = vunpack.c.l.b16 %v65
  %v2285 = vunpack.c.h.b16 %v65
  %v2286 = vunpack.c.l.b16 %v66
  %v2287 = vunpack.c.h.b16 %v66
  %v2288 = vunpack.c.l.b16 %v67
  %v2289 = vunpack.c.h.b16 %v67
  %v2290 = vunpack.c.l.b16 %v68
  %v2291 = vunpack.c.h.b16 %v68
  %v2292 = vunpack.c.l.b16 %v69
  %v2293 = vunpack.c.h.b16 %v69
  %v2294 = vunpack.c.l.b16 %v70
  %v2295 = vunpack.c.h.b16 %v70
  %v2296 = vunpack.c.l.b16 %v71
  %v2297 = vunpack.c.h.b16 %v71
  %v2298 = vunpack.c.l.b16 %v72
  %v2299 = vunpack.c.h.b16 %v72
  %v2300 = vunpack.c.l.b16 %v73
  %v2301 = vunpack.c.h.b16 %v73
  %v2302 = vunpack.c.l.b16 %v74
  %v2303 = vunpack.c.h.b16 %v74
  %v2304 = vunpack.c.l.b16 %v75
  %v2305 = vunpack.c.h.b16 %v75
  %v2306 = vunpack.c.l.b16 %v76
  %v2307 = vunpack.c.h.b16 %v76
  %v2308 = vunpack.c.l.b16 %v77
  %v2309 = vunpack.c.h.b16 %v77
  %v2310 = vunpack.c.l.b16 %v78
  %v2311 = vunpack.c.h.b16 %v78
  %v2312 = vunpack.c.l.b16 %v79
  %v2313 = vunpack.c.h.b16 %v79
  %v2314 = vunpack.c.l.b16 %v80
  %v2315 = vunpack.c.h.b16 %v80
  %v2316 = vunpack.c.l.b16 %v81
  %v2317 = vunpack.c.h.b16 %v81
  %v2318 = vunpack.c.l.b16 %v82
  %v2319 = vunpack.c.h.b16 %v82
  %v2320 = vunpack.c.l.b16 %v83
  %v2321 = vunpack.c.h.b16 %v83
  %v2322 = vunpack.c.l.b16 %v84
  %v2323 = vunpack.c.h.b16 %v84
  %v2324 = vunpack.c.l.b16 %v85
  %v2325 = vunpack.c.h.b16 %v85
  %v2326 = vunpack.c.l.b16 %v86
  %v2327 = vunpack.c.h.b16 %v86
  %v2328 = vunpack.c.l.b16 %v87
  %v2329 = vunpack.c.h.b16 %v87
  %v2330 = vunpack.c.l.b16 %v88
  %v2331 = vunpack.c.h.b16 %v88
  %v2332 = vunpack.c.l.b16 %v89
  %v2333 = vunpack.c.h.b16 %v89
  %v2334 = vunpack.c.l.b16 %v90
  %v2335 = vunpack.c.h.b16 %v90
  %v2336 = vunpack.c.l.b16 %v91
  %v2337 = vunpack.c.h.b16 %v91
  %v2338 = vunpack.c.l.b16 %v92
  %v2339 = vunpack.c.h.b16 %v92
  %v2340 = vunpack.c.l.b16 %v93
  %v2341 = vunpack.c.h.b16 %v93
  %v2342 = vunpack.c.l.b16 %v94
  %v2343 = vunpack.c.h.b16 %v94
  %v2344 = vunpack.c.l.b16 %v95
  %v2345 = vunpack.c.h.b16 %v95
  %v2346 = vunpack.c.l.b16 %v96
  %v2347 = vunpack.c.h.b16 %v96
  %v2348 = vunpack.c.l.b16 %v97
  %v2349 = vunpack.c.h.b16 %v97
  %v2350 = vunpack.c.l.b16 %v98
  %v2351 = vunpack.c.h.b16 %v98
  %v2352 = vunpack.c.l.b16 %v99
  %v2353 = vunpack.c.h.b16 %v99
  %v2354 = vunpack.c.l.b16 %v100
  %v2355 = vunpack.c.h.b16 %v100
  %v2356 = vunpack.c.l.b16 %v101
  %v2357 = vunpack.c.h.b16 %v101
  %v2358 = vunpack.c.l.b16 %v102
  %v2359 = vunpack.c.h.b16 %v102
  %v2360 = vunpack.c.l.b16 %v103
  %v2361 = vunpack.c.h.b16 %v103
  %v2362 = vunpack.c.l.b16 %v104
  %v2363 = vunpack.c.h.b16 %v104
  %v2364 = vunpack.c.l.b16 %v105
  %v2365 = vunpack.c.h.b16 %v105
  %v2366 = vunpack.c.l.b16 %v106
  %v2367 = vunpack.c.h.b16 %v106
  %v2368 = vunpack.c.l.b16 %v107
  %v2369 = vunpack.c.h.b16 %v107
  %v2370 = vunpack.c.l.b16 %v108
  %v2371 = vunpack.c.h.b16 %v108
  %v2372 = vunpack.c.l.b16 %v109
  %v2373 = vunpack.c.h.b16 %v109
  %v2374 = vunpack.c.l.b16 %v110
  %v2375 = vunpack.c.h.b16 %v110
  %v2376 = vunpack.c.l.b16 %v111
  %v2377 = vunpack.c.h.b16 %v111
  %v2378 = vunpack.c.l.b16 %v112
  %v2379 = vunpack.c.h.b16 %v112
  %v2380 = vunpack.c.l.b16 %v113
  %v2381 = vunpack.c.h.b16 %v113
  %v2382 = vunpack.c.l.b16 %v114
  %v2383 = vunpack.c.h.b16 %v114
  %v2384 = vunpack.c.l.b16 %v115
  %v2385 = vunpack.c.h.b16 %v115
  %v2386 = vunpack.c.l.b16 %v116
  %v2387 = vunpack.c.h.b16 %v116
  %v2388 = vunpack.c.l.b16 %v117
  %v2389 = vunpack.c.h.b16 %v117
  %v2390 = vunpack.c.l.b16 %v118
  %v2391 = vunpack.c.h.b16 %v118
  %v2392 = vunpack.c.l.b16 %v119
  %v2393 = vunpack.c.h.b16 %v119
  %v2394 = vunpack.c.l.b16 %v120
  %v2395 = vunpack.c.h.b16 %v120
  %v2396 = vunpack.c.l.b16 %v121
  %v2397 = vunpack.c.h.b16 %v121
  %v2398 = vunpack.c.l.b16 %v122
  %v2399 = vunpack.c.h.b16 %v122
  %v2400 = vunpack.c.l.b16 %v123
  %v2401 = vunpack.c.h.b16 %v123
  %v2402 = vunpack.c.l.b16 %v124
  %v2403 = vunpack.c.h.b16 %v124
  %v2404 = vunpack.c.l.b16 %v125
  %v2405 = vunpack.c.h.b16 %v125
  %v2406 = vunpack.c.l.b16 %v126
  %v2407 = vunpack.c.h.b16 %v126
  %v2408 = vunpack.c.l.b16 %v127
  %v2409 = vunpack.c.h.b16 %v127
  %v2410 = vunpack.c.l.b16 %v128
  %v2411 = vunpack.c.h.b16 %v128
  %v2412 = vunpack.c.l.b16 %v129
  %v2413 = vunpack.c.h.b16 %v129
  %v2414 = vunpack.c.l.b16 %v130
  %v2415 = vunpack.c.h.b16 %v130
  %v2416 = vunpack.c.l.b16 %v131
  %v2417 = vunpack.c.h.b16 %v131
  %v2418 = vunpack.c.l.b16 %v132
  %v2419 = vunpack.c.h.b16 %v132
  %v2420 = vunpack.c.l.b16 %v133
  %v2421 = vunpack.c.h.b16 %v133
  %v2422 = vunpack.c.l.b16 %v134
  %v2423 = vunpack.c.h.b16 %v134
  %v2424 = vunpack.c.l.b16 %v135
  %v2425 = vunpack.c.h.b16 %v135
  %v2426 = vunpack.c.l.b16 %v136
  %v2427 = vunpack.c.h.b16 %v136
  %v2428 = vunpack.c.l.b16 %v137
  %v2429 = vunpack.c.h.b16 %v137
  %v2430 = vunpack.c.l.b16 %v138
  %v2431 = vunpack.c.h.b16 %v138
  %v2432 = vunpack.c.l.b16 %v139
  %v2433 = vunpack.c.h.b16 %v139
  %v2434 = vunpack.c.l.b16 %v140
  %v2435 = vunpack.c.h.b16 %v140
  %v2436 = vunpack.c.l.b16 %v141
  %v2437 = vunpack.c.h.b16 %v141
  %v2438 = vunpack.c.l.b16 %v142
  %v2439 = vunpack.c.h.b16 %v142
  %v2440 = vunpack.c.l.b16 %v143
  %v2441 = vunpack.c.h.b16 %v143
  %v2442 = vunpack.c.l.b16 %v144
  %v2443 = vunpack.c.h.b16 %v144
  %v2444 = vunpack.c.l.b16 %v145
  %v2445 = vunpack.c.h.b16 %v145
  %v2446 = vunpack.c.l.b16 %v146
  %v2447 = vunpack.c.h.b16 %v146
  %v2448 = vunpack.c.l.b16 %v147
  %v2449 = vunpack.c.h.b16 %v147
  %v2450 = vunpack.c.l.b16 %v148
  %v2451 = vunpack.c.h.b16 %v148
  %v2452 = vunpack.c.l.b16 %v149
  %v2453 = vunpack.c.h.b16 %v149
  %v2454 = vunpack.c.l.b16 %v150
  %v2455 = vunpack.c.h.b16 %v150
  %v2456 = vunpack.c.l.b16 %v151
  %v2457 = vunpack.c.h.b16 %v151
  %v2458 = vunpack.c.l.b16 %v152
  %v2459 = vunpack.c.h.b16 %v152
  %v2460 = vunpack.c.l.b16 %v153
  %v2461 = vunpack.c.h.b16 %v153
  %v2462 = vunpack.c.l.b16 %v154
  %v2463 = vunpack.c.h.b16 %v154
  %v2464 = vunpack.c.l.b16 %v155
  %v2465 = vunpack.c.h.b16 %v155
  %v2466 = vunpack.c.l.b16 %v156
  %v2467 = vunpack.c.h.b16 %v156
  %v2468 = vunpack.c.l.b16 %v157
  %v2469 = vunpack.c.h.b16 %v157
  %v2470 = vunpack.c.l.b16 %v158
  %v2471 = vunpack.c.h.b16 %v158
  %v2472 = vunpack.c.l.b16 %v159
  %v2473 = vunpack.c.h.b16 %v159
  %v2474 = vunpack.c.l.b16 %v160
  %v2475 = vunpack.c.h.b16 %v160
  %v2476 = vunpack.c.l.b16 %v161
  %v2477 = vunpack.c.h.b16 %v161
  %v2478 = vunpack.c.l.b16 %v162
  %v2479 = vunpack.c.h.b16 %v162
  %v2480 = vunpack.c.l.b16 %v163
  %v2481 = vunpack.c.h.b16 %v163
  %v2482 = vunpack.c.l.b16 %v164
  %v2483 = vunpack.c.h.b16 %v164
  %v2484 = vunpack.c.l.b16 %v165
  %v2485 = vunpack.c.h.b16 %v165
  %v2486 = vunpack.c.l.b16 %v166
  %v2487 = vunpack.c.h.b16 %v166
  %v2488 = vunpack.c.l.b16 %v167
  %v2489 = vunpack.c.h.b16 %v167
  %v2490 = vunpack.c.l.b16 %v168
  %v2491 = vunpack.c.h.b16 %v168
  %v2492 = vunpack.c.l.b16 %v169
  %v2493 = vunpack.c.h.b16 %v169
  %v2494 = vunpack.c.l.b16 %v170
  %v2495 = vunpack.c.h.b16 %v170
  %v2496 = vunpack.c.l.b16 %v171
  %v2497 = vunpack.c.h.b16 %v171
  %v2498 = vunpack.c.l.b16 %v172
  %v2499 = vunpack.c.h.b16 %v172
  %v2500 = vunpack.c.l.b16 %v173
  %v2501 = vunpack.c.h.b16 %v173
  %v2502 = vunpack.c.l.b16 %v174
  %v2503 = vunpack.c.h.b16 %v174
  %v2504 = vunpack.c.l.b16 %v175
  %v2505 = vunpack.c.h.b16 %v175
  %v2506 = vunpack.c.l.b16 %v176
  %v2507 = vunpack.c.h.b16 %v176
  %v2508 = vunpack.c.l.b16 %v177
  %v2509 = vunpack.c.h.b16 %v177
  %v2510 = vunpack.c.l.b16 %v178
  %v2511 = vunpack.c.h.b16 %v178
  %v2512 = vunpack.c.l.b16 %v179
  %v2513 = vunpack.c.h.b16 %v179
  %v2514 = vunpack.c.l.b16 %v180
  %v2515 = vunpack.c.h.b16 %v180
  %v2516 = vunpack.c.l.b16 %v181
  %v2517 = vunpack.c.h.b16 %v181
  %v2518 = vunpack.c.l.b16 %v182
  %v2519 = vunpack.c.h.b16 %v182
  %v2520 = vunpack.c.l.b16 %v183
  %v2521 = vunpack.c.h.b16 %v183
  %v2522 = vunpack.c.l.b16 %v184
  %v2523 = vunpack.c.h.b16 %v184
  %v2524 = vunpack.c.l.b16 %v185
  %v2525 = vunpack.c.h.b16 %v185
  %v2526 = vunpack.c.l.b16 %v186
  %v2527 = vunpack.c.h.b16 %v186
  %v2528 = vunpack.c.l.b16 %v187
  %v2529 = vunpack.c.h.b16 %v187
  %v2530 = vunpack.c.l.b16 %v188
  %v2531 = vunpack.c.h.b16 %v188
  %v2532 = vunpack.c.l.b16 %v189
  %v2533 = vunpack.c.h.b16 %v189
  %v2534 = vunpack.c.l.b16 %v190
  %v2535 = vunpack.c.h.b16 %v190
  %v2536 = vunpack.c.l.b16 %v191
  %v2537 = vunpack.c.h.b16 %v191
  %v2538 = vunpack.c.l.b16 %v192
  %v2539 = vunpack.c.h.b16 %v192
  %v2540 = vunpack.c.l.b16 %v193
  %v2541 = vunpack.c.h.b16 %v193
  %v2542 = vunpack.c.l.b16 %v194
  %v2543 = vunpack.c.h.b16 %v194
  %v2544 = vunpack.c.l.b16 %v195
  %v2545 = vunpack.c.h.b16 %v195
  %v2546 = vunpack.c.l.b16 %v196
  %v2547 = vunpack.c.h.b16 %v196
  %v2548 = vunpack.c.l.b16 %v197
  %v2549 = vunpack.c.h.b16 %v197
  %v2550 = vunpack.c.l.b16 %v198
  %v2551 = vunpack.c.h.b16 %v198
  %v2552 = vunpack.c.l.b16 %v199
  %v2553 = vunpack.c.h.b16 %v199
  %v2554 = vunpack.c.l.b16 %v200
  %v2555 = vunpack.c.h.b16 %v200
  %v2556 = vunpack.c.l.b16 %v201
  %v2557 = vunpack.c.h.b16 %v201
  %v2558 = vunpack.c.l.b16 %v202
  %v2559 = vunpack.c.h.b16 %v202
  %v2560 = vunpack.c.l.b16 %v203
  %v2561 = vunpack.c.h.b16 %v203
  %v2562 = vunpack.c.l.b16 %v204
  %v2563 = vunpack.c.h.b16 %v204
  %v2564 = vunpack.c.l.b16 %v205
  %v2565 = vunpack.c.h.b16 %v205
  %v2566 = vunpack.c.l.b16 %v206
  %v2567 = vunpack.c.h.b16 %v206
  %v2568 = vunpack.c.l.b16 %v207
  %v2569 = vunpack.c.h.b16 %v207
  %v2570 = vunpack.c.l.b16 %v208
  %v2571 = vunpack.c.h.b16 %v208
  %v2572 = vunpack.c.l.b16 %v209
  %v2573 = vunpack.c.h.b16 %v209
  %v2574 = vunpack.c.l.b16 %v210
  %v2575 = vunpack.c.h.b16 %v210
  %v2576 = vunpack.c.l.b16 %v211
  %v2577 = vunpack.c.h.b16 %v211
  %v2578 = vunpack.c.l.b16 %v212
  %v2579 = vunpack.c.h.b16 %v212
  %v2580 = vunpack.c.l.b16 %v213
  %v2581 = vunpack.c.h.b16 %v213
  %v2582 = vunpack.c.l.b16 %v214
  %v2583 = vunpack.c.h.b16 %v214
  %v2584 = vunpack.c.l.b16 %v215
  %v2585 = vunpack.c.h.b16 %v215
  %v2586 = vunpack.c.l.b16 %v216
  %v2587 = vunpack.c.h.b16 %v216
  %v2588 = vunpack.c.l.b16 %v217
  %v2589 = vunpack.c.h.b16 %v217
  %v2590 = vunpack.c.l.b16 %v218
  %v2591 = vunpack.c.h.b16 %v218
  %v2592 = vunpack.c.l.b16 %v219
  %v2593 = vunpack.c.h.b16 %v219
  %v2594 = vunpack.c.l.b16 %v220
  %v2595 = vunpack.c.h.b16 %v220
  %v2596 = vunpack.c.l.b16 %v221
  %v2597 = vunpack.c.h.b16 %v221
  %v2598 = vunpack.c.l.b16 %v222
  %v2599 = vunpack.c.h.b16 %v222
  %v2600 = vunpack.c.l.b16 %v223
  %v2601 = vunpack.c.h.b16 %v223
  %v2602 = vunpack.c.l.b16 %v224
  %v2603 = vunpack.c.h.b16 %v224
  %v2604 = vunpack.c.l.b16 %v225
  %v2605 = vunpack.c.h.b16 %v225
  %v2606 = vunpack.c.l.b16 %v226
  %v2607 = vunpack.c.h.b16 %v226
  %v2608 = vunpack.c.l.b16 %v227
  %v2609 = vunpack.c.h.b16 %v227
  %v2610 = vunpack.c.l.b16 %v228
  %v2611 = vunpack.c.h.b16 %v228
  %v2612 = vunpack.c.l.b16 %v229
  %v2613 = vunpack.c.h.b16 %v229
  %v2614 = vunpack.c.l.b16 %v230
  %v2615 = vunpack.c.h.b16 %v230
  %v2616 = vunpack.c.l.b16 %v231
  %v2617 = vunpack.c.h.b16 %v231
  %v2618 = vunpack.c.l.b16 %v232
  %v2619 = vunpack.c.h.b16 %v232
  %v2620 = vunpack.c.l.b16 %v233
  %v2621 = vunpack.c.h.b16 %v233
  %v2622 = vunpack.c.l.b16 %v234
  %v2623 = vunpack.c.h.b16 %v234
  %v2624 = vunpack.c.l.b16 %v235
  %v2625 = vunpack.c.h.b16 %v235
  %v2626 = vunpack.c.l.b16 %v236
  %v2627 = vunpack.c.h.b16 %v236
  %v2628 = vunpack.c.l.b16 %v237
  %v2629 = vunpack.c.h.b16 %v237
  %v2630 = vunpack.c.l.b16 %v238
  %v2631 = vunpack.c.h.b16 %v238
  %v2632 = vunpack.c.l.b16 %v239
  %v2633 = vunpack.c.h.b16 %v239
  %v2634 = vunpack.c.l.b16 %v240
  %v2635 = vunpack.c.h.b16 %v240
  %v2636 = vunpack.c.l.b16 %v241
  %v2637 = vunpack.c.h.b16 %v241
  %v2638 = vunpack.c.l.b16 %v242
  %v2639 = vunpack.c.h.b16 %v242
  %v2640 = vunpack.c.l.b16 %v243
  %v2641 = vunpack.c.h.b16 %v243
  %v2642 = vunpack.c.l.b16 %v244
  %v2643 = vunpack.c.h.b16 %v244
  %v2644 = vunpack.c.l.b16 %v245
  %v2645 = vunpack.c.h.b16 %v245
  %v2646 = vunpack.c.l.b16 %v246
  %v2647 = vunpack.c.h.b16 %v246
  %v2648 = vunpack.c.l.b16 %v247
  %v2649 = vunpack.c.h.b16 %v247
  %v2650 = vunpack.c.l.b16 %v248
  %v2651 = vunpack.c.h.b16 %v248
  %v2652 = vunpack.c.l.b16 %v249
  %v2653 = vunpack.c.h.b16 %v249
  %v2654 = vunpack.c.l.b16 %v250
  %v2655 = vunpack.c.h.b16 %v250
  %v2656 = vunpack.c.l.b16 %v251
  %v2657 = vunpack.c.h.b16 %v251
  %v2658 = vunpack.c.l.b16 %v252
  %v2659 = vunpack.c.h.b16 %v252
  %v2660 = vunpack.c.l.b16 %v253
  %v2661 = vunpack.c.h.b16 %v253
  %v2662 = vunpack.c.l.b16 %v254
  %v2663 = vunpack.c.h.b16 %v254
  %v2664 = vunpack.c.l.b16 %v255
  %v2665 = vunpack.c.h.b16 %v255
  %v2666 = vunpack.c.l.b16 %v256
  %v2667 = vunpack.c.h.b16 %v256
  %v2668 = vunpack.c.l.b16 %v257
  %v2669 = vunpack.c.h.b16 %v257
  %v2670 = vunpack.c.l.b16 %v258
  %v2671 = vunpack.c.h.b16 %v258
  %v2672 = vunpack.c.l.b16 %v259
  %v2673 = vunpack.c.h.b16 %v259
  %v2674 = vunpack.c.l.b16 %v260
  %v2675 = vunpack.c.h.b16 %v260
  %v2676 = vunpack.c.l.b16 %v261
  %v2677 = vunpack.c.h.b16 %v261
  %v2678 = vunpack.c.l.b16 %v262
  %v2679 = vunpack.c.h.b16 %v262
  %v2680 = vunpack.c.l.b16 %v263
  %v2681 = vunpack.c.h.b16 %v263
  %v2682 = vunpack.c.l.b16 %v264
  %v2683 = vunpack.c.h.b16 %v264
  %v2684 = vunpack.c.l.b16 %v265
  %v2685 = vunpack.c.h.b16 %v265
  %v2686 = vunpack.c.l.b16 %v266
  %v2687 = vunpack.c.h.b16 %v266
  %v2688 = vunpack.c.l.b16 %v267
  %v2689 = vunpack.c.h.b16 %v267
  %v2690 = vunpack.c.l.b16 %v268
  %v2691 = vunpack.c.h.b16 %v268
  %v2692 = vunpack.c.l.b16 %v269
  %v2693 = vunpack.c.h.b16 %v269
  %v2694 = vunpack.c.l.b16 %v270
  %v2695 = vunpack.c.h.b16 %v270
  %v2696 = vunpack.c.l.b16 %v271
  %v2697 = vunpack.c.h.b16 %v271
  %v2698 = vunpack.c.l.b16 %v272
  %v2699 = vunpack.c.h.b16 %v272
  %v2700 = vunpack.c.l.b16 %v273
  %v2701 = vunpack.c.h.b16 %v273
  %v2702 = vunpack.c.l.b16 %v274
  %v2703 = vunpack.c.h.b16 %v274
  %v2704 = vunpack.c.l.b16 %v275
  %v2705 = vunpack.c.h.b16 %v275
  %v2706 = vunpack.c.l.b16 %v276
  %v2707 = vunpack.c.h.b16 %v276
  %v2708 = vunpack.c.l.b16 %v277
  %v2709 = vunpack.c.h.b16 %v277
  %v2710 = vunpack.c.l.b16 %v278
  %v2711 = vunpack.c.h.b16 %v278
  %v2712 = vunpack.c.l.b16 %v279
  %v2713 = vunpack.c.h.b16 %v279
  %v2714 = vunpack.c.l.b16 %v280
  %v2715 = vunpack.c.h.b16 %v280
  %v2716 = vunpack.c.l.b16 %v281
  %v2717 = vunpack.c.h.b16 %v281
  %v2718 = vunpack.c.l.b16 %v282
  %v2719 = vunpack.c.h.b16 %v282
  %v2720 = vunpack.c.l.b16 %v283
  %v2721 = vunpack.c.h.b16 %v283
  %v2722 = vunpack.c.l.b16 %v284
  %v2723 = vunpack.c.h.b16 %v284
  %v2724 = vunpack.c.l.b16 %v285
  %v2725 = vunpack.c.h.b16 %v285
  %v2726 = vunpack.c.l.b16 %v286
  %v2727 = vunpack.c.h.b16 %v286
  %v2728 = vunpack.c.l.b16 %v287
  %v2729 = vunpack.c.h.b16 %v287
  %v2730 = vunpack.c.l.b16 %v288
  %v2731 = vunpack.c.h.b16 %v288
  %v2732 = vunpack.c.l.b16 %v289
  %v2733 = vunpack.c.h.b16 %v289
  %v2734 = vunpack.c.l.b16 %v290
  %v2735 = vunpack.c.h.b16 %v290
  %v2736 = vunpack.c.l.b16 %v291
  %v2737 = vunpack.c.h.b16 %v291
  %v2738 = vunpack.c.l.b16 %v292
  %v2739 = vunpack.c.h.b16 %v292
  %v2740 = vunpack.c.l.b16 %v293
  %v2741 = vunpack.c.h.b16 %v293
  %v2742 = vunpack.c.l.b16 %v294
  %v2743 = vunpack.c.h.b16 %v294
  %v2744 = vunpack.c.l.b16 %v295
  %v2745 = vunpack.c.h.b16 %v295
  %v2746 = vunpack.c.l.b16 %v296
  %v2747 = vunpack.c.h.b16 %v296
  %v2748 = vunpack.c.l.b16 %v297
  %v2749 = vunpack.c.h.b16 %v297
  %v2750 = vunpack.c.l.b16 %v298
  %v2751 = vunpack.c.h.b16 %v298
  %v2752 = vunpack.c.l.b16 %v299
  %v2753 = vunpack.c.h.b16 %v299
  %v2754 = vunpack.c.l.b16 %v300
  %v2755 = vunpack.c.h.b16 %v300
  %v2756 = vunpack.c.l.b16 %v301
  %v2757 = vunpack.c.h.b16 %v301
  %v2758 = vunpack.c.l.b16 %v302
  %v2759 = vunpack.c.h.b16 %v302
  %v2760 = vunpack.c.l.b16 %v303
  %v2761 = vunpack.c.h.b16 %v303
  %v2762 = vunpack.c.l.b16 %v304
  %v2763 = vunpack.c.h.b16 %v304
  %v2764 = vunpack.c.l.b16 %v305
  %v2765 = vunpack.c.h.b16 %v305
  %v2766 = vunpack.c.l.b16 %v306
  %v2767 = vunpack.c.h.b16 %v306
  %v2768 = vunpack.c.l.b16 %v307
  %v2769 = vunpack.c.h.b16 %v307
  %v2770 = vunpack.c.l.b16 %v308
  %v2771 = vunpack.c.h.b16 %v308
  %v2772 = vunpack.c.l.b16 %v309
  %v2773 = vunpack.c.h.b16 %v309
  %v2774 = vunpack.c.l.b16 %v310
  %v2775 = vunpack.c.h.b16 %v310
  %v2776 = vunpack.c.l.b16 %v311
  %v2777 = vunpack.c.h.b16 %v311
  %v2778 = vunpack.c.l.b16 %v312
  %v2779 = vunpack.c.h.b16 %v312
  %v2780 = vunpack.c.l.b16 %v313
  %v2781 = vunpack.c.h.b16 %v313
  %v2782 = vunpack.c.l.b16 %v314
  %v2783 = vunpack.c.h.b16 %v314
  %v2784 = vunpack.c.l.b16 %v315
  %v2785 = vunpack.c.h.b16 %v315
  %v2786 = vunpack.c.l.b16 %v316
  %v2787 = vunpack.c.h.b16 %v316
  %v2788 = vunpack.c.l.b16 %v317
  %v2789 = vunpack.c.h.b16 %v317
  %v2790 = vunpack.c.l.b16 %v318
  %v2791 = vunpack.c.h.b16 %v318
  %v2792 = vunpack.c.l.b16 %v319
  %v2793 = vunpack.c.h.b16 %v319
  %v2794 = vunpack.c.l.b16 %v320
  %v2795 = vunpack.c.h.b16 %v320
  %v2796 = vunpack.c.l.b16 %v321
  %v2797 = vunpack.c.h.b16 %v321
  %v2798 = vunpack.c.l.b16 %v322
  %v2799 = vunpack.c.h.b16 %v322
  %v2800 = vunpack.c.l.b16 %v323
  %v2801 = vunpack.c.h.b16 %v323
  %v2802 = vunpack.c.l.b16 %v324
  %v2803 = vunpack.c.h.b16 %v324
  %v2804 = vunpack.c.l.b16 %v325
  %v2805 = vunpack.c.h.b16 %v325
  %v2806 = vunpack.c.l.b16 %v326
  %v2807 = vunpack.c.h.b16 %v326
  %v2808 = vunpack.c.l.b16 %v327
  %v2809 = vunpack.c.h.b16 %v327
  %v2810 = vunpack.c.l.b16 %v328
  %v2811 = vunpack.c.h.b16 %v328
  %v2812 = vunpack.c.l.b16 %v329
  %v2813 = vunpack.c.h.b16 %v329
  %v2814 = vunpack.c.l.b16 %v330
  %v2815 = vunpack.c.h.b16 %v330
  %v2816 = vunpack.c.l.b16 %v331
  %v2817 = vunpack.c.h.b16 %v331
  %v2818 = vunpack.c.l.b16 %v332
  %v2819 = vunpack.c.h.b16 %v332
  %v2820 = vunpack.c.l.b16 %v333
  %v2821 = vunpack.c.h.b16 %v333
  %v2822 = vunpack.c.l.b16 %v334
  %v2823 = vunpack.c.h.b16 %v334
  %v2824 = vunpack.c.l.b16 %v335
  %v2825 = vunpack.c.h.b16 %v335
  %v2826 = vunpack.c.l.b16 %v336
  %v2827 = vunpack.c.h.b16 %v336
  %v2828 = vunpack.c.l.b16 %v337
  %v2829 = vunpack.c.h.b16 %v337
  %v2830 = vunpack.c.l.b16 %v338
  %v2831 = vunpack.c.h.b16 %v338
  %v2832 = vunpack.c.l.b16 %v339
  %v2833 = vunpack.c.h.b16 %v339
  %v2834 = vunpack.c.l.b16 %v340
  %v2835 = vunpack.c.h.b16 %v340
  %v2836 = vunpack.c.l.b16 %v341
  %v2837 = vunpack.c.h.b16 %v341
  %v2838 = vunpack.c.l.b16 %v342
  %v2839 = vunpack.c.h.b16 %v342
  %v2840 = vunpack.c.l.b16 %v343
  %v2841 = vunpack.c.h.b16 %v343
  %v2842 = vunpack.c.l.b16 %v344
  %v2843 = vunpack.c.h.b16 %v344
  %v2844 = vunpack.c.l.b16 %v345
  %v2845 = vunpack.c.h.b16 %v345
  %v2846 = vunpack.c.l.b16 %v346
  %v2847 = vunpack.c.h.b16 %v346
  %v2848 = vunpack.c.l.b16 %v347
  %v2849 = vunpack.c.h.b16 %v347
  %v2850 = vunpack.c.l.b16 %v348
  %v2851 = vunpack.c.h.b16 %v348
  %v2852 = vunpack.c.l.b16 %v349
  %v2853 = vunpack.c.h.b16 %v349
  %v2854 = vunpack.c.l.b16 %v350
  %v2855 = vunpack.c.h.b16 %v350
  %v2856 = vunpack.c.l.b16 %v351
  %v2857 = vunpack.c.h.b16 %v351
  %v2858 = vunpack.c.l.b16 %v352
  %v2859 = vunpack.c.h.b16 %v352
  %v2860 = vunpack.c.l.b16 %v353
  %v2861 = vunpack.c.h.b16 %v353
  %v2862 = vunpack.c.l.b16 %v354
  %v2863 = vunpack.c.h.b16 %v354
  %v2864 = vunpack.c.l.b16 %v355
  %v2865 = vunpack.c.h.b16 %v355
  %v2866 = vunpack.c.l.b16 %v356
  %v2867 = vunpack.c.h.b16 %v356
  %v2868 = vunpack.c.l.b16 %v357
  %v2869 = vunpack.c.h.b16 %v357
  %v2870 = vunpack.c.l.b16 %v358
  %v2871 = vunpack.c.h.b16 %v358
  %v2872 = vunpack.c.l.b16 %v359
  %v2873 = vunpack.c.h.b16 %v359
  %v2874 = vunpack.c.l.b16 %v360
  %v2875 = vunpack.c.h.b16 %v360
  %v2876 = vunpack.c.l.b16 %v361
  %v2877 = vunpack.c.h.b16 %v361
  %v2878 = vunpack.c.l.b16 %v362
  %v2879 = vunpack.c.h.b16 %v362
  %v2880 = vunpack.c.l.b16 %v363
  %v2881 = vunpack.c.h.b16 %v363
  %v2882 = vunpack.c.l.b16 %v364
  %v2883 = vunpack.c.h.b16 %v364
  %v2884 = vunpack.c.l.b16 %v365
  %v2885 = vunpack.c.h.b16 %v365
  %v2886 = vunpack.c.l.b16 %v366
  %v2887 = vunpack.c.h.b16 %v366
  %v2888 = vunpack.c.l.b16 %v367
  %v2889 = vunpack.c.h.b16 %v367
  %v2890 = vunpack.c.l.b16 %v368
  %v2891 = vunpack.c.h.b16 %v368
  %v2892 = vunpack.c.l.b16 %v369
  %v2893 = vunpack.c.h.b16 %v369
  %v2894 = vunpack.c.l.b16 %v370
  %v2895 = vunpack.c.h.b16 %v370
  %v2896 = vunpack.c.l.b16 %v371
  %v2897 = vunpack.c.h.b16 %v371
  %v2898 = vunpack.c.l.b16 %v372
  %v2899 = vunpack.c.h.b16 %v372
  %v2900 = vunpack.c.l.b16 %v373
  %v2901 = vunpack.c.h.b16 %v373
  %v2902 = vunpack.c.l.b16 %v374
  %v2903 = vunpack.c.h.b16 %v374
  %v2904 = vunpack.c.l.b16 %v375
  %v2905 = vunpack.c.h.b16 %v375
  %v2906 = vunpack.c.l.b16 %v376
  %v2907 = vunpack.c.h.b16 %v376
  %v2908 = vunpack.c.l.b16 %v377
  %v2909 = vunpack.c.h.b16 %v377
  %v2910 = vunpack.c.l.b16 %v378
  %v2911 = vunpack.c.h.b16 %v378
  %v2912 = vunpack.c.l.b16 %v379
  %v2913 = vunpack.c.h.b16 %v379
  %v2914 = vunpack.c.l.b16 %v380
  %v2915 = vunpack.c.h.b16 %v380
  %v2916 = vunpack.c.l.b16 %v381
  %v2917 = vunpack.c.h.b16 %v381
  %v2918 = vunpack.c.l.b16 %v382
  %v2919 = vunpack.c.h.b16 %v382
  %v2920 = vunpack.c.l.b16 %v383
  %v2921 = vunpack.c.h.b16 %v383
  %v2922 = vunpack.c.l.b16 %v384
  %v2923 = vunpack.c.h.b16 %v384
  %v2924 = vunpack.c.l.b16 %v385
  %v2925 = vunpack.c.h.b16 %v385
  %v2926 = vunpack.c.l.b16 %v386
  %v2927 = vunpack.c.h.b16 %v386
  %v2928 = vunpack.c.l.b16 %v387
  %v2929 = vunpack.c.h.b16 %v387
  %v2930 = vunpack.c.l.b16 %v388
  %v2931 = vunpack.c.h.b16 %v388
  %v2932 = vunpack.c.l.b16 %v389
  %v2933 = vunpack.c.h.b16 %v389
  %v2934 = vunpack.c.l.b16 %v390
  %v2935 = vunpack.c.h.b16 %v390
  %v2936 = vunpack.c.l.b16 %v391
  %v2937 = vunpack.c.h.b16 %v391
  %v2938 = vunpack.c.l.b16 %v392
  %v2939 = vunpack.c.h.b16 %v392
  %v2940 = vunpack.c.l.b16 %v393
  %v2941 = vunpack.c.h.b16 %v393
  %v2942 = vunpack.c.l.b16 %v394
  %v2943 = vunpack.c.h.b16 %v394
  %v2944 = vunpack.c.l.b16 %v395
  %v2945 = vunpack.c.h.b16 %v395
  %v2946 = vunpack.c.l.b16 %v396
  %v2947 = vunpack.c.h.b16 %v396
  %v2948 = vunpack.c.l.b16 %v397
  %v2949 = vunpack.c.h.b16 %v397
  %v2950 = vunpack.c.l.b16 %v398
  %v2951 = vunpack.c.h.b16 %v398
  %v2952 = vunpack.c.l.b16 %v399
  %v2953 = vunpack.c.h.b16 %v399
  %v2954 = vunpack.c.l.b16 %v400
  %v2955 = vunpack.c.h.b16 %v400
  %v2956 = vunpack.c.l.b16 %v401
  %v2957 = vunpack.c.h.b16 %v401
  %v2958 = vunpack.c.l.b16 %v402
  %v2959 = vunpack.c.h.b16 %v402
  %v2960 = vunpack.c.l.b16 %v403
  %v2961 = vunpack.c.h.b16 %v403
  %v2962 = vunpack.c.l.b16 %v404
  %v2963 = vunpack.c.h.b16 %v404
  %v2964 = vunpack.c.l.b16 %v405
  %v2965 = vunpack.c.h.b16 %v405
  %v2966 = vunpack.c.l.b16 %v406
  %v2967 = vunpack.c.h.b16 %v406
  %v2968 = vunpack.c.l.b16 %v407
  %v2969 = vunpack.c.h.b16 %v407
  %v2970 = vunpack.c.l.b16 %v408
  %v2971 = vunpack.c.h.b16 %v408
  %v2972 = vunpack.c.l.b16 %v409
  %v2973 = vunpack.c.h.b16 %v409
  %v2974 = vunpack.c.l.b16 %v410
  %v2975 = vunpack.c.h.b16 %v410
  %v2976 = vunpack.c.l.b16 %v411
  %v2977 = vunpack.c.h.b16 %v411
  %v2978 = vunpack.c.l.b16 %v412
  %v2979 = vunpack.c.h.b16 %v412
  %v2980 = vunpack.c.l.b16 %v413
  %v2981 = vunpack.c.h.b16 %v413
  %v2982 = vunpack.c.l.b16 %v414
  %v2983 = vunpack.c.h.b16 %v414
  %v2984 = vunpack.c.l.b16 %v415
  %v2985 = vunpack.c.h.b16 %v415
  %v2986 = vunpack.c.l.b16 %v416
  %v2987 = vunpack.c.h.b16 %v416
  %v2988 = vunpack.c.l.b16 %v417
  %v2989 = vunpack.c.h.b16 %v417
  %v2990 = vunpack.c.l.b16 %v418
  %v2991 = vunpack.c.h.b16 %v418
  %v2992 = vunpack.c.l.b16 %v419
  %v2993 = vunpack.c.h.b16 %v419
  %v2994 = vunpack.c.l.b16 %v420
  %v2995 = vunpack.c.h.b16 %v420
  %v2996 = vunpack.c.l.b16 %v421
  %v2997 = vunpack.c.h.b16 %v421
  %v2998 = vunpack.c.l.b16 %v422
  %v2999 = vunpack.c.h.b16 %v422
  %v3000 = vunpack.c.l.b16 %v423
  %v3001 = vunpack.c.h.b16 %v423
  %v3002 = vunpack.c.l.b16 %v424
  %v3003 = vunpack.c.h.b16 %v424
  %v3004 = vunpack.c.l.b16 %v425
  %v3005 = vunpack.c.h.b16 %v425
  %v3006 = vunpack.c.l.b16 %v426
  %v3007 = vunpack.c.h.b16 %v426
  %v3008 = vunpack.c.l.b16 %v427
  %v3009 = vunpack.c.h.b16 %v427
  %v3010 = vunpack.c.l.b16 %v428
  %v3011 = vunpack.c.h.b16 %v428
  %v3012 = vunpack.c.l.b16 %v429
  %v3013 = vunpack.c.h.b16 %v429
  %v3014 = vunpack.c.l.b16 %v430
  %v3015 = vunpack.c.h.b16 %v430
  %v3016 = vunpack.c.l.b16 %v431
  %v3017 = vunpack.c.h.b16 %v431
  %v3018 = vunpack.c.l.b16 %v432
  %v3019 = vunpack.c.h.b16 %v432
  %v3020 = vunpack.c.l.b16 %v433
  %v3021 = vunpack.c.h.b16 %v433
  %v3022 = vunpack.c.l.b16 %v434
  %v3023 = vunpack.c.h.b16 %v434
  %v3024 = vunpack.c.l.b16 %v435
  %v3025 = vunpack.c.h.b16 %v435
  %v3026 = vunpack.c.l.b16 %v436
  %v3027 = vunpack.c.h.b16 %v436
  %v3028 = vunpack.c.l.b16 %v437
  %v3029 = vunpack.c.h.b16 %v437
  %v3030 = vunpack.c.l.b16 %v438
  %v3031 = vunpack.c.h.b16 %v438
  %v3032 = vunpack.c.l.b16 %v439
  %v3033 = vunpack.c.h.b16 %v439
  %v3034 = vunpack.c.l.b16 %v440
  %v3035 = vunpack.c.h.b16 %v440
  %v3036 = vunpack.c.l.b16 %v441
  %v3037 = vunpack.c.h.b16 %v441
  %v3038 = vunpack.c.l.b16 %v442
  %v3039 = vunpack.c.h.b16 %v442
  %v3040 = vunpack.c.l.b16 %v443
  %v3041 = vunpack.c.h.b16 %v443
  %v3042 = vunpack.c.l.b16 %v444
  %v3043 = vunpack.c.h.b16 %v444
  %v3044 = vunpack.c.l.b16 %v445
  %v3045 = vunpack.c.h.b16 %v445
  %v3046 = vunpack.c.l.b16 %v446
  %v3047 = vunpack.c.h.b16 %v446
  %v3048 = vunpack.c.l.b16 %v447
  %v3049 = vunpack.c.h.b16 %v447
  %v3050 = vunpack.c.l.b16 %v448
  %v3051 = vunpack.c.h.b16 %v448
  %v3052 = vunpack.c.l.b16 %v449
  %v3053 = vunpack.c.h.b16 %v449
  %v3054 = vunpack.c.l.b16 %v450
  %v3055 = vunpack.c.h.b16 %v450
  %v3056 = vunpack.c.l.b16 %v451
  %v3057 = vunpack.c.h.b16 %v451
  %v3058 = vunpack.c.l.b16 %v452
  %v3059 = vunpack.c.h.b16 %v452
  %v3060 = vunpack.c.l.b16 %v453
  %v3061 = vunpack.c.h.b16 %v453
  %v3062 = vunpack.c.l.b16 %v454
  %v3063 = vunpack.c.h.b16 %v454
  %v3064 = vunpack.c.l.b16 %v455
  %v3065 = vunpack.c.h.b16 %v455
  %v3066 = vunpack.c.l.b16 %v456
  %v3067 = vunpack.c.h.b16 %v456
  %v3068 = vunpack.c.l.b16 %v457
  %v3069 = vunpack.c.h.b16 %v457
  %v3070 = vunpack.c.l.b16 %v458
  %v3071 = vunpack.c.h.b16 %v458
  %v3072 = vunpack.c.l.b16 %v459
  %v3073 = vunpack.c.h.b16 %v459
  %v3074 = vunpack.c.l.b16 %v460
  %v3075 = vunpack.c.h.b16 %v460
  %v3076 = vunpack.c.l.b16 %v461
  %v3077 = vunpack.c.h.b16 %v461
  %v3078 = vunpack.c.l.b16 %v462
  %v3079 = vunpack.c.h.b16 %v462
  %v3080 = vunpack.c.l.b16 %v463
  %v3081 = vunpack.c.h.b16 %v463
  %v3082 = vunpack.c.l.b16 %v464
  %v3083 = vunpack.c.h.b16 %v464
  %v3084 = vunpack.c.l.b16 %v465
  %v3085 = vunpack.c.h.b16 %v465
  %v3086 = vunpack.c.l.b16 %v466
  %v3087 = vunpack.c.h.b16 %v466
  %v3088 = vunpack.c.l.b16 %v467
  %v3089 = vunpack.c.h.b16 %v467
  %v3090 = vunpack.c.l.b16 %v468
  %v3091 = vunpack.c.h.b16 %v468
  %v3092 = vunpack.c.l.b16 %v469
  %v3093 = vunpack.c.h.b16 %v469
  %v3094 = vunpack.c.l.b16 %v470
  %v3095 = vunpack.c.h.b16 %v470
  %v3096 = vunpack.c.l.b16 %v471
  %v3097 = vunpack.c.h.b16 %v471
  %v3098 = vunpack.c.l.b16 %v472
  %v3099 = vunpack.c.h.b16 %v472
  %v3100 = vunpack.c.l.b16 %v473
  %v3101 = vunpack.c.h.b16 %v473
  %v3102 = vunpack.c.l.b16 %v474
  %v3103 = vunpack.c.h.b16 %v474
  %v3104 = vunpack.c.l.b16 %v475
  %v3105 = vunpack.c.h.b16 %v475
  %v3106 = vunpack.c.l.b16 %v476
  %v3107 = vunpack.c.h.b16 %v476
  %v3108 = vunpack.c.l.b16 %v477
  %v3109 = vunpack.c.h.b16 %v477
  %v3110 = vunpack.c.l.b16 %v478
  %v3111 = vunpack.c.h.b16 %v478
  %v3112 = vunpack.c.l.b16 %v479
  %v3113 = vunpack.c.h.b16 %v479
  %v3114 = vunpack.c.l.b16 %v480
  %v3115 = vunpack.c.h.b16 %v480
  %v3116 = vunpack.c.l.b16 %v481
  %v3117 = vunpack.c.h.b16 %v481
  %v3118 = vunpack.c.l.b16 %v482
  %v3119 = vunpack.c.h.b16 %v482
  %v3120 = vunpack.c.l.b16 %v483
  %v3121 = vunpack.c.h.b16 %v483
  %v3122 = vunpack.c.l.b16 %v484
  %v3123 = vunpack.c.h.b16 %v484
  %v3124 = vunpack.c.l.b16 %v485
  %v3125 = vunpack.c.h.b16 %v485
  %v3126 = vunpack.c.l.b16 %v486
  %v3127 = vunpack.c.h.b16 %v486
  %v3128 = vunpack.c.l.b16 %v487
  %v3129 = vunpack.c.h.b16 %v487
  %v3130 = vunpack.c.l.b16 %v488
  %v3131 = vunpack.c.h.b16 %v488
  %v3132 = vunpack.c.l.b16 %v489
  %v3133 = vunpack.c.h.b16 %v489
  %v3134 = vunpack.c.l.b16 %v490
  %v3135 = vunpack.c.h.b16 %v490
  %v3136 = vunpack.c.l.b16 %v491
  %v3137 = vunpack.c.h.b16 %v491
  %v3138 = vunpack.c.l.b16 %v492
  %v3139 = vunpack.c.h.b16 %v492
  %v3140 = vunpack.c.l.b16 %v493
  %v3141 = vunpack.c.h.b16 %v493
  %v3142 = vunpack.c.l.b16 %v494
  %v3143 = vunpack.c.h.b16 %v494
  %v3144 = vunpack.c.l.b16 %v495
  %v3145 = vunpack.c.h.b16 %v495
  %v3146 = vunpack.c.l.b16 %v496
  %v3147 = vunpack.c.h.b16 %v496
  %v3148 = vunpack.c.l.b16 %v497
  %v3149 = vunpack.c.h.b16 %v497
  %v3150 = vunpack.c.l.b16 %v498
  %v3151 = vunpack.c.h.b16 %v498
  %v3152 = vunpack.c.l.b16 %v499
  %v3153 = vunpack.c.h.b16 %v499
  %v3154 = vunpack.c.l.b16 %v500
  %v3155 = vunpack.c.h.b16 %v500
  %v3156 = vunpack.c.l.b16 %v501
  %v3157 = vunpack.c.h.b16 %v501
  %v3158 = vunpack.c.l.b16 %v502
  %v3159 = vunpack.c.h.b16 %v502
  %v3160 = vunpack.c.l.b16 %v503
  %v3161 = vunpack.c.h.b16 %v503
  %v3162 = vunpack.c.l.b16 %v504
  %v3163 = vunpack.c.h.b16 %v504
  %v3164 = vunpack.c.l.b16 %v505
  %v3165 = vunpack.c.h.b16 %v505
  %v3166 = vunpack.c.l.b16 %v506
  %v3167 = vunpack.c.h.b16 %v506
  %v3168 = vunpack.c.l.b16 %v507
  %v3169 = vunpack.c.h.b16 %v507
  %v3170 = vunpack.c.l.b16 %v508
  %v3171 = vunpack.c.h.b16 %v508
  %v3172 = vunpack.c.l.b16 %v509
  %v3173 = vunpack.c.h.b16 %v509
  %v3174 = vunpack.c.l.b16 %v510
  %v3175 = vunpack.c.h.b16 %v510
  %v3176 = vunpack.c.l.b16 %v511
  %v3177 = vunpack.c.h.b16 %v511
  %v3178 = vunpack.c.l.b16 %v512
  %v3179 = vunpack.c.h.b16 %v512
  %v3180 = vunpack.c.l.b16 %v513
  %v3181 = vunpack.c.h.b16 %v513
  %v3182 = vunpack.c.l.b16 %v514
  %v3183 = vunpack.c.h.b16 %v514
  %v3184 = vunpack.c.l.b16 %v515
  %v3185 = vunpack.c.h.b16 %v515
  %v3186 = vunpack.c.l.b16 %v516
  %v3187 = vunpack.c.h.b16 %v516
  %v3188 = vunpack.c.l.b16 %v517
  %v3189 = vunpack.c.h.b16 %v517
  %v3190 = vunpack.c.l.b16 %v518
  %v3191 = vunpack.c.h.b16 %v518
  %v3192 = vunpack.c.l.b16 %v519
  %v3193 = vunpack.c.h.b16 %v519
  %v3194 = vunpack.c.l.b16 %v520
  %v3195 = vunpack.c.h.b16 %v520
  %v3196 = vunpack.c.l.b16 %v521
  %v3197 = vunpack.c.h.b16 %v521
  %v3198 = vunpack.c.l.b16 %v522
  %v3199 = vunpack.c.h.b16 %v522
  %v3200 = vunpack.c.l.b16 %v523
  %v3201 = vunpack.c.h.b16 %v523
  %v3202 = vunpack.c.l.b16 %v524
  %v3203 = vunpack.c.h.b16 %v524
  %v3204 = vunpack.c.l.b16 %v525
  %v3205 = vunpack.c.h.b16 %v525
  %v3206 = vunpack.c.l.b16 %v526
  %v3207 = vunpack.c.h.b16 %v526
  %v3208 = vunpack.c.l.b16 %v527
  %v3209 = vunpack.c.h.b16 %v527
  %v3210 = vunpack.c.l.b16 %v528
  %v3211 = vunpack.c.h.b16 %v528
  %v3212 = vunpack.c.l.b16 %v529
  %v3213 = vunpack.c.h.b16 %v529
  %v3214 = vunpack.c.l.b16 %v530
  %v3215 = vunpack.c.h.b16 %v530
  %v3216 = vunpack.c.l.b16 %v531
  %v3217 = vunpack.c.h.b16 %v531
  %v3218 = vunpack.c.l.b16 %v532
  %v3219 = vunpack.c.h.b16 %v532
  %v3220 = vunpack.c.l.b16 %v533
  %v3221 = vunpack.c.h.b16 %v533
  %v3222 = vunpack.c.l.b16 %v534
  %v3223 = vunpack.c.h.b16 %v534
  %v3224 = vunpack.c.l.b16 %v535
  %v3225 = vunpack.c.h.b16 %v535
  %v3226 = vunpack.c.l.b16 %v536
  %v3227 = vunpack.c.h.b16 %v536
  %v3228 = vunpack.c.l.b16 %v537
  %v3229 = vunpack.c.h.b16 %v537
  %v3230 = vunpack.c.l.b16 %v538
  %v3231 = vunpack.c.h.b16 %v538
  %v3232 = vunpack.c.l.b16 %v539
  %v3233 = vunpack.c.h.b16 %v539
  %v3234 = vunpack.c.l.b16 %v540
  %v3235 = vunpack.c.h.b16 %v540
  %v3236 = vunpack.c.l.b16 %v541
  %v3237 = vunpack.c.h.b16 %v541
  %v3238 = vunpack.c.l.b16 %v542
  %v3239 = vunpack.c.h.b16 %v542
  %v3240 = vunpack.c.l.b16 %v543
  %v3241 = vunpack.c.h.b16 %v543
  %v3242 = vunpack.c.l.b16 %v544
  %v3243 = vunpack.c.h.b16 %v544
  %v3244 = vunpack.c.l.b16 %v545
  %v3245 = vunpack.c.h.b16 %v545
  %v3246 = vunpack.c.l.b16 %v546
  %v3247 = vunpack.c.h.b16 %v546
  %v3248 = vunpack.c.l.b16 %v547
  %v3249 = vunpack.c.h.b16 %v547
  %v3250 = vunpack.c.l.b16 %v548
  %v3251 = vunpack.c.h.b16 %v548
  %v3252 = vunpack.c.l.b16 %v549
  %v3253 = vunpack.c.h.b16 %v549
  %v3254 = vunpack.c.l.b16 %v550
  %v3255 = vunpack.c.h.b16 %v550
  %v3256 = vunpack.c.l.b16 %v551
  %v3257 = vunpack.c.h.b16 %v551
  %v3258 = vunpack.c.l.b16 %v552
  %v3259 = vunpack.c.h.b16 %v552
  %v3260 = vunpack.c.l.b16 %v553
  %v3261 = vunpack.c.h.b16 %v553
  %v3262 = vunpack.c.l.b16 %v554
  %v3263 = vunpack.c.h.b16 %v554
  %v3264 = vunpack.c.l.b16 %v555
  %v3265 = vunpack.c.h.b16 %v555
  %v3266 = vunpack.c.l.b16 %v556
  %v3267 = vunpack.c.h.b16 %v556
  %v3268 = vunpack.c.l.b16 %v557
  %v3269 = vunpack.c.h.b16 %v557
  %v3270 = vunpack.c.l.b16 %v558
  %v3271 = vunpack.c.h.b16 %v558
  %v3272 = vunpack.c.l.b16 %v559
  %v3273 = vunpack.c.h.b16 %v559
  %v3274 = vunpack.c.l.b16 %v560
  %v3275 = vunpack.c.h.b16 %v560
  %v3276 = vunpack.c.l.b16 %v561
  %v3277 = vunpack.c.h.b16 %v561
  %v3278 = vunpack.c.l.b16 %v562
  %v3279 = vunpack.c.h.b16 %v562
  %v3280 = vunpack.c.l.b16 %v563
  %v3281 = vunpack.c.h.b16 %v563
  %v3282 = vunpack.c.l.b16 %v564
  %v3283 = vunpack.c.h.b16 %v564
  %v3284 = vunpack.c.l.b16 %v565
  %v3285 = vunpack.c.h.b16 %v565
  %v3286 = vunpack.c.l.b16 %v566
  %v3287 = vunpack.c.h.b16 %v566
  %v3288 = vunpack.c.l.b16 %v567
  %v3289 = vunpack.c.h.b16 %v567
  %v3290 = vunpack.c.l.b16 %v568
  %v3291 = vunpack.c.h.b16 %v568
  %v3292 = vunpack.c.l.b16 %v569
  %v3293 = vunpack.c.h.b16 %v569
  %v3294 = vunpack.c.l.b16 %v570
  %v3295 = vunpack.c.h.b16 %v570
  %v3296 = vunpack.c.l.b16 %v571
  %v3297 = vunpack.c.h.b16 %v571
  %v3298 = vunpack.c.l.b16 %v572
  %v3299 = vunpack.c.h.b16 %v572
  %v3300 = vunpack.c.l.b16 %v573
  %v3301 = vunpack.c.h.b16 %v573
  %v3302 = vunpack.c.l.b16 %v574
  %v3303 = vunpack.c.h.b16 %v574
  %v3304 = vunpack.c.l.b16 %v575
  %v3305 = vunpack.c.h.b16 %v575
  %v3306 = vunpack.c.l.b16 %v576
  %v3307 = vunpack.c.h.b16 %v576
  %v3308 = vunpack.c.l.b16 %v577
  %v3309 = vunpack.c.h.b16 %v577
  %v3310 = vunpack.c.l.b16 %v578
  %v3311 = vunpack.c.h.b16 %v578
  %v3312 = vunpack.c.l.b16 %v579
  %v3313 = vunpack.c.h.b16 %v579
  %v3314 = vunpack.c.l.b16 %v580
  %v3315 = vunpack.c.h.b16 %v580
  %v3316 = vunpack.c.l.b16 %v581
  %v3317 = vunpack.c.h.b16 %v581
  %v3318 = vunpack.c.l.b16 %v582
  %v3319 = vunpack.c.h.b16 %v582
  %v3320 = vunpack.c.l.b16 %v583
  %v3321 = vunpack.c.h.b16 %v583
  %v3322 = vunpack.c.l.b16 %v584
  %v3323 = vunpack.c.h.b16 %v584
  %v3324 = vunpack.c.l.b16 %v585
  %v3325 = vunpack.c.h.b16 %v585
  %v3326 = vunpack.c.l.b16 %v586
  %v3327 = vunpack.c.h.b16 %v586
  %v3328 = vunpack.c.l.b16 %v587
  %v3329 = vunpack.c.h.b16 %v587
  %v3330 = vunpack.c.l.b16 %v588
  %v3331 = vunpack.c.h.b16 %v588
  %v3332 = vunpack.c.l.b16 %v589
  %v3333 = vunpack.c.h.b16 %v589
  %v3334 = vunpack.c.l.b16 %v590
  %v3335 = vunpack.c.h.b16 %v590
  %v3336 = vunpack.c.l.b16 %v591
  %v3337 = vunpack.c.h.b16 %v591
  %v3338 = vunpack.c.l.b16 %v592
  %v3339 = vunpack.c.h.b16 %v592
  %v3340 = vunpack.c.l.b16 %v593
  %v3341 = vunpack.c.h.b16 %v593
  %v3342 = vunpack.c.l.b16 %v594
  %v3343 = vunpack.c.h.b16 %v594
  %v3344 = vunpack.c.l.b16 %v595
  %v3345 = vunpack.c.h.b16 %v595
  %v3346 = vunpack.c.l.b16 %v596
  %v3347 = vunpack.c.h.b16 %v596
  %v3348 = vunpack.c.l.b16 %v597
  %v3349 = vunpack.c.h.b16 %v597
  %v3350 = vunpack.c.l.b16 %v598
  %v3351 = vunpack.c.h.b16 %v598
  %v3352 = vunpack.c.l.b16 %v599
  %v3353 = vunpack.c.h.b16 %v599
  %v3354 = vunpack.c.l.b16 %v600
  %v3355 = vunpack.c.h.b16 %v600
  %v3356 = vunpack.c.l.b16 %v601
  %v3357 = vunpack.c.h.b16 %v601
  %v3358 = vunpack.c.l.b16 %v602
  %v3359 = vunpack.c.h.b16 %v602
  %v3360 = vunpack.c.l.b16 %v603
  %v3361 = vunpack.c.h.b16 %v603
  %v3362 = vunpack.c.l.b16 %v604
  %v3363 = vunpack.c.h.b16 %v604
  %v3364 = vunpack.c.l.b16 %v605
  %v3365 = vunpack.c.h.b16 %v605
  %v3366 = vunpack.c.l.b16 %v606
  %v3367 = vunpack.c.h.b16 %v606
  %v3368 = vunpack.c.l.b16 %v607
  %v3369 = vunpack.c.h.b16 %v607
  %v3370 = vunpack.c.l.b16 %v608
  %v3371 = vunpack.c.h.b16 %v608
  %v3372 = vunpack.c.l.b16 %v609
  %v3373 = vunpack.c.h.b16 %v609
  %v3374 = vunpack.c.l.b16 %v610
  %v3375 = vunpack.c.h.b16 %v610
  %v3376 = vunpack.c.l.b16 %v611
  %v3377 = vunpack.c.h.b16 %v611
  %v3378 = vunpack.c.l.b16 %v612
  %v3379 = vunpack.c.h.b16 %v612
  %v3380 = vunpack.c.l.b16 %v613
  %v3381 = vunpack.c.h.b16 %v613
  %v3382 = vunpack.c.l.b16 %v614
  %v3383 = vunpack.c.h.b16 %v614
  %v3384 = vunpack.c.l.b16 %v615
  %v3385 = vunpack.c.h.b16 %v615
  %v3386 = vunpack.c.l.b16 %v616
  %v3387 = vunpack.c.h.b16 %v616
  %v3388 = vunpack.c.l.b16 %v617
  %v3389 = vunpack.c.h.b16 %v617
  %v3390 = vunpack.c.l.b16 %v618
  %v3391 = vunpack.c.h.b16 %v618
  %v3392 = vunpack.c.l.b16 %v619
  %v3393 = vunpack.c.h.b16 %v619
  %v3394 = vunpack.c.l.b16 %v620
  %v3395 = vunpack.c.h.b16 %v620
  %v3396 = vunpack.c.l.b16 %v621
  %v3397 = vunpack.c.h.b16 %v621
  %v3398 = vunpack.c.l.b16 %v622
  %v3399 = vunpack.c.h.b16 %v622
  %v3400 = vunpack.c.l.b16 %v623
  %v3401 = vunpack.c.h.b16 %v623
  %v3402 = vunpack.c.l.b16 %v624
  %v3403 = vunpack.c.h.b16 %v624
  %v3404 = vunpack.c.l.b16 %v625
  %v3405 = vunpack.c.h.b16 %v625
  %v3406 = vunpack.c.l.b16 %v626
  %v3407 = vunpack.c.h.b16 %v626
  %v3408 = vunpack.c.l.b16 %v627
  %v3409 = vunpack.c.h.b16 %v627
  %v3410 = vunpack.c.l.b16 %v628
  %v3411 = vunpack.c.h.b16 %v628
  %v3412 = vunpack.c.l.b16 %v629
  %v3413 = vunpack.c.h.b16 %v629
  %v3414 = vunpack.c.l.b16 %v630
  %v3415 = vunpack.c.h.b16 %v630
  %v3416 = vunpack.c.l.b16 %v631
  %v3417 = vunpack.c.h.b16 %v631
  %v3418 = vunpack.c.l.b16 %v632
  %v3419 = vunpack.c.h.b16 %v632
  %v3420 = vunpack.c.l.b16 %v633
  %v3421 = vunpack.c.h.b16 %v633
  %v3422 = vunpack.c.l.b16 %v634
  %v3423 = vunpack.c.h.b16 %v634
  %v3424 = vunpack.c.l.b16 %v635
  %v3425 = vunpack.c.h.b16 %v635
  %v3426 = vunpack.c.l.b16 %v636
  %v3427 = vunpack.c.h.b16 %v636
  %v3428 = vunpack.c.l.b16 %v637
  %v3429 = vunpack.c.h.b16 %v637
  %v3430 = vunpack.c.l.b16 %v638
  %v3431 = vunpack.c.h.b16 %v638
  %v3432 = vunpack.c.l.b16 %v639
  %v3433 = vunpack.c.h.b16 %v639
  %v3434 = vunpack.c.l.b16 %v640
  %v3435 = vunpack.c.h.b16 %v640
  %v3436 = vunpack.c.l.b16 %v641
  %v3437 = vunpack.c.h.b16 %v641
  %v3438 = vunpack.c.l.b16 %v642
  %v3439 = vunpack.c.h.b16 %v642
  %v3440 = vunpack.c.l.b16 %v643
  %v3441 = vunpack.c.h.b16 %v643
  %v3442 = vunpack.c.l.b16 %v644
  %v3443 = vunpack.c.h.b16 %v644
  %v3444 = vunpack.c.l.b16 %v645
  %v3445 = vunpack.c.h.b16 %v645
  %v3446 = vunpack.c.l.b16 %v646
  %v3447 = vunpack.c.h.b16 %v646
  %v3448 = vunpack.c.l.b16 %v647
  %v3449 = vunpack.c.h.b16 %v647
  %v3450 = vunpack.c.l.b16 %v648
  %v3451 = vunpack.c.h.b16 %v648
  %v3452 = vunpack.c.l.b16 %v649
  %v3453 = vunpack.c.h.b16 %v649
  %v3454 = vunpack.c.l.b16 %v650
  %v3455 = vunpack.c.h.b16 %v650
  %v3456 = vunpack.c.l.b16 %v651
  %v3457 = vunpack.c.h.b16 %v651
  %v3458 = vunpack.c.l.b16 %v652
  %v3459 = vunpack.c.h.b16 %v652
  %v3460 = vunpack.c.l.b16 %v653
  %v3461 = vunpack.c.h.b16 %v653
  %v3462 = vunpack.c.l.b16 %v654
  %v3463 = vunpack.c.h.b16 %v654
  %v3464 = vunpack.c.l.b16 %v655
  %v3465 = vunpack.c.h.b16 %v655
  %v3466 = vunpack.c.l.b16 %v656
  %v3467 = vunpack.c.h.b16 %v656
  %v3468 = vunpack.c.l.b16 %v657
  %v3469 = vunpack.c.h.b16 %v657
  %v3470 = vunpack.c.l.b16 %v658
  %v3471 = vunpack.c.h.b16 %v658
  %v3472 = vunpack.c.l.b16 %v659
  %v3473 = vunpack.c.h.b16 %v659
  %v3474 = vunpack.c.l.b16 %v660
  %v3475 = vunpack.c.h.b16 %v660
  %v3476 = vunpack.c.l.b16 %v661
  %v3477 = vunpack.c.h.b16 %v661
  %v3478 = vunpack.c.l.b16 %v662
  %v3479 = vunpack.c.h.b16 %v662
  %v3480 = vunpack.c.l.b16 %v663
  %v3481 = vunpack.c.h.b16 %v663
  %v3482 = vunpack.c.l.b16 %v664
  %v3483 = vunpack.c.h.b16 %v664
  %v3484 = vunpack.c.l.b16 %v665
  %v3485 = vunpack.c.h.b16 %v665
  %v3486 = vunpack.c.l.b16 %v666
  %v3487 = vunpack.c.h.b16 %v666
  %v3488 = vunpack.c.l.b16 %v667
  %v3489 = vunpack.c.h.b16 %v667
  %v3490 = vunpack.c.l.b16 %v668
  %v3491 = vunpack.c.h.b16 %v668
  %v3492 = vunpack.c.l.b16 %v669
  %v3493 = vunpack.c.h.b16 %v669
  %v3494 = vunpack.c.l.b16 %v670
  %v3495 = vunpack.c.h.b16 %v670
  %v3496 = vunpack.c.l.b16 %v671
  %v3497 = vunpack.c.h.b16 %v671
  %v3498 = vunpack.c.l.b16 %v672
  %v3499 = vunpack.c.h.b16 %v672
  %v3500 = vunpack.c.l.b16 %v673
  %v3501 = vunpack.c.h.b16 %v673
  %v3502 = vunpack.c.l.b16 %v674
  %v3503 = vunpack.c.h.b16 %v674
  %v3504 = vunpack.c.l.b16 %v675
  %v3505 = vunpack.c.h.b16 %v675
  %v3506 = vunpack.c.l.b16 %v676
  %v3507 = vunpack.c.h.b16 %v676
  %v3508 = vunpack.c.l.b16 %v677
  %v3509 = vunpack.c.h.b16 %v677
  %v3510 = vunpack.c.l.b16 %v678
  %v3511 = vunpack.c.h.b16 %v678
  %v3512 = vunpack.c.l.b16 %v679
  %v3513 = vunpack.c.h.b16 %v679
  %v3514 = vunpack.c.l.b16 %v680
  %v3515 = vunpack.c.h.b16 %v680
  %v3516 = vunpack.c.l.b16 %v681
  %v3517 = vunpack.c.h.b16 %v681
  %v3518 = vunpack.c.l.b16 %v682
  %v3519 = vunpack.c.h.b16 %v682
  %v3520 = vunpack.c.l.b16 %v683
  %v3521 = vunpack.c.h.b16 %v683
  %v3522 = vunpack.c.l.b16 %v684
  %v3523 = vunpack.c.h.b16 %v684
  %v3524 = vunpack.c.l.b16 %v685
  %v3525 = vunpack.c.h.b16 %v685
  %v3526 = vunpack.c.l.b16 %v686
  %v3527 = vunpack.c.h.b16 %v686
  %v3528 = vunpack.c.l.b16 %v687
  %v3529 = vunpack.c.h.b16 %v687
  %v3530 = vunpack.c.l.b16 %v688
  %v3531 = vunpack.c.h.b16 %v688
  %v3532 = vunpack.c.l.b16 %v689
  %v3533 = vunpack.c.h.b16 %v689
  %v3534 = vunpack.c.l.b16 %v690
  %v3535 = vunpack.c.h.b16 %v690
  %v3536 = vunpack.c.l.b16 %v691
  %v3537 = vunpack.c.h.b16 %v691
  %v3538 = vunpack.c.l.b16 %v692
  %v3539 = vunpack.c.h.b16 %v692
  %v3540 = vunpack.c.l.b16 %v693
  %v3541 = vunpack.c.h.b16 %v693
  %v3542 = vunpack.c.l.b16 %v694
  %v3543 = vunpack.c.h.b16 %v694
  %v3544 = vunpack.c.l.b16 %v695
  %v3545 = vunpack.c.h.b16 %v695
  %v3546 = vunpack.c.l.b16 %v696
  %v3547 = vunpack.c.h.b16 %v696
  %v3548 = vunpack.c.l.b16 %v697
  %v3549 = vunpack.c.h.b16 %v697
  %v3550 = vunpack.c.l.b16 %v698
  %v3551 = vunpack.c.h.b16 %v698
  %v3552 = vunpack.c.l.b16 %v699
  %v3553 = vunpack.c.h.b16 %v699
  %v3554 = vunpack.c.l.b16 %v700
  %v3555 = vunpack.c.h.b16 %v700
  %v3556 = vunpack.c.l.b16 %v701
  %v3557 = vunpack.c.h.b16 %v701
  %v3558 = vunpack.c.l.b16 %v702
  %v3559 = vunpack.c.h.b16 %v702
  %v3560 = vunpack.c.l.b16 %v703
  %v3561 = vunpack.c.h.b16 %v703
  %v3562 = vunpack.c.l.b16 %v704
  %v3563 = vunpack.c.h.b16 %v704
  %v3564 = vunpack.c.l.b16 %v705
  %v3565 = vunpack.c.h.b16 %v705
  %v3566 = vunpack.c.l.b16 %v706
  %v3567 = vunpack.c.h.b16 %v706
  %v3568 = vunpack.c.l.b16 %v707
  %v3569 = vunpack.c.h.b16 %v707
  %v3570 = vunpack.c.l.b16 %v708
  %v3571 = vunpack.c.h.b16 %v708
  %v3572 = vunpack.c.l.b16 %v709
  %v3573 = vunpack.c.h.b16 %v709
  %v3574 = vunpack.c.l.b16 %v710
  %v3575 = vunpack.c.h.b16 %v710
  %v3576 = vunpack.c.l.b16 %v711
  %v3577 = vunpack.c.h.b16 %v711
  %v3578 = vunpack.c.l.b16 %v712
  %v3579 = vunpack.c.h.b16 %v712
  %v3580 = vunpack.c.l.b16 %v713
  %v3581 = vunpack.c.h.b16 %v713
  %v3582 = vunpack.c.l.b16 %v714
  %v3583 = vunpack.c.h.b16 %v714
  %v3584 = vunpack.c.l.b16 %v715
  %v3585 = vunpack.c.h.b16 %v715
  %v3586 = vunpack.c.l.b16 %v716
  %v3587 = vunpack.c.h.b16 %v716
  %v3588 = vunpack.c.l.b16 %v717
  %v3589 = vunpack.c.h.b16 %v717
  %v3590 = vunpack.c.l.b16 %v718
  %v3591 = vunpack.c.h.b16 %v718
  %v3592 = vunpack.c.l.b16 %v719
  %v3593 = vunpack.c.h.b16 %v719
  %v3594 = vunpack.c.l.b16 %v720
  %v3595 = vunpack.c.h.b16 %v720
  %v3596 = vunpack.c.l.b16 %v721
  %v3597 = vunpack.c.h.b16 %v721
  %v3598 = vunpack.c.l.b16 %v722
  %v3599 = vunpack.c.h.b16 %v722
  %v3600 = vunpack.c.l.b16 %v723
  %v3601 = vunpack.c.h.b16 %v723
  %v3602 = vunpack.c.l.b16 %v724
  %v3603 = vunpack.c.h.b16 %v724
  %v3604 = vunpack.c.l.b16 %v725
  %v3605 = vunpack.c.h.b16 %v725
  %v3606 = vunpack.c.l.b16 %v726
  %v3607 = vunpack.c.h.b16 %v726
  %v3608 = vunpack.c.l.b16 %v727
  %v3609 = vunpack.c.h.b16 %v727
  %v3610 = vunpack.c.l.b16 %v728
  %v3611 = vunpack.c.h.b16 %v728
  %v3612 = vunpack.c.l.b16 %v729
  %v3613 = vunpack.c.h.b16 %v729
  %v3614 = vunpack.c.l.b16 %v730
  %v3615 = vunpack.c.h.b16 %v730
  %v3616 = vunpack.c.l.b16 %v731
  %v3617 = vunpack.c.h.b16 %v731
  %v3618 = vunpack.c.l.b16 %v732
  %v3619 = vunpack.c.h.b16 %v732
  %v3620 = vunpack.c.l.b16 %v733
  %v3621 = vunpack.c.h.b16 %v733
  %v3622 = vunpack.c.l.b16 %v734
  %v3623 = vunpack.c.h.b16 %v734
  %v3624 = vunpack.c.l.b16 %v735
  %v3625 = vunpack.c.h.b16 %v735
  %v3626 = vunpack.c.l.b16 %v736
  %v3627 = vunpack.c.h.b16 %v736
  %v3628 = vunpack.c.l.b16 %v737
  %v3629 = vunpack.c.h.b16 %v737
  %v3630 = vunpack.c.l.b16 %v738
  %v3631 = vunpack.c.h.b16 %v738
  %v3632 = vunpack.c.l.b16 %v739
  %v3633 = vunpack.c.h.b16 %v739
  %v3634 = vunpack.c.l.b16 %v740
  %v3635 = vunpack.c.h.b16 %v740
  %v3636 = vunpack.c.l.b16 %v741
  %v3637 = vunpack.c.h.b16 %v741
  %v3638 = vunpack.c.l.b16 %v742
  %v3639 = vunpack.c.h.b16 %v742
  %v3640 = vunpack.c.l.b16 %v743
  %v3641 = vunpack.c.h.b16 %v743
  %v3642 = vunpack.c.l.b16 %v744
  %v3643 = vunpack.c.h.b16 %v744
  %v3644 = vunpack.c.l.b16 %v745
  %v3645 = vunpack.c.h.b16 %v745
  %v3646 = vunpack.c.l.b16 %v746
  %v3647 = vunpack.c.h.b16 %v746
  %v3648 = vunpack.c.l.b16 %v747
  %v3649 = vunpack.c.h.b16 %v747
  %v3650 = vunpack.c.l.b16 %v748
  %v3651 = vunpack.c.h.b16 %v748
  %v3652 = vunpack.c.l.b16 %v749
  %v3653 = vunpack.c.h.b16 %v749
  %v3654 = vunpack.c.l.b16 %v750
  %v3655 = vunpack.c.h.b16 %v750
  %v3656 = vunpack.c.l.b16 %v751
  %v3657 = vunpack.c.h.b16 %v751
  %v3658 = vunpack.c.l.b16 %v752
  %v3659 = vunpack.c.h.b16 %v752
  %v3660 = vunpack.c.l.b16 %v753
  %v3661 = vunpack.c.h.b16 %v753
  %v3662 = vunpack.c.l.b16 %v754
  %v3663 = vunpack.c.h.b16 %v754
  %v3664 = vunpack.c.l.b16 %v755
  %v3665 = vunpack.c.h.b16 %v755
  %v3666 = vunpack.c.l.b16 %v756
  %v3667 = vunpack.c.h.b16 %v756
  %v3668 = vunpack.c.l.b16 %v757
  %v3669 = vunpack.c.h.b16 %v757
  %v3670 = vunpack.c.l.b16 %v758
  %v3671 = vunpack.c.h.b16 %v758
  %v3672 = vunpack.c.l.b16 %v759
  %v3673 = vunpack.c.h.b16 %v759
  %v3674 = vunpack.c.l.b16 %v760
  %v3675 = vunpack.c.h.b16 %v760
  %v3676 = vunpack.c.l.b16 %v761
  %v3677 = vunpack.c.h.b16 %v761
  %v3678 = vunpack.c.l.b16 %v762
  %v3679 = vunpack.c.h.b16 %v762
  %v3680 = vunpack.c.l.b16 %v763
  %v3681 = vunpack.c.h.b16 %v763
  %v3682 = vunpack.c.l.b16 %v764
  %v3683 = vunpack.c.h.b16 %v764
  %v3684 = vunpack.c.l.b16 %v765
  %v3685 = vunpack.c.h.b16 %v765
  %v3686 = vunpack.c.l.b16 %v766
  %v3687 = vunpack.c.h.b16 %v766
  %v3688 = vunpack.c.l.b16 %v767
  %v3689 = vunpack.c.h.b16 %v767
  %v3690 = vunpack.c.l.b16 %v768
  %v3691 = vunpack.c.h.b16 %v768
  %v3692 = vunpack.c.l.b16 %v769
  %v3693 = vunpack.c.h.b16 %v769
  %v3694 = vunpack.c.l.b16 %v770
  %v3695 = vunpack.c.h.b16 %v770
  %v3696 = vunpack.c.l.b16 %v771
  %v3697 = vunpack.c.h.b16 %v771
  %v3698 = vunpack.c.l.b16 %v772
  %v3699 = vunpack.c.h.b16 %v772
  %v3700 = vunpack.c.l.b16 %v773
  %v3701 = vunpack.c.h.b16 %v773
  %v3702 = vunpack.c.l.b16 %v774
  %v3703 = vunpack.c.h.b16 %v774
  %v3704 = vunpack.c.l.b16 %v775
  %v3705 = vunpack.c.h.b16 %v775
  %v3706 = vunpack.c.l.b16 %v776
  %v3707 = vunpack.c.h.b16 %v776
  %v3708 = vunpack.c.l.b16 %v777
  %v3709 = vunpack.c.h.b16 %v777
  %v3710 = vunpack.c.l.b16 %v778
  %v3711 = vunpack.c.h.b16 %v778
  %v3712 = vunpack.c.l.b16 %v779
  %v3713 = vunpack.c.h.b16 %v779
  %v3714 = vunpack.c.l.b16 %v780
  %v3715 = vunpack.c.h.b16 %v780
  %v3716 = vunpack.c.l.b16 %v781
  %v3717 = vunpack.c.h.b16 %v781
  %v3718 = vunpack.c.l.b16 %v782
  %v3719 = vunpack.c.h.b16 %v782
  %v3720 = vunpack.c.l.b16 %v783
  %v3721 = vunpack.c.h.b16 %v783
  %v3722 = vunpack.c.l.b16 %v784
  %v3723 = vunpack.c.h.b16 %v784
  %v3724 = vunpack.c.l.b16 %v785
  %v3725 = vunpack.c.h.b16 %v785
  %v3726 = vunpack.c.l.b16 %v786
  %v3727 = vunpack.c.h.b16 %v786
  %v3728 = vunpack.c.l.b16 %v787
  %v3729 = vunpack.c.h.b16 %v787
  %v3730 = vunpack.c.l.b16 %v788
  %v3731 = vunpack.c.h.b16 %v788
  %v3732 = vunpack.c.l.b16 %v789
  %v3733 = vunpack.c.h.b16 %v789
  %v3734 = vunpack.c.l.b16 %v790
  %v3735 = vunpack.c.h.b16 %v790
  %v3736 = vunpack.c.l.b16 %v791
  %v3737 = vunpack.c.h.b16 %v791
  %v3738 = vunpack.c.l.b16 %v792
  %v3739 = vunpack.c.h.b16 %v792
  %v3740 = vunpack.c.l.b16 %v793
  %v3741 = vunpack.c.h.b16 %v793
  %v3742 = vunpack.c.l.b16 %v794
  %v3743 = vunpack.c.h.b16 %v794
  %v3744 = vunpack.c.l.b16 %v795
  %v3745 = vunpack.c.h.b16 %v795
  %v3746 = vunpack.c.l.b16 %v796
  %v3747 = vunpack.c.h.b16 %v796
  %v3748 = vunpack.c.l.b16 %v797
  %v3749 = vunpack.c.h.b16 %v797
  %v3750 = vunpack.c.l.b16 %v798
  %v3751 = vunpack.c.h.b16 %v798
  %v3752 = vunpack.c.l.b16 %v799
  %v3753 = vunpack.c.h.b16 %v799
  %v3754 = vunpack.c.l.b16 %v800
  %v3755 = vunpack.c.h.b16 %v800
  %v3756 = vunpack.c.l.b16 %v801
  %v3757 = vunpack.c.h.b16 %v801
  %v3758 = vunpack.c.l.b16 %v802
  %v3759 = vunpack.c.h.b16 %v802
  %v3760 = vunpack.c.l.b16 %v803
  %v3761 = vunpack.c.h.b16 %v803
  %v3762 = vunpack.c.l.b16 %v804
  %v3763 = vunpack.c.h.b16 %v804
  %v3764 = vunpack.c.l.b16 %v805
  %v3765 = vunpack.c.h.b16 %v805
  %v3766 = vunpack.c.l.b16 %v806
  %v3767 = vunpack.c.h.b16 %v806
  %v3768 = vunpack.c.l.b16 %v807
  %v3769 = vunpack.c.h.b16 %v807
  %v3770 = vunpack.c.l.b16 %v808
  %v3771 = vunpack.c.h.b16 %v808
  %v3772 = vunpack.c.l.b16 %v809
  %v3773 = vunpack.c.h.b16 %v809
  %v3774 = vunpack.c.l.b16 %v810
  %v3775 = vunpack.c.h.b16 %v810
  %v3776 = vunpack.c.l.b16 %v811
  %v3777 = vunpack.c.h.b16 %v811
  %v3778 = vunpack.c.l.b16 %v812
  %v3779 = vunpack.c.h.b16 %v812
  %v3780 = vunpack.c.l.b16 %v813
  %v3781 = vunpack.c.h.b16 %v813
  %v3782 = vunpack.c.l.b16 %v814
  %v3783 = vunpack.c.h.b16 %v814
  %v3784 = vunpack.c.l.b16 %v815
  %v3785 = vunpack.c.h.b16 %v815
  %v3786 = vunpack.c.l.b16 %v816
  %v3787 = vunpack.c.h.b16 %v816
  %v3788 = vunpack.c.l.b16 %v817
  %v3789 = vunpack.c.h.b16 %v817
  %v3790 = vunpack.c.l.b16 %v818
  %v3791 = vunpack.c.h.b16 %v818
  %v3792 = vunpack.c.l.b16 %v819
  %v3793 = vunpack.c.h.b16 %v819
  %v3794 = vunpack.c.l.b16 %v820
  %v3795 = vunpack.c.h.b16 %v820
  %v3796 = vunpack.c.l.b16 %v821
  %v3797 = vunpack.c.h.b16 %v821
  %v3798 = vunpack.c.l.b16 %v822
  %v3799 = vunpack.c.h.b16 %v822
  %v3800 = vunpack.c.l.b16 %v823
  %v3801 = vunpack.c.h.b16 %v823
  %v3802 = vunpack.c.l.b16 %v824
  %v3803 = vunpack.c.h.b16 %v824
  %v3804 = vunpack.c.l.b16 %v825
  %v3805 = vunpack.c.h.b16 %v825
  %v3806 = vunpack.c.l.b16 %v826
  %v3807 = vunpack.c.h.b16 %v826
  %v3808 = vunpack.c.l.b16 %v827
  %v3809 = vunpack.c.h.b16 %v827
  %v3810 = vunpack.c.l.b16 %v828
  %v3811 = vunpack.c.h.b16 %v828
  %v3812 = vunpack.c.l.b16 %v829
  %v3813 = vunpack.c.h.b16 %v829
  %v3814 = vunpack.c.l.b16 %v830
  %v3815 = vunpack.c.h.b16 %v830
  %v3816 = vunpack.c.l.b16 %v831
  %v3817 = vunpack.c.h.b16 %v831
  %v3818 = vunpack.c.l.b16 %v832
  %v3819 = vunpack.c.h.b16 %v832
  %v3820 = vunpack.c.l.b16 %v833
  %v3821 = vunpack.c.h.b16 %v833
  %v3822 = vunpack.c.l.b16 %v834
  %v3823 = vunpack.c.h.b16 %v834
  %v3824 = vunpack.c.l.b16 %v835
  %v3825 = vunpack.c.h.b16 %v835
  %v3826 = vunpack.c.l.b16 %v836
  %v3827 = vunpack.c.h.b16 %v836
  %v3828 = vunpack.c.l.b16 %v837
  %v3829 = vunpack.c.h.b16 %v837
  %v3830 = vunpack.c.l.b16 %v838
  %v3831 = vunpack.c.h.b16 %v838
  %v3832 = vunpack.c.l.b16 %v839
  %v3833 = vunpack.c.h.b16 %v839
  %v3834 = vunpack.c.l.b16 %v840
  %v3835 = vunpack.c.h.b16 %v840
  %v3836 = vunpack.c.l.b16 %v841
  %v3837 = vunpack.c.h.b16 %v841
  %v3838 = vunpack.c.l.b16 %v842
  %v3839 = vunpack.c.h.b16 %v842
  %v3840 = vunpack.c.l.b16 %v843
  %v3841 = vunpack.c.h.b16 %v843
  %v3842 = vunpack.c.l.b16 %v844
  %v3843 = vunpack.c.h.b16 %v844
  %v3844 = vunpack.c.l.b16 %v845
  %v3845 = vunpack.c.h.b16 %v845
  %v3846 = vunpack.c.l.b16 %v846
  %v3847 = vunpack.c.h.b16 %v846
  %v3848 = vunpack.c.l.b16 %v847
  %v3849 = vunpack.c.h.b16 %v847
  %v3850 = vunpack.c.l.b16 %v848
  %v3851 = vunpack.c.h.b16 %v848
  %v3852 = vunpack.c.l.b16 %v849
  %v3853 = vunpack.c.h.b16 %v849
  %v3854 = vunpack.c.l.b16 %v850
  %v3855 = vunpack.c.h.b16 %v850
  %v3856 = vunpack.c.l.b16 %v851
  %v3857 = vunpack.c.h.b16 %v851
  %v3858 = vunpack.c.l.b16 %v852
  %v3859 = vunpack.c.h.b16 %v852
  %v3860 = vunpack.c.l.b16 %v853
  %v3861 = vunpack.c.h.b16 %v853
  %v3862 = vunpack.c.l.b16 %v854
  %v3863 = vunpack.c.h.b16 %v854
  %v3864 = vunpack.c.l.b16 %v855
  %v3865 = vunpack.c.h.b16 %v855
  %v3866 = vunpack.c.l.b16 %v856
  %v3867 = vunpack.c.h.b16 %v856
  %v3868 = vunpack.c.l.b16 %v857
  %v3869 = vunpack.c.h.b16 %v857
  %v3870 = vunpack.c.l.b16 %v858
  %v3871 = vunpack.c.h.b16 %v858
  %v3872 = vunpack.c.l.b16 %v859
  %v3873 = vunpack.c.h.b16 %v859
  %v3874 = vunpack.c.l.b16 %v860
  %v3875 = vunpack.c.h.b16 %v860
  %v3876 = vunpack.c.l.b16 %v861
  %v3877 = vunpack.c.h.b16 %v861
  %v3878 = vunpack.c.l.b16 %v862
  %v3879 = vunpack.c.h.b16 %v862
  %v3880 = vunpack.c.l.b16 %v863
  %v3881 = vunpack.c.h.b16 %v863
  %v3882 = vunpack.c.l.b16 %v864
  %v3883 = vunpack.c.h.b16 %v864
  %v3884 = vunpack.c.l.b16 %v865
  %v3885 = vunpack.c.h.b16 %v865
  %v3886 = vunpack.c.l.b16 %v866
  %v3887 = vunpack.c.h.b16 %v866
  %v3888 = vunpack.c.l.b16 %v867
  %v3889 = vunpack.c.h.b16 %v867
  %v3890 = vunpack.c.l.b16 %v868
  %v3891 = vunpack.c.h.b16 %v868
  %v3892 = vunpack.c.l.b16 %v869
  %v3893 = vunpack.c.h.b16 %v869
  %v3894 = vunpack.c.l.b16 %v870
  %v3895 = vunpack.c.h.b16 %v870
  %v3896 = vunpack.c.l.b16 %v871
  %v3897 = vunpack.c.h.b16 %v871
  %v3898 = vunpack.c.l.b16 %v872
  %v3899 = vunpack.c.h.b16 %v872
  %v3900 = vunpack.c.l.b16 %v873
  %v3901 = vunpack.c.h.b16 %v873
  %v3902 = vunpack.c.l.b16 %v874
  %v3903 = vunpack.c.h.b16 %v874
  %v3904 = vunpack.c.l.b16 %v875
  %v3905 = vunpack.c.h.b16 %v875
  %v3906 = vunpack.c.l.b16 %v876
  %v3907 = vunpack.c.h.b16 %v876
  %v3908 = vunpack.c.l.b16 %v877
  %v3909 = vunpack.c.h.b16 %v877
  %v3910 = vunpack.c.l.b16 %v878
  %v3911 = vunpack.c.h.b16 %v878
  %v3912 = vunpack.c.l.b16 %v879
  %v3913 = vunpack.c.h.b16 %v879
  %v3914 = vunpack.c.l.b16 %v880
  %v3915 = vunpack.c.h.b16 %v880
  %v3916 = vunpack.c.l.b16 %v881
  %v3917 = vunpack.c.h.b16 %v881
  %v3918 = vunpack.c.l.b16 %v882
  %v3919 = vunpack.c.h.b16 %v882
  %v3920 = vunpack.c.l.b16 %v883
  %v3921 = vunpack.c.h.b16 %v883
  %v3922 = vunpack.c.l.b16 %v884
  %v3923 = vunpack.c.h.b16 %v884
  %v3924 = vunpack.c.l.b16 %v885
  %v3925 = vunpack.c.h.b16 %v885
  %v3926 = vunpack.c.l.b16 %v886
  %v3927 = vunpack.c.h.b16 %v886
  %v3928 = vunpack.c.l.b16 %v887
  %v3929 = vunpack.c.h.b16 %v887
  %v3930 = vunpack.c.l.b16 %v888
  %v3931 = vunpack.c.h.b16 %v888
  %v3932 = vunpack.c.l.b16 %v889
  %v3933 = vunpack.c.h.b16 %v889
  %v3934 = vunpack.c.l.b16 %v890
  %v3935 = vunpack.c.h.b16 %v890
  %v3936 = vunpack.c.l.b16 %v891
  %v3937 = vunpack.c.h.b16 %v891
  %v3938 = vunpack.c.l.b16 %v892
  %v3939 = vunpack.c.h.b16 %v892
  %v3940 = vunpack.c.l.b16 %v893
  %v3941 = vunpack.c.h.b16 %v893
  %v3942 = vunpack.c.l.b16 %v894
  %v3943 = vunpack.c.h.b16 %v894
  %v3944 = vunpack.c.l.b16 %v895
  %v3945 = vunpack.c.h.b16 %v895
  %v3946 = vunpack.c.l.b16 %v896
  %v3947 = vunpack.c.h.b16 %v896
  %v3948 = vunpack.c.l.b16 %v897
  %v3949 = vunpack.c.h.b16 %v897
  %v3950 = vunpack.c.l.b16 %v898
  %v3951 = vunpack.c.h.b16 %v898
  %v3952 = vunpack.c.l.b16 %v899
  %v3953 = vunpack.c.h.b16 %v899
  %v3954 = vunpack.c.l.b16 %v900
  %v3955 = vunpack.c.h.b16 %v900
  %v3956 = vunpack.c.l.b16 %v901
  %v3957 = vunpack.c.h.b16 %v901
  %v3958 = vunpack.c.l.b16 %v902
  %v3959 = vunpack.c.h.b16 %v902
  %v3960 = vunpack.c.l.b16 %v903
  %v3961 = vunpack.c.h.b16 %v903
  %v3962 = vunpack.c.l.b16 %v904
  %v3963 = vunpack.c.h.b16 %v904
  %v3964 = vunpack.c.l.b16 %v905
  %v3965 = vunpack.c.h.b16 %v905
  %v3966 = vunpack.c.l.b16 %v906
  %v3967 = vunpack.c.h.b16 %v906
  %v3968 = vunpack.c.l.b16 %v907
  %v3969 = vunpack.c.h.b16 %v907
  %v3970 = vunpack.c.l.b16 %v908
  %v3971 = vunpack.c.h.b16 %v908
  %v3972 = vunpack.c.l.b16 %v909
  %v3973 = vunpack.c.h.b16 %v909
  %v3974 = vunpack.c.l.b16 %v910
  %v3975 = vunpack.c.h.b16 %v910
  %v3976 = vunpack.c.l.b16 %v911
  %v3977 = vunpack.c.h.b16 %v911
  %v3978 = vunpack.c.l.b16 %v912
  %v3979 = vunpack.c.h.b16 %v912
  %v3980 = vunpack.c.l.b16 %v913
  %v3981 = vunpack.c.h.b16 %v913
  %v3982 = vunpack.c.l.b16 %v914
  %v3983 = vunpack.c.h.b16 %v914
  %v3984 = vunpack.c.l.b16 %v915
  %v3985 = vunpack.c.h.b16 %v915
  %v3986 = vunpack.c.l.b16 %v916
  %v3987 = vunpack.c.h.b16 %v916
  %v3988 = vunpack.c.l.b16 %v917
  %v3989 = vunpack.c.h.b16 %v917
  %v3990 = vunpack.c.l.b16 %v918
  %v3991 = vunpack.c.h.b16 %v918
  %v3992 = vunpack.c.l.b16 %v919
  %v3993 = vunpack.c.h.b16 %v919
  %v3994 = vunpack.c.l.b16 %v920
  %v3995 = vunpack.c.h.b16 %v920
  %v3996 = vunpack.c.l.b16 %v921
  %v3997 = vunpack.c.h.b16 %v921
  %v3998 = vunpack.c.l.b16 %v922
  %v3999 = vunpack.c.h.b16 %v922
  %v4000 = vunpack.c.l.b16 %v923
  %v4001 = vunpack.c.h.b16 %v923
  %v4002 = vunpack.c.l.b16 %v924
  %v4003 = vunpack.c.h.b16 %v924
  %v4004 = vunpack.c.l.b16 %v925
  %v4005 = vunpack.c.h.b16 %v925
  %v4006 = vunpack.c.l.b16 %v926
  %v4007 = vunpack.c.h.b16 %v926
  %v4008 = vunpack.c.l.b16 %v927
  %v4009 = vunpack.c.h.b16 %v927
  %v4010 = vunpack.c.l.b16 %v928
  %v4011 = vunpack.c.h.b16 %v928
  %v4012 = vunpack.c.l.b16 %v929
  %v4013 = vunpack.c.h.b16 %v929
  %v4014 = vunpack.c.l.b16 %v930
  %v4015 = vunpack.c.h.b16 %v930
  %v4016 = vunpack.c.l.b16 %v931
  %v4017 = vunpack.c.h.b16 %v931
  %v4018 = vunpack.c.l.b16 %v932
  %v4019 = vunpack.c.h.b16 %v932
  %v4020 = vunpack.c.l.b16 %v933
  %v4021 = vunpack.c.h.b16 %v933
  %v4022 = vunpack.c.l.b16 %v934
  %v4023 = vunpack.c.h.b16 %v934
  %v4024 = vunpack.c.l.b16 %v935
  %v4025 = vunpack.c.h.b16 %v935
  %v4026 = vunpack.c.l.b16 %v936
  %v4027 = vunpack.c.h.b16 %v936
  %v4028 = vunpack.c.l.b16 %v937
  %v4029 = vunpack.c.h.b16 %v937
  %v4030 = vunpack.c.l.b16 %v938
  %v4031 = vunpack.c.h.b16 %v938
  %v4032 = vunpack.c.l.b16 %v939
  %v4033 = vunpack.c.h.b16 %v939
  %v4034 = vunpack.c.l.b16 %v940
  %v4035 = vunpack.c.h.b16 %v940
  %v4036 = vunpack.c.l.b16 %v941
  %v4037 = vunpack.c.h.b16 %v941
  %v4038 = vunpack.c.l.b16 %v942
  %v4039 = vunpack.c.h.b16 %v942
  %v4040 = vunpack.c.l.b16 %v943
  %v4041 = vunpack.c.h.b16 %v943
  %v4042 = vunpack.c.l.b16 %v944
  %v4043 = vunpack.c.h.b16 %v944
  %v4044 = vunpack.c.l.b16 %v945
  %v4045 = vunpack.c.h.b16 %v945
  %v4046 = vunpack.c.l.b16 %v946
  %v4047 = vunpack.c.h.b16 %v946
  %v4048 = vunpack.c.l.b16 %v947
  %v4049 = vunpack.c.h.b16 %v947
  %v4050 = vunpack.c.l.b16 %v948
  %v4051 = vunpack.c.h.b16 %v948
  %v4052 = vunpack.c.l.b16 %v949
  %v4053 = vunpack.c.h.b16 %v949
  %v4054 = vunpack.c.l.b16 %v950
  %v4055 = vunpack.c.h.b16 %v950
  %v4056 = vunpack.c.l.b16 %v951
  %v4057 = vunpack.c.h.b16 %v951
  %v4058 = vunpack.c.l.b16 %v952
  %v4059 = vunpack.c.h.b16 %v952
  %v4060 = vunpack.c.l.b16 %v953
  %v4061 = vunpack.c.h.b16 %v953
  %v4062 = vunpack.c.l.b16 %v954
  %v4063 = vunpack.c.h.b16 %v954
  %v4064 = vunpack.c.l.b16 %v955
  %v4065 = vunpack.c.h.b16 %v955
  %v4066 = vunpack.c.l.b16 %v956
  %v4067 = vunpack.c.h.b16 %v956
  %v4068 = vunpack.c.l.b16 %v957
  %v4069 = vunpack.c.h.b16 %v957
  %v4070 = vunpack.c.l.b16 %v958
  %v4071 = vunpack.c.h.b16 %v958
  %v4072 = vunpack.c.l.b16 %v959
  %v4073 = vunpack.c.h.b16 %v959
  %v4074 = vunpack.c.l.b16 %v960
  %v4075 = vunpack.c.h.b16 %v960
  %v4076 = vunpack.c.l.b16 %v961
  %v4077 = vunpack.c.h.b16 %v961
  %v4078 = vunpack.c.l.b16 %v962
  %v4079 = vunpack.c.h.b16 %v962
  %v4080 = vunpack.c.l.b16 %v963
  %v4081 = vunpack.c.h.b16 %v963
  %v4082 = vunpack.c.l.b16 %v964
  %v4083 = vunpack.c.h.b16 %v964
  %v4084 = vunpack.c.l.b16 %v965
  %v4085 = vunpack.c.h.b16 %v965
  %v4086 = vunpack.c.l.b16 %v966
  %v4087 = vunpack.c.h.b16 %v966
  %v4088 = vunpack.c.l.b16 %v967
  %v4089 = vunpack.c.h.b16 %v967
  %v4090 = vunpack.c.l.b16 %v968
  %v4091 = vunpack.c.h.b16 %v968
  %v4092 = vunpack.c.l.b16 %v969
  %v4093 = vunpack.c.h.b16 %v969
  %v4094 = vunpack.c.l.b16 %v970
  %v4095 = vunpack.c.h.b16 %v970
  %v4096 = vunpack.c.l.b16 %v971
  %v4097 = vunpack.c.h.b16 %v971
  %v4098 = vunpack.c.l.b16 %v972
  %v4099 = vunpack.c.h.b16 %v972
  %v4100 = vunpack.c.l.b16 %v973
  %v4101 = vunpack.c.h.b16 %v973
  %v4102 = vunpack.c.l.b16 %v974
  %v4103 = vunpack.c.h.b16 %v974
  %v4104 = vunpack.c.l.b16 %v975
  %v4105 = vunpack.c.h.b16 %v975
  %v4106 = vunpack.c.l.b16 %v976
  %v4107 = vunpack.c.h.b16 %v976
  %v4108 = vunpack.c.l.b16 %v977
  %v4109 = vunpack.c.h.b16 %v977
  %v4110 = vunpack.c.l.b16 %v978
  %v4111 = vunpack.c.h.b16 %v978
  %v4112 = vunpack.c.l.b16 %v979
  %v4113 = vunpack.c.h.b16 %v979
  %v4114 = vunpack.c.l.b16 %v980
  %v4115 = vunpack.c.h.b16 %v980
  %v4116 = vunpack.c.l.b16 %v981
  %v4117 = vunpack.c.h.b16 %v981
  %v4118 = vunpack.c.l.b16 %v982
  %v4119 = vunpack.c.h.b16 %v982
  %v4120 = vunpack.c.l.b16 %v983
  %v4121 = vunpack.c.h.b16 %v983
  %v4122 = vunpack.c.l.b16 %v984
  %v4123 = vunpack.c.h.b16 %v984
  %v4124 = vunpack.c.l.b16 %v985
  %v4125 = vunpack.c.h.b16 %v985
  %v4126 = vunpack.c.l.b16 %v986
  %v4127 = vunpack.c.h.b16 %v986
  %v4128 = vunpack.c.l.b16 %v987
  %v4129 = vunpack.c.h.b16 %v987
  %v4130 = vunpack.c.l.b16 %v988
  %v4131 = vunpack.c.h.b16 %v988
  %v4132 = vunpack.c.l.b16 %v989
  %v4133 = vunpack.c.h.b16 %v989
  %v4134 = vunpack.c.l.b16 %v990
  %v4135 = vunpack.c.h.b16 %v990
  %v4136 = vunpack.c.l.b16 %v991
  %v4137 = vunpack.c.h.b16 %v991
  %v4138 = vunpack.c.l.b16 %v992
  %v4139 = vunpack.c.h.b16 %v992
  %v4140 = vunpack.c.l.b16 %v993
  %v4141 = vunpack.c.h.b16 %v993
  %v4142 = vunpack.c.l.b16 %v994
  %v4143 = vunpack.c.h.b16 %v994
  %v4144 = vunpack.c.l.b16 %v995
  %v4145 = vunpack.c.h.b16 %v995
  %v4146 = vunpack.c.l.b16 %v996
  %v4147 = vunpack.c.h.b16 %v996
  %v4148 = vunpack.c.l.b16 %v997
  %v4149 = vunpack.c.h.b16 %v997
  %v4150 = vunpack.c.l.b16 %v998
  %v4151 = vunpack.c.h.b16 %v998
  %v4152 = vunpack.c.l.b16 %v999
  %v4153 = vunpack.c.h.b16 %v999
  %v4154 = vunpack.c.l.b16 %v1000
  %v4155 = vunpack.c.h.b16 %v1000
  %v4156 = vunpack.c.l.b16 %v1001
  %v4157 = vunpack.c.h.b16 %v1001
  %v4158 = vunpack.c.l.b16 %v1002
  %v4159 = vunpack.c.h.b16 %v1002
  %v4160 = vunpack.c.l.b16 %v1003
  %v4161 = vunpack.c.h.b16 %v1003
  %v4162 = vunpack.c.l.b16 %v1004
  %v4163 = vunpack.c.h.b16 %v1004
  %v4164 = vunpack.c.l.b16 %v1005
  %v4165 = vunpack.c.h.b16 %v1005
  %v4166 = vunpack.c.l.b16 %v1006
  %v4167 = vunpack.c.h.b16 %v1006
  %v4168 = vunpack.c.l.b16 %v1007
  %v4169 = vunpack.c.h.b16 %v1007
  %v4170 = vunpack.c.l.b16 %v1008
  %v4171 = vunpack.c.h.b16 %v1008
  %v4172 = vunpack.c.l.b16 %v1009
  %v4173 = vunpack.c.h.b16 %v1009
  %v4174 = vunpack.c.l.b16 %v1010
  %v4175 = vunpack.c.h.b16 %v1010
  %v4176 = vunpack.c.l.b16 %v1011
  %v4177 = vunpack.c.h.b16 %v1011
  %v4178 = vunpack.c.l.b16 %v1012
  %v4179 = vunpack.c.h.b16 %v1012
  %v4180 = vunpack.c.l.b16 %v1013
  %v4181 = vunpack.c.h.b16 %v1013
  %v4182 = vunpack.c.l.b16 %v1014
  %v4183 = vunpack.c.h.b16 %v1014
  %v4184 = vunpack.c.l.b16 %v1015
  %v4185 = vunpack.c.h.b16 %v1015
  %v4186 = vunpack.c.l.b16 %v1016
  %v4187 = vunpack.c.h.b16 %v1016
  %v4188 = vunpack.c.l.b16 %v1017
  %v4189 = vunpack.c.h.b16 %v1017
  %v4190 = vunpack.c.l.b16 %v1018
  %v4191 = vunpack.c.h.b16 %v1018
  %v4192 = vunpack.c.l.b16 %v1019
  %v4193 = vunpack.c.h.b16 %v1019
  %v4194 = vunpack.c.l.b16 %v1020
  %v4195 = vunpack.c.h.b16 %v1020
  %v4196 = vunpack.c.l.b16 %v1021
  %v4197 = vunpack.c.h.b16 %v1021
  %v4198 = vunpack.c.l.b16 %v1022
  %v4199 = vunpack.c.h.b16 %v1022
  %v4200 = vunpack.c.l.b16 %v1023
  %v4201 = vunpack.c.h.b16 %v1023
  %v4202 = vunpack.c.l.b16 %v1024
  %v4203 = vunpack.c.h.b16 %v1024
  %v4204 = vunpack.c.l.b16 %v1025
  %v4205 = vunpack.c.h.b16 %v1025
  %v4206 = vunpack.c.l.b16 %v1026
  %v4207 = vunpack.c.h.b16 %v1026
  %v4208 = vunpack.c.l.b16 %v1027
  %v4209 = vunpack.c.h.b16 %v1027
  %v4210 = vunpack.c.l.b16 %v1028
  %v4211 = vunpack.c.h.b16 %v1028
  %v4212 = vunpack.c.l.b16 %v1029
  %v4213 = vunpack.c.h.b16 %v1029
  %v4214 = vunpack.c.l.b16 %v1030
  %v4215 = vunpack.c.h.b16 %v1030
  %v4216 = vunpack.c.l.b16 %v1031
  %v4217 = vunpack.c.h.b16 %v1031
  %v4218 = vunpack.c.l.b16 %v1032
  %v4219 = vunpack.c.h.b16 %v1032
  %v4220 = vunpack.c.l.b16 %v1033
  %v4221 = vunpack.c.h.b16 %v1033
  %v4222 = vunpack.c.l.b16 %v1034
  %v4223 = vunpack.c.h.b16 %v1034
  %v4224 = vunpack.c.l.b16 %v1035
  %v4225 = vunpack.c.h.b16 %v1035
  %v4226 = vunpack.c.l.b16 %v1036
  %v4227 = vunpack.c.h.b16 %v1036
  %v4228 = vunpack.c.l.b16 %v1037
  %v4229 = vunpack.c.h.b16 %v1037
  %v4230 = vunpack.c.l.b16 %v1038
  %v4231 = vunpack.c.h.b16 %v1038
  %v4232 = vunpack.c.l.b16 %v1039
  %v4233 = vunpack.c.h.b16 %v1039
  %v4234 = vunpack.c.l.b16 %v1040
  %v4235 = vunpack.c.h.b16 %v1040
  %v4236 = vunpack.c.l.b16 %v1041
  %v4237 = vunpack.c.h.b16 %v1041
  %v4238 = vunpack.c.l.b16 %v1042
  %v4239 = vunpack.c.h.b16 %v1042
  %v4240 = vunpack.c.l.b16 %v1043
  %v4241 = vunpack.c.h.b16 %v1043
  %v4242 = vunpack.c.l.b16 %v1044
  %v4243 = vunpack.c.h.b16 %v1044
  %v4244 = vunpack.c.l.b16 %v1045
  %v4245 = vunpack.c.h.b16 %v1045
  %v4246 = vunpack.c.l.b16 %v1046
  %v4247 = vunpack.c.h.b16 %v1046
  %v4248 = vunpack.c.l.b16 %v1047
  %v4249 = vunpack.c.h.b16 %v1047
  %v4250 = vunpack.c.l.b16 %v1048
  %v4251 = vunpack.c.h.b16 %v1048
  %v4252 = vunpack.c.l.b16 %v1049
  %v4253 = vunpack.c.h.b16 %v1049
  %v4254 = vunpack.c.l.b16 %v1050
  %v4255 = vunpack.c.h.b16 %v1050
  %v4256 = vunpack.c.l.b16 %v1051
  %v4257 = vunpack.c.h.b16 %v1051
  %v4258 = vunpack.c.l.b16 %v1052
  %v4259 = vunpack.c.h.b16 %v1052
  %v4260 = vunpack.c.l.b16 %v1053
  %v4261 = vunpack.c.h.b16 %v1053
  %v4262 = vunpack.c.l.b16 %v1054
  %v4263 = vunpack.c.h.b16 %v1054
  %v4264 = vunpack.c.l.b16 %v1055
  %v4265 = vunpack.c.h.b16 %v1055
  %v4266 = vunpack.c.l.b16 %v1056
  %v4267 = vunpack.c.h.b16 %v1056
  %v4268 = vunpack.c.l.b16 %v1057
  %v4269 = vunpack.c.h.b16 %v1057
  %v4270 = vunpack.c.l.b16 %v1058
  %v4271 = vunpack.c.h.b16 %v1058
  %v4272 = vunpack.c.l.b16 %v1059
  %v4273 = vunpack.c.h.b16 %v1059
  %v4274 = vunpack.c.l.b16 %v1060
  %v4275 = vunpack.c.h.b16 %v1060
  %v4276 = vunpack.c.l.b16 %v1061
  %v4277 = vunpack.c.h.b16 %v1061
  %v4278 = vunpack.c.l.b16 %v1062
  %v4279 = vunpack.c.h.b16 %v1062
  %v4280 = vunpack.c.l.b16 %v1063
  %v4281 = vunpack.c.h.b16 %v1063
  %v4282 = vunpack.c.l.b16 %v1064
  %v4283 = vunpack.c.h.b16 %v1064
  %v4284 = vunpack.c.l.b16 %v1065
  %v4285 = vunpack.c.h.b16 %v1065
  %v4286 = vunpack.c.l.b16 %v1066
  %v4287 = vunpack.c.h.b16 %v1066
  %v4288 = vunpack.c.l.b16 %v1067
  %v4289 = vunpack.c.h.b16 %v1067
  %v4290 = vunpack.c.l.b16 %v1068
  %v4291 = vunpack.c.h.b16 %v1068
  %v4292 = vunpack.c.l.b16 %v1069
  %v4293 = vunpack.c.h.b16 %v1069
  %v4294 = vunpack.c.l.b16 %v1070
  %v4295 = vunpack.c.h.b16 %v1070
  %v4296 = vunpack.c.l.b16 %v1071
  %v4297 = vunpack.c.h.b16 %v1071
  %v4298 = vunpack.c.l.b16 %v1072
  %v4299 = vunpack.c.h.b16 %v1072
  %v4300 = vunpack.c.l.b16 %v1073
  %v4301 = vunpack.c.h.b16 %v1073
  %v4302 = vunpack.c.l.b16 %v1074
  %v4303 = vunpack.c.h.b16 %v1074
  %v4304 = vunpack.c.l.b16 %v1075
  %v4305 = vunpack.c.h.b16 %v1075
  %v4306 = vpack.c.b16 %v2266, %v2258
  %v4307 = vpack.c.b16 %v2267, %v2259
  %v4308 = vpack.c.b16 %v2268, %v2260
  %v4309 = vpack.c.b16 %v2269, %v2261
  %v4310 = vpack.c.b16 %v2270, %v2262
  %v4311 = vpack.c.b16 %v2271, %v2263
  %v4312 = vpack.c.b16 %v2272, %v2264
  %v4313 = vpack.c.b16 %v2273, %v2265
  %v4314 = vpack.c.b16 %v2282, %v2274
  %v4315 = vpack.c.b16 %v2283, %v2275
  %v4316 = vpack.c.b16 %v2284, %v2276
  %v4317 = vpack.c.b16 %v2285, %v2277
  %v4318 = vpack.c.b16 %v2286, %v2278
  %v4319 = vpack.c.b16 %v2287, %v2279
  %v4320 = vpack.c.b16 %v2288, %v2280
  %v4321 = vpack.c.b16 %v2289, %v2281
  %v4322 = vpack.c.b16 %v2298, %v2290
  %v4323 = vpack.c.b16 %v2299, %v2291
  %v4324 = vpack.c.b16 %v2300, %v2292
  %v4325 = vpack.c.b16 %v2301, %v2293
  %v4326 = vpack.c.b16 %v2302, %v2294
  %v4327 = vpack.c.b16 %v2303, %v2295
  %v4328 = vpack.c.b16 %v2304, %v2296
  %v4329 = vpack.c.b16 %v2305, %v2297
  %v4330 = vpack.c.b16 %v2314, %v2306
  %v4331 = vpack.c.b16 %v2315, %v2307
  %v4332 = vpack.c.b16 %v2316, %v2308
  %v4333 = vpack.c.b16 %v2317, %v2309
  %v4334 = vpack.c.b16 %v2318, %v2310
  %v4335 = vpack.c.b16 %v2319, %v2311
  %v4336 = vpack.c.b16 %v2320, %v2312
  %v4337 = vpack.c.b16 %v2321, %v2313
  %v4338 = vpack.c.b16 %v2330, %v2322
  %v4339 = vpack.c.b16 %v2331, %v2323
  %v4340 = vpack.c.b16 %v2332, %v2324
  %v4341 = vpack.c.b16 %v2333, %v2325
  %v4342 = vpack.c.b16 %v2334, %v2326
  %v4343 = vpack.c.b16 %v2335, %v2327
  %v4344 = vpack.c.b16 %v2336, %v2328
  %v4345 = vpack.c.b16 %v2337, %v2329
  %v4346 = vpack.c.b16 %v2346, %v2338
  %v4347 = vpack.c.b16 %v2347, %v2339
  %v4348 = vpack.c.b16 %v2348, %v2340
  %v4349 = vpack.c.b16 %v2349, %v2341
  %v4350 = vpack.c.b16 %v2350, %v2342
  %v4351 = vpack.c.b16 %v2351, %v2343
  %v4352 = vpack.c.b16 %v2352, %v2344
  %v4353 = vpack.c.b16 %v2353, %v2345
  %v4354 = vpack.c.b16 %v2362, %v2354
  %v4355 = vpack.c.b16 %v2363, %v2355
  %v4356 = vpack.c.b16 %v2364, %v2356
  %v4357 = vpack.c.b16 %v2365, %v2357
  %v4358 = vpack.c.b16 %v2366, %v2358
  %v4359 = vpack.c.b16 %v2367, %v2359
  %v4360 = vpack.c.b16 %v2368, %v2360
  %v4361 = vpack.c.b16 %v2369, %v2361
  %v4362 = vpack.c.b16 %v2378, %v2370
  %v4363 = vpack.c.b16 %v2379, %v2371
  %v4364 = vpack.c.b16 %v2380, %v2372
  %v4365 = vpack.c.b16 %v2381, %v2373
  %v4366 = vpack.c.b16 %v2382, %v2374
  %v4367 = vpack.c.b16 %v2383, %v2375
  %v4368 = vpack.c.b16 %v2384, %v2376
  %v4369 = vpack.c.b16 %v2385, %v2377
  %v4370 = vpack.c.b16 %v2394, %v2386
  %v4371 = vpack.c.b16 %v2395, %v2387
  %v4372 = vpack.c.b16 %v2396, %v2388
  %v4373 = vpack.c.b16 %v2397, %v2389
  %v4374 = vpack.c.b16 %v2398, %v2390
  %v4375 = vpack.c.b16 %v2399, %v2391
  %v4376 = vpack.c.b16 %v2400, %v2392
  %v4377 = vpack.c.b16 %v2401, %v2393
  %v4378 = vpack.c.b16 %v2410, %v2402
  %v4379 = vpack.c.b16 %v2411, %v2403
  %v4380 = vpack.c.b16 %v2412, %v2404
  %v4381 = vpack.c.b16 %v2413, %v2405
  %v4382 = vpack.c.b16 %v2414, %v2406
  %v4383 = vpack.c.b16 %v2415, %v2407
  %v4384 = vpack.c.b16 %v2416, %v2408
  %v4385 = vpack.c.b16 %v2417, %v2409
  %v4386 = vpack.c.b16 %v2426, %v2418
  %v4387 = vpack.c.b16 %v2427, %v2419
  %v4388 = vpack.c.b16 %v2428, %v2420
  %v4389 = vpack.c.b16 %v2429, %v2421
  %v4390 = vpack.c.b16 %v2430, %v2422
  %v4391 = vpack.c.b16 %v2431, %v2423
  %v4392 = vpack.c.b16 %v2432, %v2424
  %v4393 = vpack.c.b16 %v2433, %v2425
  %v4394 = vpack.c.b16 %v2442, %v2434
  %v4395 = vpack.c.b16 %v2443, %v2435
  %v4396 = vpack.c.b16 %v2444, %v2436
  %v4397 = vpack.c.b16 %v2445, %v2437
  %v4398 = vpack.c.b16 %v2446, %v2438
  %v4399 = vpack.c.b16 %v2447, %v2439
  %v4400 = vpack.c.b16 %v2448, %v2440
  %v4401 = vpack.c.b16 %v2449, %v2441
  %v4402 = vpack.c.b16 %v2458, %v2450
  %v4403 = vpack.c.b16 %v2459, %v2451
  %v4404 = vpack.c.b16 %v2460, %v2452
  %v4405 = vpack.c.b16 %v2461, %v2453
  %v4406 = vpack.c.b16 %v2462, %v2454
  %v4407 = vpack.c.b16 %v2463, %v2455
  %v4408 = vpack.c.b16 %v2464, %v2456
  %v4409 = vpack.c.b16 %v2465, %v2457
  %v4410 = vpack.c.b16 %v2474, %v2466
  %v4411 = vpack.c.b16 %v2475, %v2467
  %v4412 = vpack.c.b16 %v2476, %v2468
  %v4413 = vpack.c.b16 %v2477, %v2469
  %v4414 = vpack.c.b16 %v2478, %v2470
  %v4415 = vpack.c.b16 %v2479, %v2471
  %v4416 = vpack.c.b16 %v2480, %v2472
  %v4417 = vpack.c.b16 %v2481, %v2473
  %v4418 = vpack.c.b16 %v2490, %v2482
  %v4419 = vpack.c.b16 %v2491, %v2483
  %v4420 = vpack.c.b16 %v2492, %v2484
  %v4421 = vpack.c.b16 %v2493, %v2485
  %v4422 = vpack.c.b16 %v2494, %v2486
  %v4423 = vpack.c.b16 %v2495, %v2487
  %v4424 = vpack.c.b16 %v2496, %v2488
  %v4425 = vpack.c.b16 %v2497, %v2489
  %v4426 = vpack.c.b16 %v2506, %v2498
  %v4427 = vpack.c.b16 %v2507, %v2499
  %v4428 = vpack.c.b16 %v2508, %v2500
  %v4429 = vpack.c.b16 %v2509, %v2501
  %v4430 = vpack.c.b16 %v2510, %v2502
  %v4431 = vpack.c.b16 %v2511, %v2503
  %v4432 = vpack.c.b16 %v2512, %v2504
  %v4433 = vpack.c.b16 %v2513, %v2505
  %v4434 = vpack.c.b16 %v2522, %v2514
  %v4435 = vpack.c.b16 %v2523, %v2515
  %v4436 = vpack.c.b16 %v2524, %v2516
  %v4437 = vpack.c.b16 %v2525, %v2517
  %v4438 = vpack.c.b16 %v2526, %v2518
  %v4439 = vpack.c.b16 %v2527, %v2519
  %v4440 = vpack.c.b16 %v2528, %v2520
  %v4441 = vpack.c.b16 %v2529, %v2521
  %v4442 = vpack.c.b16 %v2538, %v2530
  %v4443 = vpack.c.b16 %v2539, %v2531
  %v4444 = vpack.c.b16 %v2540, %v2532
  %v4445 = vpack.c.b16 %v2541, %v2533
  %v4446 = vpack.c.b16 %v2542, %v2534
  %v4447 = vpack.c.b16 %v2543, %v2535
  %v4448 = vpack.c.b16 %v2544, %v2536
  %v4449 = vpack.c.b16 %v2545, %v2537
  %v4450 = vpack.c.b16 %v2554, %v2546
  %v4451 = vpack.c.b16 %v2555, %v2547
  %v4452 = vpack.c.b16 %v2556, %v2548
  %v4453 = vpack.c.b16 %v2557, %v2549
  %v4454 = vpack.c.b16 %v2558, %v2550
  %v4455 = vpack.c.b16 %v2559, %v2551
  %v4456 = vpack.c.b16 %v2560, %v2552
  %v4457 = vpack.c.b16 %v2561, %v2553
  %v4458 = vpack.c.b16 %v2570, %v2562
  %v4459 = vpack.c.b16 %v2571, %v2563
  %v4460 = vpack.c.b16 %v2572, %v2564
  %v4461 = vpack.c.b16 %v2573, %v2565
  %v4462 = vpack.c.b16 %v2574, %v2566
  %v4463 = vpack.c.b16 %v2575, %v2567
  %v4464 = vpack.c.b16 %v2576, %v2568
  %v4465 = vpack.c.b16 %v2577, %v2569
  %v4466 = vpack.c.b16 %v2586, %v2578
  %v4467 = vpack.c.b16 %v2587, %v2579
  %v4468 = vpack.c.b16 %v2588, %v2580
  %v4469 = vpack.c.b16 %v2589, %v2581
  %v4470 = vpack.c.b16 %v2590, %v2582
  %v4471 = vpack.c.b16 %v2591, %v2583
  %v4472 = vpack.c.b16 %v2592, %v2584
  %v4473 = vpack.c.b16 %v2593, %v2585
  %v4474 = vpack.c.b16 %v2602, %v2594
  %v4475 = vpack.c.b16 %v2603, %v2595
  %v4476 = vpack.c.b16 %v2604, %v2596
  %v4477 = vpack.c.b16 %v2605, %v2597
  %v4478 = vpack.c.b16 %v2606, %v2598
  %v4479 = vpack.c.b16 %v2607, %v2599
  %v4480 = vpack.c.b16 %v2608, %v2600
  %v4481 = vpack.c.b16 %v2609, %v2601
  %v4482 = vpack.c.b16 %v2618, %v2610
  %v4483 = vpack.c.b16 %v2619, %v2611
  %v4484 = vpack.c.b16 %v2620, %v2612
  %v4485 = vpack.c.b16 %v2621, %v2613
  %v4486 = vpack.c.b16 %v2622, %v2614
  %v4487 = vpack.c.b16 %v2623, %v2615
  %v4488 = vpack.c.b16 %v2624, %v2616
  %v4489 = vpack.c.b16 %v2625, %v2617
  %v4490 = vpack.c.b16 %v2634, %v2626
  %v4491 = vpack.c.b16 %v2635, %v2627
  %v4492 = vpack.c.b16 %v2636, %v2628
  %v4493 = vpack.c.b16 %v2637, %v2629
  %v4494 = vpack.c.b16 %v2638, %v2630
  %v4495 = vpack.c.b16 %v2639, %v2631
  %v4496 = vpack.c.b16 %v2640, %v2632
  %v4497 = vpack.c.b16 %v2641, %v2633
  %v4498 = vpack.c.b16 %v2650, %v2642
  %v4499 = vpack.c.b16 %v2651, %v2643
  %v4500 = vpack.c.b16 %v2652, %v2644
  %v4501 = vpack.c.b16 %v2653, %v2645
  %v4502 = vpack.c.b16 %v2654, %v2646
  %v4503 = vpack.c.b16 %v2655, %v2647
  %v4504 = vpack.c.b16 %v2656, %v2648
  %v4505 = vpack.c.b16 %v2657, %v2649
  %v4506 = vpack.c.b16 %v2666, %v2658
  %v4507 = vpack.c.b16 %v2667, %v2659
  %v4508 = vpack.c.b16 %v2668, %v2660
  %v4509 = vpack.c.b16 %v2669, %v2661
  %v4510 = vpack.c.b16 %v2670, %v2662
  %v4511 = vpack.c.b16 %v2671, %v2663
  %v4512 = vpack.c.b16 %v2672, %v2664
  %v4513 = vpack.c.b16 %v2673, %v2665
  %v4514 = vpack.c.b16 %v2682, %v2674
  %v4515 = vpack.c.b16 %v2683, %v2675
  %v4516 = vpack.c.b16 %v2684, %v2676
  %v4517 = vpack.c.b16 %v2685, %v2677
  %v4518 = vpack.c.b16 %v2686, %v2678
  %v4519 = vpack.c.b16 %v2687, %v2679
  %v4520 = vpack.c.b16 %v2688, %v2680
  %v4521 = vpack.c.b16 %v2689, %v2681
  %v4522 = vpack.c.b16 %v2698, %v2690
  %v4523 = vpack.c.b16 %v2699, %v2691
  %v4524 = vpack.c.b16 %v2700, %v2692
  %v4525 = vpack.c.b16 %v2701, %v2693
  %v4526 = vpack.c.b16 %v2702, %v2694
  %v4527 = vpack.c.b16 %v2703, %v2695
  %v4528 = vpack.c.b16 %v2704, %v2696
  %v4529 = vpack.c.b16 %v2705, %v2697
  %v4530 = vpack.c.b16 %v2714, %v2706
  %v4531 = vpack.c.b16 %v2715, %v2707
  %v4532 = vpack.c.b16 %v2716, %v2708
  %v4533 = vpack.c.b16 %v2717, %v2709
  %v4534 = vpack.c.b16 %v2718, %v2710
  %v4535 = vpack.c.b16 %v2719, %v2711
  %v4536 = vpack.c.b16 %v2720, %v2712
  %v4537 = vpack.c.b16 %v2721, %v2713
  %v4538 = vpack.c.b16 %v2730, %v2722
  %v4539 = vpack.c.b16 %v2731, %v2723
  %v4540 = vpack.c.b16 %v2732, %v2724
  %v4541 = vpack.c.b16 %v2733, %v2725
  %v4542 = vpack.c.b16 %v2734, %v2726
  %v4543 = vpack.c.b16 %v2735, %v2727
  %v4544 = vpack.c.b16 %v2736, %v2728
  %v4545 = vpack.c.b16 %v2737, %v2729
  %v4546 = vpack.c.b16 %v2746, %v2738
  %v4547 = vpack.c.b16 %v2747, %v2739
  %v4548 = vpack.c.b16 %v2748, %v2740
  %v4549 = vpack.c.b16 %v2749, %v2741
  %v4550 = vpack.c.b16 %v2750, %v2742
  %v4551 = vpack.c.b16 %v2751, %v2743
  %v4552 = vpack.c.b16 %v2752, %v2744
  %v4553 = vpack.c.b16 %v2753, %v2745
  %v4554 = vpack.c.b16 %v2762, %v2754
  %v4555 = vpack.c.b16 %v2763, %v2755
  %v4556 = vpack.c.b16 %v2764, %v2756
  %v4557 = vpack.c.b16 %v2765, %v2757
  %v4558 = vpack.c.b16 %v2766, %v2758
  %v4559 = vpack.c.b16 %v2767, %v2759
  %v4560 = vpack.c.b16 %v2768, %v2760
  %v4561 = vpack.c.b16 %v2769, %v2761
  %v4562 = vpack.c.b16 %v2778, %v2770
  %v4563 = vpack.c.b16 %v2779, %v2771
  %v4564 = vpack.c.b16 %v2780, %v2772
  %v4565 = vpack.c.b16 %v2781, %v2773
  %v4566 = vpack.c.b16 %v2782, %v2774
  %v4567 = vpack.c.b16 %v2783, %v2775
  %v4568 = vpack.c.b16 %v2784, %v2776
  %v4569 = vpack.c.b16 %v2785, %v2777
  %v4570 = vpack.c.b16 %v2794, %v2786
  %v4571 = vpack.c.b16 %v2795, %v2787
  %v4572 = vpack.c.b16 %v2796, %v2788
  %v4573 = vpack.c.b16 %v2797, %v2789
  %v4574 = vpack.c.b16 %v2798, %v2790
  %v4575 = vpack.c.b16 %v2799, %v2791
  %v4576 = vpack.c.b16 %v2800, %v2792
  %v4577 = vpack.c.b16 %v2801, %v2793
  %v4578 = vpack.c.b16 %v2810, %v2802
  %v4579 = vpack.c.b16 %v2811, %v2803
  %v4580 = vpack.c.b16 %v2812, %v2804
  %v4581 = vpack.c.b16 %v2813, %v2805
  %v4582 = vpack.c.b16 %v2814, %v2806
  %v4583 = vpack.c.b16 %v2815, %v2807
  %v4584 = vpack.c.b16 %v2816, %v2808
  %v4585 = vpack.c.b16 %v2817, %v2809
  %v4586 = vpack.c.b16 %v2826, %v2818
  %v4587 = vpack.c.b16 %v2827, %v2819
  %v4588 = vpack.c.b16 %v2828, %v2820
  %v4589 = vpack.c.b16 %v2829, %v2821
  %v4590 = vpack.c.b16 %v2830, %v2822
  %v4591 = vpack.c.b16 %v2831, %v2823
  %v4592 = vpack.c.b16 %v2832, %v2824
  %v4593 = vpack.c.b16 %v2833, %v2825
  %v4594 = vpack.c.b16 %v2842, %v2834
  %v4595 = vpack.c.b16 %v2843, %v2835
  %v4596 = vpack.c.b16 %v2844, %v2836
  %v4597 = vpack.c.b16 %v2845, %v2837
  %v4598 = vpack.c.b16 %v2846, %v2838
  %v4599 = vpack.c.b16 %v2847, %v2839
  %v4600 = vpack.c.b16 %v2848, %v2840
  %v4601 = vpack.c.b16 %v2849, %v2841
  %v4602 = vpack.c.b16 %v2858, %v2850
  %v4603 = vpack.c.b16 %v2859, %v2851
  %v4604 = vpack.c.b16 %v2860, %v2852
  %v4605 = vpack.c.b16 %v2861, %v2853
  %v4606 = vpack.c.b16 %v2862, %v2854
  %v4607 = vpack.c.b16 %v2863, %v2855
  %v4608 = vpack.c.b16 %v2864, %v2856
  %v4609 = vpack.c.b16 %v2865, %v2857
  %v4610 = vpack.c.b16 %v2874, %v2866
  %v4611 = vpack.c.b16 %v2875, %v2867
  %v4612 = vpack.c.b16 %v2876, %v2868
  %v4613 = vpack.c.b16 %v2877, %v2869
  %v4614 = vpack.c.b16 %v2878, %v2870
  %v4615 = vpack.c.b16 %v2879, %v2871
  %v4616 = vpack.c.b16 %v2880, %v2872
  %v4617 = vpack.c.b16 %v2881, %v2873
  %v4618 = vpack.c.b16 %v2890, %v2882
  %v4619 = vpack.c.b16 %v2891, %v2883
  %v4620 = vpack.c.b16 %v2892, %v2884
  %v4621 = vpack.c.b16 %v2893, %v2885
  %v4622 = vpack.c.b16 %v2894, %v2886
  %v4623 = vpack.c.b16 %v2895, %v2887
  %v4624 = vpack.c.b16 %v2896, %v2888
  %v4625 = vpack.c.b16 %v2897, %v2889
  %v4626 = vpack.c.b16 %v2906, %v2898
  %v4627 = vpack.c.b16 %v2907, %v2899
  %v4628 = vpack.c.b16 %v2908, %v2900
  %v4629 = vpack.c.b16 %v2909, %v2901
  %v4630 = vpack.c.b16 %v2910, %v2902
  %v4631 = vpack.c.b16 %v2911, %v2903
  %v4632 = vpack.c.b16 %v2912, %v2904
  %v4633 = vpack.c.b16 %v2913, %v2905
  %v4634 = vpack.c.b16 %v2922, %v2914
  %v4635 = vpack.c.b16 %v2923, %v2915
  %v4636 = vpack.c.b16 %v2924, %v2916
  %v4637 = vpack.c.b16 %v2925, %v2917
  %v4638 = vpack.c.b16 %v2926, %v2918
  %v4639 = vpack.c.b16 %v2927, %v2919
  %v4640 = vpack.c.b16 %v2928, %v2920
  %v4641 = vpack.c.b16 %v2929, %v2921
  %v4642 = vpack.c.b16 %v2938, %v2930
  %v4643 = vpack.c.b16 %v2939, %v2931
  %v4644 = vpack.c.b16 %v2940, %v2932
  %v4645 = vpack.c.b16 %v2941, %v2933
  %v4646 = vpack.c.b16 %v2942, %v2934
  %v4647 = vpack.c.b16 %v2943, %v2935
  %v4648 = vpack.c.b16 %v2944, %v2936
  %v4649 = vpack.c.b16 %v2945, %v2937
  %v4650 = vpack.c.b16 %v2954, %v2946
  %v4651 = vpack.c.b16 %v2955, %v2947
  %v4652 = vpack.c.b16 %v2956, %v2948
  %v4653 = vpack.c.b16 %v2957, %v2949
  %v4654 = vpack.c.b16 %v2958, %v2950
  %v4655 = vpack.c.b16 %v2959, %v2951
  %v4656 = vpack.c.b16 %v2960, %v2952
  %v4657 = vpack.c.b16 %v2961, %v2953
  %v4658 = vpack.c.b16 %v2970, %v2962
  %v4659 = vpack.c.b16 %v2971, %v2963
  %v4660 = vpack.c.b16 %v2972, %v2964
  %v4661 = vpack.c.b16 %v2973, %v2965
  %v4662 = vpack.c.b16 %v2974, %v2966
  %v4663 = vpack.c.b16 %v2975, %v2967
  %v4664 = vpack.c.b16 %v2976, %v2968
  %v4665 = vpack.c.b16 %v2977, %v2969
  %v4666 = vpack.c.b16 %v2986, %v2978
  %v4667 = vpack.c.b16 %v2987, %v2979
  %v4668 = vpack.c.b16 %v2988, %v2980
  %v4669 = vpack.c.b16 %v2989, %v2981
  %v4670 = vpack.c.b16 %v2990, %v2982
  %v4671 = vpack.c.b16 %v2991, %v2983
  %v4672 = vpack.c.b16 %v2992, %v2984
  %v4673 = vpack.c.b16 %v2993, %v2985
  %v4674 = vpack.c.b16 %v3002, %v2994
  %v4675 = vpack.c.b16 %v3003, %v2995
  %v4676 = vpack.c.b16 %v3004, %v2996
  %v4677 = vpack.c.b16 %v3005, %v2997
  %v4678 = vpack.c.b16 %v3006, %v2998
  %v4679 = vpack.c.b16 %v3007, %v2999
  %v4680 = vpack.c.b16 %v3008, %v3000
  %v4681 = vpack.c.b16 %v3009, %v3001
  %v4682 = vpack.c.b16 %v3018, %v3010
  %v4683 = vpack.c.b16 %v3019, %v3011
  %v4684 = vpack.c.b16 %v3020, %v3012
  %v4685 = vpack.c.b16 %v3021, %v3013
  %v4686 = vpack.c.b16 %v3022, %v3014
  %v4687 = vpack.c.b16 %v3023, %v3015
  %v4688 = vpack.c.b16 %v3024, %v3016
  %v4689 = vpack.c.b16 %v3025, %v3017
  %v4690 = vpack.c.b16 %v3034, %v3026
  %v4691 = vpack.c.b16 %v3035, %v3027
  %v4692 = vpack.c.b16 %v3036, %v3028
  %v4693 = vpack.c.b16 %v3037, %v3029
  %v4694 = vpack.c.b16 %v3038, %v3030
  %v4695 = vpack.c.b16 %v3039, %v3031
  %v4696 = vpack.c.b16 %v3040, %v3032
  %v4697 = vpack.c.b16 %v3041, %v3033
  %v4698 = vpack.c.b16 %v3050, %v3042
  %v4699 = vpack.c.b16 %v3051, %v3043
  %v4700 = vpack.c.b16 %v3052, %v3044
  %v4701 = vpack.c.b16 %v3053, %v3045
  %v4702 = vpack.c.b16 %v3054, %v3046
  %v4703 = vpack.c.b16 %v3055, %v3047
  %v4704 = vpack.c.b16 %v3056, %v3048
  %v4705 = vpack.c.b16 %v3057, %v3049
  %v4706 = vpack.c.b16 %v3066, %v3058
  %v4707 = vpack.c.b16 %v3067, %v3059
  %v4708 = vpack.c.b16 %v3068, %v3060
  %v4709 = vpack.c.b16 %v3069, %v3061
  %v4710 = vpack.c.b16 %v3070, %v3062
  %v4711 = vpack.c.b16 %v3071, %v3063
  %v4712 = vpack.c.b16 %v3072, %v3064
  %v4713 = vpack.c.b16 %v3073, %v3065
  %v4714 = vpack.c.b16 %v3082, %v3074
  %v4715 = vpack.c.b16 %v3083, %v3075
  %v4716 = vpack.c.b16 %v3084, %v3076
  %v4717 = vpack.c.b16 %v3085, %v3077
  %v4718 = vpack.c.b16 %v3086, %v3078
  %v4719 = vpack.c.b16 %v3087, %v3079
  %v4720 = vpack.c.b16 %v3088, %v3080
  %v4721 = vpack.c.b16 %v3089, %v3081
  %v4722 = vpack.c.b16 %v3098, %v3090
  %v4723 = vpack.c.b16 %v3099, %v3091
  %v4724 = vpack.c.b16 %v3100, %v3092
  %v4725 = vpack.c.b16 %v3101, %v3093
  %v4726 = vpack.c.b16 %v3102, %v3094
  %v4727 = vpack.c.b16 %v3103, %v3095
  %v4728 = vpack.c.b16 %v3104, %v3096
  %v4729 = vpack.c.b16 %v3105, %v3097
  %v4730 = vpack.c.b16 %v3114, %v3106
  %v4731 = vpack.c.b16 %v3115, %v3107
  %v4732 = vpack.c.b16 %v3116, %v3108
  %v4733 = vpack.c.b16 %v3117, %v3109
  %v4734 = vpack.c.b16 %v3118, %v3110
  %v4735 = vpack.c.b16 %v3119, %v3111
  %v4736 = vpack.c.b16 %v3120, %v3112
  %v4737 = vpack.c.b16 %v3121, %v3113
  %v4738 = vpack.c.b16 %v3130, %v3122
  %v4739 = vpack.c.b16 %v3131, %v3123
  %v4740 = vpack.c.b16 %v3132, %v3124
  %v4741 = vpack.c.b16 %v3133, %v3125
  %v4742 = vpack.c.b16 %v3134, %v3126
  %v4743 = vpack.c.b16 %v3135, %v3127
  %v4744 = vpack.c.b16 %v3136, %v3128
  %v4745 = vpack.c.b16 %v3137, %v3129
  %v4746 = vpack.c.b16 %v3146, %v3138
  %v4747 = vpack.c.b16 %v3147, %v3139
  %v4748 = vpack.c.b16 %v3148, %v3140
  %v4749 = vpack.c.b16 %v3149, %v3141
  %v4750 = vpack.c.b16 %v3150, %v3142
  %v4751 = vpack.c.b16 %v3151, %v3143
  %v4752 = vpack.c.b16 %v3152, %v3144
  %v4753 = vpack.c.b16 %v3153, %v3145
  %v4754 = vpack.c.b16 %v3162, %v3154
  %v4755 = vpack.c.b16 %v3163, %v3155
  %v4756 = vpack.c.b16 %v3164, %v3156
  %v4757 = vpack.c.b16 %v3165, %v3157
  %v4758 = vpack.c.b16 %v3166, %v3158
  %v4759 = vpack.c.b16 %v3167, %v3159
  %v4760 = vpack.c.b16 %v3168, %v3160
  %v4761 = vpack.c.b16 %v3169, %v3161
  %v4762 = vpack.c.b16 %v3178, %v3170
  %v4763 = vpack.c.b16 %v3179, %v3171
  %v4764 = vpack.c.b16 %v3180, %v3172
  %v4765 = vpack.c.b16 %v3181, %v3173
  %v4766 = vpack.c.b16 %v3182, %v3174
  %v4767 = vpack.c.b16 %v3183, %v3175
  %v4768 = vpack.c.b16 %v3184, %v3176
  %v4769 = vpack.c.b16 %v3185, %v3177
  %v4770 = vpack.c.b16 %v3194, %v3186
  %v4771 = vpack.c.b16 %v3195, %v3187
  %v4772 = vpack.c.b16 %v3196, %v3188
  %v4773 = vpack.c.b16 %v3197, %v3189
  %v4774 = vpack.c.b16 %v3198, %v3190
  %v4775 = vpack.c.b16 %v3199, %v3191
  %v4776 = vpack.c.b16 %v3200, %v3192
  %v4777 = vpack.c.b16 %v3201, %v3193
  %v4778 = vpack.c.b16 %v3210, %v3202
  %v4779 = vpack.c.b16 %v3211, %v3203
  %v4780 = vpack.c.b16 %v3212, %v3204
  %v4781 = vpack.c.b16 %v3213, %v3205
  %v4782 = vpack.c.b16 %v3214, %v3206
  %v4783 = vpack.c.b16 %v3215, %v3207
  %v4784 = vpack.c.b16 %v3216, %v3208
  %v4785 = vpack.c.b16 %v3217, %v3209
  %v4786 = vpack.c.b16 %v3226, %v3218
  %v4787 = vpack.c.b16 %v3227, %v3219
  %v4788 = vpack.c.b16 %v3228, %v3220
  %v4789 = vpack.c.b16 %v3229, %v3221
  %v4790 = vpack.c.b16 %v3230, %v3222
  %v4791 = vpack.c.b16 %v3231, %v3223
  %v4792 = vpack.c.b16 %v3232, %v3224
  %v4793 = vpack.c.b16 %v3233, %v3225
  %v4794 = vpack.c.b16 %v3242, %v3234
  %v4795 = vpack.c.b16 %v3243, %v3235
  %v4796 = vpack.c.b16 %v3244, %v3236
  %v4797 = vpack.c.b16 %v3245, %v3237
  %v4798 = vpack.c.b16 %v3246, %v3238
  %v4799 = vpack.c.b16 %v3247, %v3239
  %v4800 = vpack.c.b16 %v3248, %v3240
  %v4801 = vpack.c.b16 %v3249, %v3241
  %v4802 = vpack.c.b16 %v3258, %v3250
  %v4803 = vpack.c.b16 %v3259, %v3251
  %v4804 = vpack.c.b16 %v3260, %v3252
  %v4805 = vpack.c.b16 %v3261, %v3253
  %v4806 = vpack.c.b16 %v3262, %v3254
  %v4807 = vpack.c.b16 %v3263, %v3255
  %v4808 = vpack.c.b16 %v3264, %v3256
  %v4809 = vpack.c.b16 %v3265, %v3257
  %v4810 = vpack.c.b16 %v3274, %v3266
  %v4811 = vpack.c.b16 %v3275, %v3267
  %v4812 = vpack.c.b16 %v3276, %v3268
  %v4813 = vpack.c.b16 %v3277, %v3269
  %v4814 = vpack.c.b16 %v3278, %v3270
  %v4815 = vpack.c.b16 %v3279, %v3271
  %v4816 = vpack.c.b16 %v3280, %v3272
  %v4817 = vpack.c.b16 %v3281, %v3273
  %v4818 = vpack.c.b16 %v3290, %v3282
  %v4819 = vpack.c.b16 %v3291, %v3283
  %v4820 = vpack.c.b16 %v3292, %v3284
  %v4821 = vpack.c.b16 %v3293, %v3285
  %v4822 = vpack.c.b16 %v3294, %v3286
  %v4823 = vpack.c.b16 %v3295, %v3287
  %v4824 = vpack.c.b16 %v3296, %v3288
  %v4825 = vpack.c.b16 %v3297, %v3289
  %v4826 = vpack.c.b16 %v3306, %v3298
  %v4827 = vpack.c.b16 %v3307, %v3299
  %v4828 = vpack.c.b16 %v3308, %v3300
  %v4829 = vpack.c.b16 %v3309, %v3301
  %v4830 = vpack.c.b16 %v3310, %v3302
  %v4831 = vpack.c.b16 %v3311, %v3303
  %v4832 = vpack.c.b16 %v3312, %v3304
  %v4833 = vpack.c.b16 %v3313, %v3305
  %v4834 = vpack.c.b16 %v3322, %v3314
  %v4835 = vpack.c.b16 %v3323, %v3315
  %v4836 = vpack.c.b16 %v3324, %v3316
  %v4837 = vpack.c.b16 %v3325, %v3317
  %v4838 = vpack.c.b16 %v3326, %v3318
  %v4839 = vpack.c.b16 %v3327, %v3319
  %v4840 = vpack.c.b16 %v3328, %v3320
  %v4841 = vpack.c.b16 %v3329, %v3321
  %v4842 = vpack.c.b16 %v3338, %v3330
  %v4843 = vpack.c.b16 %v3339, %v3331
  %v4844 = vpack.c.b16 %v3340, %v3332
  %v4845 = vpack.c.b16 %v3341, %v3333
  %v4846 = vpack.c.b16 %v3342, %v3334
  %v4847 = vpack.c.b16 %v3343, %v3335
  %v4848 = vpack.c.b16 %v3344, %v3336
  %v4849 = vpack.c.b16 %v3345, %v3337
  %v4850 = vpack.c.b16 %v3354, %v3346
  %v4851 = vpack.c.b16 %v3355, %v3347
  %v4852 = vpack.c.b16 %v3356, %v3348
  %v4853 = vpack.c.b16 %v3357, %v3349
  %v4854 = vpack.c.b16 %v3358, %v3350
  %v4855 = vpack.c.b16 %v3359, %v3351
  %v4856 = vpack.c.b16 %v3360, %v3352
  %v4857 = vpack.c.b16 %v3361, %v3353
  %v4858 = vpack.c.b16 %v3370, %v3362
  %v4859 = vpack.c.b16 %v3371, %v3363
  %v4860 = vpack.c.b16 %v3372, %v3364
  %v4861 = vpack.c.b16 %v3373, %v3365
  %v4862 = vpack.c.b16 %v3374, %v3366
  %v4863 = vpack.c.b16 %v3375, %v3367
  %v4864 = vpack.c.b16 %v3376, %v3368
  %v4865 = vpack.c.b16 %v3377, %v3369
  %v4866 = vpack.c.b16 %v3386, %v3378
  %v4867 = vpack.c.b16 %v3387, %v3379
  %v4868 = vpack.c.b16 %v3388, %v3380
  %v4869 = vpack.c.b16 %v3389, %v3381
  %v4870 = vpack.c.b16 %v3390, %v3382
  %v4871 = vpack.c.b16 %v3391, %v3383
  %v4872 = vpack.c.b16 %v3392, %v3384
  %v4873 = vpack.c.b16 %v3393, %v3385
  %v4874 = vpack.c.b16 %v3402, %v3394
  %v4875 = vpack.c.b16 %v3403, %v3395
  %v4876 = vpack.c.b16 %v3404, %v3396
  %v4877 = vpack.c.b16 %v3405, %v3397
  %v4878 = vpack.c.b16 %v3406, %v3398
  %v4879 = vpack.c.b16 %v3407, %v3399
  %v4880 = vpack.c.b16 %v3408, %v3400
  %v4881 = vpack.c.b16 %v3409, %v3401
  %v4882 = vpack.c.b16 %v3418, %v3410
  %v4883 = vpack.c.b16 %v3419, %v3411
  %v4884 = vpack.c.b16 %v3420, %v3412
  %v4885 = vpack.c.b16 %v3421, %v3413
  %v4886 = vpack.c.b16 %v3422, %v3414
  %v4887 = vpack.c.b16 %v3423, %v3415
  %v4888 = vpack.c.b16 %v3424, %v3416
  %v4889 = vpack.c.b16 %v3425, %v3417
  %v4890 = vpack.c.b16 %v3434, %v3426
  %v4891 = vpack.c.b16 %v3435, %v3427
  %v4892 = vpack.c.b16 %v3436, %v3428
  %v4893 = vpack.c.b16 %v3437, %v3429
  %v4894 = vpack.c.b16 %v3438, %v3430
  %v4895 = vpack.c.b16 %v3439, %v3431
  %v4896 = vpack.c.b16 %v3440, %v3432
  %v4897 = vpack.c.b16 %v3441, %v3433
  %v4898 = vpack.c.b16 %v3450, %v3442
  %v4899 = vpack.c.b16 %v3451, %v3443
  %v4900 = vpack.c.b16 %v3452, %v3444
  %v4901 = vpack.c.b16 %v3453, %v3445
  %v4902 = vpack.c.b16 %v3454, %v3446
  %v4903 = vpack.c.b16 %v3455, %v3447
  %v4904 = vpack.c.b16 %v3456, %v3448
  %v4905 = vpack.c.b16 %v3457, %v3449
  %v4906 = vpack.c.b16 %v3466, %v3458
  %v4907 = vpack.c.b16 %v3467, %v3459
  %v4908 = vpack.c.b16 %v3468, %v3460
  %v4909 = vpack.c.b16 %v3469, %v3461
  %v4910 = vpack.c.b16 %v3470, %v3462
  %v4911 = vpack.c.b16 %v3471, %v3463
  %v4912 = vpack.c.b16 %v3472, %v3464
  %v4913 = vpack.c.b16 %v3473, %v3465
  %v4914 = vpack.c.b16 %v3482, %v3474
  %v4915 = vpack.c.b16 %v3483, %v3475
  %v4916 = vpack.c.b16 %v3484, %v3476
  %v4917 = vpack.c.b16 %v3485, %v3477
  %v4918 = vpack.c.b16 %v3486, %v3478
  %v4919 = vpack.c.b16 %v3487, %v3479
  %v4920 = vpack.c.b16 %v3488, %v3480
  %v4921 = vpack.c.b16 %v3489, %v3481
  %v4922 = vpack.c.b16 %v3498, %v3490
  %v4923 = vpack.c.b16 %v3499, %v3491
  %v4924 = vpack.c.b16 %v3500, %v3492
  %v4925 = vpack.c.b16 %v3501, %v3493
  %v4926 = vpack.c.b16 %v3502, %v3494
  %v4927 = vpack.c.b16 %v3503, %v3495
  %v4928 = vpack.c.b16 %v3504, %v3496
  %v4929 = vpack.c.b16 %v3505, %v3497
  %v4930 = vpack.c.b16 %v3514, %v3506
  %v4931 = vpack.c.b16 %v3515, %v3507
  %v4932 = vpack.c.b16 %v3516, %v3508
  %v4933 = vpack.c.b16 %v3517, %v3509
  %v4934 = vpack.c.b16 %v3518, %v3510
  %v4935 = vpack.c.b16 %v3519, %v3511
  %v4936 = vpack.c.b16 %v3520, %v3512
  %v4937 = vpack.c.b16 %v3521, %v3513
  %v4938 = vpack.c.b16 %v3530, %v3522
  %v4939 = vpack.c.b16 %v3531, %v3523
  %v4940 = vpack.c.b16 %v3532, %v3524
  %v4941 = vpack.c.b16 %v3533, %v3525
  %v4942 = vpack.c.b16 %v3534, %v3526
  %v4943 = vpack.c.b16 %v3535, %v3527
  %v4944 = vpack.c.b16 %v3536, %v3528
  %v4945 = vpack.c.b16 %v3537, %v3529
  %v4946 = vpack.c.b16 %v3546, %v3538
  %v4947 = vpack.c.b16 %v3547, %v3539
  %v4948 = vpack.c.b16 %v3548, %v3540
  %v4949 = vpack.c.b16 %v3549, %v3541
  %v4950 = vpack.c.b16 %v3550, %v3542
  %v4951 = vpack.c.b16 %v3551, %v3543
  %v4952 = vpack.c.b16 %v3552, %v3544
  %v4953 = vpack.c.b16 %v3553, %v3545
  %v4954 = vpack.c.b16 %v3562, %v3554
  %v4955 = vpack.c.b16 %v3563, %v3555
  %v4956 = vpack.c.b16 %v3564, %v3556
  %v4957 = vpack.c.b16 %v3565, %v3557
  %v4958 = vpack.c.b16 %v3566, %v3558
  %v4959 = vpack.c.b16 %v3567, %v3559
  %v4960 = vpack.c.b16 %v3568, %v3560
  %v4961 = vpack.c.b16 %v3569, %v3561
  %v4962 = vpack.c.b16 %v3578, %v3570
  %v4963 = vpack.c.b16 %v3579, %v3571
  %v4964 = vpack.c.b16 %v3580, %v3572
  %v4965 = vpack.c.b16 %v3581, %v3573
  %v4966 = vpack.c.b16 %v3582, %v3574
  %v4967 = vpack.c.b16 %v3583, %v3575
  %v4968 = vpack.c.b16 %v3584, %v3576
  %v4969 = vpack.c.b16 %v3585, %v3577
  %v4970 = vpack.c.b16 %v3594, %v3586
  %v4971 = vpack.c.b16 %v3595, %v3587
  %v4972 = vpack.c.b16 %v3596, %v3588
  %v4973 = vpack.c.b16 %v3597, %v3589
  %v4974 = vpack.c.b16 %v3598, %v3590
  %v4975 = vpack.c.b16 %v3599, %v3591
  %v4976 = vpack.c.b16 %v3600, %v3592
  %v4977 = vpack.c.b16 %v3601, %v3593
  %v4978 = vpack.c.b16 %v3610, %v3602
  %v4979 = vpack.c.b16 %v3611, %v3603
  %v4980 = vpack.c.b16 %v3612, %v3604
  %v4981 = vpack.c.b16 %v3613, %v3605
  %v4982 = vpack.c.b16 %v3614, %v3606
  %v4983 = vpack.c.b16 %v3615, %v3607
  %v4984 = vpack.c.b16 %v3616, %v3608
  %v4985 = vpack.c.b16 %v3617, %v3609
  %v4986 = vpack.c.b16 %v3626, %v3618
  %v4987 = vpack.c.b16 %v3627, %v3619
  %v4988 = vpack.c.b16 %v3628, %v3620
  %v4989 = vpack.c.b16 %v3629, %v3621
  %v4990 = vpack.c.b16 %v3630, %v3622
  %v4991 = vpack.c.b16 %v3631, %v3623
  %v4992 = vpack.c.b16 %v3632, %v3624
  %v4993 = vpack.c.b16 %v3633, %v3625
  %v4994 = vpack.c.b16 %v3642, %v3634
  %v4995 = vpack.c.b16 %v3643, %v3635
  %v4996 = vpack.c.b16 %v3644, %v3636
  %v4997 = vpack.c.b16 %v3645, %v3637
  %v4998 = vpack.c.b16 %v3646, %v3638
  %v4999 = vpack.c.b16 %v3647, %v3639
  %v5000 = vpack.c.b16 %v3648, %v3640
  %v5001 = vpack.c.b16 %v3649, %v3641
  %v5002 = vpack.c.b16 %v3658, %v3650
  %v5003 = vpack.c.b16 %v3659, %v3651
  %v5004 = vpack.c.b16 %v3660, %v3652
  %v5005 = vpack.c.b16 %v3661, %v3653
  %v5006 = vpack.c.b16 %v3662, %v3654
  %v5007 = vpack.c.b16 %v3663, %v3655
  %v5008 = vpack.c.b16 %v3664, %v3656
  %v5009 = vpack.c.b16 %v3665, %v3657
  %v5010 = vpack.c.b16 %v3674, %v3666
  %v5011 = vpack.c.b16 %v3675, %v3667
  %v5012 = vpack.c.b16 %v3676, %v3668
  %v5013 = vpack.c.b16 %v3677, %v3669
  %v5014 = vpack.c.b16 %v3678, %v3670
  %v5015 = vpack.c.b16 %v3679, %v3671
  %v5016 = vpack.c.b16 %v3680, %v3672
  %v5017 = vpack.c.b16 %v3681, %v3673
  %v5018 = vpack.c.b16 %v3690, %v3682
  %v5019 = vpack.c.b16 %v3691, %v3683
  %v5020 = vpack.c.b16 %v3692, %v3684
  %v5021 = vpack.c.b16 %v3693, %v3685
  %v5022 = vpack.c.b16 %v3694, %v3686
  %v5023 = vpack.c.b16 %v3695, %v3687
  %v5024 = vpack.c.b16 %v3696, %v3688
  %v5025 = vpack.c.b16 %v3697, %v3689
  %v5026 = vpack.c.b16 %v3706, %v3698
  %v5027 = vpack.c.b16 %v3707, %v3699
  %v5028 = vpack.c.b16 %v3708, %v3700
  %v5029 = vpack.c.b16 %v3709, %v3701
  %v5030 = vpack.c.b16 %v3710, %v3702
  %v5031 = vpack.c.b16 %v3711, %v3703
  %v5032 = vpack.c.b16 %v3712, %v3704
  %v5033 = vpack.c.b16 %v3713, %v3705
  %v5034 = vpack.c.b16 %v3722, %v3714
  %v5035 = vpack.c.b16 %v3723, %v3715
  %v5036 = vpack.c.b16 %v3724, %v3716
  %v5037 = vpack.c.b16 %v3725, %v3717
  %v5038 = vpack.c.b16 %v3726, %v3718
  %v5039 = vpack.c.b16 %v3727, %v3719
  %v5040 = vpack.c.b16 %v3728, %v3720
  %v5041 = vpack.c.b16 %v3729, %v3721
  %v5042 = vpack.c.b16 %v3738, %v3730
  %v5043 = vpack.c.b16 %v3739, %v3731
  %v5044 = vpack.c.b16 %v3740, %v3732
  %v5045 = vpack.c.b16 %v3741, %v3733
  %v5046 = vpack.c.b16 %v3742, %v3734
  %v5047 = vpack.c.b16 %v3743, %v3735
  %v5048 = vpack.c.b16 %v3744, %v3736
  %v5049 = vpack.c.b16 %v3745, %v3737
  %v5050 = vpack.c.b16 %v3754, %v3746
  %v5051 = vpack.c.b16 %v3755, %v3747
  %v5052 = vpack.c.b16 %v3756, %v3748
  %v5053 = vpack.c.b16 %v3757, %v3749
  %v5054 = vpack.c.b16 %v3758, %v3750
  %v5055 = vpack.c.b16 %v3759, %v3751
  %v5056 = vpack.c.b16 %v3760, %v3752
  %v5057 = vpack.c.b16 %v3761, %v3753
  %v5058 = vpack.c.b16 %v3770, %v3762
  %v5059 = vpack.c.b16 %v3771, %v3763
  %v5060 = vpack.c.b16 %v3772, %v3764
  %v5061 = vpack.c.b16 %v3773, %v3765
  %v5062 = vpack.c.b16 %v3774, %v3766
  %v5063 = vpack.c.b16 %v3775, %v3767
  %v5064 = vpack.c.b16 %v3776, %v3768
  %v5065 = vpack.c.b16 %v3777, %v3769
  %v5066 = vpack.c.b16 %v3786, %v3778
  %v5067 = vpack.c.b16 %v3787, %v3779
  %v5068 = vpack.c.b16 %v3788, %v3780
  %v5069 = vpack.c.b16 %v3789, %v3781
  %v5070 = vpack.c.b16 %v3790, %v3782
  %v5071 = vpack.c.b16 %v3791, %v3783
  %v5072 = vpack.c.b16 %v3792, %v3784
  %v5073 = vpack.c.b16 %v3793, %v3785
  %v5074 = vpack.c.b16 %v3802, %v3794
  %v5075 = vpack.c.b16 %v3803, %v3795
  %v5076 = vpack.c.b16 %v3804, %v3796
  %v5077 = vpack.c.b16 %v3805, %v3797
  %v5078 = vpack.c.b16 %v3806, %v3798
  %v5079 = vpack.c.b16 %v3807, %v3799
  %v5080 = vpack.c.b16 %v3808, %v3800
  %v5081 = vpack.c.b16 %v3809, %v3801
  %v5082 = vpack.c.b16 %v3818, %v3810
  %v5083 = vpack.c.b16 %v3819, %v3811
  %v5084 = vpack.c.b16 %v3820, %v3812
  %v5085 = vpack.c.b16 %v3821, %v3813
  %v5086 = vpack.c.b16 %v3822, %v3814
  %v5087 = vpack.c.b16 %v3823, %v3815
  %v5088 = vpack.c.b16 %v3824, %v3816
  %v5089 = vpack.c.b16 %v3825, %v3817
  %v5090 = vpack.c.b16 %v3834, %v3826
  %v5091 = vpack.c.b16 %v3835, %v3827
  %v5092 = vpack.c.b16 %v3836, %v3828
  %v5093 = vpack.c.b16 %v3837, %v3829
  %v5094 = vpack.c.b16 %v3838, %v3830
  %v5095 = vpack.c.b16 %v3839, %v3831
  %v5096 = vpack.c.b16 %v3840, %v3832
  %v5097 = vpack.c.b16 %v3841, %v3833
  %v5098 = vpack.c.b16 %v3850, %v3842
  %v5099 = vpack.c.b16 %v3851, %v3843
  %v5100 = vpack.c.b16 %v3852, %v3844
  %v5101 = vpack.c.b16 %v3853, %v3845
  %v5102 = vpack.c.b16 %v3854, %v3846
  %v5103 = vpack.c.b16 %v3855, %v3847
  %v5104 = vpack.c.b16 %v3856, %v3848
  %v5105 = vpack.c.b16 %v3857, %v3849
  %v5106 = vpack.c.b16 %v3866, %v3858
  %v5107 = vpack.c.b16 %v3867, %v3859
  %v5108 = vpack.c.b16 %v3868, %v3860
  %v5109 = vpack.c.b16 %v3869, %v3861
  %v5110 = vpack.c.b16 %v3870, %v3862
  %v5111 = vpack.c.b16 %v3871, %v3863
  %v5112 = vpack.c.b16 %v3872, %v3864
  %v5113 = vpack.c.b16 %v3873, %v3865
  %v5114 = vpack.c.b16 %v3882, %v3874
  %v5115 = vpack.c.b16 %v3883, %v3875
  %v5116 = vpack.c.b16 %v3884, %v3876
  %v5117 = vpack.c.b16 %v3885, %v3877
  %v5118 = vpack.c.b16 %v3886, %v3878
  %v5119 = vpack.c.b16 %v3887, %v3879
  %v5120 = vpack.c.b16 %v3888, %v3880
  %v5121 = vpack.c.b16 %v3889, %v3881
  %v5122 = vpack.c.b16 %v3898, %v3890
  %v5123 = vpack.c.b16 %v3899, %v3891
  %v5124 = vpack.c.b16 %v3900, %v3892
  %v5125 = vpack.c.b16 %v3901, %v3893
  %v5126 = vpack.c.b16 %v3902, %v3894
  %v5127 = vpack.c.b16 %v3903, %v3895
  %v5128 = vpack.c.b16 %v3904, %v3896
  %v5129 = vpack.c.b16 %v3905, %v3897
  %v5130 = vpack.c.b16 %v3914, %v3906
  %v5131 = vpack.c.b16 %v3915, %v3907
  %v5132 = vpack.c.b16 %v3916, %v3908
  %v5133 = vpack.c.b16 %v3917, %v3909
  %v5134 = vpack.c.b16 %v3918, %v3910
  %v5135 = vpack.c.b16 %v3919, %v3911
  %v5136 = vpack.c.b16 %v3920, %v3912
  %v5137 = vpack.c.b16 %v3921, %v3913
  %v5138 = vpack.c.b16 %v3930, %v3922
  %v5139 = vpack.c.b16 %v3931, %v3923
  %v5140 = vpack.c.b16 %v3932, %v3924
  %v5141 = vpack.c.b16 %v3933, %v3925
  %v5142 = vpack.c.b16 %v3934, %v3926
  %v5143 = vpack.c.b16 %v3935, %v3927
  %v5144 = vpack.c.b16 %v3936, %v3928
  %v5145 = vpack.c.b16 %v3937, %v3929
  %v5146 = vpack.c.b16 %v3946, %v3938
  %v5147 = vpack.c.b16 %v3947, %v3939
  %v5148 = vpack.c.b16 %v3948, %v3940
  %v5149 = vpack.c.b16 %v3949, %v3941
  %v5150 = vpack.c.b16 %v3950, %v3942
  %v5151 = vpack.c.b16 %v3951, %v3943
  %v5152 = vpack.c.b16 %v3952, %v3944
  %v5153 = vpack.c.b16 %v3953, %v3945
  %v5154 = vpack.c.b16 %v3962, %v3954
  %v5155 = vpack.c.b16 %v3963, %v3955
  %v5156 = vpack.c.b16 %v3964, %v3956
  %v5157 = vpack.c.b16 %v3965, %v3957
  %v5158 = vpack.c.b16 %v3966, %v3958
  %v5159 = vpack.c.b16 %v3967, %v3959
  %v5160 = vpack.c.b16 %v3968, %v3960
  %v5161 = vpack.c.b16 %v3969, %v3961
  %v5162 = vpack.c.b16 %v3978, %v3970
  %v5163 = vpack.c.b16 %v3979, %v3971
  %v5164 = vpack.c.b16 %v3980, %v3972
  %v5165 = vpack.c.b16 %v3981, %v3973
  %v5166 = vpack.c.b16 %v3982, %v3974
  %v5167 = vpack.c.b16 %v3983, %v3975
  %v5168 = vpack.c.b16 %v3984, %v3976
  %v5169 = vpack.c.b16 %v3985, %v3977
  %v5170 = vpack.c.b16 %v3994, %v3986
  %v5171 = vpack.c.b16 %v3995, %v3987
  %v5172 = vpack.c.b16 %v3996, %v3988
  %v5173 = vpack.c.b16 %v3997, %v3989
  %v5174 = vpack.c.b16 %v3998, %v3990
  %v5175 = vpack.c.b16 %v3999, %v3991
  %v5176 = vpack.c.b16 %v4000, %v3992
  %v5177 = vpack.c.b16 %v4001, %v3993
  %v5178 = vpack.c.b16 %v4010, %v4002
  %v5179 = vpack.c.b16 %v4011, %v4003
  %v5180 = vpack.c.b16 %v4012, %v4004
  %v5181 = vpack.c.b16 %v4013, %v4005
  %v5182 = vpack.c.b16 %v4014, %v4006
  %v5183 = vpack.c.b16 %v4015, %v4007
  %v5184 = vpack.c.b16 %v4016, %v4008
  %v5185 = vpack.c.b16 %v4017, %v4009
  %v5186 = vpack.c.b16 %v4026, %v4018
  %v5187 = vpack.c.b16 %v4027, %v4019
  %v5188 = vpack.c.b16 %v4028, %v4020
  %v5189 = vpack.c.b16 %v4029, %v4021
  %v5190 = vpack.c.b16 %v4030, %v4022
  %v5191 = vpack.c.b16 %v4031, %v4023
  %v5192 = vpack.c.b16 %v4032, %v4024
  %v5193 = vpack.c.b16 %v4033, %v4025
  %v5194 = vpack.c.b16 %v4042, %v4034
  %v5195 = vpack.c.b16 %v4043, %v4035
  %v5196 = vpack.c.b16 %v4044, %v4036
  %v5197 = vpack.c.b16 %v4045, %v4037
  %v5198 = vpack.c.b16 %v4046, %v4038
  %v5199 = vpack.c.b16 %v4047, %v4039
  %v5200 = vpack.c.b16 %v4048, %v4040
  %v5201 = vpack.c.b16 %v4049, %v4041
  %v5202 = vpack.c.b16 %v4058, %v4050
  %v5203 = vpack.c.b16 %v4059, %v4051
  %v5204 = vpack.c.b16 %v4060, %v4052
  %v5205 = vpack.c.b16 %v4061, %v4053
  %v5206 = vpack.c.b16 %v4062, %v4054
  %v5207 = vpack.c.b16 %v4063, %v4055
  %v5208 = vpack.c.b16 %v4064, %v4056
  %v5209 = vpack.c.b16 %v4065, %v4057
  %v5210 = vpack.c.b16 %v4074, %v4066
  %v5211 = vpack.c.b16 %v4075, %v4067
  %v5212 = vpack.c.b16 %v4076, %v4068
  %v5213 = vpack.c.b16 %v4077, %v4069
  %v5214 = vpack.c.b16 %v4078, %v4070
  %v5215 = vpack.c.b16 %v4079, %v4071
  %v5216 = vpack.c.b16 %v4080, %v4072
  %v5217 = vpack.c.b16 %v4081, %v4073
  %v5218 = vpack.c.b16 %v4090, %v4082
  %v5219 = vpack.c.b16 %v4091, %v4083
  %v5220 = vpack.c.b16 %v4092, %v4084
  %v5221 = vpack.c.b16 %v4093, %v4085
  %v5222 = vpack.c.b16 %v4094, %v4086
  %v5223 = vpack.c.b16 %v4095, %v4087
  %v5224 = vpack.c.b16 %v4096, %v4088
  %v5225 = vpack.c.b16 %v4097, %v4089
  %v5226 = vpack.c.b16 %v4106, %v4098
  %v5227 = vpack.c.b16 %v4107, %v4099
  %v5228 = vpack.c.b16 %v4108, %v4100
  %v5229 = vpack.c.b16 %v4109, %v4101
  %v5230 = vpack.c.b16 %v4110, %v4102
  %v5231 = vpack.c.b16 %v4111, %v4103
  %v5232 = vpack.c.b16 %v4112, %v4104
  %v5233 = vpack.c.b16 %v4113, %v4105
  %v5234 = vpack.c.b16 %v4122, %v4114
  %v5235 = vpack.c.b16 %v4123, %v4115
  %v5236 = vpack.c.b16 %v4124, %v4116
  %v5237 = vpack.c.b16 %v4125, %v4117
  %v5238 = vpack.c.b16 %v4126, %v4118
  %v5239 = vpack.c.b16 %v4127, %v4119
  %v5240 = vpack.c.b16 %v4128, %v4120
  %v5241 = vpack.c.b16 %v4129, %v4121
  %v5242 = vpack.c.b16 %v4138, %v4130
  %v5243 = vpack.c.b16 %v4139, %v4131
  %v5244 = vpack.c.b16 %v4140, %v4132
  %v5245 = vpack.c.b16 %v4141, %v4133
  %v5246 = vpack.c.b16 %v4142, %v4134
  %v5247 = vpack.c.b16 %v4143, %v4135
  %v5248 = vpack.c.b16 %v4144, %v4136
  %v5249 = vpack.c.b16 %v4145, %v4137
  %v5250 = vpack.c.b16 %v4154, %v4146
  %v5251 = vpack.c.b16 %v4155, %v4147
  %v5252 = vpack.c.b16 %v4156, %v4148
  %v5253 = vpack.c.b16 %v4157, %v4149
  %v5254 = vpack.c.b16 %v4158, %v4150
  %v5255 = vpack.c.b16 %v4159, %v4151
  %v5256 = vpack.c.b16 %v4160, %v4152
  %v5257 = vpack.c.b16 %v4161, %v4153
  %v5258 = vpack.c.b16 %v4170, %v4162
  %v5259 = vpack.c.b16 %v4171, %v4163
  %v5260 = vpack.c.b16 %v4172, %v4164
  %v5261 = vpack.c.b16 %v4173, %v4165
  %v5262 = vpack.c.b16 %v4174, %v4166
  %v5263 = vpack.c.b16 %v4175, %v4167
  %v5264 = vpack.c.b16 %v4176, %v4168
  %v5265 = vpack.c.b16 %v4177, %v4169
  %v5266 = vpack.c.b16 %v4186, %v4178
  %v5267 = vpack.c.b16 %v4187, %v4179
  %v5268 = vpack.c.b16 %v4188, %v4180
  %v5269 = vpack.c.b16 %v4189, %v4181
  %v5270 = vpack.c.b16 %v4190, %v4182
  %v5271 = vpack.c.b16 %v4191, %v4183
  %v5272 = vpack.c.b16 %v4192, %v4184
  %v5273 = vpack.c.b16 %v4193, %v4185
  %v5274 = vpack.c.b16 %v4202, %v4194
  %v5275 = vpack.c.b16 %v4203, %v4195
  %v5276 = vpack.c.b16 %v4204, %v4196
  %v5277 = vpack.c.b16 %v4205, %v4197
  %v5278 = vpack.c.b16 %v4206, %v4198
  %v5279 = vpack.c.b16 %v4207, %v4199
  %v5280 = vpack.c.b16 %v4208, %v4200
  %v5281 = vpack.c.b16 %v4209, %v4201
  %v5282 = vpack.c.b16 %v4218, %v4210
  %v5283 = vpack.c.b16 %v4219, %v4211
  %v5284 = vpack.c.b16 %v4220, %v4212
  %v5285 = vpack.c.b16 %v4221, %v4213
  %v5286 = vpack.c.b16 %v4222, %v4214
  %v5287 = vpack.c.b16 %v4223, %v4215
  %v5288 = vpack.c.b16 %v4224, %v4216
  %v5289 = vpack.c.b16 %v4225, %v4217
  %v5290 = vpack.c.b16 %v4234, %v4226
  %v5291 = vpack.c.b16 %v4235, %v4227
  %v5292 = vpack.c.b16 %v4236, %v4228
  %v5293 = vpack.c.b16 %v4237, %v4229
  %v5294 = vpack.c.b16 %v4238, %v4230
  %v5295 = vpack.c.b16 %v4239, %v4231
  %v5296 = vpack.c.b16 %v4240, %v4232
  %v5297 = vpack.c.b16 %v4241, %v4233
  %v5298 = vpack.c.b16 %v4250, %v4242
  %v5299 = vpack.c.b16 %v4251, %v4243
  %v5300 = vpack.c.b16 %v4252, %v4244
  %v5301 = vpack.c.b16 %v4253, %v4245
  %v5302 = vpack.c.b16 %v4254, %v4246
  %v5303 = vpack.c.b16 %v4255, %v4247
  %v5304 = vpack.c.b16 %v4256, %v4248
  %v5305 = vpack.c.b16 %v4257, %v4249
  %v5306 = vpack.c.b16 %v4266, %v4258
  %v5307 = vpack.c.b16 %v4267, %v4259
  %v5308 = vpack.c.b16 %v4268, %v4260
  %v5309 = vpack.c.b16 %v4269, %v4261
  %v5310 = vpack.c.b16 %v4270, %v4262
  %v5311 = vpack.c.b16 %v4271, %v4263
  %v5312 = vpack.c.b16 %v4272, %v4264
  %v5313 = vpack.c.b16 %v4273, %v4265
  %v5314 = vpack.c.b16 %v4282, %v4274
  %v5315 = vpack.c.b16 %v4283, %v4275
  %v5316 = vpack.c.b16 %v4284, %v4276
  %v5317 = vpack.c.b16 %v4285, %v4277
  %v5318 = vpack.c.b16 %v4286, %v4278
  %v5319 = vpack.c.b16 %v4287, %v4279
  %v5320 = vpack.c.b16 %v4288, %v4280
  %v5321 = vpack.c.b16 %v4289, %v4281
  %v5322 = vpack.c.b16 %v4298, %v4290
  %v5323 = vpack.c.b16 %v4299, %v4291
  %v5324 = vpack.c.b16 %v4300, %v4292
  %v5325 = vpack.c.b16 %v4301, %v4293
  %v5326 = vpack.c.b16 %v4302, %v4294
  %v5327 = vpack.c.b16 %v4303, %v4295
  %v5328 = vpack.c.b16 %v4304, %v4296
  %v5329 = vpack.c.b16 %v4305, %v4297
  %6354 = vmatprep.subr.bf16.mxu0 %v4307
  %6355 = vmatpush1.bf16.msra.mxu0 %v4306
  %6356 = vmatprep.subr.bf16.mxu0 %v4315
  %6357 = vmatpush1.bf16.msra.mxu0 %v4314
  %6358 = vmatprep.subr.bf16.mxu0 %v4323
  %6359 = vmatpush1.bf16.msra.mxu0 %v4322
  %6360 = vmatprep.subr.bf16.mxu0 %v4331
  %6361 = vmatpush1.bf16.msra.mxu0 %v4330
  %6362 = vmatprep.subr.bf16.mxu0 %v4339
  %6363 = vmatpush1.bf16.msra.mxu0 %v4338
  %6364 = vmatprep.subr.bf16.mxu0 %v4347
  %6365 = vmatpush1.bf16.msra.mxu0 %v4346
  %6366 = vmatprep.subr.bf16.mxu0 %v4355
  %6367 = vmatpush1.bf16.msra.mxu0 %v4354
  %6368 = vmatprep.subr.bf16.mxu0 %v4363
  %6369 = vmatpush1.bf16.msra.mxu0 %v4362
  %6370 = vmatprep.subr.bf16.mxu0 %v4371
  %6371 = vmatpush1.bf16.msra.mxu0 %v4370
  %6372 = vmatprep.subr.bf16.mxu0 %v4379
  %6373 = vmatpush1.bf16.msra.mxu0 %v4378
  %6374 = vmatprep.subr.bf16.mxu0 %v4387
  %6375 = vmatpush1.bf16.msra.mxu0 %v4386
  %6376 = vmatprep.subr.bf16.mxu0 %v4395
  %6377 = vmatpush1.bf16.msra.mxu0 %v4394
  %6378 = vmatprep.subr.bf16.mxu0 %v4403
  %6379 = vmatpush1.bf16.msra.mxu0 %v4402
  %6380 = vmatprep.subr.bf16.mxu0 %v4411
  %6381 = vmatpush1.bf16.msra.mxu0 %v4410
  %6382 = vmatprep.subr.bf16.mxu0 %v4419
  %6383 = vmatpush1.bf16.msra.mxu0 %v4418
  %6384 = vmatprep.subr.bf16.mxu0 %v4427
  %6385 = vmatpush1.bf16.msra.mxu0 %v4426
  %6386 = vmatprep.mubr.bf16.mxu0 %v1157
  %6387 = vmatmul.mubr.bf16.gmra.mrb[0].mxu0 %v1143
  %v6388 = vpop.f32.mrb[0].mxu0
  %v6389 = vadd.f32 %v1081, %v6388
  %v6390 = vpop.f32.mrb[0].mxu0
  %v6391 = vadd.f32 %v1085, %v6390
  %v6392 = vpop.f32.mrb[0].mxu0
  %v6393 = vpop.f32.mrb[0].mxu0
  %6394 = vdwg.mxu0
  %6395 = vmatprep.subr.bf16.mxu0 %v4435
  %6396 = vmatpush1.bf16.msra.mxu0 %v4434
  %6397 = vmatprep.subr.bf16.mxu0 %v4443
  %6398 = vmatpush1.bf16.msra.mxu0 %v4442
  %6399 = vmatprep.subr.bf16.mxu0 %v4451
  %6400 = vmatpush1.bf16.msra.mxu0 %v4450
  %6401 = vmatprep.subr.bf16.mxu0 %v4459
  %6402 = vmatpush1.bf16.msra.mxu0 %v4458
  %6403 = vmatprep.subr.bf16.mxu0 %v4467
  %6404 = vmatpush1.bf16.msra.mxu0 %v4466
  %6405 = vmatprep.subr.bf16.mxu0 %v4475
  %6406 = vmatpush1.bf16.msra.mxu0 %v4474
  %6407 = vmatprep.subr.bf16.mxu0 %v4483
  %6408 = vmatpush1.bf16.msra.mxu0 %v4482
  %6409 = vmatprep.subr.bf16.mxu0 %v4491
  %6410 = vmatpush1.bf16.msra.mxu0 %v4490
  %6411 = vmatprep.subr.bf16.mxu0 %v4499
  %6412 = vmatpush1.bf16.msra.mxu0 %v4498
  %6413 = vmatprep.subr.bf16.mxu0 %v4507
  %6414 = vmatpush1.bf16.msra.mxu0 %v4506
  %6415 = vmatprep.subr.bf16.mxu0 %v4515
  %6416 = vmatpush1.bf16.msra.mxu0 %v4514
  %6417 = vmatprep.subr.bf16.mxu0 %v4523
  %6418 = vmatpush1.bf16.msra.mxu0 %v4522
  %6419 = vmatprep.subr.bf16.mxu0 %v4531
  %6420 = vmatpush1.bf16.msra.mxu0 %v4530
  %6421 = vmatprep.subr.bf16.mxu0 %v4539
  %6422 = vmatpush1.bf16.msra.mxu0 %v4538
  %6423 = vmatprep.subr.bf16.mxu0 %v4547
  %6424 = vmatpush1.bf16.msra.mxu0 %v4546
  %6425 = vmatprep.subr.bf16.mxu0 %v4555
  %6426 = vmatpush1.bf16.msra.mxu0 %v4554
  %6427 = vmatprep.mubr.bf16.mxu0 %v1167
  %6428 = vmatmul.mubr.bf16.gmra.mrb[0].mxu0 %v1165
  %v6429 = vpop.f32.mrb[0].mxu0
  %v6430 = vadd.f32 %v6389, %v6429
  %v6431 = vpop.f32.mrb[0].mxu0
  %v6432 = vadd.f32 %v6391, %v6431
  %v6433 = vpop.f32.mrb[0].mxu0
  %v6434 = vpop.f32.mrb[0].mxu0
  %6435 = vdwg.mxu0
  %6436 = vmatprep.subr.bf16.mxu0 %v4563
  %6437 = vmatpush1.bf16.msra.mxu0 %v4562
  %6438 = vmatprep.subr.bf16.mxu0 %v4571
  %6439 = vmatpush1.bf16.msra.mxu0 %v4570
  %6440 = vmatprep.subr.bf16.mxu0 %v4579
  %6441 = vmatpush1.bf16.msra.mxu0 %v4578
  %6442 = vmatprep.subr.bf16.mxu0 %v4587
  %6443 = vmatpush1.bf16.msra.mxu0 %v4586
  %6444 = vmatprep.subr.bf16.mxu0 %v4595
  %6445 = vmatpush1.bf16.msra.mxu0 %v4594
  %6446 = vmatprep.subr.bf16.mxu0 %v4603
  %6447 = vmatpush1.bf16.msra.mxu0 %v4602
  %6448 = vmatprep.subr.bf16.mxu0 %v4611
  %6449 = vmatpush1.bf16.msra.mxu0 %v4610
  %6450 = vmatprep.subr.bf16.mxu0 %v4619
  %6451 = vmatpush1.bf16.msra.mxu0 %v4618
  %6452 = vmatprep.subr.bf16.mxu0 %v4627
  %6453 = vmatpush1.bf16.msra.mxu0 %v4626
  %6454 = vmatprep.subr.bf16.mxu0 %v4635
  %6455 = vmatpush1.bf16.msra.mxu0 %v4634
  %6456 = vmatprep.subr.bf16.mxu0 %v4643
  %6457 = vmatpush1.bf16.msra.mxu0 %v4642
  %6458 = vmatprep.subr.bf16.mxu0 %v4651
  %6459 = vmatpush1.bf16.msra.mxu0 %v4650
  %6460 = vmatprep.subr.bf16.mxu0 %v4659
  %6461 = vmatpush1.bf16.msra.mxu0 %v4658
  %6462 = vmatprep.subr.bf16.mxu0 %v4667
  %6463 = vmatpush1.bf16.msra.mxu0 %v4666
  %6464 = vmatprep.subr.bf16.mxu0 %v4675
  %6465 = vmatpush1.bf16.msra.mxu0 %v4674
  %6466 = vmatprep.subr.bf16.mxu0 %v4683
  %6467 = vmatpush1.bf16.msra.mxu0 %v4682
  %6468 = vmatprep.mubr.bf16.mxu0 %v1164
  %6469 = vmatmul.mubr.bf16.gmra.mrb[0].mxu0 %v1150
  %v6470 = vpop.f32.mrb[0].mxu0
  %v6471 = vadd.f32 %v6430, %v6470
  %v6472 = vpop.f32.mrb[0].mxu0
  %v6473 = vadd.f32 %v6432, %v6472
  %v6474 = vpop.f32.mrb[0].mxu0
  %v6475 = vpop.f32.mrb[0].mxu0
  %6476 = vdwg.mxu0
  %6477 = vmatprep.subr.bf16.mxu0 %v4691
  %6478 = vmatpush1.bf16.msra.mxu0 %v4690
  %6479 = vmatprep.subr.bf16.mxu0 %v4699
  %6480 = vmatpush1.bf16.msra.mxu0 %v4698
  %6481 = vmatprep.subr.bf16.mxu0 %v4707
  %6482 = vmatpush1.bf16.msra.mxu0 %v4706
  %6483 = vmatprep.subr.bf16.mxu0 %v4715
  %6484 = vmatpush1.bf16.msra.mxu0 %v4714
  %6485 = vmatprep.subr.bf16.mxu0 %v4723
  %6486 = vmatpush1.bf16.msra.mxu0 %v4722
  %6487 = vmatprep.subr.bf16.mxu0 %v4731
  %6488 = vmatpush1.bf16.msra.mxu0 %v4730
  %6489 = vmatprep.subr.bf16.mxu0 %v4739
  %6490 = vmatpush1.bf16.msra.mxu0 %v4738
  %6491 = vmatprep.subr.bf16.mxu0 %v4747
  %6492 = vmatpush1.bf16.msra.mxu0 %v4746
  %6493 = vmatprep.subr.bf16.mxu0 %v4755
  %6494 = vmatpush1.bf16.msra.mxu0 %v4754
  %6495 = vmatprep.subr.bf16.mxu0 %v4763
  %6496 = vmatpush1.bf16.msra.mxu0 %v4762
  %6497 = vmatprep.subr.bf16.mxu0 %v4771
  %6498 = vmatpush1.bf16.msra.mxu0 %v4770
  %6499 = vmatprep.subr.bf16.mxu0 %v4779
  %6500 = vmatpush1.bf16.msra.mxu0 %v4778
  %6501 = vmatprep.subr.bf16.mxu0 %v4787
  %6502 = vmatpush1.bf16.msra.mxu0 %v4786
  %6503 = vmatprep.subr.bf16.mxu0 %v4795
  %6504 = vmatpush1.bf16.msra.mxu0 %v4794
  %6505 = vmatprep.subr.bf16.mxu0 %v4803
  %6506 = vmatpush1.bf16.msra.mxu0 %v4802
  %6507 = vmatprep.subr.bf16.mxu0 %v4811
  %6508 = vmatpush1.bf16.msra.mxu0 %v4810
  %6509 = vmatprep.mubr.bf16.mxu0 %v1168
  %6510 = vmatmul.mubr.bf16.gmra.mrb[0].mxu0 %v1166
  %v6511 = vpop.f32.mrb[0].mxu0
  %v6512 = vadd.f32 %v6471, %v6511
  %v6513 = vpop.f32.mrb[0].mxu0
  %v6514 = vadd.f32 %v6473, %v6513
  %v6515 = vpop.f32.mrb[0].mxu0
  %v6516 = vpop.f32.mrb[0].mxu0
  %6517 = vdwg.mxu0
  %6518 = vmatprep.subr.bf16.mxu0 %v4819
  %6519 = vmatpush1.bf16.msra.mxu0 %v4818
  %6520 = vmatprep.subr.bf16.mxu0 %v4827
  %6521 = vmatpush1.bf16.msra.mxu0 %v4826
  %6522 = vmatprep.subr.bf16.mxu0 %v4835
  %6523 = vmatpush1.bf16.msra.mxu0 %v4834
  %6524 = vmatprep.subr.bf16.mxu0 %v4843
  %6525 = vmatpush1.bf16.msra.mxu0 %v4842
  %6526 = vmatprep.subr.bf16.mxu0 %v4851
  %6527 = vmatpush1.bf16.msra.mxu0 %v4850
  %6528 = vmatprep.subr.bf16.mxu0 %v4859
  %6529 = vmatpush1.bf16.msra.mxu0 %v4858
  %6530 = vmatprep.subr.bf16.mxu0 %v4867
  %6531 = vmatpush1.bf16.msra.mxu0 %v4866
  %6532 = vmatprep.subr.bf16.mxu0 %v4875
  %6533 = vmatpush1.bf16.msra.mxu0 %v4874
  %6534 = vmatprep.subr.bf16.mxu0 %v4883
  %6535 = vmatpush1.bf16.msra.mxu0 %v4882
  %6536 = vmatprep.subr.bf16.mxu0 %v4891
  %6537 = vmatpush1.bf16.msra.mxu0 %v4890
  %6538 = vmatprep.subr.bf16.mxu0 %v4899
  %6539 = vmatpush1.bf16.msra.mxu0 %v4898
  %6540 = vmatprep.subr.bf16.mxu0 %v4907
  %6541 = vmatpush1.bf16.msra.mxu0 %v4906
  %6542 = vmatprep.subr.bf16.mxu0 %v4915
  %6543 = vmatpush1.bf16.msra.mxu0 %v4914
  %6544 = vmatprep.subr.bf16.mxu0 %v4923
  %6545 = vmatpush1.bf16.msra.mxu0 %v4922
  %6546 = vmatprep.subr.bf16.mxu0 %v4931
  %6547 = vmatpush1.bf16.msra.mxu0 %v4930
  %6548 = vmatprep.subr.bf16.mxu0 %v4939
  %6549 = vmatpush1.bf16.msra.mxu0 %v4938
  %6550 = vmatprep.mubr.bf16.mxu0 %v1206
  %6551 = vmatmul.mubr.bf16.gmra.mrb[0].mxu0 %v1192
  %v6552 = vpop.f32.mrb[0].mxu0
  %v6553 = vadd.f32 %v6512, %v6552
  %v6554 = vpop.f32.mrb[0].mxu0
  %v6555 = vadd.f32 %v6514, %v6554
  %v6556 = vpop.f32.mrb[0].mxu0
  %v6557 = vpop.f32.mrb[0].mxu0
  %6558 = vdwg.mxu0
  %6559 = vmatprep.subr.bf16.mxu0 %v4947
  %6560 = vmatpush1.bf16.msra.mxu0 %v4946
  %6561 = vmatprep.subr.bf16.mxu0 %v4955
  %6562 = vmatpush1.bf16.msra.mxu0 %v4954
  %6563 = vmatprep.subr.bf16.mxu0 %v4963
  %6564 = vmatpush1.bf16.msra.mxu0 %v4962
  %6565 = vmatprep.subr.bf16.mxu0 %v4971
  %6566 = vmatpush1.bf16.msra.mxu0 %v4970
  %6567 = vmatprep.subr.bf16.mxu0 %v4979
  %6568 = vmatpush1.bf16.msra.mxu0 %v4978
  %6569 = vmatprep.subr.bf16.mxu0 %v4987
  %6570 = vmatpush1.bf16.msra.mxu0 %v4986
  %6571 = vmatprep.subr.bf16.mxu0 %v4995
  %6572 = vmatpush1.bf16.msra.mxu0 %v4994
  %6573 = vmatprep.subr.bf16.mxu0 %v5003
  %6574 = vmatpush1.bf16.msra.mxu0 %v5002
  %6575 = vmatprep.subr.bf16.mxu0 %v5011
  %6576 = vmatpush1.bf16.msra.mxu0 %v5010
  %6577 = vmatprep.subr.bf16.mxu0 %v5019
  %6578 = vmatpush1.bf16.msra.mxu0 %v5018
  %6579 = vmatprep.subr.bf16.mxu0 %v5027
  %6580 = vmatpush1.bf16.msra.mxu0 %v5026
  %6581 = vmatprep.subr.bf16.mxu0 %v5035
  %6582 = vmatpush1.bf16.msra.mxu0 %v5034
  %6583 = vmatprep.subr.bf16.mxu0 %v5043
  %6584 = vmatpush1.bf16.msra.mxu0 %v5042
  %6585 = vmatprep.subr.bf16.mxu0 %v5051
  %6586 = vmatpush1.bf16.msra.mxu0 %v5050
  %6587 = vmatprep.subr.bf16.mxu0 %v5059
  %6588 = vmatpush1.bf16.msra.mxu0 %v5058
  %6589 = vmatprep.subr.bf16.mxu0 %v5067
  %6590 = vmatpush1.bf16.msra.mxu0 %v5066
  %6591 = vmatprep.mubr.bf16.mxu0 %v1216
  %6592 = vmatmul.mubr.bf16.gmra.mrb[0].mxu0 %v1214
  %v6593 = vpop.f32.mrb[0].mxu0
  %v6594 = vadd.f32 %v6553, %v6593
  %v6595 = vpop.f32.mrb[0].mxu0
  %v6596 = vadd.f32 %v6555, %v6595
  %v6597 = vpop.f32.mrb[0].mxu0
  %v6598 = vpop.f32.mrb[0].mxu0
  %6599 = vdwg.mxu0
  %6600 = vmatprep.subr.bf16.mxu0 %v5075
  %6601 = vmatpush1.bf16.msra.mxu0 %v5074
  %6602 = vmatprep.subr.bf16.mxu0 %v5083
  %6603 = vmatpush1.bf16.msra.mxu0 %v5082
  %6604 = vmatprep.subr.bf16.mxu0 %v5091
  %6605 = vmatpush1.bf16.msra.mxu0 %v5090
  %6606 = vmatprep.subr.bf16.mxu0 %v5099
  %6607 = vmatpush1.bf16.msra.mxu0 %v5098
  %6608 = vmatprep.subr.bf16.mxu0 %v5107
  %6609 = vmatpush1.bf16.msra.mxu0 %v5106
  %6610 = vmatprep.subr.bf16.mxu0 %v5115
  %6611 = vmatpush1.bf16.msra.mxu0 %v5114
  %6612 = vmatprep.subr.bf16.mxu0 %v5123
  %6613 = vmatpush1.bf16.msra.mxu0 %v5122
  %6614 = vmatprep.subr.bf16.mxu0 %v5131
  %6615 = vmatpush1.bf16.msra.mxu0 %v5130
  %6616 = vmatprep.subr.bf16.mxu0 %v5139
  %6617 = vmatpush1.bf16.msra.mxu0 %v5138
  %6618 = vmatprep.subr.bf16.mxu0 %v5147
  %6619 = vmatpush1.bf16.msra.mxu0 %v5146
  %6620 = vmatprep.subr.bf16.mxu0 %v5155
  %6621 = vmatpush1.bf16.msra.mxu0 %v5154
  %6622 = vmatprep.subr.bf16.mxu0 %v5163
  %6623 = vmatpush1.bf16.msra.mxu0 %v5162
  %6624 = vmatprep.subr.bf16.mxu0 %v5171
  %6625 = vmatpush1.bf16.msra.mxu0 %v5170
  %6626 = vmatprep.subr.bf16.mxu0 %v5179
  %6627 = vmatpush1.bf16.msra.mxu0 %v5178
  %6628 = vmatprep.subr.bf16.mxu0 %v5187
  %6629 = vmatpush1.bf16.msra.mxu0 %v5186
  %6630 = vmatprep.subr.bf16.mxu0 %v5195
  %6631 = vmatpush1.bf16.msra.mxu0 %v5194
  %6632 = vmatprep.mubr.bf16.mxu0 %v1213
  %6633 = vmatmul.mubr.bf16.gmra.mrb[0].mxu0 %v1199
  %v6634 = vpop.f32.mrb[0].mxu0
  %v6635 = vadd.f32 %v6594, %v6634
  %v6636 = vpop.f32.mrb[0].mxu0
  %v6637 = vadd.f32 %v6596, %v6636
  %v6638 = vpop.f32.mrb[0].mxu0
  %v6639 = vpop.f32.mrb[0].mxu0
  %6640 = vdwg.mxu0
  %6641 = vmatprep.subr.bf16.mxu0 %v5203
  %6642 = vmatpush1.bf16.msra.mxu0 %v5202
  %6643 = vmatprep.subr.bf16.mxu0 %v5211
  %6644 = vmatpush1.bf16.msra.mxu0 %v5210
  %6645 = vmatprep.subr.bf16.mxu0 %v5219
  %6646 = vmatpush1.bf16.msra.mxu0 %v5218
  %6647 = vmatprep.subr.bf16.mxu0 %v5227
  %6648 = vmatpush1.bf16.msra.mxu0 %v5226
  %6649 = vmatprep.subr.bf16.mxu0 %v5235
  %6650 = vmatpush1.bf16.msra.mxu0 %v5234
  %6651 = vmatprep.subr.bf16.mxu0 %v5243
  %6652 = vmatpush1.bf16.msra.mxu0 %v5242
  %6653 = vmatprep.subr.bf16.mxu0 %v5251
  %6654 = vmatpush1.bf16.msra.mxu0 %v5250
  %6655 = vmatprep.subr.bf16.mxu0 %v5259
  %6656 = vmatpush1.bf16.msra.mxu0 %v5258
  %6657 = vmatprep.subr.bf16.mxu0 %v5267
  %6658 = vmatpush1.bf16.msra.mxu0 %v5266
  %6659 = vmatprep.subr.bf16.mxu0 %v5275
  %6660 = vmatpush1.bf16.msra.mxu0 %v5274
  %6661 = vmatprep.subr.bf16.mxu0 %v5283
  %6662 = vmatpush1.bf16.msra.mxu0 %v5282
  %6663 = vmatprep.subr.bf16.mxu0 %v5291
  %6664 = vmatpush1.bf16.msra.mxu0 %v5290
  %6665 = vmatprep.subr.bf16.mxu0 %v5299
  %6666 = vmatpush1.bf16.msra.mxu0 %v5298
  %6667 = vmatprep.subr.bf16.mxu0 %v5307
  %6668 = vmatpush1.bf16.msra.mxu0 %v5306
  %6669 = vmatprep.subr.bf16.mxu0 %v5315
  %6670 = vmatpush1.bf16.msra.mxu0 %v5314
  %6671 = vmatprep.subr.bf16.mxu0 %v5323
  %6672 = vmatpush1.bf16.msra.mxu0 %v5322
  %6673 = vmatprep.mubr.bf16.mxu0 %v1217
  %6674 = vmatmul.mubr.bf16.gmra.mrb[0].mxu0 %v1215
  %v6675 = vpop.f32.mrb[0].mxu0
  %v6676 = vadd.f32 %v6635, %v6675
  %v6677 = vpop.f32.mrb[0].mxu0
  %v6678 = vadd.f32 %v6637, %v6677
  %v6679 = vpop.f32.mrb[0].mxu0
  %v6680 = vpop.f32.mrb[0].mxu0
  %6681 = vdwg.mxu0
  %6682 = vmatprep.subr.bf16.mxu0 %v4309
  %6683 = vmatpush1.bf16.msra.mxu0 %v4308
  %6684 = vmatprep.subr.bf16.mxu0 %v4317
  %6685 = vmatpush1.bf16.msra.mxu0 %v4316
  %6686 = vmatprep.subr.bf16.mxu0 %v4325
  %6687 = vmatpush1.bf16.msra.mxu0 %v4324
  %6688 = vmatprep.subr.bf16.mxu0 %v4333
  %6689 = vmatpush1.bf16.msra.mxu0 %v4332
  %6690 = vmatprep.subr.bf16.mxu0 %v4341
  %6691 = vmatpush1.bf16.msra.mxu0 %v4340
  %6692 = vmatprep.subr.bf16.mxu0 %v4349
  %6693 = vmatpush1.bf16.msra.mxu0 %v4348
  %6694 = vmatprep.subr.bf16.mxu0 %v4357
  %6695 = vmatpush1.bf16.msra.mxu0 %v4356
  %6696 = vmatprep.subr.bf16.mxu0 %v4365
  %6697 = vmatpush1.bf16.msra.mxu0 %v4364
  %6698 = vmatprep.subr.bf16.mxu0 %v4373
  %6699 = vmatpush1.bf16.msra.mxu0 %v4372
  %6700 = vmatprep.subr.bf16.mxu0 %v4381
  %6701 = vmatpush1.bf16.msra.mxu0 %v4380
  %6702 = vmatprep.subr.bf16.mxu0 %v4389
  %6703 = vmatpush1.bf16.msra.mxu0 %v4388
  %6704 = vmatprep.subr.bf16.mxu0 %v4397
  %6705 = vmatpush1.bf16.msra.mxu0 %v4396
  %6706 = vmatprep.subr.bf16.mxu0 %v4405
  %6707 = vmatpush1.bf16.msra.mxu0 %v4404
  %6708 = vmatprep.subr.bf16.mxu0 %v4413
  %6709 = vmatpush1.bf16.msra.mxu0 %v4412
  %6710 = vmatprep.subr.bf16.mxu0 %v4421
  %6711 = vmatpush1.bf16.msra.mxu0 %v4420
  %6712 = vmatprep.subr.bf16.mxu0 %v4429
  %6713 = vmatpush1.bf16.msra.mxu0 %v4428
  %6714 = vmatprep.mubr.bf16.mxu0 %v1157
  %6715 = vmatmul.mubr.bf16.gmra.mrb[0].mxu0 %v1143
  %v6716 = vpop.f32.mrb[0].mxu0
  %v6717 = vadd.f32 %v1089, %v6716
  %v6718 = vpop.f32.mrb[0].mxu0
  %v6719 = vadd.f32 %v1093, %v6718
  %v6720 = vpop.f32.mrb[0].mxu0
  %v6721 = vpop.f32.mrb[0].mxu0
  %6722 = vdwg.mxu0
  %6723 = vmatprep.subr.bf16.mxu0 %v4437
  %6724 = vmatpush1.bf16.msra.mxu0 %v4436
  %6725 = vmatprep.subr.bf16.mxu0 %v4445
  %6726 = vmatpush1.bf16.msra.mxu0 %v4444
  %6727 = vmatprep.subr.bf16.mxu0 %v4453
  %6728 = vmatpush1.bf16.msra.mxu0 %v4452
  %6729 = vmatprep.subr.bf16.mxu0 %v4461
  %6730 = vmatpush1.bf16.msra.mxu0 %v4460
  %6731 = vmatprep.subr.bf16.mxu0 %v4469
  %6732 = vmatpush1.bf16.msra.mxu0 %v4468
  %6733 = vmatprep.subr.bf16.mxu0 %v4477
  %6734 = vmatpush1.bf16.msra.mxu0 %v4476
  %6735 = vmatprep.subr.bf16.mxu0 %v4485
  %6736 = vmatpush1.bf16.msra.mxu0 %v4484
  %6737 = vmatprep.subr.bf16.mxu0 %v4493
  %6738 = vmatpush1.bf16.msra.mxu0 %v4492
  %6739 = vmatprep.subr.bf16.mxu0 %v4501
  %6740 = vmatpush1.bf16.msra.mxu0 %v4500
  %6741 = vmatprep.subr.bf16.mxu0 %v4509
  %6742 = vmatpush1.bf16.msra.mxu0 %v4508
  %6743 = vmatprep.subr.bf16.mxu0 %v4517
  %6744 = vmatpush1.bf16.msra.mxu0 %v4516
  %6745 = vmatprep.subr.bf16.mxu0 %v4525
  %6746 = vmatpush1.bf16.msra.mxu0 %v4524
  %6747 = vmatprep.subr.bf16.mxu0 %v4533
  %6748 = vmatpush1.bf16.msra.mxu0 %v4532
  %6749 = vmatprep.subr.bf16.mxu0 %v4541
  %6750 = vmatpush1.bf16.msra.mxu0 %v4540
  %6751 = vmatprep.subr.bf16.mxu0 %v4549
  %6752 = vmatpush1.bf16.msra.mxu0 %v4548
  %6753 = vmatprep.subr.bf16.mxu0 %v4557
  %6754 = vmatpush1.bf16.msra.mxu0 %v4556
  %6755 = vmatprep.mubr.bf16.mxu0 %v1167
  %6756 = vmatmul.mubr.bf16.gmra.mrb[0].mxu0 %v1165
  %v6757 = vpop.f32.mrb[0].mxu0
  %v6758 = vadd.f32 %v6717, %v6757
  %v6759 = vpop.f32.mrb[0].mxu0
  %v6760 = vadd.f32 %v6719, %v6759
  %v6761 = vpop.f32.mrb[0].mxu0
  %v6762 = vpop.f32.mrb[0].mxu0
  %6763 = vdwg.mxu0
  %6764 = vmatprep.subr.bf16.mxu0 %v4565
  %6765 = vmatpush1.bf16.msra.mxu0 %v4564
  %6766 = vmatprep.subr.bf16.mxu0 %v4573
  %6767 = vmatpush1.bf16.msra.mxu0 %v4572
  %6768 = vmatprep.subr.bf16.mxu0 %v4581
  %6769 = vmatpush1.bf16.msra.mxu0 %v4580
  %6770 = vmatprep.subr.bf16.mxu0 %v4589
  %6771 = vmatpush1.bf16.msra.mxu0 %v4588
  %6772 = vmatprep.subr.bf16.mxu0 %v4597
  %6773 = vmatpush1.bf16.msra.mxu0 %v4596
  %6774 = vmatprep.subr.bf16.mxu0 %v4605
  %6775 = vmatpush1.bf16.msra.mxu0 %v4604
  %6776 = vmatprep.subr.bf16.mxu0 %v4613
  %6777 = vmatpush1.bf16.msra.mxu0 %v4612
  %6778 = vmatprep.subr.bf16.mxu0 %v4621
  %6779 = vmatpush1.bf16.msra.mxu0 %v4620
  %6780 = vmatprep.subr.bf16.mxu0 %v4629
  %6781 = vmatpush1.bf16.msra.mxu0 %v4628
  %6782 = vmatprep.subr.bf16.mxu0 %v4637
  %6783 = vmatpush1.bf16.msra.mxu0 %v4636
  %6784 = vmatprep.subr.bf16.mxu0 %v4645
  %6785 = vmatpush1.bf16.msra.mxu0 %v4644
  %6786 = vmatprep.subr.bf16.mxu0 %v4653
  %6787 = vmatpush1.bf16.msra.mxu0 %v4652
  %6788 = vmatprep.subr.bf16.mxu0 %v4661
  %6789 = vmatpush1.bf16.msra.mxu0 %v4660
  %6790 = vmatprep.subr.bf16.mxu0 %v4669
  %6791 = vmatpush1.bf16.msra.mxu0 %v4668
  %6792 = vmatprep.subr.bf16.mxu0 %v4677
  %6793 = vmatpush1.bf16.msra.mxu0 %v4676
  %6794 = vmatprep.subr.bf16.mxu0 %v4685
  %6795 = vmatpush1.bf16.msra.mxu0 %v4684
  %6796 = vmatprep.mubr.bf16.mxu0 %v1164
  %6797 = vmatmul.mubr.bf16.gmra.mrb[0].mxu0 %v1150
  %v6798 = vpop.f32.mrb[0].mxu0
  %v6799 = vadd.f32 %v6758, %v6798
  %v6800 = vpop.f32.mrb[0].mxu0
  %v6801 = vadd.f32 %v6760, %v6800
  %v6802 = vpop.f32.mrb[0].mxu0
  %v6803 = vpop.f32.mrb[0].mxu0
  %6804 = vdwg.mxu0
  %6805 = vmatprep.subr.bf16.mxu0 %v4693
  %6806 = vmatpush1.bf16.msra.mxu0 %v4692
  %6807 = vmatprep.subr.bf16.mxu0 %v4701
  %6808 = vmatpush1.bf16.msra.mxu0 %v4700
  %6809 = vmatprep.subr.bf16.mxu0 %v4709
  %6810 = vmatpush1.bf16.msra.mxu0 %v4708
  %6811 = vmatprep.subr.bf16.mxu0 %v4717
  %6812 = vmatpush1.bf16.msra.mxu0 %v4716
  %6813 = vmatprep.subr.bf16.mxu0 %v4725
  %6814 = vmatpush1.bf16.msra.mxu0 %v4724
  %6815 = vmatprep.subr.bf16.mxu0 %v4733
  %6816 = vmatpush1.bf16.msra.mxu0 %v4732
  %6817 = vmatprep.subr.bf16.mxu0 %v4741
  %6818 = vmatpush1.bf16.msra.mxu0 %v4740
  %6819 = vmatprep.subr.bf16.mxu0 %v4749
  %6820 = vmatpush1.bf16.msra.mxu0 %v4748
  %6821 = vmatprep.subr.bf16.mxu0 %v4757
  %6822 = vmatpush1.bf16.msra.mxu0 %v4756
  %6823 = vmatprep.subr.bf16.mxu0 %v4765
  %6824 = vmatpush1.bf16.msra.mxu0 %v4764
  %6825 = vmatprep.subr.bf16.mxu0 %v4773
  %6826 = vmatpush1.bf16.msra.mxu0 %v4772
  %6827 = vmatprep.subr.bf16.mxu0 %v4781
  %6828 = vmatpush1.bf16.msra.mxu0 %v4780
  %6829 = vmatprep.subr.bf16.mxu0 %v4789
  %6830 = vmatpush1.bf16.msra.mxu0 %v4788
  %6831 = vmatprep.subr.bf16.mxu0 %v4797
  %6832 = vmatpush1.bf16.msra.mxu0 %v4796
  %6833 = vmatprep.subr.bf16.mxu0 %v4805
  %6834 = vmatpush1.bf16.msra.mxu0 %v4804
  %6835 = vmatprep.subr.bf16.mxu0 %v4813
  %6836 = vmatpush1.bf16.msra.mxu0 %v4812
  %6837 = vmatprep.mubr.bf16.mxu0 %v1168
  %6838 = vmatmul.mubr.bf16.gmra.mrb[0].mxu0 %v1166
  %v6839 = vpop.f32.mrb[0].mxu0
  %v6840 = vadd.f32 %v6799, %v6839
  %v6841 = vpop.f32.mrb[0].mxu0
  %v6842 = vadd.f32 %v6801, %v6841
  %v6843 = vpop.f32.mrb[0].mxu0
  %v6844 = vpop.f32.mrb[0].mxu0
  %6845 = vdwg.mxu0
  %6846 = vmatprep.subr.bf16.mxu0 %v4821
  %6847 = vmatpush1.bf16.msra.mxu0 %v4820
  %6848 = vmatprep.subr.bf16.mxu0 %v4829
  %6849 = vmatpush1.bf16.msra.mxu0 %v4828
  %6850 = vmatprep.subr.bf16.mxu0 %v4837
  %6851 = vmatpush1.bf16.msra.mxu0 %v4836
  %6852 = vmatprep.subr.bf16.mxu0 %v4845
  %6853 = vmatpush1.bf16.msra.mxu0 %v4844
  %6854 = vmatprep.subr.bf16.mxu0 %v4853
  %6855 = vmatpush1.bf16.msra.mxu0 %v4852
  %6856 = vmatprep.subr.bf16.mxu0 %v4861
  %6857 = vmatpush1.bf16.msra.mxu0 %v4860
  %6858 = vmatprep.subr.bf16.mxu0 %v4869
  %6859 = vmatpush1.bf16.msra.mxu0 %v4868
  %6860 = vmatprep.subr.bf16.mxu0 %v4877
  %6861 = vmatpush1.bf16.msra.mxu0 %v4876
  %6862 = vmatprep.subr.bf16.mxu0 %v4885
  %6863 = vmatpush1.bf16.msra.mxu0 %v4884
  %6864 = vmatprep.subr.bf16.mxu0 %v4893
  %6865 = vmatpush1.bf16.msra.mxu0 %v4892
  %6866 = vmatprep.subr.bf16.mxu0 %v4901
  %6867 = vmatpush1.bf16.msra.mxu0 %v4900
  %6868 = vmatprep.subr.bf16.mxu0 %v4909
  %6869 = vmatpush1.bf16.msra.mxu0 %v4908
  %6870 = vmatprep.subr.bf16.mxu0 %v4917
  %6871 = vmatpush1.bf16.msra.mxu0 %v4916
  %6872 = vmatprep.subr.bf16.mxu0 %v4925
  %6873 = vmatpush1.bf16.msra.mxu0 %v4924
  %6874 = vmatprep.subr.bf16.mxu0 %v4933
  %6875 = vmatpush1.bf16.msra.mxu0 %v4932
  %6876 = vmatprep.subr.bf16.mxu0 %v4941
  %6877 = vmatpush1.bf16.msra.mxu0 %v4940
  %6878 = vmatprep.mubr.bf16.mxu0 %v1206
  %6879 = vmatmul.mubr.bf16.gmra.mrb[0].mxu0 %v1192
  %v6880 = vpop.f32.mrb[0].mxu0
  %v6881 = vadd.f32 %v6840, %v6880
  %v6882 = vpop.f32.mrb[0].mxu0
  %v6883 = vadd.f32 %v6842, %v6882
  %v6884 = vpop.f32.mrb[0].mxu0
  %v6885 = vpop.f32.mrb[0].mxu0
  %6886 = vdwg.mxu0
  %6887 = vmatprep.subr.bf16.mxu0 %v4949
  %6888 = vmatpush1.bf16.msra.mxu0 %v4948
  %6889 = vmatprep.subr.bf16.mxu0 %v4957
  %6890 = vmatpush1.bf16.msra.mxu0 %v4956
  %6891 = vmatprep.subr.bf16.mxu0 %v4965
  %6892 = vmatpush1.bf16.msra.mxu0 %v4964
  %6893 = vmatprep.subr.bf16.mxu0 %v4973
  %6894 = vmatpush1.bf16.msra.mxu0 %v4972
  %6895 = vmatprep.subr.bf16.mxu0 %v4981
  %6896 = vmatpush1.bf16.msra.mxu0 %v4980
  %6897 = vmatprep.subr.bf16.mxu0 %v4989
  %6898 = vmatpush1.bf16.msra.mxu0 %v4988
  %6899 = vmatprep.subr.bf16.mxu0 %v4997
  %6900 = vmatpush1.bf16.msra.mxu0 %v4996
  %6901 = vmatprep.subr.bf16.mxu0 %v5005
  %6902 = vmatpush1.bf16.msra.mxu0 %v5004
  %6903 = vmatprep.subr.bf16.mxu0 %v5013
  %6904 = vmatpush1.bf16.msra.mxu0 %v5012
  %6905 = vmatprep.subr.bf16.mxu0 %v5021
  %6906 = vmatpush1.bf16.msra.mxu0 %v5020
  %6907 = vmatprep.subr.bf16.mxu0 %v5029
  %6908 = vmatpush1.bf16.msra.mxu0 %v5028
  %6909 = vmatprep.subr.bf16.mxu0 %v5037
  %6910 = vmatpush1.bf16.msra.mxu0 %v5036
  %6911 = vmatprep.subr.bf16.mxu0 %v5045
  %6912 = vmatpush1.bf16.msra.mxu0 %v5044
  %6913 = vmatprep.subr.bf16.mxu0 %v5053
  %6914 = vmatpush1.bf16.msra.mxu0 %v5052
  %6915 = vmatprep.subr.bf16.mxu0 %v5061
  %6916 = vmatpush1.bf16.msra.mxu0 %v5060
  %6917 = vmatprep.subr.bf16.mxu0 %v5069
  %6918 = vmatpush1.bf16.msra.mxu0 %v5068
  %6919 = vmatprep.mubr.bf16.mxu0 %v1216
  %6920 = vmatmul.mubr.bf16.gmra.mrb[0].mxu0 %v1214
  %v6921 = vpop.f32.mrb[0].mxu0
  %v6922 = vadd.f32 %v6881, %v6921
  %v6923 = vpop.f32.mrb[0].mxu0
  %v6924 = vadd.f32 %v6883, %v6923
  %v6925 = vpop.f32.mrb[0].mxu0
  %v6926 = vpop.f32.mrb[0].mxu0
  %6927 = vdwg.mxu0
  %6928 = vmatprep.subr.bf16.mxu0 %v5077
  %6929 = vmatpush1.bf16.msra.mxu0 %v5076
  %6930 = vmatprep.subr.bf16.mxu0 %v5085
  %6931 = vmatpush1.bf16.msra.mxu0 %v5084
  %6932 = vmatprep.subr.bf16.mxu0 %v5093
  %6933 = vmatpush1.bf16.msra.mxu0 %v5092
  %6934 = vmatprep.subr.bf16.mxu0 %v5101
  %6935 = vmatpush1.bf16.msra.mxu0 %v5100
  %6936 = vmatprep.subr.bf16.mxu0 %v5109
  %6937 = vmatpush1.bf16.msra.mxu0 %v5108
  %6938 = vmatprep.subr.bf16.mxu0 %v5117
  %6939 = vmatpush1.bf16.msra.mxu0 %v5116
  %6940 = vmatprep.subr.bf16.mxu0 %v5125
  %6941 = vmatpush1.bf16.msra.mxu0 %v5124
  %6942 = vmatprep.subr.bf16.mxu0 %v5133
  %6943 = vmatpush1.bf16.msra.mxu0 %v5132
  %6944 = vmatprep.subr.bf16.mxu0 %v5141
  %6945 = vmatpush1.bf16.msra.mxu0 %v5140
  %6946 = vmatprep.subr.bf16.mxu0 %v5149
  %6947 = vmatpush1.bf16.msra.mxu0 %v5148
  %6948 = vmatprep.subr.bf16.mxu0 %v5157
  %6949 = vmatpush1.bf16.msra.mxu0 %v5156
  %6950 = vmatprep.subr.bf16.mxu0 %v5165
  %6951 = vmatpush1.bf16.msra.mxu0 %v5164
  %6952 = vmatprep.subr.bf16.mxu0 %v5173
  %6953 = vmatpush1.bf16.msra.mxu0 %v5172
  %6954 = vmatprep.subr.bf16.mxu0 %v5181
  %6955 = vmatpush1.bf16.msra.mxu0 %v5180
  %6956 = vmatprep.subr.bf16.mxu0 %v5189
  %6957 = vmatpush1.bf16.msra.mxu0 %v5188
  %6958 = vmatprep.subr.bf16.mxu0 %v5197
  %6959 = vmatpush1.bf16.msra.mxu0 %v5196
  %6960 = vmatprep.mubr.bf16.mxu0 %v1213
  %6961 = vmatmul.mubr.bf16.gmra.mrb[0].mxu0 %v1199
  %v6962 = vpop.f32.mrb[0].mxu0
  %v6963 = vadd.f32 %v6922, %v6962
  %v6964 = vpop.f32.mrb[0].mxu0
  %v6965 = vadd.f32 %v6924, %v6964
  %v6966 = vpop.f32.mrb[0].mxu0
  %v6967 = vpop.f32.mrb[0].mxu0
  %6968 = vdwg.mxu0
  %6969 = vmatprep.subr.bf16.mxu0 %v5205
  %6970 = vmatpush1.bf16.msra.mxu0 %v5204
  %6971 = vmatprep.subr.bf16.mxu0 %v5213
  %6972 = vmatpush1.bf16.msra.mxu0 %v5212
  %6973 = vmatprep.subr.bf16.mxu0 %v5221
  %6974 = vmatpush1.bf16.msra.mxu0 %v5220
  %6975 = vmatprep.subr.bf16.mxu0 %v5229
  %6976 = vmatpush1.bf16.msra.mxu0 %v5228
  %6977 = vmatprep.subr.bf16.mxu0 %v5237
  %6978 = vmatpush1.bf16.msra.mxu0 %v5236
  %6979 = vmatprep.subr.bf16.mxu0 %v5245
  %6980 = vmatpush1.bf16.msra.mxu0 %v5244
  %6981 = vmatprep.subr.bf16.mxu0 %v5253
  %6982 = vmatpush1.bf16.msra.mxu0 %v5252
  %6983 = vmatprep.subr.bf16.mxu0 %v5261
  %6984 = vmatpush1.bf16.msra.mxu0 %v5260
  %6985 = vmatprep.subr.bf16.mxu0 %v5269
  %6986 = vmatpush1.bf16.msra.mxu0 %v5268
  %6987 = vmatprep.subr.bf16.mxu0 %v5277
  %6988 = vmatpush1.bf16.msra.mxu0 %v5276
  %6989 = vmatprep.subr.bf16.mxu0 %v5285
  %6990 = vmatpush1.bf16.msra.mxu0 %v5284
  %6991 = vmatprep.subr.bf16.mxu0 %v5293
  %6992 = vmatpush1.bf16.msra.mxu0 %v5292
  %6993 = vmatprep.subr.bf16.mxu0 %v5301
  %6994 = vmatpush1.bf16.msra.mxu0 %v5300
  %6995 = vmatprep.subr.bf16.mxu0 %v5309
  %6996 = vmatpush1.bf16.msra.mxu0 %v5308
  %6997 = vmatprep.subr.bf16.mxu0 %v5317
  %6998 = vmatpush1.bf16.msra.mxu0 %v5316
  %6999 = vmatprep.subr.bf16.mxu0 %v5325
  %7000 = vmatpush1.bf16.msra.mxu0 %v5324
  %7001 = vmatprep.mubr.bf16.mxu0 %v1217
  %7002 = vmatmul.mubr.bf16.gmra.mrb[0].mxu0 %v1215
  %v7003 = vpop.f32.mrb[0].mxu0
  %v7004 = vadd.f32 %v6963, %v7003
  %v7005 = vpop.f32.mrb[0].mxu0
  %v7006 = vadd.f32 %v6965, %v7005
  %v7007 = vpop.f32.mrb[0].mxu0
  %v7008 = vpop.f32.mrb[0].mxu0
  %7009 = vdwg.mxu0
  %7010 = vmatprep.subr.bf16.mxu0 %v4311
  %7011 = vmatpush1.bf16.msra.mxu0 %v4310
  %7012 = vmatprep.subr.bf16.mxu0 %v4319
  %7013 = vmatpush1.bf16.msra.mxu0 %v4318
  %7014 = vmatprep.subr.bf16.mxu0 %v4327
  %7015 = vmatpush1.bf16.msra.mxu0 %v4326
  %7016 = vmatprep.subr.bf16.mxu0 %v4335
  %7017 = vmatpush1.bf16.msra.mxu0 %v4334
  %7018 = vmatprep.subr.bf16.mxu0 %v4343
  %7019 = vmatpush1.bf16.msra.mxu0 %v4342
  %7020 = vmatprep.subr.bf16.mxu0 %v4351
  %7021 = vmatpush1.bf16.msra.mxu0 %v4350
  %7022 = vmatprep.subr.bf16.mxu0 %v4359
  %7023 = vmatpush1.bf16.msra.mxu0 %v4358
  %7024 = vmatprep.subr.bf16.mxu0 %v4367
  %7025 = vmatpush1.bf16.msra.mxu0 %v4366
  %7026 = vmatprep.subr.bf16.mxu0 %v4375
  %7027 = vmatpush1.bf16.msra.mxu0 %v4374
  %7028 = vmatprep.subr.bf16.mxu0 %v4383
  %7029 = vmatpush1.bf16.msra.mxu0 %v4382
  %7030 = vmatprep.subr.bf16.mxu0 %v4391
  %7031 = vmatpush1.bf16.msra.mxu0 %v4390
  %7032 = vmatprep.subr.bf16.mxu0 %v4399
  %7033 = vmatpush1.bf16.msra.mxu0 %v4398
  %7034 = vmatprep.subr.bf16.mxu0 %v4407
  %7035 = vmatpush1.bf16.msra.mxu0 %v4406
  %7036 = vmatprep.subr.bf16.mxu0 %v4415
  %7037 = vmatpush1.bf16.msra.mxu0 %v4414
  %7038 = vmatprep.subr.bf16.mxu0 %v4423
  %7039 = vmatpush1.bf16.msra.mxu0 %v4422
  %7040 = vmatprep.subr.bf16.mxu0 %v4431
  %7041 = vmatpush1.bf16.msra.mxu0 %v4430
  %7042 = vmatprep.mubr.bf16.mxu0 %v1157
  %7043 = vmatmul.mubr.bf16.gmra.mrb[0].mxu0 %v1143
  %v7044 = vpop.f32.mrb[0].mxu0
  %v7045 = vadd.f32 %v1097, %v7044
  %v7046 = vpop.f32.mrb[0].mxu0
  %v7047 = vadd.f32 %v1101, %v7046
  %v7048 = vpop.f32.mrb[0].mxu0
  %v7049 = vpop.f32.mrb[0].mxu0
  %7050 = vdwg.mxu0
  %7051 = vmatprep.subr.bf16.mxu0 %v4439
  %7052 = vmatpush1.bf16.msra.mxu0 %v4438
  %7053 = vmatprep.subr.bf16.mxu0 %v4447
  %7054 = vmatpush1.bf16.msra.mxu0 %v4446
  %7055 = vmatprep.subr.bf16.mxu0 %v4455
  %7056 = vmatpush1.bf16.msra.mxu0 %v4454
  %7057 = vmatprep.subr.bf16.mxu0 %v4463
  %7058 = vmatpush1.bf16.msra.mxu0 %v4462
  %7059 = vmatprep.subr.bf16.mxu0 %v4471
  %7060 = vmatpush1.bf16.msra.mxu0 %v4470
  %7061 = vmatprep.subr.bf16.mxu0 %v4479
  %7062 = vmatpush1.bf16.msra.mxu0 %v4478
  %7063 = vmatprep.subr.bf16.mxu0 %v4487
  %7064 = vmatpush1.bf16.msra.mxu0 %v4486
  %7065 = vmatprep.subr.bf16.mxu0 %v4495
  %7066 = vmatpush1.bf16.msra.mxu0 %v4494
  %7067 = vmatprep.subr.bf16.mxu0 %v4503
  %7068 = vmatpush1.bf16.msra.mxu0 %v4502
  %7069 = vmatprep.subr.bf16.mxu0 %v4511
  %7070 = vmatpush1.bf16.msra.mxu0 %v4510
  %7071 = vmatprep.subr.bf16.mxu0 %v4519
  %7072 = vmatpush1.bf16.msra.mxu0 %v4518
  %7073 = vmatprep.subr.bf16.mxu0 %v4527
  %7074 = vmatpush1.bf16.msra.mxu0 %v4526
  %7075 = vmatprep.subr.bf16.mxu0 %v4535
  %7076 = vmatpush1.bf16.msra.mxu0 %v4534
  %7077 = vmatprep.subr.bf16.mxu0 %v4543
  %7078 = vmatpush1.bf16.msra.mxu0 %v4542
  %7079 = vmatprep.subr.bf16.mxu0 %v4551
  %7080 = vmatpush1.bf16.msra.mxu0 %v4550
  %7081 = vmatprep.subr.bf16.mxu0 %v4559
  %7082 = vmatpush1.bf16.msra.mxu0 %v4558
  %7083 = vmatprep.mubr.bf16.mxu0 %v1167
  %7084 = vmatmul.mubr.bf16.gmra.mrb[0].mxu0 %v1165
  %v7085 = vpop.f32.mrb[0].mxu0
  %v7086 = vadd.f32 %v7045, %v7085
  %v7087 = vpop.f32.mrb[0].mxu0
  %v7088 = vadd.f32 %v7047, %v7087
  %v7089 = vpop.f32.mrb[0].mxu0
  %v7090 = vpop.f32.mrb[0].mxu0
  %7091 = vdwg.mxu0
  %7092 = vmatprep.subr.bf16.mxu0 %v4567
  %7093 = vmatpush1.bf16.msra.mxu0 %v4566
  %7094 = vmatprep.subr.bf16.mxu0 %v4575
  %7095 = vmatpush1.bf16.msra.mxu0 %v4574
  %7096 = vmatprep.subr.bf16.mxu0 %v4583
  %7097 = vmatpush1.bf16.msra.mxu0 %v4582
  %7098 = vmatprep.subr.bf16.mxu0 %v4591
  %7099 = vmatpush1.bf16.msra.mxu0 %v4590
  %7100 = vmatprep.subr.bf16.mxu0 %v4599
  %7101 = vmatpush1.bf16.msra.mxu0 %v4598
  %7102 = vmatprep.subr.bf16.mxu0 %v4607
  %7103 = vmatpush1.bf16.msra.mxu0 %v4606
  %7104 = vmatprep.subr.bf16.mxu0 %v4615
  %7105 = vmatpush1.bf16.msra.mxu0 %v4614
  %7106 = vmatprep.subr.bf16.mxu0 %v4623
  %7107 = vmatpush1.bf16.msra.mxu0 %v4622
  %7108 = vmatprep.subr.bf16.mxu0 %v4631
  %7109 = vmatpush1.bf16.msra.mxu0 %v4630
  %7110 = vmatprep.subr.bf16.mxu0 %v4639
  %7111 = vmatpush1.bf16.msra.mxu0 %v4638
  %7112 = vmatprep.subr.bf16.mxu0 %v4647
  %7113 = vmatpush1.bf16.msra.mxu0 %v4646
  %7114 = vmatprep.subr.bf16.mxu0 %v4655
  %7115 = vmatpush1.bf16.msra.mxu0 %v4654
  %7116 = vmatprep.subr.bf16.mxu0 %v4663
  %7117 = vmatpush1.bf16.msra.mxu0 %v4662
  %7118 = vmatprep.subr.bf16.mxu0 %v4671
  %7119 = vmatpush1.bf16.msra.mxu0 %v4670
  %7120 = vmatprep.subr.bf16.mxu0 %v4679
  %7121 = vmatpush1.bf16.msra.mxu0 %v4678
  %7122 = vmatprep.subr.bf16.mxu0 %v4687
  %7123 = vmatpush1.bf16.msra.mxu0 %v4686
  %7124 = vmatprep.mubr.bf16.mxu0 %v1164
  %7125 = vmatmul.mubr.bf16.gmra.mrb[0].mxu0 %v1150
  %v7126 = vpop.f32.mrb[0].mxu0
  %v7127 = vadd.f32 %v7086, %v7126
  %v7128 = vpop.f32.mrb[0].mxu0
  %v7129 = vadd.f32 %v7088, %v7128
  %v7130 = vpop.f32.mrb[0].mxu0
  %v7131 = vpop.f32.mrb[0].mxu0
  %7132 = vdwg.mxu0
  %7133 = vmatprep.subr.bf16.mxu0 %v4695
  %7134 = vmatpush1.bf16.msra.mxu0 %v4694
  %7135 = vmatprep.subr.bf16.mxu0 %v4703
  %7136 = vmatpush1.bf16.msra.mxu0 %v4702
  %7137 = vmatprep.subr.bf16.mxu0 %v4711
  %7138 = vmatpush1.bf16.msra.mxu0 %v4710
  %7139 = vmatprep.subr.bf16.mxu0 %v4719
  %7140 = vmatpush1.bf16.msra.mxu0 %v4718
  %7141 = vmatprep.subr.bf16.mxu0 %v4727
  %7142 = vmatpush1.bf16.msra.mxu0 %v4726
  %7143 = vmatprep.subr.bf16.mxu0 %v4735
  %7144 = vmatpush1.bf16.msra.mxu0 %v4734
  %7145 = vmatprep.subr.bf16.mxu0 %v4743
  %7146 = vmatpush1.bf16.msra.mxu0 %v4742
  %7147 = vmatprep.subr.bf16.mxu0 %v4751
  %7148 = vmatpush1.bf16.msra.mxu0 %v4750
  %7149 = vmatprep.subr.bf16.mxu0 %v4759
  %7150 = vmatpush1.bf16.msra.mxu0 %v4758
  %7151 = vmatprep.subr.bf16.mxu0 %v4767
  %7152 = vmatpush1.bf16.msra.mxu0 %v4766
  %7153 = vmatprep.subr.bf16.mxu0 %v4775
  %7154 = vmatpush1.bf16.msra.mxu0 %v4774
  %7155 = vmatprep.subr.bf16.mxu0 %v4783
  %7156 = vmatpush1.bf16.msra.mxu0 %v4782
  %7157 = vmatprep.subr.bf16.mxu0 %v4791
  %7158 = vmatpush1.bf16.msra.mxu0 %v4790
  %7159 = vmatprep.subr.bf16.mxu0 %v4799
  %7160 = vmatpush1.bf16.msra.mxu0 %v4798
  %7161 = vmatprep.subr.bf16.mxu0 %v4807
  %7162 = vmatpush1.bf16.msra.mxu0 %v4806
  %7163 = vmatprep.subr.bf16.mxu0 %v4815
  %7164 = vmatpush1.bf16.msra.mxu0 %v4814
  %7165 = vmatprep.mubr.bf16.mxu0 %v1168
  %7166 = vmatmul.mubr.bf16.gmra.mrb[0].mxu0 %v1166
  %v7167 = vpop.f32.mrb[0].mxu0
  %v7168 = vadd.f32 %v7127, %v7167
  %v7169 = vpop.f32.mrb[0].mxu0
  %v7170 = vadd.f32 %v7129, %v7169
  %v7171 = vpop.f32.mrb[0].mxu0
  %v7172 = vpop.f32.mrb[0].mxu0
  %7173 = vdwg.mxu0
  %7174 = vmatprep.subr.bf16.mxu0 %v4823
  %7175 = vmatpush1.bf16.msra.mxu0 %v4822
  %7176 = vmatprep.subr.bf16.mxu0 %v4831
  %7177 = vmatpush1.bf16.msra.mxu0 %v4830
  %7178 = vmatprep.subr.bf16.mxu0 %v4839
  %7179 = vmatpush1.bf16.msra.mxu0 %v4838
  %7180 = vmatprep.subr.bf16.mxu0 %v4847
  %7181 = vmatpush1.bf16.msra.mxu0 %v4846
  %7182 = vmatprep.subr.bf16.mxu0 %v4855
  %7183 = vmatpush1.bf16.msra.mxu0 %v4854
  %7184 = vmatprep.subr.bf16.mxu0 %v4863
  %7185 = vmatpush1.bf16.msra.mxu0 %v4862
  %7186 = vmatprep.subr.bf16.mxu0 %v4871
  %7187 = vmatpush1.bf16.msra.mxu0 %v4870
  %7188 = vmatprep.subr.bf16.mxu0 %v4879
  %7189 = vmatpush1.bf16.msra.mxu0 %v4878
  %7190 = vmatprep.subr.bf16.mxu0 %v4887
  %7191 = vmatpush1.bf16.msra.mxu0 %v4886
  %7192 = vmatprep.subr.bf16.mxu0 %v4895
  %7193 = vmatpush1.bf16.msra.mxu0 %v4894
  %7194 = vmatprep.subr.bf16.mxu0 %v4903
  %7195 = vmatpush1.bf16.msra.mxu0 %v4902
  %7196 = vmatprep.subr.bf16.mxu0 %v4911
  %7197 = vmatpush1.bf16.msra.mxu0 %v4910
  %7198 = vmatprep.subr.bf16.mxu0 %v4919
  %7199 = vmatpush1.bf16.msra.mxu0 %v4918
  %7200 = vmatprep.subr.bf16.mxu0 %v4927
  %7201 = vmatpush1.bf16.msra.mxu0 %v4926
  %7202 = vmatprep.subr.bf16.mxu0 %v4935
  %7203 = vmatpush1.bf16.msra.mxu0 %v4934
  %7204 = vmatprep.subr.bf16.mxu0 %v4943
  %7205 = vmatpush1.bf16.msra.mxu0 %v4942
  %7206 = vmatprep.mubr.bf16.mxu0 %v1206
  %7207 = vmatmul.mubr.bf16.gmra.mrb[0].mxu0 %v1192
  %v7208 = vpop.f32.mrb[0].mxu0
  %v7209 = vadd.f32 %v7168, %v7208
  %v7210 = vpop.f32.mrb[0].mxu0
  %v7211 = vadd.f32 %v7170, %v7210
  %v7212 = vpop.f32.mrb[0].mxu0
  %v7213 = vpop.f32.mrb[0].mxu0
  %7214 = vdwg.mxu0
  %7215 = vmatprep.subr.bf16.mxu0 %v4951
  %7216 = vmatpush1.bf16.msra.mxu0 %v4950
  %7217 = vmatprep.subr.bf16.mxu0 %v4959
  %7218 = vmatpush1.bf16.msra.mxu0 %v4958
  %7219 = vmatprep.subr.bf16.mxu0 %v4967
  %7220 = vmatpush1.bf16.msra.mxu0 %v4966
  %7221 = vmatprep.subr.bf16.mxu0 %v4975
  %7222 = vmatpush1.bf16.msra.mxu0 %v4974
  %7223 = vmatprep.subr.bf16.mxu0 %v4983
  %7224 = vmatpush1.bf16.msra.mxu0 %v4982
  %7225 = vmatprep.subr.bf16.mxu0 %v4991
  %7226 = vmatpush1.bf16.msra.mxu0 %v4990
  %7227 = vmatprep.subr.bf16.mxu0 %v4999
  %7228 = vmatpush1.bf16.msra.mxu0 %v4998
  %7229 = vmatprep.subr.bf16.mxu0 %v5007
  %7230 = vmatpush1.bf16.msra.mxu0 %v5006
  %7231 = vmatprep.subr.bf16.mxu0 %v5015
  %7232 = vmatpush1.bf16.msra.mxu0 %v5014
  %7233 = vmatprep.subr.bf16.mxu0 %v5023
  %7234 = vmatpush1.bf16.msra.mxu0 %v5022
  %7235 = vmatprep.subr.bf16.mxu0 %v5031
  %7236 = vmatpush1.bf16.msra.mxu0 %v5030
  %7237 = vmatprep.subr.bf16.mxu0 %v5039
  %7238 = vmatpush1.bf16.msra.mxu0 %v5038
  %7239 = vmatprep.subr.bf16.mxu0 %v5047
  %7240 = vmatpush1.bf16.msra.mxu0 %v5046
  %7241 = vmatprep.subr.bf16.mxu0 %v5055
  %7242 = vmatpush1.bf16.msra.mxu0 %v5054
  %7243 = vmatprep.subr.bf16.mxu0 %v5063
  %7244 = vmatpush1.bf16.msra.mxu0 %v5062
  %7245 = vmatprep.subr.bf16.mxu0 %v5071
  %7246 = vmatpush1.bf16.msra.mxu0 %v5070
  %7247 = vmatprep.mubr.bf16.mxu0 %v1216
  %7248 = vmatmul.mubr.bf16.gmra.mrb[0].mxu0 %v1214
  %v7249 = vpop.f32.mrb[0].mxu0
  %v7250 = vadd.f32 %v7209, %v7249
  %v7251 = vpop.f32.mrb[0].mxu0
  %v7252 = vadd.f32 %v7211, %v7251
  %v7253 = vpop.f32.mrb[0].mxu0
  %v7254 = vpop.f32.mrb[0].mxu0
  %7255 = vdwg.mxu0
  %7256 = vmatprep.subr.bf16.mxu0 %v5079
  %7257 = vmatpush1.bf16.msra.mxu0 %v5078
  %7258 = vmatprep.subr.bf16.mxu0 %v5087
  %7259 = vmatpush1.bf16.msra.mxu0 %v5086
  %7260 = vmatprep.subr.bf16.mxu0 %v5095
  %7261 = vmatpush1.bf16.msra.mxu0 %v5094
  %7262 = vmatprep.subr.bf16.mxu0 %v5103
  %7263 = vmatpush1.bf16.msra.mxu0 %v5102
  %7264 = vmatprep.subr.bf16.mxu0 %v5111
  %7265 = vmatpush1.bf16.msra.mxu0 %v5110
  %7266 = vmatprep.subr.bf16.mxu0 %v5119
  %7267 = vmatpush1.bf16.msra.mxu0 %v5118
  %7268 = vmatprep.subr.bf16.mxu0 %v5127
  %7269 = vmatpush1.bf16.msra.mxu0 %v5126
  %7270 = vmatprep.subr.bf16.mxu0 %v5135
  %7271 = vmatpush1.bf16.msra.mxu0 %v5134
  %7272 = vmatprep.subr.bf16.mxu0 %v5143
  %7273 = vmatpush1.bf16.msra.mxu0 %v5142
  %7274 = vmatprep.subr.bf16.mxu0 %v5151
  %7275 = vmatpush1.bf16.msra.mxu0 %v5150
  %7276 = vmatprep.subr.bf16.mxu0 %v5159
  %7277 = vmatpush1.bf16.msra.mxu0 %v5158
  %7278 = vmatprep.subr.bf16.mxu0 %v5167
  %7279 = vmatpush1.bf16.msra.mxu0 %v5166
  %7280 = vmatprep.subr.bf16.mxu0 %v5175
  %7281 = vmatpush1.bf16.msra.mxu0 %v5174
  %7282 = vmatprep.subr.bf16.mxu0 %v5183
  %7283 = vmatpush1.bf16.msra.mxu0 %v5182
  %7284 = vmatprep.subr.bf16.mxu0 %v5191
  %7285 = vmatpush1.bf16.msra.mxu0 %v5190
  %7286 = vmatprep.subr.bf16.mxu0 %v5199
  %7287 = vmatpush1.bf16.msra.mxu0 %v5198
  %7288 = vmatprep.mubr.bf16.mxu0 %v1213
  %7289 = vmatmul.mubr.bf16.gmra.mrb[0].mxu0 %v1199
  %v7290 = vpop.f32.mrb[0].mxu0
  %v7291 = vadd.f32 %v7250, %v7290
  %v7292 = vpop.f32.mrb[0].mxu0
  %v7293 = vadd.f32 %v7252, %v7292
  %v7294 = vpop.f32.mrb[0].mxu0
  %v7295 = vpop.f32.mrb[0].mxu0
  %7296 = vdwg.mxu0
  %7297 = vmatprep.subr.bf16.mxu0 %v5207
  %7298 = vmatpush1.bf16.msra.mxu0 %v5206
  %7299 = vmatprep.subr.bf16.mxu0 %v5215
  %7300 = vmatpush1.bf16.msra.mxu0 %v5214
  %7301 = vmatprep.subr.bf16.mxu0 %v5223
  %7302 = vmatpush1.bf16.msra.mxu0 %v5222
  %7303 = vmatprep.subr.bf16.mxu0 %v5231
  %7304 = vmatpush1.bf16.msra.mxu0 %v5230
  %7305 = vmatprep.subr.bf16.mxu0 %v5239
  %7306 = vmatpush1.bf16.msra.mxu0 %v5238
  %7307 = vmatprep.subr.bf16.mxu0 %v5247
  %7308 = vmatpush1.bf16.msra.mxu0 %v5246
  %7309 = vmatprep.subr.bf16.mxu0 %v5255
  %7310 = vmatpush1.bf16.msra.mxu0 %v5254
  %7311 = vmatprep.subr.bf16.mxu0 %v5263
  %7312 = vmatpush1.bf16.msra.mxu0 %v5262
  %7313 = vmatprep.subr.bf16.mxu0 %v5271
  %7314 = vmatpush1.bf16.msra.mxu0 %v5270
  %7315 = vmatprep.subr.bf16.mxu0 %v5279
  %7316 = vmatpush1.bf16.msra.mxu0 %v5278
  %7317 = vmatprep.subr.bf16.mxu0 %v5287
  %7318 = vmatpush1.bf16.msra.mxu0 %v5286
  %7319 = vmatprep.subr.bf16.mxu0 %v5295
  %7320 = vmatpush1.bf16.msra.mxu0 %v5294
  %7321 = vmatprep.subr.bf16.mxu0 %v5303
  %7322 = vmatpush1.bf16.msra.mxu0 %v5302
  %7323 = vmatprep.subr.bf16.mxu0 %v5311
  %7324 = vmatpush1.bf16.msra.mxu0 %v5310
  %7325 = vmatprep.subr.bf16.mxu0 %v5319
  %7326 = vmatpush1.bf16.msra.mxu0 %v5318
  %7327 = vmatprep.subr.bf16.mxu0 %v5327
  %7328 = vmatpush1.bf16.msra.mxu0 %v5326
  %7329 = vmatprep.mubr.bf16.mxu0 %v1217
  %7330 = vmatmul.mubr.bf16.gmra.mrb[0].mxu0 %v1215
  %v7331 = vpop.f32.mrb[0].mxu0
  %v7332 = vadd.f32 %v7291, %v7331
  %v7333 = vpop.f32.mrb[0].mxu0
  %v7334 = vadd.f32 %v7293, %v7333
  %v7335 = vpop.f32.mrb[0].mxu0
  %v7336 = vpop.f32.mrb[0].mxu0
  %7337 = vdwg.mxu0
  %7338 = vmatprep.subr.bf16.mxu0 %v4313
  %7339 = vmatpush1.bf16.msra.mxu0 %v4312
  %7340 = vmatprep.subr.bf16.mxu0 %v4321
  %7341 = vmatpush1.bf16.msra.mxu0 %v4320
  %7342 = vmatprep.subr.bf16.mxu0 %v4329
  %7343 = vmatpush1.bf16.msra.mxu0 %v4328
  %7344 = vmatprep.subr.bf16.mxu0 %v4337
  %7345 = vmatpush1.bf16.msra.mxu0 %v4336
  %7346 = vmatprep.subr.bf16.mxu0 %v4345
  %7347 = vmatpush1.bf16.msra.mxu0 %v4344
  %7348 = vmatprep.subr.bf16.mxu0 %v4353
  %7349 = vmatpush1.bf16.msra.mxu0 %v4352
  %7350 = vmatprep.subr.bf16.mxu0 %v4361
  %7351 = vmatpush1.bf16.msra.mxu0 %v4360
  %7352 = vmatprep.subr.bf16.mxu0 %v4369
  %7353 = vmatpush1.bf16.msra.mxu0 %v4368
  %7354 = vmatprep.subr.bf16.mxu0 %v4377
  %7355 = vmatpush1.bf16.msra.mxu0 %v4376
  %7356 = vmatprep.subr.bf16.mxu0 %v4385
  %7357 = vmatpush1.bf16.msra.mxu0 %v4384
  %7358 = vmatprep.subr.bf16.mxu0 %v4393
  %7359 = vmatpush1.bf16.msra.mxu0 %v4392
  %7360 = vmatprep.subr.bf16.mxu0 %v4401
  %7361 = vmatpush1.bf16.msra.mxu0 %v4400
  %7362 = vmatprep.subr.bf16.mxu0 %v4409
  %7363 = vmatpush1.bf16.msra.mxu0 %v4408
  %7364 = vmatprep.subr.bf16.mxu0 %v4417
  %7365 = vmatpush1.bf16.msra.mxu0 %v4416
  %7366 = vmatprep.subr.bf16.mxu0 %v4425
  %7367 = vmatpush1.bf16.msra.mxu0 %v4424
  %7368 = vmatprep.subr.bf16.mxu0 %v4433
  %7369 = vmatpush1.bf16.msra.mxu0 %v4432
  %7370 = vmatprep.mubr.bf16.mxu0 %v1157
  %7371 = vmatmul.mubr.bf16.gmra.mrb[0].mxu0 %v1143
  %v7372 = vpop.f32.mrb[0].mxu0
  %v7373 = vadd.f32 %v1105, %v7372
  %v7374 = vpop.f32.mrb[0].mxu0
  %v7375 = vadd.f32 %v1109, %v7374
  %v7376 = vpop.f32.mrb[0].mxu0
  %v7377 = vpop.f32.mrb[0].mxu0
  %7378 = vdwg.mxu0
  %7379 = vmatprep.subr.bf16.mxu0 %v4441
  %7380 = vmatpush1.bf16.msra.mxu0 %v4440
  %7381 = vmatprep.subr.bf16.mxu0 %v4449
  %7382 = vmatpush1.bf16.msra.mxu0 %v4448
  %7383 = vmatprep.subr.bf16.mxu0 %v4457
  %7384 = vmatpush1.bf16.msra.mxu0 %v4456
  %7385 = vmatprep.subr.bf16.mxu0 %v4465
  %7386 = vmatpush1.bf16.msra.mxu0 %v4464
  %7387 = vmatprep.subr.bf16.mxu0 %v4473
  %7388 = vmatpush1.bf16.msra.mxu0 %v4472
  %7389 = vmatprep.subr.bf16.mxu0 %v4481
  %7390 = vmatpush1.bf16.msra.mxu0 %v4480
  %7391 = vmatprep.subr.bf16.mxu0 %v4489
  %7392 = vmatpush1.bf16.msra.mxu0 %v4488
  %7393 = vmatprep.subr.bf16.mxu0 %v4497
  %7394 = vmatpush1.bf16.msra.mxu0 %v4496
  %7395 = vmatprep.subr.bf16.mxu0 %v4505
  %7396 = vmatpush1.bf16.msra.mxu0 %v4504
  %7397 = vmatprep.subr.bf16.mxu0 %v4513
  %7398 = vmatpush1.bf16.msra.mxu0 %v4512
  %7399 = vmatprep.subr.bf16.mxu0 %v4521
  %7400 = vmatpush1.bf16.msra.mxu0 %v4520
  %7401 = vmatprep.subr.bf16.mxu0 %v4529
  %7402 = vmatpush1.bf16.msra.mxu0 %v4528
  %7403 = vmatprep.subr.bf16.mxu0 %v4537
  %7404 = vmatpush1.bf16.msra.mxu0 %v4536
  %7405 = vmatprep.subr.bf16.mxu0 %v4545
  %7406 = vmatpush1.bf16.msra.mxu0 %v4544
  %7407 = vmatprep.subr.bf16.mxu0 %v4553
  %7408 = vmatpush1.bf16.msra.mxu0 %v4552
  %7409 = vmatprep.subr.bf16.mxu0 %v4561
  %7410 = vmatpush1.bf16.msra.mxu0 %v4560
  %7411 = vmatprep.mubr.bf16.mxu0 %v1167
  %7412 = vmatmul.mubr.bf16.gmra.mrb[0].mxu0 %v1165
  %v7413 = vpop.f32.mrb[0].mxu0
  %v7414 = vadd.f32 %v7373, %v7413
  %v7415 = vpop.f32.mrb[0].mxu0
  %v7416 = vadd.f32 %v7375, %v7415
  %v7417 = vpop.f32.mrb[0].mxu0
  %v7418 = vpop.f32.mrb[0].mxu0
  %7419 = vdwg.mxu0
  %7420 = vmatprep.subr.bf16.mxu0 %v4569
  %7421 = vmatpush1.bf16.msra.mxu0 %v4568
  %7422 = vmatprep.subr.bf16.mxu0 %v4577
  %7423 = vmatpush1.bf16.msra.mxu0 %v4576
  %7424 = vmatprep.subr.bf16.mxu0 %v4585
  %7425 = vmatpush1.bf16.msra.mxu0 %v4584
  %7426 = vmatprep.subr.bf16.mxu0 %v4593
  %7427 = vmatpush1.bf16.msra.mxu0 %v4592
  %7428 = vmatprep.subr.bf16.mxu0 %v4601
  %7429 = vmatpush1.bf16.msra.mxu0 %v4600
  %7430 = vmatprep.subr.bf16.mxu0 %v4609
  %7431 = vmatpush1.bf16.msra.mxu0 %v4608
  %7432 = vmatprep.subr.bf16.mxu0 %v4617
  %7433 = vmatpush1.bf16.msra.mxu0 %v4616
  %7434 = vmatprep.subr.bf16.mxu0 %v4625
  %7435 = vmatpush1.bf16.msra.mxu0 %v4624
  %7436 = vmatprep.subr.bf16.mxu0 %v4633
  %7437 = vmatpush1.bf16.msra.mxu0 %v4632
  %7438 = vmatprep.subr.bf16.mxu0 %v4641
  %7439 = vmatpush1.bf16.msra.mxu0 %v4640
  %7440 = vmatprep.subr.bf16.mxu0 %v4649
  %7441 = vmatpush1.bf16.msra.mxu0 %v4648
  %7442 = vmatprep.subr.bf16.mxu0 %v4657
  %7443 = vmatpush1.bf16.msra.mxu0 %v4656
  %7444 = vmatprep.subr.bf16.mxu0 %v4665
  %7445 = vmatpush1.bf16.msra.mxu0 %v4664
  %7446 = vmatprep.subr.bf16.mxu0 %v4673
  %7447 = vmatpush1.bf16.msra.mxu0 %v4672
  %7448 = vmatprep.subr.bf16.mxu0 %v4681
  %7449 = vmatpush1.bf16.msra.mxu0 %v4680
  %7450 = vmatprep.subr.bf16.mxu0 %v4689
  %7451 = vmatpush1.bf16.msra.mxu0 %v4688
  %7452 = vmatprep.mubr.bf16.mxu0 %v1164
  %7453 = vmatmul.mubr.bf16.gmra.mrb[0].mxu0 %v1150
  %v7454 = vpop.f32.mrb[0].mxu0
  %v7455 = vadd.f32 %v7414, %v7454
  %v7456 = vpop.f32.mrb[0].mxu0
  %v7457 = vadd.f32 %v7416, %v7456
  %v7458 = vpop.f32.mrb[0].mxu0
  %v7459 = vpop.f32.mrb[0].mxu0
  %7460 = vdwg.mxu0
  %7461 = vmatprep.subr.bf16.mxu0 %v4697
  %7462 = vmatpush1.bf16.msra.mxu0 %v4696
  %7463 = vmatprep.subr.bf16.mxu0 %v4705
  %7464 = vmatpush1.bf16.msra.mxu0 %v4704
  %7465 = vmatprep.subr.bf16.mxu0 %v4713
  %7466 = vmatpush1.bf16.msra.mxu0 %v4712
  %7467 = vmatprep.subr.bf16.mxu0 %v4721
  %7468 = vmatpush1.bf16.msra.mxu0 %v4720
  %7469 = vmatprep.subr.bf16.mxu0 %v4729
  %7470 = vmatpush1.bf16.msra.mxu0 %v4728
  %7471 = vmatprep.subr.bf16.mxu0 %v4737
  %7472 = vmatpush1.bf16.msra.mxu0 %v4736
  %7473 = vmatprep.subr.bf16.mxu0 %v4745
  %7474 = vmatpush1.bf16.msra.mxu0 %v4744
  %7475 = vmatprep.subr.bf16.mxu0 %v4753
  %7476 = vmatpush1.bf16.msra.mxu0 %v4752
  %7477 = vmatprep.subr.bf16.mxu0 %v4761
  %7478 = vmatpush1.bf16.msra.mxu0 %v4760
  %7479 = vmatprep.subr.bf16.mxu0 %v4769
  %7480 = vmatpush1.bf16.msra.mxu0 %v4768
  %7481 = vmatprep.subr.bf16.mxu0 %v4777
  %7482 = vmatpush1.bf16.msra.mxu0 %v4776
  %7483 = vmatprep.subr.bf16.mxu0 %v4785
  %7484 = vmatpush1.bf16.msra.mxu0 %v4784
  %7485 = vmatprep.subr.bf16.mxu0 %v4793
  %7486 = vmatpush1.bf16.msra.mxu0 %v4792
  %7487 = vmatprep.subr.bf16.mxu0 %v4801
  %7488 = vmatpush1.bf16.msra.mxu0 %v4800
  %7489 = vmatprep.subr.bf16.mxu0 %v4809
  %7490 = vmatpush1.bf16.msra.mxu0 %v4808
  %7491 = vmatprep.subr.bf16.mxu0 %v4817
  %7492 = vmatpush1.bf16.msra.mxu0 %v4816
  %7493 = vmatprep.mubr.bf16.mxu0 %v1168
  %7494 = vmatmul.mubr.bf16.gmra.mrb[0].mxu0 %v1166
  %v7495 = vpop.f32.mrb[0].mxu0
  %v7496 = vadd.f32 %v7455, %v7495
  %v7497 = vpop.f32.mrb[0].mxu0
  %v7498 = vadd.f32 %v7457, %v7497
  %v7499 = vpop.f32.mrb[0].mxu0
  %v7500 = vpop.f32.mrb[0].mxu0
  %7501 = vdwg.mxu0
  %7502 = vmatprep.subr.bf16.mxu0 %v4825
  %7503 = vmatpush1.bf16.msra.mxu0 %v4824
  %7504 = vmatprep.subr.bf16.mxu0 %v4833
  %7505 = vmatpush1.bf16.msra.mxu0 %v4832
  %7506 = vmatprep.subr.bf16.mxu0 %v4841
  %7507 = vmatpush1.bf16.msra.mxu0 %v4840
  %7508 = vmatprep.subr.bf16.mxu0 %v4849
  %7509 = vmatpush1.bf16.msra.mxu0 %v4848
  %7510 = vmatprep.subr.bf16.mxu0 %v4857
  %7511 = vmatpush1.bf16.msra.mxu0 %v4856
  %7512 = vmatprep.subr.bf16.mxu0 %v4865
  %7513 = vmatpush1.bf16.msra.mxu0 %v4864
  %7514 = vmatprep.subr.bf16.mxu0 %v4873
  %7515 = vmatpush1.bf16.msra.mxu0 %v4872
  %7516 = vmatprep.subr.bf16.mxu0 %v4881
  %7517 = vmatpush1.bf16.msra.mxu0 %v4880
  %7518 = vmatprep.subr.bf16.mxu0 %v4889
  %7519 = vmatpush1.bf16.msra.mxu0 %v4888
  %7520 = vmatprep.subr.bf16.mxu0 %v4897
  %7521 = vmatpush1.bf16.msra.mxu0 %v4896
  %7522 = vmatprep.subr.bf16.mxu0 %v4905
  %7523 = vmatpush1.bf16.msra.mxu0 %v4904
  %7524 = vmatprep.subr.bf16.mxu0 %v4913
  %7525 = vmatpush1.bf16.msra.mxu0 %v4912
  %7526 = vmatprep.subr.bf16.mxu0 %v4921
  %7527 = vmatpush1.bf16.msra.mxu0 %v4920
  %7528 = vmatprep.subr.bf16.mxu0 %v4929
  %7529 = vmatpush1.bf16.msra.mxu0 %v4928
  %7530 = vmatprep.subr.bf16.mxu0 %v4937
  %7531 = vmatpush1.bf16.msra.mxu0 %v4936
  %7532 = vmatprep.subr.bf16.mxu0 %v4945
  %7533 = vmatpush1.bf16.msra.mxu0 %v4944
  %7534 = vmatprep.mubr.bf16.mxu0 %v1206
  %7535 = vmatmul.mubr.bf16.gmra.mrb[0].mxu0 %v1192
  %v7536 = vpop.f32.mrb[0].mxu0
  %v7537 = vadd.f32 %v7496, %v7536
  %v7538 = vpop.f32.mrb[0].mxu0
  %v7539 = vadd.f32 %v7498, %v7538
  %v7540 = vpop.f32.mrb[0].mxu0
  %v7541 = vpop.f32.mrb[0].mxu0
  %7542 = vdwg.mxu0
  %7543 = vmatprep.subr.bf16.mxu0 %v4953
  %7544 = vmatpush1.bf16.msra.mxu0 %v4952
  %7545 = vmatprep.subr.bf16.mxu0 %v4961
  %7546 = vmatpush1.bf16.msra.mxu0 %v4960
  %7547 = vmatprep.subr.bf16.mxu0 %v4969
  %7548 = vmatpush1.bf16.msra.mxu0 %v4968
  %7549 = vmatprep.subr.bf16.mxu0 %v4977
  %7550 = vmatpush1.bf16.msra.mxu0 %v4976
  %7551 = vmatprep.subr.bf16.mxu0 %v4985
  %7552 = vmatpush1.bf16.msra.mxu0 %v4984
  %7553 = vmatprep.subr.bf16.mxu0 %v4993
  %7554 = vmatpush1.bf16.msra.mxu0 %v4992
  %7555 = vmatprep.subr.bf16.mxu0 %v5001
  %7556 = vmatpush1.bf16.msra.mxu0 %v5000
  %7557 = vmatprep.subr.bf16.mxu0 %v5009
  %7558 = vmatpush1.bf16.msra.mxu0 %v5008
  %7559 = vmatprep.subr.bf16.mxu0 %v5017
  %7560 = vmatpush1.bf16.msra.mxu0 %v5016
  %7561 = vmatprep.subr.bf16.mxu0 %v5025
  %7562 = vmatpush1.bf16.msra.mxu0 %v5024
  %7563 = vmatprep.subr.bf16.mxu0 %v5033
  %7564 = vmatpush1.bf16.msra.mxu0 %v5032
  %7565 = vmatprep.subr.bf16.mxu0 %v5041
  %7566 = vmatpush1.bf16.msra.mxu0 %v5040
  %7567 = vmatprep.subr.bf16.mxu0 %v5049
  %7568 = vmatpush1.bf16.msra.mxu0 %v5048
  %7569 = vmatprep.subr.bf16.mxu0 %v5057
  %7570 = vmatpush1.bf16.msra.mxu0 %v5056
  %7571 = vmatprep.subr.bf16.mxu0 %v5065
  %7572 = vmatpush1.bf16.msra.mxu0 %v5064
  %7573 = vmatprep.subr.bf16.mxu0 %v5073
  %7574 = vmatpush1.bf16.msra.mxu0 %v5072
  %7575 = vmatprep.mubr.bf16.mxu0 %v1216
  %7576 = vmatmul.mubr.bf16.gmra.mrb[0].mxu0 %v1214
  %v7577 = vpop.f32.mrb[0].mxu0
  %v7578 = vadd.f32 %v7537, %v7577
  %v7579 = vpop.f32.mrb[0].mxu0
  %v7580 = vadd.f32 %v7539, %v7579
  %v7581 = vpop.f32.mrb[0].mxu0
  %v7582 = vpop.f32.mrb[0].mxu0
  %7583 = vdwg.mxu0
  %7584 = vmatprep.subr.bf16.mxu0 %v5081
  %7585 = vmatpush1.bf16.msra.mxu0 %v5080
  %7586 = vmatprep.subr.bf16.mxu0 %v5089
  %7587 = vmatpush1.bf16.msra.mxu0 %v5088
  %7588 = vmatprep.subr.bf16.mxu0 %v5097
  %7589 = vmatpush1.bf16.msra.mxu0 %v5096
  %7590 = vmatprep.subr.bf16.mxu0 %v5105
  %7591 = vmatpush1.bf16.msra.mxu0 %v5104
  %7592 = vmatprep.subr.bf16.mxu0 %v5113
  %7593 = vmatpush1.bf16.msra.mxu0 %v5112
  %7594 = vmatprep.subr.bf16.mxu0 %v5121
  %7595 = vmatpush1.bf16.msra.mxu0 %v5120
  %7596 = vmatprep.subr.bf16.mxu0 %v5129
  %7597 = vmatpush1.bf16.msra.mxu0 %v5128
  %7598 = vmatprep.subr.bf16.mxu0 %v5137
  %7599 = vmatpush1.bf16.msra.mxu0 %v5136
  %7600 = vmatprep.subr.bf16.mxu0 %v5145
  %7601 = vmatpush1.bf16.msra.mxu0 %v5144
  %7602 = vmatprep.subr.bf16.mxu0 %v5153
  %7603 = vmatpush1.bf16.msra.mxu0 %v5152
  %7604 = vmatprep.subr.bf16.mxu0 %v5161
  %7605 = vmatpush1.bf16.msra.mxu0 %v5160
  %7606 = vmatprep.subr.bf16.mxu0 %v5169
  %7607 = vmatpush1.bf16.msra.mxu0 %v5168
  %7608 = vmatprep.subr.bf16.mxu0 %v5177
  %7609 = vmatpush1.bf16.msra.mxu0 %v5176
  %7610 = vmatprep.subr.bf16.mxu0 %v5185
  %7611 = vmatpush1.bf16.msra.mxu0 %v5184
  %7612 = vmatprep.subr.bf16.mxu0 %v5193
  %7613 = vmatpush1.bf16.msra.mxu0 %v5192
  %7614 = vmatprep.subr.bf16.mxu0 %v5201
  %7615 = vmatpush1.bf16.msra.mxu0 %v5200
  %7616 = vmatprep.mubr.bf16.mxu0 %v1213
  %7617 = vmatmul.mubr.bf16.gmra.mrb[0].mxu0 %v1199
  %v7618 = vpop.f32.mrb[0].mxu0
  %v7619 = vadd.f32 %v7578, %v7618
  %v7620 = vpop.f32.mrb[0].mxu0
  %v7621 = vadd.f32 %v7580, %v7620
  %v7622 = vpop.f32.mrb[0].mxu0
  %v7623 = vpop.f32.mrb[0].mxu0
  %7624 = vdwg.mxu0
  %7625 = vmatprep.subr.bf16.mxu0 %v5209
  %7626 = vmatpush1.bf16.msra.mxu0 %v5208
  %7627 = vmatprep.subr.bf16.mxu0 %v5217
  %7628 = vmatpush1.bf16.msra.mxu0 %v5216
  %7629 = vmatprep.subr.bf16.mxu0 %v5225
  %7630 = vmatpush1.bf16.msra.mxu0 %v5224
  %7631 = vmatprep.subr.bf16.mxu0 %v5233
  %7632 = vmatpush1.bf16.msra.mxu0 %v5232
  %7633 = vmatprep.subr.bf16.mxu0 %v5241
  %7634 = vmatpush1.bf16.msra.mxu0 %v5240
  %7635 = vmatprep.subr.bf16.mxu0 %v5249
  %7636 = vmatpush1.bf16.msra.mxu0 %v5248
  %7637 = vmatprep.subr.bf16.mxu0 %v5257
  %7638 = vmatpush1.bf16.msra.mxu0 %v5256
  %7639 = vmatprep.subr.bf16.mxu0 %v5265
  %7640 = vmatpush1.bf16.msra.mxu0 %v5264
  %7641 = vmatprep.subr.bf16.mxu0 %v5273
  %7642 = vmatpush1.bf16.msra.mxu0 %v5272
  %7643 = vmatprep.subr.bf16.mxu0 %v5281
  %7644 = vmatpush1.bf16.msra.mxu0 %v5280
  %7645 = vmatprep.subr.bf16.mxu0 %v5289
  %7646 = vmatpush1.bf16.msra.mxu0 %v5288
  %7647 = vmatprep.subr.bf16.mxu0 %v5297
  %7648 = vmatpush1.bf16.msra.mxu0 %v5296
  %7649 = vmatprep.subr.bf16.mxu0 %v5305
  %7650 = vmatpush1.bf16.msra.mxu0 %v5304
  %7651 = vmatprep.subr.bf16.mxu0 %v5313
  %7652 = vmatpush1.bf16.msra.mxu0 %v5312
  %7653 = vmatprep.subr.bf16.mxu0 %v5321
  %7654 = vmatpush1.bf16.msra.mxu0 %v5320
  %7655 = vmatprep.subr.bf16.mxu0 %v5329
  %7656 = vmatpush1.bf16.msra.mxu0 %v5328
  %7657 = vmatprep.mubr.bf16.mxu0 %v1217
  %7658 = vmatmul.mubr.bf16.gmra.mrb[0].mxu0 %v1215
  %v7659 = vpop.f32.mrb[0].mxu0
  %v7660 = vadd.f32 %v7619, %v7659
  %v7661 = vpop.f32.mrb[0].mxu0
  %v7662 = vadd.f32 %v7621, %v7661
  %v7663 = vpop.f32.mrb[0].mxu0
  %v7664 = vpop.f32.mrb[0].mxu0
  %7665 = vdwg.mxu0
  %vm7666 = vcmp.ge.f32.partialorder %v6676, 0.0
  %vm7667 = vcmp.ge.f32.partialorder %v6678, 0.0
  %vm7668 = vcmp.ge.f32.partialorder %v7004, 0.0
  %vm7669 = vcmp.ge.f32.partialorder %v7006, 0.0
  %vm7670 = vcmp.ge.f32.partialorder %v7332, 0.0
  %vm7671 = vcmp.ge.f32.partialorder %v7334, 0.0
  %vm7672 = vcmp.ge.f32.partialorder %v7660, 0.0
  %vm7673 = vcmp.ge.f32.partialorder %v7662, 0.0
  %v7674 = vmul.f32 %v6676, 0.01
  %v7675 = vmul.f32 %v6678, 0.01
  %v7676 = vmul.f32 %v7004, 0.01
  %v7677 = vmul.f32 %v7006, 0.01
  %v7678 = vmul.f32 %v7332, 0.01
  %v7679 = vmul.f32 %v7334, 0.01
  %v7680 = vmul.f32 %v7660, 0.01
  %v7681 = vmul.f32 %v7662, 0.01
  %v7682 = vsel %vm7666, %v6676, %v7674
  %v7683 = vsel %vm7667, %v6678, %v7675
  %v7684 = vsel %vm7668, %v7004, %v7676
  %v7685 = vsel %vm7669, %v7006, %v7677
  %v7686 = vsel %vm7670, %v7332, %v7678
  %v7687 = vsel %vm7671, %v7334, %v7679
  %v7688 = vsel %vm7672, %v7660, %v7680
  %v7689 = vsel %vm7673, %v7662, %v7681
  %v7690 = vpack.c.bf16 %v7682, %v7682
  %v7691 = vpack.c.bf16 %v7683, %v7683
  %v7692 = vpack.c.bf16 %v7684, %v7684
  %v7693 = vpack.c.bf16 %v7685, %v7685
  %v7694 = vpack.c.bf16 %v7686, %v7686
  %v7695 = vpack.c.bf16 %v7687, %v7687
  %v7696 = vpack.c.bf16 %v7688, %v7688
  %v7697 = vpack.c.bf16 %v7689, %v7689
  %v7698 = vld [vmem:[%s3] sm:$0xff]
  %v7699 = vld [vmem:[%s3 + $0x8] sm:$0xff]
  %v7700 = vld [vmem:[%s3 + $0x10] sm:$0xff]
  %v7701 = vld [vmem:[%s3 + $0x18] sm:$0xff]
  %v7702 = vld [vmem:[%s3 + $0x20] sm:$0xff]
  %v7703 = vld [vmem:[%s3 + $0x28] sm:$0xff]
  %v7704 = vld [vmem:[%s3 + $0x30] sm:$0xff]
  %v7705 = vld [vmem:[%s3 + $0x38] sm:$0xff]
  %v7706 = vld [vmem:[%s3 + $0x40] sm:$0xff]
  %v7707 = vld [vmem:[%s3 + $0x48] sm:$0xff]
  %v7708 = vld [vmem:[%s3 + $0x50] sm:$0xff]
  %v7709 = vld [vmem:[%s3 + $0x58] sm:$0xff]
  %v7710 = vld [vmem:[%s3 + $0x60] sm:$0xff]
  %v7711 = vld [vmem:[%s3 + $0x68] sm:$0xff]
  %v7712 = vld [vmem:[%s3 + $0x70] sm:$0xff]
  %v7713 = vld [vmem:[%s3 + $0x78] sm:$0xff]
  %v7714 = vld [vmem:[%s3 + $0x80] sm:$0xff]
  %v7715 = vld [vmem:[%s3 + $0x88] sm:$0xff]
  %v7716 = vld [vmem:[%s3 + $0x90] sm:$0xff]
  %v7717 = vld [vmem:[%s3 + $0x98] sm:$0xff]
  %v7718 = vld [vmem:[%s3 + $0xa0] sm:$0xff]
  %v7719 = vld [vmem:[%s3 + $0xa8] sm:$0xff]
  %v7720 = vld [vmem:[%s3 + $0xb0] sm:$0xff]
  %v7721 = vld [vmem:[%s3 + $0xb8] sm:$0xff]
  %v7722 = vld [vmem:[%s3 + $0xc0] sm:$0xff]
  %v7723 = vld [vmem:[%s3 + $0xc8] sm:$0xff]
  %v7724 = vld [vmem:[%s3 + $0xd0] sm:$0xff]
  %v7725 = vld [vmem:[%s3 + $0xd8] sm:$0xff]
  %v7726 = vld [vmem:[%s3 + $0xe0] sm:$0xff]
  %v7727 = vld [vmem:[%s3 + $0xe8] sm:$0xff]
  %v7728 = vld [vmem:[%s3 + $0xf0] sm:$0xff]
  %v7729 = vld [vmem:[%s3 + $0xf8] sm:$0xff]
  %v7730 = vld [vmem:[%s3 + $0x100] sm:$0xff]
  %v7731 = vld [vmem:[%s3 + $0x108] sm:$0xff]
  %v7732 = vld [vmem:[%s3 + $0x110] sm:$0xff]
  %v7733 = vld [vmem:[%s3 + $0x118] sm:$0xff]
  %v7734 = vld [vmem:[%s3 + $0x120] sm:$0xff]
  %v7735 = vld [vmem:[%s3 + $0x128] sm:$0xff]
  %v7736 = vld [vmem:[%s3 + $0x130] sm:$0xff]
  %v7737 = vld [vmem:[%s3 + $0x138] sm:$0xff]
  %v7738 = vld [vmem:[%s3 + $0x140] sm:$0xff]
  %v7739 = vld [vmem:[%s3 + $0x148] sm:$0xff]
  %v7740 = vld [vmem:[%s3 + $0x150] sm:$0xff]
  %v7741 = vld [vmem:[%s3 + $0x158] sm:$0xff]
  %v7742 = vld [vmem:[%s3 + $0x160] sm:$0xff]
  %v7743 = vld [vmem:[%s3 + $0x168] sm:$0xff]
  %v7744 = vld [vmem:[%s3 + $0x170] sm:$0xff]
  %v7745 = vld [vmem:[%s3 + $0x178] sm:$0xff]
  %v7746 = vld [vmem:[%s3 + $0x180] sm:$0xff]
  %v7747 = vld [vmem:[%s3 + $0x188] sm:$0xff]
  %v7748 = vld [vmem:[%s3 + $0x190] sm:$0xff]
  %v7749 = vld [vmem:[%s3 + $0x198] sm:$0xff]
  %v7750 = vld [vmem:[%s3 + $0x1a0] sm:$0xff]
  %v7751 = vld [vmem:[%s3 + $0x1a8] sm:$0xff]
  %v7752 = vld [vmem:[%s3 + $0x1b0] sm:$0xff]
  %v7753 = vld [vmem:[%s3 + $0x1b8] sm:$0xff]
  %v7754 = vld [vmem:[%s3 + $0x1c0] sm:$0xff]
  %v7755 = vld [vmem:[%s3 + $0x1c8] sm:$0xff]
  %v7756 = vld [vmem:[%s3 + $0x1d0] sm:$0xff]
  %v7757 = vld [vmem:[%s3 + $0x1d8] sm:$0xff]
  %v7758 = vld [vmem:[%s3 + $0x1e0] sm:$0xff]
  %v7759 = vld [vmem:[%s3 + $0x1e8] sm:$0xff]
  %v7760 = vld [vmem:[%s3 + $0x1f0] sm:$0xff]
  %v7761 = vld [vmem:[%s3 + $0x1f8] sm:$0xff]
  %v7762 = vld [vmem:[%s3 + $0x200] sm:$0xff]
  %v7763 = vld [vmem:[%s3 + $0x208] sm:$0xff]
  %v7764 = vld [vmem:[%s3 + $0x210] sm:$0xff]
  %v7765 = vld [vmem:[%s3 + $0x218] sm:$0xff]
  %v7766 = vld [vmem:[%s3 + $0x220] sm:$0xff]
  %v7767 = vld [vmem:[%s3 + $0x228] sm:$0xff]
  %v7768 = vld [vmem:[%s3 + $0x230] sm:$0xff]
  %v7769 = vld [vmem:[%s3 + $0x238] sm:$0xff]
  %v7770 = vld [vmem:[%s3 + $0x240] sm:$0xff]
  %v7771 = vld [vmem:[%s3 + $0x248] sm:$0xff]
  %v7772 = vld [vmem:[%s3 + $0x250] sm:$0xff]
  %v7773 = vld [vmem:[%s3 + $0x258] sm:$0xff]
  %v7774 = vld [vmem:[%s3 + $0x260] sm:$0xff]
  %v7775 = vld [vmem:[%s3 + $0x268] sm:$0xff]
  %v7776 = vld [vmem:[%s3 + $0x270] sm:$0xff]
  %v7777 = vld [vmem:[%s3 + $0x278] sm:$0xff]
  %v7778 = vld [vmem:[%s3 + $0x280] sm:$0xff]
  %v7779 = vld [vmem:[%s3 + $0x288] sm:$0xff]
  %v7780 = vld [vmem:[%s3 + $0x290] sm:$0xff]
  %v7781 = vld [vmem:[%s3 + $0x298] sm:$0xff]
  %v7782 = vld [vmem:[%s3 + $0x2a0] sm:$0xff]
  %v7783 = vld [vmem:[%s3 + $0x2a8] sm:$0xff]
  %v7784 = vld [vmem:[%s3 + $0x2b0] sm:$0xff]
  %v7785 = vld [vmem:[%s3 + $0x2b8] sm:$0xff]
  %v7786 = vld [vmem:[%s3 + $0x2c0] sm:$0xff]
  %v7787 = vld [vmem:[%s3 + $0x2c8] sm:$0xff]
  %v7788 = vld [vmem:[%s3 + $0x2d0] sm:$0xff]
  %v7789 = vld [vmem:[%s3 + $0x2d8] sm:$0xff]
  %v7790 = vld [vmem:[%s3 + $0x2e0] sm:$0xff]
  %v7791 = vld [vmem:[%s3 + $0x2e8] sm:$0xff]
  %v7792 = vld [vmem:[%s3 + $0x2f0] sm:$0xff]
  %v7793 = vld [vmem:[%s3 + $0x2f8] sm:$0xff]
  %v7794 = vld [vmem:[%s3 + $0x300] sm:$0xff]
  %v7795 = vld [vmem:[%s3 + $0x308] sm:$0xff]
  %v7796 = vld [vmem:[%s3 + $0x310] sm:$0xff]
  %v7797 = vld [vmem:[%s3 + $0x318] sm:$0xff]
  %v7798 = vld [vmem:[%s3 + $0x320] sm:$0xff]
  %v7799 = vld [vmem:[%s3 + $0x328] sm:$0xff]
  %v7800 = vld [vmem:[%s3 + $0x330] sm:$0xff]
  %v7801 = vld [vmem:[%s3 + $0x338] sm:$0xff]
  %v7802 = vld [vmem:[%s3 + $0x340] sm:$0xff]
  %v7803 = vld [vmem:[%s3 + $0x348] sm:$0xff]
  %v7804 = vld [vmem:[%s3 + $0x350] sm:$0xff]
  %v7805 = vld [vmem:[%s3 + $0x358] sm:$0xff]
  %v7806 = vld [vmem:[%s3 + $0x360] sm:$0xff]
  %v7807 = vld [vmem:[%s3 + $0x368] sm:$0xff]
  %v7808 = vld [vmem:[%s3 + $0x370] sm:$0xff]
  %v7809 = vld [vmem:[%s3 + $0x378] sm:$0xff]
  %v7810 = vld [vmem:[%s3 + $0x380] sm:$0xff]
  %v7811 = vld [vmem:[%s3 + $0x388] sm:$0xff]
  %v7812 = vld [vmem:[%s3 + $0x390] sm:$0xff]
  %v7813 = vld [vmem:[%s3 + $0x398] sm:$0xff]
  %v7814 = vld [vmem:[%s3 + $0x3a0] sm:$0xff]
  %v7815 = vld [vmem:[%s3 + $0x3a8] sm:$0xff]
  %v7816 = vld [vmem:[%s3 + $0x3b0] sm:$0xff]
  %v7817 = vld [vmem:[%s3 + $0x3b8] sm:$0xff]
  %v7818 = vld [vmem:[%s3 + $0x3c0] sm:$0xff]
  %v7819 = vld [vmem:[%s3 + $0x3c8] sm:$0xff]
  %v7820 = vld [vmem:[%s3 + $0x3d0] sm:$0xff]
  %v7821 = vld [vmem:[%s3 + $0x3d8] sm:$0xff]
  %v7822 = vld [vmem:[%s3 + $0x3e0] sm:$0xff]
  %v7823 = vld [vmem:[%s3 + $0x3e8] sm:$0xff]
  %v7824 = vld [vmem:[%s3 + $0x3f0] sm:$0xff]
  %v7825 = vld [vmem:[%s3 + $0x3f8] sm:$0xff]
  %v7826 = vld [vmem:[%s3 + $0x400] sm:$0xff]
  %v7827 = vld [vmem:[%s3 + $0x408] sm:$0xff]
  %v7828 = vld [vmem:[%s3 + $0x410] sm:$0xff]
  %v7829 = vld [vmem:[%s3 + $0x418] sm:$0xff]
  %v7830 = vld [vmem:[%s3 + $0x420] sm:$0xff]
  %v7831 = vld [vmem:[%s3 + $0x428] sm:$0xff]
  %v7832 = vld [vmem:[%s3 + $0x430] sm:$0xff]
  %v7833 = vld [vmem:[%s3 + $0x438] sm:$0xff]
  %v7834 = vld [vmem:[%s3 + $0x440] sm:$0xff]
  %v7835 = vld [vmem:[%s3 + $0x448] sm:$0xff]
  %v7836 = vld [vmem:[%s3 + $0x450] sm:$0xff]
  %v7837 = vld [vmem:[%s3 + $0x458] sm:$0xff]
  %v7838 = vld [vmem:[%s3 + $0x460] sm:$0xff]
  %v7839 = vld [vmem:[%s3 + $0x468] sm:$0xff]
  %v7840 = vld [vmem:[%s3 + $0x470] sm:$0xff]
  %v7841 = vld [vmem:[%s3 + $0x478] sm:$0xff]
  %v7842 = vld [vmem:[%s3 + $0x480] sm:$0xff]
  %v7843 = vld [vmem:[%s3 + $0x488] sm:$0xff]
  %v7844 = vld [vmem:[%s3 + $0x490] sm:$0xff]
  %v7845 = vld [vmem:[%s3 + $0x498] sm:$0xff]
  %v7846 = vld [vmem:[%s3 + $0x4a0] sm:$0xff]
  %v7847 = vld [vmem:[%s3 + $0x4a8] sm:$0xff]
  %v7848 = vld [vmem:[%s3 + $0x4b0] sm:$0xff]
  %v7849 = vld [vmem:[%s3 + $0x4b8] sm:$0xff]
  %v7850 = vld [vmem:[%s3 + $0x4c0] sm:$0xff]
  %v7851 = vld [vmem:[%s3 + $0x4c8] sm:$0xff]
  %v7852 = vld [vmem:[%s3 + $0x4d0] sm:$0xff]
  %v7853 = vld [vmem:[%s3 + $0x4d8] sm:$0xff]
  %v7854 = vld [vmem:[%s3 + $0x4e0] sm:$0xff]
  %v7855 = vld [vmem:[%s3 + $0x4e8] sm:$0xff]
  %v7856 = vld [vmem:[%s3 + $0x4f0] sm:$0xff]
  %v7857 = vld [vmem:[%s3 + $0x4f8] sm:$0xff]
  %v7858 = vld [vmem:[%s3 + $0x500] sm:$0xff]
  %v7859 = vld [vmem:[%s3 + $0x508] sm:$0xff]
  %v7860 = vld [vmem:[%s3 + $0x510] sm:$0xff]
  %v7861 = vld [vmem:[%s3 + $0x518] sm:$0xff]
  %v7862 = vld [vmem:[%s3 + $0x520] sm:$0xff]
  %v7863 = vld [vmem:[%s3 + $0x528] sm:$0xff]
  %v7864 = vld [vmem:[%s3 + $0x530] sm:$0xff]
  %v7865 = vld [vmem:[%s3 + $0x538] sm:$0xff]
  %v7866 = vld [vmem:[%s3 + $0x540] sm:$0xff]
  %v7867 = vld [vmem:[%s3 + $0x548] sm:$0xff]
  %v7868 = vld [vmem:[%s3 + $0x550] sm:$0xff]
  %v7869 = vld [vmem:[%s3 + $0x558] sm:$0xff]
  %v7870 = vld [vmem:[%s3 + $0x560] sm:$0xff]
  %v7871 = vld [vmem:[%s3 + $0x568] sm:$0xff]
  %v7872 = vld [vmem:[%s3 + $0x570] sm:$0xff]
  %v7873 = vld [vmem:[%s3 + $0x578] sm:$0xff]
  %v7874 = vld [vmem:[%s3 + $0x580] sm:$0xff]
  %v7875 = vld [vmem:[%s3 + $0x588] sm:$0xff]
  %v7876 = vld [vmem:[%s3 + $0x590] sm:$0xff]
  %v7877 = vld [vmem:[%s3 + $0x598] sm:$0xff]
  %v7878 = vld [vmem:[%s3 + $0x5a0] sm:$0xff]
  %v7879 = vld [vmem:[%s3 + $0x5a8] sm:$0xff]
  %v7880 = vld [vmem:[%s3 + $0x5b0] sm:$0xff]
  %v7881 = vld [vmem:[%s3 + $0x5b8] sm:$0xff]
  %v7882 = vld [vmem:[%s3 + $0x5c0] sm:$0xff]
  %v7883 = vld [vmem:[%s3 + $0x5c8] sm:$0xff]
  %v7884 = vld [vmem:[%s3 + $0x5d0] sm:$0xff]
  %v7885 = vld [vmem:[%s3 + $0x5d8] sm:$0xff]
  %v7886 = vld [vmem:[%s3 + $0x5e0] sm:$0xff]
  %v7887 = vld [vmem:[%s3 + $0x5e8] sm:$0xff]
  %v7888 = vld [vmem:[%s3 + $0x5f0] sm:$0xff]
  %v7889 = vld [vmem:[%s3 + $0x5f8] sm:$0xff]
  %v7890 = vld [vmem:[%s3 + $0x600] sm:$0xff]
  %v7891 = vld [vmem:[%s3 + $0x608] sm:$0xff]
  %v7892 = vld [vmem:[%s3 + $0x610] sm:$0xff]
  %v7893 = vld [vmem:[%s3 + $0x618] sm:$0xff]
  %v7894 = vld [vmem:[%s3 + $0x620] sm:$0xff]
  %v7895 = vld [vmem:[%s3 + $0x628] sm:$0xff]
  %v7896 = vld [vmem:[%s3 + $0x630] sm:$0xff]
  %v7897 = vld [vmem:[%s3 + $0x638] sm:$0xff]
  %v7898 = vld [vmem:[%s3 + $0x640] sm:$0xff]
  %v7899 = vld [vmem:[%s3 + $0x648] sm:$0xff]
  %v7900 = vld [vmem:[%s3 + $0x650] sm:$0xff]
  %v7901 = vld [vmem:[%s3 + $0x658] sm:$0xff]
  %v7902 = vld [vmem:[%s3 + $0x660] sm:$0xff]
  %v7903 = vld [vmem:[%s3 + $0x668] sm:$0xff]
  %v7904 = vld [vmem:[%s3 + $0x670] sm:$0xff]
  %v7905 = vld [vmem:[%s3 + $0x678] sm:$0xff]
  %v7906 = vld [vmem:[%s3 + $0x680] sm:$0xff]
  %v7907 = vld [vmem:[%s3 + $0x688] sm:$0xff]
  %v7908 = vld [vmem:[%s3 + $0x690] sm:$0xff]
  %v7909 = vld [vmem:[%s3 + $0x698] sm:$0xff]
  %v7910 = vld [vmem:[%s3 + $0x6a0] sm:$0xff]
  %v7911 = vld [vmem:[%s3 + $0x6a8] sm:$0xff]
  %v7912 = vld [vmem:[%s3 + $0x6b0] sm:$0xff]
  %v7913 = vld [vmem:[%s3 + $0x6b8] sm:$0xff]
  %v7914 = vld [vmem:[%s3 + $0x6c0] sm:$0xff]
  %v7915 = vld [vmem:[%s3 + $0x6c8] sm:$0xff]
  %v7916 = vld [vmem:[%s3 + $0x6d0] sm:$0xff]
  %v7917 = vld [vmem:[%s3 + $0x6d8] sm:$0xff]
  %v7918 = vld [vmem:[%s3 + $0x6e0] sm:$0xff]
  %v7919 = vld [vmem:[%s3 + $0x6e8] sm:$0xff]
  %v7920 = vld [vmem:[%s3 + $0x6f0] sm:$0xff]
  %v7921 = vld [vmem:[%s3 + $0x6f8] sm:$0xff]
  %v7922 = vld [vmem:[%s3 + $0x700] sm:$0xff]
  %v7923 = vld [vmem:[%s3 + $0x708] sm:$0xff]
  %v7924 = vld [vmem:[%s3 + $0x710] sm:$0xff]
  %v7925 = vld [vmem:[%s3 + $0x718] sm:$0xff]
  %v7926 = vld [vmem:[%s3 + $0x720] sm:$0xff]
  %v7927 = vld [vmem:[%s3 + $0x728] sm:$0xff]
  %v7928 = vld [vmem:[%s3 + $0x730] sm:$0xff]
  %v7929 = vld [vmem:[%s3 + $0x738] sm:$0xff]
  %v7930 = vld [vmem:[%s3 + $0x740] sm:$0xff]
  %v7931 = vld [vmem:[%s3 + $0x748] sm:$0xff]
  %v7932 = vld [vmem:[%s3 + $0x750] sm:$0xff]
  %v7933 = vld [vmem:[%s3 + $0x758] sm:$0xff]
  %v7934 = vld [vmem:[%s3 + $0x760] sm:$0xff]
  %v7935 = vld [vmem:[%s3 + $0x768] sm:$0xff]
  %v7936 = vld [vmem:[%s3 + $0x770] sm:$0xff]
  %v7937 = vld [vmem:[%s3 + $0x778] sm:$0xff]
  %v7938 = vld [vmem:[%s3 + $0x780] sm:$0xff]
  %v7939 = vld [vmem:[%s3 + $0x788] sm:$0xff]
  %v7940 = vld [vmem:[%s3 + $0x790] sm:$0xff]
  %v7941 = vld [vmem:[%s3 + $0x798] sm:$0xff]
  %v7942 = vld [vmem:[%s3 + $0x7a0] sm:$0xff]
  %v7943 = vld [vmem:[%s3 + $0x7a8] sm:$0xff]
  %v7944 = vld [vmem:[%s3 + $0x7b0] sm:$0xff]
  %v7945 = vld [vmem:[%s3 + $0x7b8] sm:$0xff]
  %v7946 = vld [vmem:[%s3 + $0x7c0] sm:$0xff]
  %v7947 = vld [vmem:[%s3 + $0x7c8] sm:$0xff]
  %v7948 = vld [vmem:[%s3 + $0x7d0] sm:$0xff]
  %v7949 = vld [vmem:[%s3 + $0x7d8] sm:$0xff]
  %v7950 = vld [vmem:[%s3 + $0x7e0] sm:$0xff]
  %v7951 = vld [vmem:[%s3 + $0x7e8] sm:$0xff]
  %v7952 = vld [vmem:[%s3 + $0x7f0] sm:$0xff]
  %v7953 = vld [vmem:[%s3 + $0x7f8] sm:$0xff]
  %v7954 = vld [vmem:[%s4] sm:$0xf]
  %v7956 = vlaneseq
  %v7957 = vshrl.u32 %v7956, 7
  %v7958 = vsub.s32 0, %v7957
  %v7959 = vrot.slane %v7954, %v7958
  %v7960 = vlaneseq
  %v7961 = vshrl.u32 %v7960, 7
  %v7962 = vsub.s32 1, %v7961
  %v7963 = vrot.slane %v7954, %v7962
  %v7964 = vlaneseq
  %v7965 = vshrl.u32 %v7964, 7
  %v7966 = vsub.s32 2, %v7965
  %v7967 = vrot.slane %v7954, %v7966
  %v7968 = vlaneseq
  %v7969 = vshrl.u32 %v7968, 7
  %v7970 = vsub.s32 3, %v7969
  %v7971 = vrot.slane %v7954, %v7970
  %v8232 = vunpack.c.l.b16 %v7698
  %v8233 = vunpack.c.h.b16 %v7698
  %v8234 = vunpack.c.l.b16 %v7699
  %v8235 = vunpack.c.h.b16 %v7699
  %v8236 = vunpack.c.l.b16 %v7700
  %v8237 = vunpack.c.h.b16 %v7700
  %v8238 = vunpack.c.l.b16 %v7701
  %v8239 = vunpack.c.h.b16 %v7701
  %v8240 = vunpack.c.l.b16 %v7702
  %v8241 = vunpack.c.h.b16 %v7702
  %v8242 = vunpack.c.l.b16 %v7703
  %v8243 = vunpack.c.h.b16 %v7703
  %v8244 = vunpack.c.l.b16 %v7704
  %v8245 = vunpack.c.h.b16 %v7704
  %v8246 = vunpack.c.l.b16 %v7705
  %v8247 = vunpack.c.h.b16 %v7705
  %v8248 = vunpack.c.l.b16 %v7706
  %v8249 = vunpack.c.h.b16 %v7706
  %v8250 = vunpack.c.l.b16 %v7707
  %v8251 = vunpack.c.h.b16 %v7707
  %v8252 = vunpack.c.l.b16 %v7708
  %v8253 = vunpack.c.h.b16 %v7708
  %v8254 = vunpack.c.l.b16 %v7709
  %v8255 = vunpack.c.h.b16 %v7709
  %v8256 = vunpack.c.l.b16 %v7710
  %v8257 = vunpack.c.h.b16 %v7710
  %v8258 = vunpack.c.l.b16 %v7711
  %v8259 = vunpack.c.h.b16 %v7711
  %v8260 = vunpack.c.l.b16 %v7712
  %v8261 = vunpack.c.h.b16 %v7712
  %v8262 = vunpack.c.l.b16 %v7713
  %v8263 = vunpack.c.h.b16 %v7713
  %v8264 = vunpack.c.l.b16 %v7714
  %v8265 = vunpack.c.h.b16 %v7714
  %v8266 = vunpack.c.l.b16 %v7715
  %v8267 = vunpack.c.h.b16 %v7715
  %v8268 = vunpack.c.l.b16 %v7716
  %v8269 = vunpack.c.h.b16 %v7716
  %v8270 = vunpack.c.l.b16 %v7717
  %v8271 = vunpack.c.h.b16 %v7717
  %v8272 = vunpack.c.l.b16 %v7718
  %v8273 = vunpack.c.h.b16 %v7718
  %v8274 = vunpack.c.l.b16 %v7719
  %v8275 = vunpack.c.h.b16 %v7719
  %v8276 = vunpack.c.l.b16 %v7720
  %v8277 = vunpack.c.h.b16 %v7720
  %v8278 = vunpack.c.l.b16 %v7721
  %v8279 = vunpack.c.h.b16 %v7721
  %v8280 = vunpack.c.l.b16 %v7722
  %v8281 = vunpack.c.h.b16 %v7722
  %v8282 = vunpack.c.l.b16 %v7723
  %v8283 = vunpack.c.h.b16 %v7723
  %v8284 = vunpack.c.l.b16 %v7724
  %v8285 = vunpack.c.h.b16 %v7724
  %v8286 = vunpack.c.l.b16 %v7725
  %v8287 = vunpack.c.h.b16 %v7725
  %v8288 = vunpack.c.l.b16 %v7726
  %v8289 = vunpack.c.h.b16 %v7726
  %v8290 = vunpack.c.l.b16 %v7727
  %v8291 = vunpack.c.h.b16 %v7727
  %v8292 = vunpack.c.l.b16 %v7728
  %v8293 = vunpack.c.h.b16 %v7728
  %v8294 = vunpack.c.l.b16 %v7729
  %v8295 = vunpack.c.h.b16 %v7729
  %v8296 = vunpack.c.l.b16 %v7730
  %v8297 = vunpack.c.h.b16 %v7730
  %v8298 = vunpack.c.l.b16 %v7731
  %v8299 = vunpack.c.h.b16 %v7731
  %v8300 = vunpack.c.l.b16 %v7732
  %v8301 = vunpack.c.h.b16 %v7732
  %v8302 = vunpack.c.l.b16 %v7733
  %v8303 = vunpack.c.h.b16 %v7733
  %v8304 = vunpack.c.l.b16 %v7734
  %v8305 = vunpack.c.h.b16 %v7734
  %v8306 = vunpack.c.l.b16 %v7735
  %v8307 = vunpack.c.h.b16 %v7735
  %v8308 = vunpack.c.l.b16 %v7736
  %v8309 = vunpack.c.h.b16 %v7736
  %v8310 = vunpack.c.l.b16 %v7737
  %v8311 = vunpack.c.h.b16 %v7737
  %v8312 = vunpack.c.l.b16 %v7738
  %v8313 = vunpack.c.h.b16 %v7738
  %v8314 = vunpack.c.l.b16 %v7739
  %v8315 = vunpack.c.h.b16 %v7739
  %v8316 = vunpack.c.l.b16 %v7740
  %v8317 = vunpack.c.h.b16 %v7740
  %v8318 = vunpack.c.l.b16 %v7741
  %v8319 = vunpack.c.h.b16 %v7741
  %v8320 = vunpack.c.l.b16 %v7742
  %v8321 = vunpack.c.h.b16 %v7742
  %v8322 = vunpack.c.l.b16 %v7743
  %v8323 = vunpack.c.h.b16 %v7743
  %v8324 = vunpack.c.l.b16 %v7744
  %v8325 = vunpack.c.h.b16 %v7744
  %v8326 = vunpack.c.l.b16 %v7745
  %v8327 = vunpack.c.h.b16 %v7745
  %v8328 = vunpack.c.l.b16 %v7746
  %v8329 = vunpack.c.h.b16 %v7746
  %v8330 = vunpack.c.l.b16 %v7747
  %v8331 = vunpack.c.h.b16 %v7747
  %v8332 = vunpack.c.l.b16 %v7748
  %v8333 = vunpack.c.h.b16 %v7748
  %v8334 = vunpack.c.l.b16 %v7749
  %v8335 = vunpack.c.h.b16 %v7749
  %v8336 = vunpack.c.l.b16 %v7750
  %v8337 = vunpack.c.h.b16 %v7750
  %v8338 = vunpack.c.l.b16 %v7751
  %v8339 = vunpack.c.h.b16 %v7751
  %v8340 = vunpack.c.l.b16 %v7752
  %v8341 = vunpack.c.h.b16 %v7752
  %v8342 = vunpack.c.l.b16 %v7753
  %v8343 = vunpack.c.h.b16 %v7753
  %v8344 = vunpack.c.l.b16 %v7754
  %v8345 = vunpack.c.h.b16 %v7754
  %v8346 = vunpack.c.l.b16 %v7755
  %v8347 = vunpack.c.h.b16 %v7755
  %v8348 = vunpack.c.l.b16 %v7756
  %v8349 = vunpack.c.h.b16 %v7756
  %v8350 = vunpack.c.l.b16 %v7757
  %v8351 = vunpack.c.h.b16 %v7757
  %v8352 = vunpack.c.l.b16 %v7758
  %v8353 = vunpack.c.h.b16 %v7758
  %v8354 = vunpack.c.l.b16 %v7759
  %v8355 = vunpack.c.h.b16 %v7759
  %v8356 = vunpack.c.l.b16 %v7760
  %v8357 = vunpack.c.h.b16 %v7760
  %v8358 = vunpack.c.l.b16 %v7761
  %v8359 = vunpack.c.h.b16 %v7761
  %v8360 = vunpack.c.l.b16 %v7762
  %v8361 = vunpack.c.h.b16 %v7762
  %v8362 = vunpack.c.l.b16 %v7763
  %v8363 = vunpack.c.h.b16 %v7763
  %v8364 = vunpack.c.l.b16 %v7764
  %v8365 = vunpack.c.h.b16 %v7764
  %v8366 = vunpack.c.l.b16 %v7765
  %v8367 = vunpack.c.h.b16 %v7765
  %v8368 = vunpack.c.l.b16 %v7766
  %v8369 = vunpack.c.h.b16 %v7766
  %v8370 = vunpack.c.l.b16 %v7767
  %v8371 = vunpack.c.h.b16 %v7767
  %v8372 = vunpack.c.l.b16 %v7768
  %v8373 = vunpack.c.h.b16 %v7768
  %v8374 = vunpack.c.l.b16 %v7769
  %v8375 = vunpack.c.h.b16 %v7769
  %v8376 = vunpack.c.l.b16 %v7770
  %v8377 = vunpack.c.h.b16 %v7770
  %v8378 = vunpack.c.l.b16 %v7771
  %v8379 = vunpack.c.h.b16 %v7771
  %v8380 = vunpack.c.l.b16 %v7772
  %v8381 = vunpack.c.h.b16 %v7772
  %v8382 = vunpack.c.l.b16 %v7773
  %v8383 = vunpack.c.h.b16 %v7773
  %v8384 = vunpack.c.l.b16 %v7774
  %v8385 = vunpack.c.h.b16 %v7774
  %v8386 = vunpack.c.l.b16 %v7775
  %v8387 = vunpack.c.h.b16 %v7775
  %v8388 = vunpack.c.l.b16 %v7776
  %v8389 = vunpack.c.h.b16 %v7776
  %v8390 = vunpack.c.l.b16 %v7777
  %v8391 = vunpack.c.h.b16 %v7777
  %v8392 = vunpack.c.l.b16 %v7778
  %v8393 = vunpack.c.h.b16 %v7778
  %v8394 = vunpack.c.l.b16 %v7779
  %v8395 = vunpack.c.h.b16 %v7779
  %v8396 = vunpack.c.l.b16 %v7780
  %v8397 = vunpack.c.h.b16 %v7780
  %v8398 = vunpack.c.l.b16 %v7781
  %v8399 = vunpack.c.h.b16 %v7781
  %v8400 = vunpack.c.l.b16 %v7782
  %v8401 = vunpack.c.h.b16 %v7782
  %v8402 = vunpack.c.l.b16 %v7783
  %v8403 = vunpack.c.h.b16 %v7783
  %v8404 = vunpack.c.l.b16 %v7784
  %v8405 = vunpack.c.h.b16 %v7784
  %v8406 = vunpack.c.l.b16 %v7785
  %v8407 = vunpack.c.h.b16 %v7785
  %v8408 = vunpack.c.l.b16 %v7786
  %v8409 = vunpack.c.h.b16 %v7786
  %v8410 = vunpack.c.l.b16 %v7787
  %v8411 = vunpack.c.h.b16 %v7787
  %v8412 = vunpack.c.l.b16 %v7788
  %v8413 = vunpack.c.h.b16 %v7788
  %v8414 = vunpack.c.l.b16 %v7789
  %v8415 = vunpack.c.h.b16 %v7789
  %v8416 = vunpack.c.l.b16 %v7790
  %v8417 = vunpack.c.h.b16 %v7790
  %v8418 = vunpack.c.l.b16 %v7791
  %v8419 = vunpack.c.h.b16 %v7791
  %v8420 = vunpack.c.l.b16 %v7792
  %v8421 = vunpack.c.h.b16 %v7792
  %v8422 = vunpack.c.l.b16 %v7793
  %v8423 = vunpack.c.h.b16 %v7793
  %v8424 = vunpack.c.l.b16 %v7794
  %v8425 = vunpack.c.h.b16 %v7794
  %v8426 = vunpack.c.l.b16 %v7795
  %v8427 = vunpack.c.h.b16 %v7795
  %v8428 = vunpack.c.l.b16 %v7796
  %v8429 = vunpack.c.h.b16 %v7796
  %v8430 = vunpack.c.l.b16 %v7797
  %v8431 = vunpack.c.h.b16 %v7797
  %v8432 = vunpack.c.l.b16 %v7798
  %v8433 = vunpack.c.h.b16 %v7798
  %v8434 = vunpack.c.l.b16 %v7799
  %v8435 = vunpack.c.h.b16 %v7799
  %v8436 = vunpack.c.l.b16 %v7800
  %v8437 = vunpack.c.h.b16 %v7800
  %v8438 = vunpack.c.l.b16 %v7801
  %v8439 = vunpack.c.h.b16 %v7801
  %v8440 = vunpack.c.l.b16 %v7802
  %v8441 = vunpack.c.h.b16 %v7802
  %v8442 = vunpack.c.l.b16 %v7803
  %v8443 = vunpack.c.h.b16 %v7803
  %v8444 = vunpack.c.l.b16 %v7804
  %v8445 = vunpack.c.h.b16 %v7804
  %v8446 = vunpack.c.l.b16 %v7805
  %v8447 = vunpack.c.h.b16 %v7805
  %v8448 = vunpack.c.l.b16 %v7806
  %v8449 = vunpack.c.h.b16 %v7806
  %v8450 = vunpack.c.l.b16 %v7807
  %v8451 = vunpack.c.h.b16 %v7807
  %v8452 = vunpack.c.l.b16 %v7808
  %v8453 = vunpack.c.h.b16 %v7808
  %v8454 = vunpack.c.l.b16 %v7809
  %v8455 = vunpack.c.h.b16 %v7809
  %v8456 = vunpack.c.l.b16 %v7810
  %v8457 = vunpack.c.h.b16 %v7810
  %v8458 = vunpack.c.l.b16 %v7811
  %v8459 = vunpack.c.h.b16 %v7811
  %v8460 = vunpack.c.l.b16 %v7812
  %v8461 = vunpack.c.h.b16 %v7812
  %v8462 = vunpack.c.l.b16 %v7813
  %v8463 = vunpack.c.h.b16 %v7813
  %v8464 = vunpack.c.l.b16 %v7814
  %v8465 = vunpack.c.h.b16 %v7814
  %v8466 = vunpack.c.l.b16 %v7815
  %v8467 = vunpack.c.h.b16 %v7815
  %v8468 = vunpack.c.l.b16 %v7816
  %v8469 = vunpack.c.h.b16 %v7816
  %v8470 = vunpack.c.l.b16 %v7817
  %v8471 = vunpack.c.h.b16 %v7817
  %v8472 = vunpack.c.l.b16 %v7818
  %v8473 = vunpack.c.h.b16 %v7818
  %v8474 = vunpack.c.l.b16 %v7819
  %v8475 = vunpack.c.h.b16 %v7819
  %v8476 = vunpack.c.l.b16 %v7820
  %v8477 = vunpack.c.h.b16 %v7820
  %v8478 = vunpack.c.l.b16 %v7821
  %v8479 = vunpack.c.h.b16 %v7821
  %v8480 = vunpack.c.l.b16 %v7822
  %v8481 = vunpack.c.h.b16 %v7822
  %v8482 = vunpack.c.l.b16 %v7823
  %v8483 = vunpack.c.h.b16 %v7823
  %v8484 = vunpack.c.l.b16 %v7824
  %v8485 = vunpack.c.h.b16 %v7824
  %v8486 = vunpack.c.l.b16 %v7825
  %v8487 = vunpack.c.h.b16 %v7825
  %v8488 = vunpack.c.l.b16 %v7826
  %v8489 = vunpack.c.h.b16 %v7826
  %v8490 = vunpack.c.l.b16 %v7827
  %v8491 = vunpack.c.h.b16 %v7827
  %v8492 = vunpack.c.l.b16 %v7828
  %v8493 = vunpack.c.h.b16 %v7828
  %v8494 = vunpack.c.l.b16 %v7829
  %v8495 = vunpack.c.h.b16 %v7829
  %v8496 = vunpack.c.l.b16 %v7830
  %v8497 = vunpack.c.h.b16 %v7830
  %v8498 = vunpack.c.l.b16 %v7831
  %v8499 = vunpack.c.h.b16 %v7831
  %v8500 = vunpack.c.l.b16 %v7832
  %v8501 = vunpack.c.h.b16 %v7832
  %v8502 = vunpack.c.l.b16 %v7833
  %v8503 = vunpack.c.h.b16 %v7833
  %v8504 = vunpack.c.l.b16 %v7834
  %v8505 = vunpack.c.h.b16 %v7834
  %v8506 = vunpack.c.l.b16 %v7835
  %v8507 = vunpack.c.h.b16 %v7835
  %v8508 = vunpack.c.l.b16 %v7836
  %v8509 = vunpack.c.h.b16 %v7836
  %v8510 = vunpack.c.l.b16 %v7837
  %v8511 = vunpack.c.h.b16 %v7837
  %v8512 = vunpack.c.l.b16 %v7838
  %v8513 = vunpack.c.h.b16 %v7838
  %v8514 = vunpack.c.l.b16 %v7839
  %v8515 = vunpack.c.h.b16 %v7839
  %v8516 = vunpack.c.l.b16 %v7840
  %v8517 = vunpack.c.h.b16 %v7840
  %v8518 = vunpack.c.l.b16 %v7841
  %v8519 = vunpack.c.h.b16 %v7841
  %v8520 = vunpack.c.l.b16 %v7842
  %v8521 = vunpack.c.h.b16 %v7842
  %v8522 = vunpack.c.l.b16 %v7843
  %v8523 = vunpack.c.h.b16 %v7843
  %v8524 = vunpack.c.l.b16 %v7844
  %v8525 = vunpack.c.h.b16 %v7844
  %v8526 = vunpack.c.l.b16 %v7845
  %v8527 = vunpack.c.h.b16 %v7845
  %v8528 = vunpack.c.l.b16 %v7846
  %v8529 = vunpack.c.h.b16 %v7846
  %v8530 = vunpack.c.l.b16 %v7847
  %v8531 = vunpack.c.h.b16 %v7847
  %v8532 = vunpack.c.l.b16 %v7848
  %v8533 = vunpack.c.h.b16 %v7848
  %v8534 = vunpack.c.l.b16 %v7849
  %v8535 = vunpack.c.h.b16 %v7849
  %v8536 = vunpack.c.l.b16 %v7850
  %v8537 = vunpack.c.h.b16 %v7850
  %v8538 = vunpack.c.l.b16 %v7851
  %v8539 = vunpack.c.h.b16 %v7851
  %v8540 = vunpack.c.l.b16 %v7852
  %v8541 = vunpack.c.h.b16 %v7852
  %v8542 = vunpack.c.l.b16 %v7853
  %v8543 = vunpack.c.h.b16 %v7853
  %v8544 = vunpack.c.l.b16 %v7854
  %v8545 = vunpack.c.h.b16 %v7854
  %v8546 = vunpack.c.l.b16 %v7855
  %v8547 = vunpack.c.h.b16 %v7855
  %v8548 = vunpack.c.l.b16 %v7856
  %v8549 = vunpack.c.h.b16 %v7856
  %v8550 = vunpack.c.l.b16 %v7857
  %v8551 = vunpack.c.h.b16 %v7857
  %v8552 = vunpack.c.l.b16 %v7858
  %v8553 = vunpack.c.h.b16 %v7858
  %v8554 = vunpack.c.l.b16 %v7859
  %v8555 = vunpack.c.h.b16 %v7859
  %v8556 = vunpack.c.l.b16 %v7860
  %v8557 = vunpack.c.h.b16 %v7860
  %v8558 = vunpack.c.l.b16 %v7861
  %v8559 = vunpack.c.h.b16 %v7861
  %v8560 = vunpack.c.l.b16 %v7862
  %v8561 = vunpack.c.h.b16 %v7862
  %v8562 = vunpack.c.l.b16 %v7863
  %v8563 = vunpack.c.h.b16 %v7863
  %v8564 = vunpack.c.l.b16 %v7864
  %v8565 = vunpack.c.h.b16 %v7864
  %v8566 = vunpack.c.l.b16 %v7865
  %v8567 = vunpack.c.h.b16 %v7865
  %v8568 = vunpack.c.l.b16 %v7866
  %v8569 = vunpack.c.h.b16 %v7866
  %v8570 = vunpack.c.l.b16 %v7867
  %v8571 = vunpack.c.h.b16 %v7867
  %v8572 = vunpack.c.l.b16 %v7868
  %v8573 = vunpack.c.h.b16 %v7868
  %v8574 = vunpack.c.l.b16 %v7869
  %v8575 = vunpack.c.h.b16 %v7869
  %v8576 = vunpack.c.l.b16 %v7870
  %v8577 = vunpack.c.h.b16 %v7870
  %v8578 = vunpack.c.l.b16 %v7871
  %v8579 = vunpack.c.h.b16 %v7871
  %v8580 = vunpack.c.l.b16 %v7872
  %v8581 = vunpack.c.h.b16 %v7872
  %v8582 = vunpack.c.l.b16 %v7873
  %v8583 = vunpack.c.h.b16 %v7873
  %v8584 = vunpack.c.l.b16 %v7874
  %v8585 = vunpack.c.h.b16 %v7874
  %v8586 = vunpack.c.l.b16 %v7875
  %v8587 = vunpack.c.h.b16 %v7875
  %v8588 = vunpack.c.l.b16 %v7876
  %v8589 = vunpack.c.h.b16 %v7876
  %v8590 = vunpack.c.l.b16 %v7877
  %v8591 = vunpack.c.h.b16 %v7877
  %v8592 = vunpack.c.l.b16 %v7878
  %v8593 = vunpack.c.h.b16 %v7878
  %v8594 = vunpack.c.l.b16 %v7879
  %v8595 = vunpack.c.h.b16 %v7879
  %v8596 = vunpack.c.l.b16 %v7880
  %v8597 = vunpack.c.h.b16 %v7880
  %v8598 = vunpack.c.l.b16 %v7881
  %v8599 = vunpack.c.h.b16 %v7881
  %v8600 = vunpack.c.l.b16 %v7882
  %v8601 = vunpack.c.h.b16 %v7882
  %v8602 = vunpack.c.l.b16 %v7883
  %v8603 = vunpack.c.h.b16 %v7883
  %v8604 = vunpack.c.l.b16 %v7884
  %v8605 = vunpack.c.h.b16 %v7884
  %v8606 = vunpack.c.l.b16 %v7885
  %v8607 = vunpack.c.h.b16 %v7885
  %v8608 = vunpack.c.l.b16 %v7886
  %v8609 = vunpack.c.h.b16 %v7886
  %v8610 = vunpack.c.l.b16 %v7887
  %v8611 = vunpack.c.h.b16 %v7887
  %v8612 = vunpack.c.l.b16 %v7888
  %v8613 = vunpack.c.h.b16 %v7888
  %v8614 = vunpack.c.l.b16 %v7889
  %v8615 = vunpack.c.h.b16 %v7889
  %v8616 = vunpack.c.l.b16 %v7890
  %v8617 = vunpack.c.h.b16 %v7890
  %v8618 = vunpack.c.l.b16 %v7891
  %v8619 = vunpack.c.h.b16 %v7891
  %v8620 = vunpack.c.l.b16 %v7892
  %v8621 = vunpack.c.h.b16 %v7892
  %v8622 = vunpack.c.l.b16 %v7893
  %v8623 = vunpack.c.h.b16 %v7893
  %v8624 = vunpack.c.l.b16 %v7894
  %v8625 = vunpack.c.h.b16 %v7894
  %v8626 = vunpack.c.l.b16 %v7895
  %v8627 = vunpack.c.h.b16 %v7895
  %v8628 = vunpack.c.l.b16 %v7896
  %v8629 = vunpack.c.h.b16 %v7896
  %v8630 = vunpack.c.l.b16 %v7897
  %v8631 = vunpack.c.h.b16 %v7897
  %v8632 = vunpack.c.l.b16 %v7898
  %v8633 = vunpack.c.h.b16 %v7898
  %v8634 = vunpack.c.l.b16 %v7899
  %v8635 = vunpack.c.h.b16 %v7899
  %v8636 = vunpack.c.l.b16 %v7900
  %v8637 = vunpack.c.h.b16 %v7900
  %v8638 = vunpack.c.l.b16 %v7901
  %v8639 = vunpack.c.h.b16 %v7901
  %v8640 = vunpack.c.l.b16 %v7902
  %v8641 = vunpack.c.h.b16 %v7902
  %v8642 = vunpack.c.l.b16 %v7903
  %v8643 = vunpack.c.h.b16 %v7903
  %v8644 = vunpack.c.l.b16 %v7904
  %v8645 = vunpack.c.h.b16 %v7904
  %v8646 = vunpack.c.l.b16 %v7905
  %v8647 = vunpack.c.h.b16 %v7905
  %v8648 = vunpack.c.l.b16 %v7906
  %v8649 = vunpack.c.h.b16 %v7906
  %v8650 = vunpack.c.l.b16 %v7907
  %v8651 = vunpack.c.h.b16 %v7907
  %v8652 = vunpack.c.l.b16 %v7908
  %v8653 = vunpack.c.h.b16 %v7908
  %v8654 = vunpack.c.l.b16 %v7909
  %v8655 = vunpack.c.h.b16 %v7909
  %v8656 = vunpack.c.l.b16 %v7910
  %v8657 = vunpack.c.h.b16 %v7910
  %v8658 = vunpack.c.l.b16 %v7911
  %v8659 = vunpack.c.h.b16 %v7911
  %v8660 = vunpack.c.l.b16 %v7912
  %v8661 = vunpack.c.h.b16 %v7912
  %v8662 = vunpack.c.l.b16 %v7913
  %v8663 = vunpack.c.h.b16 %v7913
  %v8664 = vunpack.c.l.b16 %v7914
  %v8665 = vunpack.c.h.b16 %v7914
  %v8666 = vunpack.c.l.b16 %v7915
  %v8667 = vunpack.c.h.b16 %v7915
  %v8668 = vunpack.c.l.b16 %v7916
  %v8669 = vunpack.c.h.b16 %v7916
  %v8670 = vunpack.c.l.b16 %v7917
  %v8671 = vunpack.c.h.b16 %v7917
  %v8672 = vunpack.c.l.b16 %v7918
  %v8673 = vunpack.c.h.b16 %v7918
  %v8674 = vunpack.c.l.b16 %v7919
  %v8675 = vunpack.c.h.b16 %v7919
  %v8676 = vunpack.c.l.b16 %v7920
  %v8677 = vunpack.c.h.b16 %v7920
  %v8678 = vunpack.c.l.b16 %v7921
  %v8679 = vunpack.c.h.b16 %v7921
  %v8680 = vunpack.c.l.b16 %v7922
  %v8681 = vunpack.c.h.b16 %v7922
  %v8682 = vunpack.c.l.b16 %v7923
  %v8683 = vunpack.c.h.b16 %v7923
  %v8684 = vunpack.c.l.b16 %v7924
  %v8685 = vunpack.c.h.b16 %v7924
  %v8686 = vunpack.c.l.b16 %v7925
  %v8687 = vunpack.c.h.b16 %v7925
  %v8688 = vunpack.c.l.b16 %v7926
  %v8689 = vunpack.c.h.b16 %v7926
  %v8690 = vunpack.c.l.b16 %v7927
  %v8691 = vunpack.c.h.b16 %v7927
  %v8692 = vunpack.c.l.b16 %v7928
  %v8693 = vunpack.c.h.b16 %v7928
  %v8694 = vunpack.c.l.b16 %v7929
  %v8695 = vunpack.c.h.b16 %v7929
  %v8696 = vunpack.c.l.b16 %v7930
  %v8697 = vunpack.c.h.b16 %v7930
  %v8698 = vunpack.c.l.b16 %v7931
  %v8699 = vunpack.c.h.b16 %v7931
  %v8700 = vunpack.c.l.b16 %v7932
  %v8701 = vunpack.c.h.b16 %v7932
  %v8702 = vunpack.c.l.b16 %v7933
  %v8703 = vunpack.c.h.b16 %v7933
  %v8704 = vunpack.c.l.b16 %v7934
  %v8705 = vunpack.c.h.b16 %v7934
  %v8706 = vunpack.c.l.b16 %v7935
  %v8707 = vunpack.c.h.b16 %v7935
  %v8708 = vunpack.c.l.b16 %v7936
  %v8709 = vunpack.c.h.b16 %v7936
  %v8710 = vunpack.c.l.b16 %v7937
  %v8711 = vunpack.c.h.b16 %v7937
  %v8712 = vunpack.c.l.b16 %v7938
  %v8713 = vunpack.c.h.b16 %v7938
  %v8714 = vunpack.c.l.b16 %v7939
  %v8715 = vunpack.c.h.b16 %v7939
  %v8716 = vunpack.c.l.b16 %v7940
  %v8717 = vunpack.c.h.b16 %v7940
  %v8718 = vunpack.c.l.b16 %v7941
  %v8719 = vunpack.c.h.b16 %v7941
  %v8720 = vunpack.c.l.b16 %v7942
  %v8721 = vunpack.c.h.b16 %v7942
  %v8722 = vunpack.c.l.b16 %v7943
  %v8723 = vunpack.c.h.b16 %v7943
  %v8724 = vunpack.c.l.b16 %v7944
  %v8725 = vunpack.c.h.b16 %v7944
  %v8726 = vunpack.c.l.b16 %v7945
  %v8727 = vunpack.c.h.b16 %v7945
  %v8728 = vunpack.c.l.b16 %v7946
  %v8729 = vunpack.c.h.b16 %v7946
  %v8730 = vunpack.c.l.b16 %v7947
  %v8731 = vunpack.c.h.b16 %v7947
  %v8732 = vunpack.c.l.b16 %v7948
  %v8733 = vunpack.c.h.b16 %v7948
  %v8734 = vunpack.c.l.b16 %v7949
  %v8735 = vunpack.c.h.b16 %v7949
  %v8736 = vunpack.c.l.b16 %v7950
  %v8737 = vunpack.c.h.b16 %v7950
  %v8738 = vunpack.c.l.b16 %v7951
  %v8739 = vunpack.c.h.b16 %v7951
  %v8740 = vunpack.c.l.b16 %v7952
  %v8741 = vunpack.c.h.b16 %v7952
  %v8742 = vunpack.c.l.b16 %v7953
  %v8743 = vunpack.c.h.b16 %v7953
  %v8744 = vpack.c.b16 %v8236, %v8232
  %v8745 = vpack.c.b16 %v8237, %v8233
  %v8746 = vpack.c.b16 %v8238, %v8234
  %v8747 = vpack.c.b16 %v8239, %v8235
  %v8748 = vpack.c.b16 %v8244, %v8240
  %v8749 = vpack.c.b16 %v8245, %v8241
  %v8750 = vpack.c.b16 %v8246, %v8242
  %v8751 = vpack.c.b16 %v8247, %v8243
  %v8752 = vpack.c.b16 %v8252, %v8248
  %v8753 = vpack.c.b16 %v8253, %v8249
  %v8754 = vpack.c.b16 %v8254, %v8250
  %v8755 = vpack.c.b16 %v8255, %v8251
  %v8756 = vpack.c.b16 %v8260, %v8256
  %v8757 = vpack.c.b16 %v8261, %v8257
  %v8758 = vpack.c.b16 %v8262, %v8258
  %v8759 = vpack.c.b16 %v8263, %v8259
  %v8760 = vpack.c.b16 %v8268, %v8264
  %v8761 = vpack.c.b16 %v8269, %v8265
  %v8762 = vpack.c.b16 %v8270, %v8266
  %v8763 = vpack.c.b16 %v8271, %v8267
  %v8764 = vpack.c.b16 %v8276, %v8272
  %v8765 = vpack.c.b16 %v8277, %v8273
  %v8766 = vpack.c.b16 %v8278, %v8274
  %v8767 = vpack.c.b16 %v8279, %v8275
  %v8768 = vpack.c.b16 %v8284, %v8280
  %v8769 = vpack.c.b16 %v8285, %v8281
  %v8770 = vpack.c.b16 %v8286, %v8282
  %v8771 = vpack.c.b16 %v8287, %v8283
  %v8772 = vpack.c.b16 %v8292, %v8288
  %v8773 = vpack.c.b16 %v8293, %v8289
  %v8774 = vpack.c.b16 %v8294, %v8290
  %v8775 = vpack.c.b16 %v8295, %v8291
  %v8776 = vpack.c.b16 %v8300, %v8296
  %v8777 = vpack.c.b16 %v8301, %v8297
  %v8778 = vpack.c.b16 %v8302, %v8298
  %v8779 = vpack.c.b16 %v8303, %v8299
  %v8780 = vpack.c.b16 %v8308, %v8304
  %v8781 = vpack.c.b16 %v8309, %v8305
  %v8782 = vpack.c.b16 %v8310, %v8306
  %v8783 = vpack.c.b16 %v8311, %v8307
  %v8784 = vpack.c.b16 %v8316, %v8312
  %v8785 = vpack.c.b16 %v8317, %v8313
  %v8786 = vpack.c.b16 %v8318, %v8314
  %v8787 = vpack.c.b16 %v8319, %v8315
  %v8788 = vpack.c.b16 %v8324, %v8320
  %v8789 = vpack.c.b16 %v8325, %v8321
  %v8790 = vpack.c.b16 %v8326, %v8322
  %v8791 = vpack.c.b16 %v8327, %v8323
  %v8792 = vpack.c.b16 %v8332, %v8328
  %v8793 = vpack.c.b16 %v8333, %v8329
  %v8794 = vpack.c.b16 %v8334, %v8330
  %v8795 = vpack.c.b16 %v8335, %v8331
  %v8796 = vpack.c.b16 %v8340, %v8336
  %v8797 = vpack.c.b16 %v8341, %v8337
  %v8798 = vpack.c.b16 %v8342, %v8338
  %v8799 = vpack.c.b16 %v8343, %v8339
  %v8800 = vpack.c.b16 %v8348, %v8344
  %v8801 = vpack.c.b16 %v8349, %v8345
  %v8802 = vpack.c.b16 %v8350, %v8346
  %v8803 = vpack.c.b16 %v8351, %v8347
  %v8804 = vpack.c.b16 %v8356, %v8352
  %v8805 = vpack.c.b16 %v8357, %v8353
  %v8806 = vpack.c.b16 %v8358, %v8354
  %v8807 = vpack.c.b16 %v8359, %v8355
  %v8808 = vpack.c.b16 %v8364, %v8360
  %v8809 = vpack.c.b16 %v8365, %v8361
  %v8810 = vpack.c.b16 %v8366, %v8362
  %v8811 = vpack.c.b16 %v8367, %v8363
  %v8812 = vpack.c.b16 %v8372, %v8368
  %v8813 = vpack.c.b16 %v8373, %v8369
  %v8814 = vpack.c.b16 %v8374, %v8370
  %v8815 = vpack.c.b16 %v8375, %v8371
  %v8816 = vpack.c.b16 %v8380, %v8376
  %v8817 = vpack.c.b16 %v8381, %v8377
  %v8818 = vpack.c.b16 %v8382, %v8378
  %v8819 = vpack.c.b16 %v8383, %v8379
  %v8820 = vpack.c.b16 %v8388, %v8384
  %v8821 = vpack.c.b16 %v8389, %v8385
  %v8822 = vpack.c.b16 %v8390, %v8386
  %v8823 = vpack.c.b16 %v8391, %v8387
  %v8824 = vpack.c.b16 %v8396, %v8392
  %v8825 = vpack.c.b16 %v8397, %v8393
  %v8826 = vpack.c.b16 %v8398, %v8394
  %v8827 = vpack.c.b16 %v8399, %v8395
  %v8828 = vpack.c.b16 %v8404, %v8400
  %v8829 = vpack.c.b16 %v8405, %v8401
  %v8830 = vpack.c.b16 %v8406, %v8402
  %v8831 = vpack.c.b16 %v8407, %v8403
  %v8832 = vpack.c.b16 %v8412, %v8408
  %v8833 = vpack.c.b16 %v8413, %v8409
  %v8834 = vpack.c.b16 %v8414, %v8410
  %v8835 = vpack.c.b16 %v8415, %v8411
  %v8836 = vpack.c.b16 %v8420, %v8416
  %v8837 = vpack.c.b16 %v8421, %v8417
  %v8838 = vpack.c.b16 %v8422, %v8418
  %v8839 = vpack.c.b16 %v8423, %v8419
  %v8840 = vpack.c.b16 %v8428, %v8424
  %v8841 = vpack.c.b16 %v8429, %v8425
  %v8842 = vpack.c.b16 %v8430, %v8426
  %v8843 = vpack.c.b16 %v8431, %v8427
  %v8844 = vpack.c.b16 %v8436, %v8432
  %v8845 = vpack.c.b16 %v8437, %v8433
  %v8846 = vpack.c.b16 %v8438, %v8434
  %v8847 = vpack.c.b16 %v8439, %v8435
  %v8848 = vpack.c.b16 %v8444, %v8440
  %v8849 = vpack.c.b16 %v8445, %v8441
  %v8850 = vpack.c.b16 %v8446, %v8442
  %v8851 = vpack.c.b16 %v8447, %v8443
  %v8852 = vpack.c.b16 %v8452, %v8448
  %v8853 = vpack.c.b16 %v8453, %v8449
  %v8854 = vpack.c.b16 %v8454, %v8450
  %v8855 = vpack.c.b16 %v8455, %v8451
  %v8856 = vpack.c.b16 %v8460, %v8456
  %v8857 = vpack.c.b16 %v8461, %v8457
  %v8858 = vpack.c.b16 %v8462, %v8458
  %v8859 = vpack.c.b16 %v8463, %v8459
  %v8860 = vpack.c.b16 %v8468, %v8464
  %v8861 = vpack.c.b16 %v8469, %v8465
  %v8862 = vpack.c.b16 %v8470, %v8466
  %v8863 = vpack.c.b16 %v8471, %v8467
  %v8864 = vpack.c.b16 %v8476, %v8472
  %v8865 = vpack.c.b16 %v8477, %v8473
  %v8866 = vpack.c.b16 %v8478, %v8474
  %v8867 = vpack.c.b16 %v8479, %v8475
  %v8868 = vpack.c.b16 %v8484, %v8480
  %v8869 = vpack.c.b16 %v8485, %v8481
  %v8870 = vpack.c.b16 %v8486, %v8482
  %v8871 = vpack.c.b16 %v8487, %v8483
  %v8872 = vpack.c.b16 %v8492, %v8488
  %v8873 = vpack.c.b16 %v8493, %v8489
  %v8874 = vpack.c.b16 %v8494, %v8490
  %v8875 = vpack.c.b16 %v8495, %v8491
  %v8876 = vpack.c.b16 %v8500, %v8496
  %v8877 = vpack.c.b16 %v8501, %v8497
  %v8878 = vpack.c.b16 %v8502, %v8498
  %v8879 = vpack.c.b16 %v8503, %v8499
  %v8880 = vpack.c.b16 %v8508, %v8504
  %v8881 = vpack.c.b16 %v8509, %v8505
  %v8882 = vpack.c.b16 %v8510, %v8506
  %v8883 = vpack.c.b16 %v8511, %v8507
  %v8884 = vpack.c.b16 %v8516, %v8512
  %v8885 = vpack.c.b16 %v8517, %v8513
  %v8886 = vpack.c.b16 %v8518, %v8514
  %v8887 = vpack.c.b16 %v8519, %v8515
  %v8888 = vpack.c.b16 %v8524, %v8520
  %v8889 = vpack.c.b16 %v8525, %v8521
  %v8890 = vpack.c.b16 %v8526, %v8522
  %v8891 = vpack.c.b16 %v8527, %v8523
  %v8892 = vpack.c.b16 %v8532, %v8528
  %v8893 = vpack.c.b16 %v8533, %v8529
  %v8894 = vpack.c.b16 %v8534, %v8530
  %v8895 = vpack.c.b16 %v8535, %v8531
  %v8896 = vpack.c.b16 %v8540, %v8536
  %v8897 = vpack.c.b16 %v8541, %v8537
  %v8898 = vpack.c.b16 %v8542, %v8538
  %v8899 = vpack.c.b16 %v8543, %v8539
  %v8900 = vpack.c.b16 %v8548, %v8544
  %v8901 = vpack.c.b16 %v8549, %v8545
  %v8902 = vpack.c.b16 %v8550, %v8546
  %v8903 = vpack.c.b16 %v8551, %v8547
  %v8904 = vpack.c.b16 %v8556, %v8552
  %v8905 = vpack.c.b16 %v8557, %v8553
  %v8906 = vpack.c.b16 %v8558, %v8554
  %v8907 = vpack.c.b16 %v8559, %v8555
  %v8908 = vpack.c.b16 %v8564, %v8560
  %v8909 = vpack.c.b16 %v8565, %v8561
  %v8910 = vpack.c.b16 %v8566, %v8562
  %v8911 = vpack.c.b16 %v8567, %v8563
  %v8912 = vpack.c.b16 %v8572, %v8568
  %v8913 = vpack.c.b16 %v8573, %v8569
  %v8914 = vpack.c.b16 %v8574, %v8570
  %v8915 = vpack.c.b16 %v8575, %v8571
  %v8916 = vpack.c.b16 %v8580, %v8576
  %v8917 = vpack.c.b16 %v8581, %v8577
  %v8918 = vpack.c.b16 %v8582, %v8578
  %v8919 = vpack.c.b16 %v8583, %v8579
  %v8920 = vpack.c.b16 %v8588, %v8584
  %v8921 = vpack.c.b16 %v8589, %v8585
  %v8922 = vpack.c.b16 %v8590, %v8586
  %v8923 = vpack.c.b16 %v8591, %v8587
  %v8924 = vpack.c.b16 %v8596, %v8592
  %v8925 = vpack.c.b16 %v8597, %v8593
  %v8926 = vpack.c.b16 %v8598, %v8594
  %v8927 = vpack.c.b16 %v8599, %v8595
  %v8928 = vpack.c.b16 %v8604, %v8600
  %v8929 = vpack.c.b16 %v8605, %v8601
  %v8930 = vpack.c.b16 %v8606, %v8602
  %v8931 = vpack.c.b16 %v8607, %v8603
  %v8932 = vpack.c.b16 %v8612, %v8608
  %v8933 = vpack.c.b16 %v8613, %v8609
  %v8934 = vpack.c.b16 %v8614, %v8610
  %v8935 = vpack.c.b16 %v8615, %v8611
  %v8936 = vpack.c.b16 %v8620, %v8616
  %v8937 = vpack.c.b16 %v8621, %v8617
  %v8938 = vpack.c.b16 %v8622, %v8618
  %v8939 = vpack.c.b16 %v8623, %v8619
  %v8940 = vpack.c.b16 %v8628, %v8624
  %v8941 = vpack.c.b16 %v8629, %v8625
  %v8942 = vpack.c.b16 %v8630, %v8626
  %v8943 = vpack.c.b16 %v8631, %v8627
  %v8944 = vpack.c.b16 %v8636, %v8632
  %v8945 = vpack.c.b16 %v8637, %v8633
  %v8946 = vpack.c.b16 %v8638, %v8634
  %v8947 = vpack.c.b16 %v8639, %v8635
  %v8948 = vpack.c.b16 %v8644, %v8640
  %v8949 = vpack.c.b16 %v8645, %v8641
  %v8950 = vpack.c.b16 %v8646, %v8642
  %v8951 = vpack.c.b16 %v8647, %v8643
  %v8952 = vpack.c.b16 %v8652, %v8648
  %v8953 = vpack.c.b16 %v8653, %v8649
  %v8954 = vpack.c.b16 %v8654, %v8650
  %v8955 = vpack.c.b16 %v8655, %v8651
  %v8956 = vpack.c.b16 %v8660, %v8656
  %v8957 = vpack.c.b16 %v8661, %v8657
  %v8958 = vpack.c.b16 %v8662, %v8658
  %v8959 = vpack.c.b16 %v8663, %v8659
  %v8960 = vpack.c.b16 %v8668, %v8664
  %v8961 = vpack.c.b16 %v8669, %v8665
  %v8962 = vpack.c.b16 %v8670, %v8666
  %v8963 = vpack.c.b16 %v8671, %v8667
  %v8964 = vpack.c.b16 %v8676, %v8672
  %v8965 = vpack.c.b16 %v8677, %v8673
  %v8966 = vpack.c.b16 %v8678, %v8674
  %v8967 = vpack.c.b16 %v8679, %v8675
  %v8968 = vpack.c.b16 %v8684, %v8680
  %v8969 = vpack.c.b16 %v8685, %v8681
  %v8970 = vpack.c.b16 %v8686, %v8682
  %v8971 = vpack.c.b16 %v8687, %v8683
  %v8972 = vpack.c.b16 %v8692, %v8688
  %v8973 = vpack.c.b16 %v8693, %v8689
  %v8974 = vpack.c.b16 %v8694, %v8690
  %v8975 = vpack.c.b16 %v8695, %v8691
  %v8976 = vpack.c.b16 %v8700, %v8696
  %v8977 = vpack.c.b16 %v8701, %v8697
  %v8978 = vpack.c.b16 %v8702, %v8698
  %v8979 = vpack.c.b16 %v8703, %v8699
  %v8980 = vpack.c.b16 %v8708, %v8704
  %v8981 = vpack.c.b16 %v8709, %v8705
  %v8982 = vpack.c.b16 %v8710, %v8706
  %v8983 = vpack.c.b16 %v8711, %v8707
  %v8984 = vpack.c.b16 %v8716, %v8712
  %v8985 = vpack.c.b16 %v8717, %v8713
  %v8986 = vpack.c.b16 %v8718, %v8714
  %v8987 = vpack.c.b16 %v8719, %v8715
  %v8988 = vpack.c.b16 %v8724, %v8720
  %v8989 = vpack.c.b16 %v8725, %v8721
  %v8990 = vpack.c.b16 %v8726, %v8722
  %v8991 = vpack.c.b16 %v8727, %v8723
  %v8992 = vpack.c.b16 %v8732, %v8728
  %v8993 = vpack.c.b16 %v8733, %v8729
  %v8994 = vpack.c.b16 %v8734, %v8730
  %v8995 = vpack.c.b16 %v8735, %v8731
  %v8996 = vpack.c.b16 %v8740, %v8736
  %v8997 = vpack.c.b16 %v8741, %v8737
  %v8998 = vpack.c.b16 %v8742, %v8738
  %v8999 = vpack.c.b16 %v8743, %v8739
  %9256 = vmatprep.subr.bf16.mxu0 %v8745
  %9257 = vmatpush1.bf16.msra.mxu0 %v8744
  %9258 = vmatprep.subr.bf16.mxu0 %v8749
  %9259 = vmatpush1.bf16.msra.mxu0 %v8748
  %9260 = vmatprep.subr.bf16.mxu0 %v8753
  %9261 = vmatpush1.bf16.msra.mxu0 %v8752
  %9262 = vmatprep.subr.bf16.mxu0 %v8757
  %9263 = vmatpush1.bf16.msra.mxu0 %v8756
  %9264 = vmatprep.subr.bf16.mxu0 %v8761
  %9265 = vmatpush1.bf16.msra.mxu0 %v8760
  %9266 = vmatprep.subr.bf16.mxu0 %v8765
  %9267 = vmatpush1.bf16.msra.mxu0 %v8764
  %9268 = vmatprep.subr.bf16.mxu0 %v8769
  %9269 = vmatpush1.bf16.msra.mxu0 %v8768
  %9270 = vmatprep.subr.bf16.mxu0 %v8773
  %9271 = vmatpush1.bf16.msra.mxu0 %v8772
  %9272 = vmatprep.subr.bf16.mxu0 %v8777
  %9273 = vmatpush1.bf16.msra.mxu0 %v8776
  %9274 = vmatprep.subr.bf16.mxu0 %v8781
  %9275 = vmatpush1.bf16.msra.mxu0 %v8780
  %9276 = vmatprep.subr.bf16.mxu0 %v8785
  %9277 = vmatpush1.bf16.msra.mxu0 %v8784
  %9278 = vmatprep.subr.bf16.mxu0 %v8789
  %9279 = vmatpush1.bf16.msra.mxu0 %v8788
  %9280 = vmatprep.subr.bf16.mxu0 %v8793
  %9281 = vmatpush1.bf16.msra.mxu0 %v8792
  %9282 = vmatprep.subr.bf16.mxu0 %v8797
  %9283 = vmatpush1.bf16.msra.mxu0 %v8796
  %9284 = vmatprep.subr.bf16.mxu0 %v8801
  %9285 = vmatpush1.bf16.msra.mxu0 %v8800
  %9286 = vmatprep.subr.bf16.mxu0 %v8805
  %9287 = vmatpush1.bf16.msra.mxu0 %v8804
  %9288 = vmatprep.mubr.bf16.mxu0 %v7691
  %9289 = vmatmul.mubr.bf16.gmra.mrb[0].mxu0 %v7690
  %v9290 = vpop.f32.mrb[0].mxu0
  %v9291 = vadd.f32 %v7959, %v9290
  %v9292 = vpop.f32.mrb[0].mxu0
  %v9293 = vadd.f32 %v7963, %v9292
  %v9294 = vpop.f32.mrb[0].mxu0
  %v9295 = vpop.f32.mrb[0].mxu0
  %9296 = vdwg.mxu0
  %9297 = vmatprep.subr.bf16.mxu0 %v8809
  %9298 = vmatpush1.bf16.msra.mxu0 %v8808
  %9299 = vmatprep.subr.bf16.mxu0 %v8813
  %9300 = vmatpush1.bf16.msra.mxu0 %v8812
  %9301 = vmatprep.subr.bf16.mxu0 %v8817
  %9302 = vmatpush1.bf16.msra.mxu0 %v8816
  %9303 = vmatprep.subr.bf16.mxu0 %v8821
  %9304 = vmatpush1.bf16.msra.mxu0 %v8820
  %9305 = vmatprep.subr.bf16.mxu0 %v8825
  %9306 = vmatpush1.bf16.msra.mxu0 %v8824
  %9307 = vmatprep.subr.bf16.mxu0 %v8829
  %9308 = vmatpush1.bf16.msra.mxu0 %v8828
  %9309 = vmatprep.subr.bf16.mxu0 %v8833
  %9310 = vmatpush1.bf16.msra.mxu0 %v8832
  %9311 = vmatprep.subr.bf16.mxu0 %v8837
  %9312 = vmatpush1.bf16.msra.mxu0 %v8836
  %9313 = vmatprep.subr.bf16.mxu0 %v8841
  %9314 = vmatpush1.bf16.msra.mxu0 %v8840
  %9315 = vmatprep.subr.bf16.mxu0 %v8845
  %9316 = vmatpush1.bf16.msra.mxu0 %v8844
  %9317 = vmatprep.subr.bf16.mxu0 %v8849
  %9318 = vmatpush1.bf16.msra.mxu0 %v8848
  %9319 = vmatprep.subr.bf16.mxu0 %v8853
  %9320 = vmatpush1.bf16.msra.mxu0 %v8852
  %9321 = vmatprep.subr.bf16.mxu0 %v8857
  %9322 = vmatpush1.bf16.msra.mxu0 %v8856
  %9323 = vmatprep.subr.bf16.mxu0 %v8861
  %9324 = vmatpush1.bf16.msra.mxu0 %v8860
  %9325 = vmatprep.subr.bf16.mxu0 %v8865
  %9326 = vmatpush1.bf16.msra.mxu0 %v8864
  %9327 = vmatprep.subr.bf16.mxu0 %v8869
  %9328 = vmatpush1.bf16.msra.mxu0 %v8868
  %9329 = vmatprep.mubr.bf16.mxu0 %v7693
  %9330 = vmatmul.mubr.bf16.gmra.mrb[0].mxu0 %v7692
  %v9331 = vpop.f32.mrb[0].mxu0
  %v9332 = vadd.f32 %v9291, %v9331
  %v9333 = vpop.f32.mrb[0].mxu0
  %v9334 = vadd.f32 %v9293, %v9333
  %v9335 = vpop.f32.mrb[0].mxu0
  %v9336 = vpop.f32.mrb[0].mxu0
  %9337 = vdwg.mxu0
  %9338 = vmatprep.subr.bf16.mxu0 %v8873
  %9339 = vmatpush1.bf16.msra.mxu0 %v8872
  %9340 = vmatprep.subr.bf16.mxu0 %v8877
  %9341 = vmatpush1.bf16.msra.mxu0 %v8876
  %9342 = vmatprep.subr.bf16.mxu0 %v8881
  %9343 = vmatpush1.bf16.msra.mxu0 %v8880
  %9344 = vmatprep.subr.bf16.mxu0 %v8885
  %9345 = vmatpush1.bf16.msra.mxu0 %v8884
  %9346 = vmatprep.subr.bf16.mxu0 %v8889
  %9347 = vmatpush1.bf16.msra.mxu0 %v8888
  %9348 = vmatprep.subr.bf16.mxu0 %v8893
  %9349 = vmatpush1.bf16.msra.mxu0 %v8892
  %9350 = vmatprep.subr.bf16.mxu0 %v8897
  %9351 = vmatpush1.bf16.msra.mxu0 %v8896
  %9352 = vmatprep.subr.bf16.mxu0 %v8901
  %9353 = vmatpush1.bf16.msra.mxu0 %v8900
  %9354 = vmatprep.subr.bf16.mxu0 %v8905
  %9355 = vmatpush1.bf16.msra.mxu0 %v8904
  %9356 = vmatprep.subr.bf16.mxu0 %v8909
  %9357 = vmatpush1.bf16.msra.mxu0 %v8908
  %9358 = vmatprep.subr.bf16.mxu0 %v8913
  %9359 = vmatpush1.bf16.msra.mxu0 %v8912
  %9360 = vmatprep.subr.bf16.mxu0 %v8917
  %9361 = vmatpush1.bf16.msra.mxu0 %v8916
  %9362 = vmatprep.subr.bf16.mxu0 %v8921
  %9363 = vmatpush1.bf16.msra.mxu0 %v8920
  %9364 = vmatprep.subr.bf16.mxu0 %v8925
  %9365 = vmatpush1.bf16.msra.mxu0 %v8924
  %9366 = vmatprep.subr.bf16.mxu0 %v8929
  %9367 = vmatpush1.bf16.msra.mxu0 %v8928
  %9368 = vmatprep.subr.bf16.mxu0 %v8933
  %9369 = vmatpush1.bf16.msra.mxu0 %v8932
  %9370 = vmatprep.mubr.bf16.mxu0 %v7695
  %9371 = vmatmul.mubr.bf16.gmra.mrb[0].mxu0 %v7694
  %v9372 = vpop.f32.mrb[0].mxu0
  %v9373 = vadd.f32 %v9332, %v9372
  %v9374 = vpop.f32.mrb[0].mxu0
  %v9375 = vadd.f32 %v9334, %v9374
  %v9376 = vpop.f32.mrb[0].mxu0
  %v9377 = vpop.f32.mrb[0].mxu0
  %9378 = vdwg.mxu0
  %9379 = vmatprep.subr.bf16.mxu0 %v8937
  %9380 = vmatpush1.bf16.msra.mxu0 %v8936
  %9381 = vmatprep.subr.bf16.mxu0 %v8941
  %9382 = vmatpush1.bf16.msra.mxu0 %v8940
  %9383 = vmatprep.subr.bf16.mxu0 %v8945
  %9384 = vmatpush1.bf16.msra.mxu0 %v8944
  %9385 = vmatprep.subr.bf16.mxu0 %v8949
  %9386 = vmatpush1.bf16.msra.mxu0 %v8948
  %9387 = vmatprep.subr.bf16.mxu0 %v8953
  %9388 = vmatpush1.bf16.msra.mxu0 %v8952
  %9389 = vmatprep.subr.bf16.mxu0 %v8957
  %9390 = vmatpush1.bf16.msra.mxu0 %v8956
  %9391 = vmatprep.subr.bf16.mxu0 %v8961
  %9392 = vmatpush1.bf16.msra.mxu0 %v8960
  %9393 = vmatprep.subr.bf16.mxu0 %v8965
  %9394 = vmatpush1.bf16.msra.mxu0 %v8964
  %9395 = vmatprep.subr.bf16.mxu0 %v8969
  %9396 = vmatpush1.bf16.msra.mxu0 %v8968
  %9397 = vmatprep.subr.bf16.mxu0 %v8973
  %9398 = vmatpush1.bf16.msra.mxu0 %v8972
  %9399 = vmatprep.subr.bf16.mxu0 %v8977
  %9400 = vmatpush1.bf16.msra.mxu0 %v8976
  %9401 = vmatprep.subr.bf16.mxu0 %v8981
  %9402 = vmatpush1.bf16.msra.mxu0 %v8980
  %9403 = vmatprep.subr.bf16.mxu0 %v8985
  %9404 = vmatpush1.bf16.msra.mxu0 %v8984
  %9405 = vmatprep.subr.bf16.mxu0 %v8989
  %9406 = vmatpush1.bf16.msra.mxu0 %v8988
  %9407 = vmatprep.subr.bf16.mxu0 %v8993
  %9408 = vmatpush1.bf16.msra.mxu0 %v8992
  %9409 = vmatprep.subr.bf16.mxu0 %v8997
  %9410 = vmatpush1.bf16.msra.mxu0 %v8996
  %9411 = vmatprep.mubr.bf16.mxu0 %v7697
  %9412 = vmatmul.mubr.bf16.gmra.mrb[0].mxu0 %v7696
  %v9413 = vpop.f32.mrb[0].mxu0
  %v9414 = vadd.f32 %v9373, %v9413
  %v9415 = vpop.f32.mrb[0].mxu0
  %v9416 = vadd.f32 %v9375, %v9415
  %v9417 = vpop.f32.mrb[0].mxu0
  %v9418 = vpop.f32.mrb[0].mxu0
  %9419 = vdwg.mxu0
  %9420 = vmatprep.subr.bf16.mxu0 %v8747
  %9421 = vmatpush1.bf16.msra.mxu0 %v8746
  %9422 = vmatprep.subr.bf16.mxu0 %v8751
  %9423 = vmatpush1.bf16.msra.mxu0 %v8750
  %9424 = vmatprep.subr.bf16.mxu0 %v8755
  %9425 = vmatpush1.bf16.msra.mxu0 %v8754
  %9426 = vmatprep.subr.bf16.mxu0 %v8759
  %9427 = vmatpush1.bf16.msra.mxu0 %v8758
  %9428 = vmatprep.subr.bf16.mxu0 %v8763
  %9429 = vmatpush1.bf16.msra.mxu0 %v8762
  %9430 = vmatprep.subr.bf16.mxu0 %v8767
  %9431 = vmatpush1.bf16.msra.mxu0 %v8766
  %9432 = vmatprep.subr.bf16.mxu0 %v8771
  %9433 = vmatpush1.bf16.msra.mxu0 %v8770
  %9434 = vmatprep.subr.bf16.mxu0 %v8775
  %9435 = vmatpush1.bf16.msra.mxu0 %v8774
  %9436 = vmatprep.subr.bf16.mxu0 %v8779
  %9437 = vmatpush1.bf16.msra.mxu0 %v8778
  %9438 = vmatprep.subr.bf16.mxu0 %v8783
  %9439 = vmatpush1.bf16.msra.mxu0 %v8782
  %9440 = vmatprep.subr.bf16.mxu0 %v8787
  %9441 = vmatpush1.bf16.msra.mxu0 %v8786
  %9442 = vmatprep.subr.bf16.mxu0 %v8791
  %9443 = vmatpush1.bf16.msra.mxu0 %v8790
  %9444 = vmatprep.subr.bf16.mxu0 %v8795
  %9445 = vmatpush1.bf16.msra.mxu0 %v8794
  %9446 = vmatprep.subr.bf16.mxu0 %v8799
  %9447 = vmatpush1.bf16.msra.mxu0 %v8798
  %9448 = vmatprep.subr.bf16.mxu0 %v8803
  %9449 = vmatpush1.bf16.msra.mxu0 %v8802
  %9450 = vmatprep.subr.bf16.mxu0 %v8807
  %9451 = vmatpush1.bf16.msra.mxu0 %v8806
  %9452 = vmatprep.mubr.bf16.mxu0 %v7691
  %9453 = vmatmul.mubr.bf16.gmra.mrb[0].mxu0 %v7690
  %v9454 = vpop.f32.mrb[0].mxu0
  %v9455 = vadd.f32 %v7967, %v9454
  %v9456 = vpop.f32.mrb[0].mxu0
  %v9457 = vadd.f32 %v7971, %v9456
  %v9458 = vpop.f32.mrb[0].mxu0
  %v9459 = vpop.f32.mrb[0].mxu0
  %9460 = vdwg.mxu0
  %9461 = vmatprep.subr.bf16.mxu0 %v8811
  %9462 = vmatpush1.bf16.msra.mxu0 %v8810
  %9463 = vmatprep.subr.bf16.mxu0 %v8815
  %9464 = vmatpush1.bf16.msra.mxu0 %v8814
  %9465 = vmatprep.subr.bf16.mxu0 %v8819
  %9466 = vmatpush1.bf16.msra.mxu0 %v8818
  %9467 = vmatprep.subr.bf16.mxu0 %v8823
  %9468 = vmatpush1.bf16.msra.mxu0 %v8822
  %9469 = vmatprep.subr.bf16.mxu0 %v8827
  %9470 = vmatpush1.bf16.msra.mxu0 %v8826
  %9471 = vmatprep.subr.bf16.mxu0 %v8831
  %9472 = vmatpush1.bf16.msra.mxu0 %v8830
  %9473 = vmatprep.subr.bf16.mxu0 %v8835
  %9474 = vmatpush1.bf16.msra.mxu0 %v8834
  %9475 = vmatprep.subr.bf16.mxu0 %v8839
  %9476 = vmatpush1.bf16.msra.mxu0 %v8838
  %9477 = vmatprep.subr.bf16.mxu0 %v8843
  %9478 = vmatpush1.bf16.msra.mxu0 %v8842
  %9479 = vmatprep.subr.bf16.mxu0 %v8847
  %9480 = vmatpush1.bf16.msra.mxu0 %v8846
  %9481 = vmatprep.subr.bf16.mxu0 %v8851
  %9482 = vmatpush1.bf16.msra.mxu0 %v8850
  %9483 = vmatprep.subr.bf16.mxu0 %v8855
  %9484 = vmatpush1.bf16.msra.mxu0 %v8854
  %9485 = vmatprep.subr.bf16.mxu0 %v8859
  %9486 = vmatpush1.bf16.msra.mxu0 %v8858
  %9487 = vmatprep.subr.bf16.mxu0 %v8863
  %9488 = vmatpush1.bf16.msra.mxu0 %v8862
  %9489 = vmatprep.subr.bf16.mxu0 %v8867
  %9490 = vmatpush1.bf16.msra.mxu0 %v8866
  %9491 = vmatprep.subr.bf16.mxu0 %v8871
  %9492 = vmatpush1.bf16.msra.mxu0 %v8870
  %9493 = vmatprep.mubr.bf16.mxu0 %v7693
  %9494 = vmatmul.mubr.bf16.gmra.mrb[0].mxu0 %v7692
  %v9495 = vpop.f32.mrb[0].mxu0
  %v9496 = vadd.f32 %v9455, %v9495
  %v9497 = vpop.f32.mrb[0].mxu0
  %v9498 = vadd.f32 %v9457, %v9497
  %v9499 = vpop.f32.mrb[0].mxu0
  %v9500 = vpop.f32.mrb[0].mxu0
  %9501 = vdwg.mxu0
  %9502 = vmatprep.subr.bf16.mxu0 %v8875
  %9503 = vmatpush1.bf16.msra.mxu0 %v8874
  %9504 = vmatprep.subr.bf16.mxu0 %v8879
  %9505 = vmatpush1.bf16.msra.mxu0 %v8878
  %9506 = vmatprep.subr.bf16.mxu0 %v8883
  %9507 = vmatpush1.bf16.msra.mxu0 %v8882
  %9508 = vmatprep.subr.bf16.mxu0 %v8887
  %9509 = vmatpush1.bf16.msra.mxu0 %v8886
  %9510 = vmatprep.subr.bf16.mxu0 %v8891
  %9511 = vmatpush1.bf16.msra.mxu0 %v8890
  %9512 = vmatprep.subr.bf16.mxu0 %v8895
  %9513 = vmatpush1.bf16.msra.mxu0 %v8894
  %9514 = vmatprep.subr.bf16.mxu0 %v8899
  %9515 = vmatpush1.bf16.msra.mxu0 %v8898
  %9516 = vmatprep.subr.bf16.mxu0 %v8903
  %9517 = vmatpush1.bf16.msra.mxu0 %v8902
  %9518 = vmatprep.subr.bf16.mxu0 %v8907
  %9519 = vmatpush1.bf16.msra.mxu0 %v8906
  %9520 = vmatprep.subr.bf16.mxu0 %v8911
  %9521 = vmatpush1.bf16.msra.mxu0 %v8910
  %9522 = vmatprep.subr.bf16.mxu0 %v8915
  %9523 = vmatpush1.bf16.msra.mxu0 %v8914
  %9524 = vmatprep.subr.bf16.mxu0 %v8919
  %9525 = vmatpush1.bf16.msra.mxu0 %v8918
  %9526 = vmatprep.subr.bf16.mxu0 %v8923
  %9527 = vmatpush1.bf16.msra.mxu0 %v8922
  %9528 = vmatprep.subr.bf16.mxu0 %v8927
  %9529 = vmatpush1.bf16.msra.mxu0 %v8926
  %9530 = vmatprep.subr.bf16.mxu0 %v8931
  %9531 = vmatpush1.bf16.msra.mxu0 %v8930
  %9532 = vmatprep.subr.bf16.mxu0 %v8935
  %9533 = vmatpush1.bf16.msra.mxu0 %v8934
  %9534 = vmatprep.mubr.bf16.mxu0 %v7695
  %9535 = vmatmul.mubr.bf16.gmra.mrb[0].mxu0 %v7694
  %v9536 = vpop.f32.mrb[0].mxu0
  %v9537 = vadd.f32 %v9496, %v9536
  %v9538 = vpop.f32.mrb[0].mxu0
  %v9539 = vadd.f32 %v9498, %v9538
  %v9540 = vpop.f32.mrb[0].mxu0
  %v9541 = vpop.f32.mrb[0].mxu0
  %9542 = vdwg.mxu0
  %9543 = vmatprep.subr.bf16.mxu0 %v8939
  %9544 = vmatpush1.bf16.msra.mxu0 %v8938
  %9545 = vmatprep.subr.bf16.mxu0 %v8943
  %9546 = vmatpush1.bf16.msra.mxu0 %v8942
  %9547 = vmatprep.subr.bf16.mxu0 %v8947
  %9548 = vmatpush1.bf16.msra.mxu0 %v8946
  %9549 = vmatprep.subr.bf16.mxu0 %v8951
  %9550 = vmatpush1.bf16.msra.mxu0 %v8950
  %9551 = vmatprep.subr.bf16.mxu0 %v8955
  %9552 = vmatpush1.bf16.msra.mxu0 %v8954
  %9553 = vmatprep.subr.bf16.mxu0 %v8959
  %9554 = vmatpush1.bf16.msra.mxu0 %v8958
  %9555 = vmatprep.subr.bf16.mxu0 %v8963
  %9556 = vmatpush1.bf16.msra.mxu0 %v8962
  %9557 = vmatprep.subr.bf16.mxu0 %v8967
  %9558 = vmatpush1.bf16.msra.mxu0 %v8966
  %9559 = vmatprep.subr.bf16.mxu0 %v8971
  %9560 = vmatpush1.bf16.msra.mxu0 %v8970
  %9561 = vmatprep.subr.bf16.mxu0 %v8975
  %9562 = vmatpush1.bf16.msra.mxu0 %v8974
  %9563 = vmatprep.subr.bf16.mxu0 %v8979
  %9564 = vmatpush1.bf16.msra.mxu0 %v8978
  %9565 = vmatprep.subr.bf16.mxu0 %v8983
  %9566 = vmatpush1.bf16.msra.mxu0 %v8982
  %9567 = vmatprep.subr.bf16.mxu0 %v8987
  %9568 = vmatpush1.bf16.msra.mxu0 %v8986
  %9569 = vmatprep.subr.bf16.mxu0 %v8991
  %9570 = vmatpush1.bf16.msra.mxu0 %v8990
  %9571 = vmatprep.subr.bf16.mxu0 %v8995
  %9572 = vmatpush1.bf16.msra.mxu0 %v8994
  %9573 = vmatprep.subr.bf16.mxu0 %v8999
  %9574 = vmatpush1.bf16.msra.mxu0 %v8998
  %9575 = vmatprep.mubr.bf16.mxu0 %v7697
  %9576 = vmatmul.mubr.bf16.gmra.mrb[0].mxu0 %v7696
  %v9577 = vpop.f32.mrb[0].mxu0
  %v9578 = vadd.f32 %v9537, %v9577
  %v9579 = vpop.f32.mrb[0].mxu0
  %v9580 = vadd.f32 %v9539, %v9579
  %v9581 = vpop.f32.mrb[0].mxu0
  %v9582 = vpop.f32.mrb[0].mxu0
  %9583 = vdwg.mxu0
  %vm9584 = vcmp.ge.f32.partialorder %v9414, 0.0
  %vm9585 = vcmp.ge.f32.partialorder %v9416, 0.0
  %vm9586 = vcmp.ge.f32.partialorder %v9578, 0.0
  %vm9587 = vcmp.ge.f32.partialorder %v9580, 0.0
  %v9588 = vmul.f32 %v9414, 0.01
  %v9589 = vmul.f32 %v9416, 0.01
  %v9590 = vmul.f32 %v9578, 0.01
  %v9591 = vmul.f32 %v9580, 0.01
  %v9592 = vsel %vm9584, %v9414, %v9588
  %v9593 = vsel %vm9585, %v9416, %v9589
  %v9594 = vsel %vm9586, %v9578, %v9590
  %v9595 = vsel %vm9587, %v9580, %v9591
  %v9596 = vpack.c.bf16 %v9592, %v9592
  %v9597 = vpack.c.bf16 %v9593, %v9593
  %v9598 = vpack.c.bf16 %v9594, %v9594
  %v9599 = vpack.c.bf16 %v9595, %v9595
  %v9600 = vld [vmem:[%s5] sm:$0xff]
  %v9601 = vld [vmem:[%s5 + $0x8] sm:$0xff]
  %v9602 = vld [vmem:[%s5 + $0x10] sm:$0xff]
  %v9603 = vld [vmem:[%s5 + $0x18] sm:$0xff]
  %v9604 = vld [vmem:[%s5 + $0x20] sm:$0xff]
  %v9605 = vld [vmem:[%s5 + $0x28] sm:$0xff]
  %v9606 = vld [vmem:[%s5 + $0x30] sm:$0xff]
  %v9607 = vld [vmem:[%s5 + $0x38] sm:$0xff]
  %v9608 = vld [vmem:[%s5 + $0x40] sm:$0xff]
  %v9609 = vld [vmem:[%s5 + $0x48] sm:$0xff]
  %v9610 = vld [vmem:[%s5 + $0x50] sm:$0xff]
  %v9611 = vld [vmem:[%s5 + $0x58] sm:$0xff]
  %v9612 = vld [vmem:[%s5 + $0x60] sm:$0xff]
  %v9613 = vld [vmem:[%s5 + $0x68] sm:$0xff]
  %v9614 = vld [vmem:[%s5 + $0x70] sm:$0xff]
  %v9615 = vld [vmem:[%s5 + $0x78] sm:$0xff]
  %v9616 = vld [vmem:[%s5 + $0x80] sm:$0xff]
  %v9617 = vld [vmem:[%s5 + $0x88] sm:$0xff]
  %v9618 = vld [vmem:[%s5 + $0x90] sm:$0xff]
  %v9619 = vld [vmem:[%s5 + $0x98] sm:$0xff]
  %v9620 = vld [vmem:[%s5 + $0xa0] sm:$0xff]
  %v9621 = vld [vmem:[%s5 + $0xa8] sm:$0xff]
  %v9622 = vld [vmem:[%s5 + $0xb0] sm:$0xff]
  %v9623 = vld [vmem:[%s5 + $0xb8] sm:$0xff]
  %v9624 = vld [vmem:[%s5 + $0xc0] sm:$0xff]
  %v9625 = vld [vmem:[%s5 + $0xc8] sm:$0xff]
  %v9626 = vld [vmem:[%s5 + $0xd0] sm:$0xff]
  %v9627 = vld [vmem:[%s5 + $0xd8] sm:$0xff]
  %v9628 = vld [vmem:[%s5 + $0xe0] sm:$0xff]
  %v9629 = vld [vmem:[%s5 + $0xe8] sm:$0xff]
  %v9630 = vld [vmem:[%s5 + $0xf0] sm:$0xff]
  %v9631 = vld [vmem:[%s5 + $0xf8] sm:$0xff]
  %v9632 = vld [vmem:[%s5 + $0x100] sm:$0xff]
  %v9633 = vld [vmem:[%s5 + $0x108] sm:$0xff]
  %v9634 = vld [vmem:[%s5 + $0x110] sm:$0xff]
  %v9635 = vld [vmem:[%s5 + $0x118] sm:$0xff]
  %v9636 = vld [vmem:[%s5 + $0x120] sm:$0xff]
  %v9637 = vld [vmem:[%s5 + $0x128] sm:$0xff]
  %v9638 = vld [vmem:[%s5 + $0x130] sm:$0xff]
  %v9639 = vld [vmem:[%s5 + $0x138] sm:$0xff]
  %v9640 = vld [vmem:[%s5 + $0x140] sm:$0xff]
  %v9641 = vld [vmem:[%s5 + $0x148] sm:$0xff]
  %v9642 = vld [vmem:[%s5 + $0x150] sm:$0xff]
  %v9643 = vld [vmem:[%s5 + $0x158] sm:$0xff]
  %v9644 = vld [vmem:[%s5 + $0x160] sm:$0xff]
  %v9645 = vld [vmem:[%s5 + $0x168] sm:$0xff]
  %v9646 = vld [vmem:[%s5 + $0x170] sm:$0xff]
  %v9647 = vld [vmem:[%s5 + $0x178] sm:$0xff]
  %v9648 = vld [vmem:[%s5 + $0x180] sm:$0xff]
  %v9649 = vld [vmem:[%s5 + $0x188] sm:$0xff]
  %v9650 = vld [vmem:[%s5 + $0x190] sm:$0xff]
  %v9651 = vld [vmem:[%s5 + $0x198] sm:$0xff]
  %v9652 = vld [vmem:[%s5 + $0x1a0] sm:$0xff]
  %v9653 = vld [vmem:[%s5 + $0x1a8] sm:$0xff]
  %v9654 = vld [vmem:[%s5 + $0x1b0] sm:$0xff]
  %v9655 = vld [vmem:[%s5 + $0x1b8] sm:$0xff]
  %v9656 = vld [vmem:[%s5 + $0x1c0] sm:$0xff]
  %v9657 = vld [vmem:[%s5 + $0x1c8] sm:$0xff]
  %v9658 = vld [vmem:[%s5 + $0x1d0] sm:$0xff]
  %v9659 = vld [vmem:[%s5 + $0x1d8] sm:$0xff]
  %v9660 = vld [vmem:[%s5 + $0x1e0] sm:$0xff]
  %v9661 = vld [vmem:[%s5 + $0x1e8] sm:$0xff]
  %v9662 = vld [vmem:[%s5 + $0x1f0] sm:$0xff]
  %v9663 = vld [vmem:[%s5 + $0x1f8] sm:$0xff]
  %v9664 = vld [vmem:[%s6] sm:$0x3]
  %v9666 = vlaneseq
  %v9667 = vshrl.u32 %v9666, 7
  %v9668 = vsub.s32 0, %v9667
  %v9669 = vrot.slane %v9664, %v9668
  %v9670 = vlaneseq
  %v9671 = vshrl.u32 %v9670, 7
  %v9672 = vsub.s32 1, %v9671
  %v9673 = vrot.slane %v9664, %v9672
  %v9740 = vunpack.c.l.b16 %v9600
  %v9741 = vunpack.c.h.b16 %v9600
  %v9742 = vunpack.c.l.b16 %v9601
  %v9743 = vunpack.c.h.b16 %v9601
  %v9744 = vunpack.c.l.b16 %v9602
  %v9745 = vunpack.c.h.b16 %v9602
  %v9746 = vunpack.c.l.b16 %v9603
  %v9747 = vunpack.c.h.b16 %v9603
  %v9748 = vunpack.c.l.b16 %v9604
  %v9749 = vunpack.c.h.b16 %v9604
  %v9750 = vunpack.c.l.b16 %v9605
  %v9751 = vunpack.c.h.b16 %v9605
  %v9752 = vunpack.c.l.b16 %v9606
  %v9753 = vunpack.c.h.b16 %v9606
  %v9754 = vunpack.c.l.b16 %v9607
  %v9755 = vunpack.c.h.b16 %v9607
  %v9756 = vunpack.c.l.b16 %v9608
  %v9757 = vunpack.c.h.b16 %v9608
  %v9758 = vunpack.c.l.b16 %v9609
  %v9759 = vunpack.c.h.b16 %v9609
  %v9760 = vunpack.c.l.b16 %v9610
  %v9761 = vunpack.c.h.b16 %v9610
  %v9762 = vunpack.c.l.b16 %v9611
  %v9763 = vunpack.c.h.b16 %v9611
  %v9764 = vunpack.c.l.b16 %v9612
  %v9765 = vunpack.c.h.b16 %v9612
  %v9766 = vunpack.c.l.b16 %v9613
  %v9767 = vunpack.c.h.b16 %v9613
  %v9768 = vunpack.c.l.b16 %v9614
  %v9769 = vunpack.c.h.b16 %v9614
  %v9770 = vunpack.c.l.b16 %v9615
  %v9771 = vunpack.c.h.b16 %v9615
  %v9772 = vunpack.c.l.b16 %v9616
  %v9773 = vunpack.c.h.b16 %v9616
  %v9774 = vunpack.c.l.b16 %v9617
  %v9775 = vunpack.c.h.b16 %v9617
  %v9776 = vunpack.c.l.b16 %v9618
  %v9777 = vunpack.c.h.b16 %v9618
  %v9778 = vunpack.c.l.b16 %v9619
  %v9779 = vunpack.c.h.b16 %v9619
  %v9780 = vunpack.c.l.b16 %v9620
  %v9781 = vunpack.c.h.b16 %v9620
  %v9782 = vunpack.c.l.b16 %v9621
  %v9783 = vunpack.c.h.b16 %v9621
  %v9784 = vunpack.c.l.b16 %v9622
  %v9785 = vunpack.c.h.b16 %v9622
  %v9786 = vunpack.c.l.b16 %v9623
  %v9787 = vunpack.c.h.b16 %v9623
  %v9788 = vunpack.c.l.b16 %v9624
  %v9789 = vunpack.c.h.b16 %v9624
  %v9790 = vunpack.c.l.b16 %v9625
  %v9791 = vunpack.c.h.b16 %v9625
  %v9792 = vunpack.c.l.b16 %v9626
  %v9793 = vunpack.c.h.b16 %v9626
  %v9794 = vunpack.c.l.b16 %v9627
  %v9795 = vunpack.c.h.b16 %v9627
  %v9796 = vunpack.c.l.b16 %v9628
  %v9797 = vunpack.c.h.b16 %v9628
  %v9798 = vunpack.c.l.b16 %v9629
  %v9799 = vunpack.c.h.b16 %v9629
  %v9800 = vunpack.c.l.b16 %v9630
  %v9801 = vunpack.c.h.b16 %v9630
  %v9802 = vunpack.c.l.b16 %v9631
  %v9803 = vunpack.c.h.b16 %v9631
  %v9804 = vunpack.c.l.b16 %v9632
  %v9805 = vunpack.c.h.b16 %v9632
  %v9806 = vunpack.c.l.b16 %v9633
  %v9807 = vunpack.c.h.b16 %v9633
  %v9808 = vunpack.c.l.b16 %v9634
  %v9809 = vunpack.c.h.b16 %v9634
  %v9810 = vunpack.c.l.b16 %v9635
  %v9811 = vunpack.c.h.b16 %v9635
  %v9812 = vunpack.c.l.b16 %v9636
  %v9813 = vunpack.c.h.b16 %v9636
  %v9814 = vunpack.c.l.b16 %v9637
  %v9815 = vunpack.c.h.b16 %v9637
  %v9816 = vunpack.c.l.b16 %v9638
  %v9817 = vunpack.c.h.b16 %v9638
  %v9818 = vunpack.c.l.b16 %v9639
  %v9819 = vunpack.c.h.b16 %v9639
  %v9820 = vunpack.c.l.b16 %v9640
  %v9821 = vunpack.c.h.b16 %v9640
  %v9822 = vunpack.c.l.b16 %v9641
  %v9823 = vunpack.c.h.b16 %v9641
  %v9824 = vunpack.c.l.b16 %v9642
  %v9825 = vunpack.c.h.b16 %v9642
  %v9826 = vunpack.c.l.b16 %v9643
  %v9827 = vunpack.c.h.b16 %v9643
  %v9828 = vunpack.c.l.b16 %v9644
  %v9829 = vunpack.c.h.b16 %v9644
  %v9830 = vunpack.c.l.b16 %v9645
  %v9831 = vunpack.c.h.b16 %v9645
  %v9832 = vunpack.c.l.b16 %v9646
  %v9833 = vunpack.c.h.b16 %v9646
  %v9834 = vunpack.c.l.b16 %v9647
  %v9835 = vunpack.c.h.b16 %v9647
  %v9836 = vunpack.c.l.b16 %v9648
  %v9837 = vunpack.c.h.b16 %v9648
  %v9838 = vunpack.c.l.b16 %v9649
  %v9839 = vunpack.c.h.b16 %v9649
  %v9840 = vunpack.c.l.b16 %v9650
  %v9841 = vunpack.c.h.b16 %v9650
  %v9842 = vunpack.c.l.b16 %v9651
  %v9843 = vunpack.c.h.b16 %v9651
  %v9844 = vunpack.c.l.b16 %v9652
  %v9845 = vunpack.c.h.b16 %v9652
  %v9846 = vunpack.c.l.b16 %v9653
  %v9847 = vunpack.c.h.b16 %v9653
  %v9848 = vunpack.c.l.b16 %v9654
  %v9849 = vunpack.c.h.b16 %v9654
  %v9850 = vunpack.c.l.b16 %v9655
  %v9851 = vunpack.c.h.b16 %v9655
  %v9852 = vunpack.c.l.b16 %v9656
  %v9853 = vunpack.c.h.b16 %v9656
  %v9854 = vunpack.c.l.b16 %v9657
  %v9855 = vunpack.c.h.b16 %v9657
  %v9856 = vunpack.c.l.b16 %v9658
  %v9857 = vunpack.c.h.b16 %v9658
  %v9858 = vunpack.c.l.b16 %v9659
  %v9859 = vunpack.c.h.b16 %v9659
  %v9860 = vunpack.c.l.b16 %v9660
  %v9861 = vunpack.c.h.b16 %v9660
  %v9862 = vunpack.c.l.b16 %v9661
  %v9863 = vunpack.c.h.b16 %v9661
  %v9864 = vunpack.c.l.b16 %v9662
  %v9865 = vunpack.c.h.b16 %v9662
  %v9866 = vunpack.c.l.b16 %v9663
  %v9867 = vunpack.c.h.b16 %v9663
  %v9868 = vpack.c.b16 %v9742, %v9740
  %v9869 = vpack.c.b16 %v9743, %v9741
  %v9870 = vpack.c.b16 %v9746, %v9744
  %v9871 = vpack.c.b16 %v9747, %v9745
  %v9872 = vpack.c.b16 %v9750, %v9748
  %v9873 = vpack.c.b16 %v9751, %v9749
  %v9874 = vpack.c.b16 %v9754, %v9752
  %v9875 = vpack.c.b16 %v9755, %v9753
  %v9876 = vpack.c.b16 %v9758, %v9756
  %v9877 = vpack.c.b16 %v9759, %v9757
  %v9878 = vpack.c.b16 %v9762, %v9760
  %v9879 = vpack.c.b16 %v9763, %v9761
  %v9880 = vpack.c.b16 %v9766, %v9764
  %v9881 = vpack.c.b16 %v9767, %v9765
  %v9882 = vpack.c.b16 %v9770, %v9768
  %v9883 = vpack.c.b16 %v9771, %v9769
  %v9884 = vpack.c.b16 %v9774, %v9772
  %v9885 = vpack.c.b16 %v9775, %v9773
  %v9886 = vpack.c.b16 %v9778, %v9776
  %v9887 = vpack.c.b16 %v9779, %v9777
  %v9888 = vpack.c.b16 %v9782, %v9780
  %v9889 = vpack.c.b16 %v9783, %v9781
  %v9890 = vpack.c.b16 %v9786, %v9784
  %v9891 = vpack.c.b16 %v9787, %v9785
  %v9892 = vpack.c.b16 %v9790, %v9788
  %v9893 = vpack.c.b16 %v9791, %v9789
  %v9894 = vpack.c.b16 %v9794, %v9792
  %v9895 = vpack.c.b16 %v9795, %v9793
  %v9896 = vpack.c.b16 %v9798, %v9796
  %v9897 = vpack.c.b16 %v9799, %v9797
  %v9898 = vpack.c.b16 %v9802, %v9800
  %v9899 = vpack.c.b16 %v9803, %v9801
  %v9900 = vpack.c.b16 %v9806, %v9804
  %v9901 = vpack.c.b16 %v9807, %v9805
  %v9902 = vpack.c.b16 %v9810, %v9808
  %v9903 = vpack.c.b16 %v9811, %v9809
  %v9904 = vpack.c.b16 %v9814, %v9812
  %v9905 = vpack.c.b16 %v9815, %v9813
  %v9906 = vpack.c.b16 %v9818, %v9816
  %v9907 = vpack.c.b16 %v9819, %v9817
  %v9908 = vpack.c.b16 %v9822, %v9820
  %v9909 = vpack.c.b16 %v9823, %v9821
  %v9910 = vpack.c.b16 %v9826, %v9824
  %v9911 = vpack.c.b16 %v9827, %v9825
  %v9912 = vpack.c.b16 %v9830, %v9828
  %v9913 = vpack.c.b16 %v9831, %v9829
  %v9914 = vpack.c.b16 %v9834, %v9832
  %v9915 = vpack.c.b16 %v9835, %v9833
  %v9916 = vpack.c.b16 %v9838, %v9836
  %v9917 = vpack.c.b16 %v9839, %v9837
  %v9918 = vpack.c.b16 %v9842, %v9840
  %v9919 = vpack.c.b16 %v9843, %v9841
  %v9920 = vpack.c.b16 %v9846, %v9844
  %v9921 = vpack.c.b16 %v9847, %v9845
  %v9922 = vpack.c.b16 %v9850, %v9848
  %v9923 = vpack.c.b16 %v9851, %v9849
  %v9924 = vpack.c.b16 %v9854, %v9852
  %v9925 = vpack.c.b16 %v9855, %v9853
  %v9926 = vpack.c.b16 %v9858, %v9856
  %v9927 = vpack.c.b16 %v9859, %v9857
  %v9928 = vpack.c.b16 %v9862, %v9860
  %v9929 = vpack.c.b16 %v9863, %v9861
  %v9930 = vpack.c.b16 %v9866, %v9864
  %v9931 = vpack.c.b16 %v9867, %v9865
  %9996 = vmatprep.subr.bf16.mxu0 %v9869
  %9997 = vmatpush1.bf16.msra.mxu0 %v9868
  %9998 = vmatprep.subr.bf16.mxu0 %v9871
  %9999 = vmatpush1.bf16.msra.mxu0 %v9870
  %10000 = vmatprep.subr.bf16.mxu0 %v9873
  %10001 = vmatpush1.bf16.msra.mxu0 %v9872
  %10002 = vmatprep.subr.bf16.mxu0 %v9875
  %10003 = vmatpush1.bf16.msra.mxu0 %v9874
  %10004 = vmatprep.subr.bf16.mxu0 %v9877
  %10005 = vmatpush1.bf16.msra.mxu0 %v9876
  %10006 = vmatprep.subr.bf16.mxu0 %v9879
  %10007 = vmatpush1.bf16.msra.mxu0 %v9878
  %10008 = vmatprep.subr.bf16.mxu0 %v9881
  %10009 = vmatpush1.bf16.msra.mxu0 %v9880
  %10010 = vmatprep.subr.bf16.mxu0 %v9883
  %10011 = vmatpush1.bf16.msra.mxu0 %v9882
  %10012 = vmatprep.subr.bf16.mxu0 %v9885
  %10013 = vmatpush1.bf16.msra.mxu0 %v9884
  %10014 = vmatprep.subr.bf16.mxu0 %v9887
  %10015 = vmatpush1.bf16.msra.mxu0 %v9886
  %10016 = vmatprep.subr.bf16.mxu0 %v9889
  %10017 = vmatpush1.bf16.msra.mxu0 %v9888
  %10018 = vmatprep.subr.bf16.mxu0 %v9891
  %10019 = vmatpush1.bf16.msra.mxu0 %v9890
  %10020 = vmatprep.subr.bf16.mxu0 %v9893
  %10021 = vmatpush1.bf16.msra.mxu0 %v9892
  %10022 = vmatprep.subr.bf16.mxu0 %v9895
  %10023 = vmatpush1.bf16.msra.mxu0 %v9894
  %10024 = vmatprep.subr.bf16.mxu0 %v9897
  %10025 = vmatpush1.bf16.msra.mxu0 %v9896
  %10026 = vmatprep.subr.bf16.mxu0 %v9899
  %10027 = vmatpush1.bf16.msra.mxu0 %v9898
  %10028 = vmatprep.mubr.bf16.mxu0 %v9597
  %10029 = vmatmul.mubr.bf16.gmra.mrb[0].mxu0 %v9596
  %v10030 = vpop.f32.mrb[0].mxu0
  %v10031 = vadd.f32 %v9669, %v10030
  %v10032 = vpop.f32.mrb[0].mxu0
  %v10033 = vadd.f32 %v9673, %v10032
  %v10034 = vpop.f32.mrb[0].mxu0
  %v10035 = vpop.f32.mrb[0].mxu0
  %10036 = vdwg.mxu0
  %10037 = vmatprep.subr.bf16.mxu0 %v9901
  %10038 = vmatpush1.bf16.msra.mxu0 %v9900
  %10039 = vmatprep.subr.bf16.mxu0 %v9903
  %10040 = vmatpush1.bf16.msra.mxu0 %v9902
  %10041 = vmatprep.subr.bf16.mxu0 %v9905
  %10042 = vmatpush1.bf16.msra.mxu0 %v9904
  %10043 = vmatprep.subr.bf16.mxu0 %v9907
  %10044 = vmatpush1.bf16.msra.mxu0 %v9906
  %10045 = vmatprep.subr.bf16.mxu0 %v9909
  %10046 = vmatpush1.bf16.msra.mxu0 %v9908
  %10047 = vmatprep.subr.bf16.mxu0 %v9911
  %10048 = vmatpush1.bf16.msra.mxu0 %v9910
  %10049 = vmatprep.subr.bf16.mxu0 %v9913
  %10050 = vmatpush1.bf16.msra.mxu0 %v9912
  %10051 = vmatprep.subr.bf16.mxu0 %v9915
  %10052 = vmatpush1.bf16.msra.mxu0 %v9914
  %10053 = vmatprep.subr.bf16.mxu0 %v9917
  %10054 = vmatpush1.bf16.msra.mxu0 %v9916
  %10055 = vmatprep.subr.bf16.mxu0 %v9919
  %10056 = vmatpush1.bf16.msra.mxu0 %v9918
  %10057 = vmatprep.subr.bf16.mxu0 %v9921
  %10058 = vmatpush1.bf16.msra.mxu0 %v9920
  %10059 = vmatprep.subr.bf16.mxu0 %v9923
  %10060 = vmatpush1.bf16.msra.mxu0 %v9922
  %10061 = vmatprep.subr.bf16.mxu0 %v9925
  %10062 = vmatpush1.bf16.msra.mxu0 %v9924
  %10063 = vmatprep.subr.bf16.mxu0 %v9927
  %10064 = vmatpush1.bf16.msra.mxu0 %v9926
  %10065 = vmatprep.subr.bf16.mxu0 %v9929
  %10066 = vmatpush1.bf16.msra.mxu0 %v9928
  %10067 = vmatprep.subr.bf16.mxu0 %v9931
  %10068 = vmatpush1.bf16.msra.mxu0 %v9930
  %10069 = vmatprep.mubr.bf16.mxu0 %v9599
  %10070 = vmatmul.mubr.bf16.gmra.mrb[0].mxu0 %v9598
  %v10071 = vpop.f32.mrb[0].mxu0
  %v10072 = vadd.f32 %v10031, %v10071
  %v10073 = vpop.f32.mrb[0].mxu0
  %v10074 = vadd.f32 %v10033, %v10073
  %v10075 = vpop.f32.mrb[0].mxu0
  %v10076 = vpop.f32.mrb[0].mxu0
  %10077 = vdwg.mxu0
  %vm10078 = vcmp.ge.f32.partialorder %v10072, 0.0
  %vm10079 = vcmp.ge.f32.partialorder %v10074, 0.0
  %v10080 = vmul.f32 %v10072, 0.01
  %v10081 = vmul.f32 %v10074, 0.01
  %v10082 = vsel %vm10078, %v10072, %v10080
  %v10083 = vsel %vm10079, %v10074, %v10081
  %v10084 = vpack.c.bf16 %v10082, %v10082
  %v10085 = vpack.c.bf16 %v10083, %v10083
  %v10086 = vld [vmem:[%s7] sm:$0xf]
  %v10087 = vld [vmem:[%s7 + $0x4] sm:$0xf]
  %v10088 = vld [vmem:[%s7 + $0x8] sm:$0xf]
  %v10089 = vld [vmem:[%s7 + $0xc] sm:$0xf]
  %v10090 = vld [vmem:[%s7 + $0x10] sm:$0xf]
  %v10091 = vld [vmem:[%s7 + $0x14] sm:$0xf]
  %v10092 = vld [vmem:[%s7 + $0x18] sm:$0xf]
  %v10093 = vld [vmem:[%s7 + $0x1c] sm:$0xf]
  %v10094 = vld [vmem:[%s7 + $0x20] sm:$0xf]
  %v10095 = vld [vmem:[%s7 + $0x24] sm:$0xf]
  %v10096 = vld [vmem:[%s7 + $0x28] sm:$0xf]
  %v10097 = vld [vmem:[%s7 + $0x2c] sm:$0xf]
  %v10098 = vld [vmem:[%s7 + $0x30] sm:$0xf]
  %v10099 = vld [vmem:[%s7 + $0x34] sm:$0xf]
  %v10100 = vld [vmem:[%s7 + $0x38] sm:$0xf]
  %v10101 = vld [vmem:[%s7 + $0x3c] sm:$0xf]
  %v10102 = vld [vmem:[%s7 + $0x40] sm:$0xf]
  %v10103 = vld [vmem:[%s7 + $0x44] sm:$0xf]
  %v10104 = vld [vmem:[%s7 + $0x48] sm:$0xf]
  %v10105 = vld [vmem:[%s7 + $0x4c] sm:$0xf]
  %v10106 = vld [vmem:[%s7 + $0x50] sm:$0xf]
  %v10107 = vld [vmem:[%s7 + $0x54] sm:$0xf]
  %v10108 = vld [vmem:[%s7 + $0x58] sm:$0xf]
  %v10109 = vld [vmem:[%s7 + $0x5c] sm:$0xf]
  %v10110 = vld [vmem:[%s7 + $0x60] sm:$0xf]
  %v10111 = vld [vmem:[%s7 + $0x64] sm:$0xf]
  %v10112 = vld [vmem:[%s7 + $0x68] sm:$0xf]
  %v10113 = vld [vmem:[%s7 + $0x6c] sm:$0xf]
  %v10114 = vld [vmem:[%s7 + $0x70] sm:$0xf]
  %v10115 = vld [vmem:[%s7 + $0x74] sm:$0xf]
  %v10116 = vld [vmem:[%s7 + $0x78] sm:$0xf]
  %v10117 = vld [vmem:[%s7 + $0x7c] sm:$0xf]
  %v10118 = vld [vmem:[%s8] sm:$0x1]
  %v10120 = vlaneseq
  %v10121 = vshrl.u32 %v10120, 7
  %v10122 = vsub.s32 0, %v10121
  %v10123 = vrot.slane %v10118, %v10122
  %v10157 = vunpack.c.l.b16 %v10086
  %v10158 = vunpack.c.l.b16 %v10087
  %v10159 = vunpack.c.l.b16 %v10088
  %v10160 = vunpack.c.l.b16 %v10089
  %v10161 = vunpack.c.l.b16 %v10090
  %v10162 = vunpack.c.l.b16 %v10091
  %v10163 = vunpack.c.l.b16 %v10092
  %v10164 = vunpack.c.l.b16 %v10093
  %v10165 = vunpack.c.l.b16 %v10094
  %v10166 = vunpack.c.l.b16 %v10095
  %v10167 = vunpack.c.l.b16 %v10096
  %v10168 = vunpack.c.l.b16 %v10097
  %v10169 = vunpack.c.l.b16 %v10098
  %v10170 = vunpack.c.l.b16 %v10099
  %v10171 = vunpack.c.l.b16 %v10100
  %v10172 = vunpack.c.l.b16 %v10101
  %v10173 = vunpack.c.l.b16 %v10102
  %v10174 = vunpack.c.l.b16 %v10103
  %v10175 = vunpack.c.l.b16 %v10104
  %v10176 = vunpack.c.l.b16 %v10105
  %v10177 = vunpack.c.l.b16 %v10106
  %v10178 = vunpack.c.l.b16 %v10107
  %v10179 = vunpack.c.l.b16 %v10108
  %v10180 = vunpack.c.l.b16 %v10109
  %v10181 = vunpack.c.l.b16 %v10110
  %v10182 = vunpack.c.l.b16 %v10111
  %v10183 = vunpack.c.l.b16 %v10112
  %v10184 = vunpack.c.l.b16 %v10113
  %v10185 = vunpack.c.l.b16 %v10114
  %v10186 = vunpack.c.l.b16 %v10115
  %v10187 = vunpack.c.l.b16 %v10116
  %v10188 = vunpack.c.l.b16 %v10117
  %v10189 = vpack.c.b16 %v10158, %v10157
  %v10190 = vpack.c.b16 %v10160, %v10159
  %v10191 = vpack.c.b16 %v10162, %v10161
  %v10192 = vpack.c.b16 %v10164, %v10163
  %v10193 = vpack.c.b16 %v10166, %v10165
  %v10194 = vpack.c.b16 %v10168, %v10167
  %v10195 = vpack.c.b16 %v10170, %v10169
  %v10196 = vpack.c.b16 %v10172, %v10171
  %v10197 = vpack.c.b16 %v10174, %v10173
  %v10198 = vpack.c.b16 %v10176, %v10175
  %v10199 = vpack.c.b16 %v10178, %v10177
  %v10200 = vpack.c.b16 %v10180, %v10179
  %v10201 = vpack.c.b16 %v10182, %v10181
  %v10202 = vpack.c.b16 %v10184, %v10183
  %v10203 = vpack.c.b16 %v10186, %v10185
  %v10204 = vpack.c.b16 %v10188, %v10187
  %10221 = vmatprep.subr.bf16.mxu0 0
  %10222 = vmatpush1.bf16.msra.mxu0 %v10189
  %10223 = vmatprep.subr.bf16.mxu0 0
  %10224 = vmatpush1.bf16.msra.mxu0 %v10190
  %10225 = vmatprep.subr.bf16.mxu0 0
  %10226 = vmatpush1.bf16.msra.mxu0 %v10191
  %10227 = vmatprep.subr.bf16.mxu0 0
  %10228 = vmatpush1.bf16.msra.mxu0 %v10192
  %10229 = vmatprep.subr.bf16.mxu0 0
  %10230 = vmatpush1.bf16.msra.mxu0 %v10193
  %10231 = vmatprep.subr.bf16.mxu0 0
  %10232 = vmatpush1.bf16.msra.mxu0 %v10194
  %10233 = vmatprep.subr.bf16.mxu0 0
  %10234 = vmatpush1.bf16.msra.mxu0 %v10195
  %10235 = vmatprep.subr.bf16.mxu0 0
  %10236 = vmatpush1.bf16.msra.mxu0 %v10196
  %10237 = vmatprep.subr.bf16.mxu0 0
  %10238 = vmatpush1.bf16.msra.mxu0 %v10197
  %10239 = vmatprep.subr.bf16.mxu0 0
  %10240 = vmatpush1.bf16.msra.mxu0 %v10198
  %10241 = vmatprep.subr.bf16.mxu0 0
  %10242 = vmatpush1.bf16.msra.mxu0 %v10199
  %10243 = vmatprep.subr.bf16.mxu0 0
  %10244 = vmatpush1.bf16.msra.mxu0 %v10200
  %10245 = vmatprep.subr.bf16.mxu0 0
  %10246 = vmatpush1.bf16.msra.mxu0 %v10201
  %10247 = vmatprep.subr.bf16.mxu0 0
  %10248 = vmatpush1.bf16.msra.mxu0 %v10202
  %10249 = vmatprep.subr.bf16.mxu0 0
  %10250 = vmatpush1.bf16.msra.mxu0 %v10203
  %10251 = vmatprep.subr.bf16.mxu0 0
  %10252 = vmatpush1.bf16.msra.mxu0 %v10204
  %10253 = vmatprep.mubr.bf16.mxu0 %v10085
  %10254 = vmatmul.mubr.bf16.gmra.mrb[0].mxu0 %v10084
  %v10255 = vpop.f32.mrb[0].mxu0
  %v10256 = vadd.f32 %v10123, %v10255
  %v10257 = vpop.f32.mrb[0].mxu0
  %v10258 = vpop.f32.mrb[0].mxu0
  %v10259 = vpop.f32.mrb[0].mxu0
  %10260 = vdwg.mxu0
  %vm10261 = vcmp.ge.f32.partialorder %v10256, 0.0
  %v10262 = vmul.f32 %v10256, 0.01
  %v10263 = vsel %vm10261, %v10256, %v10262
  %v10264 = vpack.c.bf16 %v10263, %v10263
  %v10265 = vld [vmem:[%s9] sm:$0xf]
  %v10266 = vld [vmem:[%s9 + $0x4] sm:$0xf]
  %v10267 = vld [vmem:[%s9 + $0x8] sm:$0xf]
  %v10268 = vld [vmem:[%s9 + $0xc] sm:$0xf]
  %v10269 = vld [vmem:[%s9 + $0x10] sm:$0xf]
  %v10270 = vld [vmem:[%s9 + $0x14] sm:$0xf]
  %v10271 = vld [vmem:[%s9 + $0x18] sm:$0xf]
  %v10272 = vld [vmem:[%s9 + $0x1c] sm:$0xf]
  %v10273 = vld [vmem:[%s9 + $0x20] sm:$0xf]
  %v10274 = vld [vmem:[%s9 + $0x24] sm:$0xf]
  %v10275 = vld [vmem:[%s9 + $0x28] sm:$0xf]
  %v10276 = vld [vmem:[%s9 + $0x2c] sm:$0xf]
  %v10277 = vld [vmem:[%s9 + $0x30] sm:$0xf]
  %v10278 = vld [vmem:[%s9 + $0x34] sm:$0xf]
  %v10279 = vld [vmem:[%s9 + $0x38] sm:$0xf]
  %v10280 = vld [vmem:[%s9 + $0x3c] sm:$0xf]
  %v10297 = vunpack.c.l.b16 %v10265
  %v10298 = vunpack.c.l.b16 %v10266
  %v10299 = vunpack.c.l.b16 %v10267
  %v10300 = vunpack.c.l.b16 %v10268
  %v10301 = vunpack.c.l.b16 %v10269
  %v10302 = vunpack.c.l.b16 %v10270
  %v10303 = vunpack.c.l.b16 %v10271
  %v10304 = vunpack.c.l.b16 %v10272
  %v10305 = vunpack.c.l.b16 %v10273
  %v10306 = vunpack.c.l.b16 %v10274
  %v10307 = vunpack.c.l.b16 %v10275
  %v10308 = vunpack.c.l.b16 %v10276
  %v10309 = vunpack.c.l.b16 %v10277
  %v10310 = vunpack.c.l.b16 %v10278
  %v10311 = vunpack.c.l.b16 %v10279
  %v10312 = vunpack.c.l.b16 %v10280
  %v10313 = vpack.c.b16 %v10298, %v10297
  %v10314 = vpack.c.b16 %v10300, %v10299
  %v10315 = vpack.c.b16 %v10302, %v10301
  %v10316 = vpack.c.b16 %v10304, %v10303
  %v10317 = vpack.c.b16 %v10306, %v10305
  %v10318 = vpack.c.b16 %v10308, %v10307
  %v10319 = vpack.c.b16 %v10310, %v10309
  %v10320 = vpack.c.b16 %v10312, %v10311
  %10329 = vmatprep.subr.bf16.mxu0 0
  %10330 = vmatpush1.bf16.msra.mxu0 %v10313
  %10331 = vmatprep.subr.bf16.mxu0 0
  %10332 = vmatpush1.bf16.msra.mxu0 %v10314
  %10333 = vmatprep.subr.bf16.mxu0 0
  %10334 = vmatpush1.bf16.msra.mxu0 %v10315
  %10335 = vmatprep.subr.bf16.mxu0 0
  %10336 = vmatpush1.bf16.msra.mxu0 %v10316
  %10337 = vmatprep.subr.bf16.mxu0 0
  %10338 = vmatpush1.bf16.msra.mxu0 %v10317
  %10339 = vmatprep.subr.bf16.mxu0 0
  %10340 = vmatpush1.bf16.msra.mxu0 %v10318
  %10341 = vmatprep.subr.bf16.mxu0 0
  %10342 = vmatpush1.bf16.msra.mxu0 %v10319
  %10343 = vmatprep.subr.bf16.mxu0 0
  %10344 = vmatpush1.bf16.msra.mxu0 %v10320
  %10345 = vmatprep.subr.bf16.mxu0 0
  %10346 = vmatpush1.bf16.msra.mxu0 0
  %10347 = vmatprep.subr.bf16.mxu0 0
  %10348 = vmatpush1.bf16.msra.mxu0 0
  %10349 = vmatprep.subr.bf16.mxu0 0
  %10350 = vmatpush1.bf16.msra.mxu0 0
  %10351 = vmatprep.subr.bf16.mxu0 0
  %10352 = vmatpush1.bf16.msra.mxu0 0
  %10353 = vmatprep.subr.bf16.mxu0 0
  %10354 = vmatpush1.bf16.msra.mxu0 0
  %10355 = vmatprep.subr.bf16.mxu0 0
  %10356 = vmatpush1.bf16.msra.mxu0 0
  %10357 = vmatprep.subr.bf16.mxu0 0
  %10358 = vmatpush1.bf16.msra.mxu0 0
  %10359 = vmatprep.subr.bf16.mxu0 0
  %10360 = vmatpush1.bf16.msra.mxu0 0
  %10361 = vmatprep.mubr.bf16.mxu0 0
  %10362 = vmatmul.mubr.bf16.gmra.mrb[0].mxu0 %v10264
  %v10363 = vpop.f32.mrb[0].mxu0
  %v10364 = vadd.f32 0.0, %v10363
  %v10365 = vpop.f32.mrb[0].mxu0
  %v10366 = vpop.f32.mrb[0].mxu0
  %v10367 = vpop.f32.mrb[0].mxu0
  %10368 = vdwg.mxu0
  %vm10369 = vcmask 1041408
  %v10370 = vsel %vm10369, %v10364, 0.0
  %v10371 = vrot.slane %v10370, 4
  %v10372 = vadd.f32 %v10370, %v10371
  %v10373 = vrot.slane %v10372, 2
  %v10374 = vadd.f32 %v10372, %v10373
  %v10375 = vrot.slane %v10374, 1
  %v10376 = vadd.f32 %v10374, %v10375
  %v10377 = vrcp.pop 2.0
  %v10378 = vmul.f32 %v10376, %v10377
  %v10379 = vsub.f32 %v10364, %v10378
  %v10380 = vmul.f32 %v10379, %v10379
  %v10381 = vsel %vm10369, %v10380, 0.0
  %v10382 = vrot.slane %v10381, 4
  %v10383 = vadd.f32 %v10381, %v10382
  %v10384 = vrot.slane %v10383, 2
  %v10385 = vadd.f32 %v10383, %v10384
  %v10386 = vrot.slane %v10385, 1
  %v10387 = vadd.f32 %v10385, %v10386
  %v10388 = vmul.f32 %v10387, %v10377
  %v10389 = vadd.f32 %v10388, 1e-05
  %v10390 = vrsqrt.pop %v10389
  %v10391 = vmul.f32 %v10379, %v10390
  %v10392 = vld [vmem:[%s10] sm:$0x1]
  %v10394 = vlaneseq
  %v10395 = vshrl.u32 %v10394, 7
  %v10396 = vsub.s32 0, %v10395
  %v10397 = vrot.slane %v10392, %v10396
  %v10399 = vmul.f32 %v10391, %v10397
  %v10400 = vld [vmem:[%s11] sm:$0x1]
  %v10402 = vlaneseq
  %v10403 = vshrl.u32 %v10402, 7
  %v10404 = vsub.s32 0, %v10403
  %v10405 = vrot.slane %v10400, %v10404
  %v10407 = vadd.f32 %v10399, %v10405
  %v10408 = vld [vmem:[%s12] sm:$0xff]
  %v10409 = vld [vmem:[%s12 + $0x8] sm:$0xff]
  %v10410 = vld [vmem:[%s12 + $0x10] sm:$0xff]
  %v10411 = vld [vmem:[%s12 + $0x18] sm:$0xff]
  %v10412 = vld [vmem:[%s12 + $0x20] sm:$0xff]
  %v10413 = vld [vmem:[%s12 + $0x28] sm:$0xff]
  %v10414 = vld [vmem:[%s12 + $0x30] sm:$0xff]
  %v10415 = vld [vmem:[%s12 + $0x38] sm:$0xff]
  %v10416 = vld [vmem:[%s12 + $0x40] sm:$0xff]
  %v10417 = vld [vmem:[%s12 + $0x48] sm:$0xff]
  %v10418 = vld [vmem:[%s12 + $0x50] sm:$0xff]
  %v10419 = vld [vmem:[%s12 + $0x58] sm:$0xff]
  %v10420 = vld [vmem:[%s12 + $0x60] sm:$0xff]
  %v10421 = vld [vmem:[%s12 + $0x68] sm:$0xff]
  %v10422 = vld [vmem:[%s12 + $0x70] sm:$0xff]
  %v10423 = vld [vmem:[%s12 + $0x78] sm:$0xff]
  %v10424 = vld [vmem:[#allocation2] sm:$0x1]
  %v10426 = vlaneseq
  %v10427 = vshrl.u32 %v10426, 7
  %v10428 = vsub.s32 0, %v10427
  %v10429 = vrot.slane %v10424, %v10428
  %10431 = vmatprep.subr.mxu0 0.0
  %10432 = vmatpush1.msra.mxu0 %v10408
  %10433 = vmatprep.subr.mxu0 0.0
  %10434 = vmatpush1.msra.mxu0 %v10409
  %10435 = vmatprep.subr.mxu0 0.0
  %10436 = vmatpush1.msra.mxu0 %v10410
  %10437 = vmatprep.subr.mxu0 0.0
  %10438 = vmatpush1.msra.mxu0 %v10411
  %10439 = vmatprep.subr.mxu0 0.0
  %10440 = vmatpush1.msra.mxu0 %v10412
  %10441 = vmatprep.subr.mxu0 0.0
  %10442 = vmatpush1.msra.mxu0 %v10413
  %10443 = vmatprep.subr.mxu0 0.0
  %10444 = vmatpush1.msra.mxu0 %v10414
  %10445 = vmatprep.subr.mxu0 0.0
  %10446 = vmatpush1.msra.mxu0 %v10415
  %10447 = vmatprep.subr.mxu0 0.0
  %10448 = vmatpush1.msra.mxu0 %v10416
  %10449 = vmatprep.subr.mxu0 0.0
  %10450 = vmatpush1.msra.mxu0 %v10417
  %10451 = vmatprep.subr.mxu0 0.0
  %10452 = vmatpush1.msra.mxu0 %v10418
  %10453 = vmatprep.subr.mxu0 0.0
  %10454 = vmatpush1.msra.mxu0 %v10419
  %10455 = vmatprep.subr.mxu0 0.0
  %10456 = vmatpush1.msra.mxu0 %v10420
  %10457 = vmatprep.subr.mxu0 0.0
  %10458 = vmatpush1.msra.mxu0 %v10421
  %10459 = vmatprep.subr.mxu0 0.0
  %10460 = vmatpush1.msra.mxu0 %v10422
  %10461 = vmatprep.subr.mxu0 0.0
  %10462 = vmatpush1.msra.mxu0 %v10423
  %10463 = vmatprep.subr.mxu0 0.0
  %10464 = vmatpush1.msra.mxu0 0.0
  %10465 = vmatprep.subr.mxu0 0.0
  %10466 = vmatpush1.msra.mxu0 0.0
  %10467 = vmatprep.subr.mxu0 0.0
  %10468 = vmatpush1.msra.mxu0 0.0
  %10469 = vmatprep.subr.mxu0 0.0
  %10470 = vmatpush1.msra.mxu0 0.0
  %10471 = vmatprep.subr.mxu0 0.0
  %10472 = vmatpush1.msra.mxu0 0.0
  %10473 = vmatprep.subr.mxu0 0.0
  %10474 = vmatpush1.msra.mxu0 0.0
  %10475 = vmatprep.subr.mxu0 0.0
  %10476 = vmatpush1.msra.mxu0 0.0
  %10477 = vmatprep.subr.mxu0 0.0
  %10478 = vmatpush1.msra.mxu0 0.0
  %10479 = vmatprep.subr.mxu0 0.0
  %10480 = vmatpush1.msra.mxu0 0.0
  %10481 = vmatprep.subr.mxu0 0.0
  %10482 = vmatpush1.msra.mxu0 0.0
  %10483 = vmatprep.subr.mxu0 0.0
  %10484 = vmatpush1.msra.mxu0 0.0
  %10485 = vmatprep.subr.mxu0 0.0
  %10486 = vmatpush1.msra.mxu0 0.0
  %10487 = vmatprep.subr.mxu0 0.0
  %10488 = vmatpush1.msra.mxu0 0.0
  %10489 = vmatprep.subr.mxu0 0.0
  %10490 = vmatpush1.msra.mxu0 0.0
  %10491 = vmatprep.subr.mxu0 0.0
  %10492 = vmatpush1.msra.mxu0 0.0
  %10493 = vmatprep.subr.mxu0 0.0
  %10494 = vmatpush1.msra.mxu0 0.0
  %10495 = vmatprep.mubr.f32.mxu0 0.0
  %10496 = vmatmul.mubr.f32.gmra.mrb[0].mxu0 %v10407
  %v10497 = vpop.f32.mrb[0].mxu0
  %v10498 = vadd.f32 %v10429, %v10497
  %v10499 = vpop.f32.mrb[0].mxu0
  %10500 = vdwg.mxu0
  %v10501 = vsub.f32 0.0, %v10498
  %v10502 = vmul.f32 %v10501, 1.442695
  %v10503 = vpow.pop %v10502
  %v10504 = vadd.f32 %v10503, 1.0
  %v10505 = vrcp.pop %v10504
  %vm10506 = vcmask 1024
  %10507 = vst.msk [vmem:[%s14] sm:$0x3] %vm10506, %v10505
  // Predicated region
  $region58: #{discriminator_forward.3} parent=0 // pred_check
    _
  $region59: #{discriminator_forward.3} parent=0 // pred_check_branch
    %10509 = sbr.rel (0) target = $region61
  $region60: #{discriminator_forward.3} parent=0 // pred_region
    _
  $region61: #{discriminator_forward.3} parent=0 // pred_fallthru
    _
  // Predicated region
  $region62: #{discriminator_forward.3} parent=0 // pred_check
    _
  $region63: #{discriminator_forward.3} parent=0 // pred_check_branch
    %10511 = sbr.rel (0) target = $region65
  $region64: #{discriminator_forward.3} parent=0 // pred_region
    _
  $region65: #{discriminator_forward.3} parent=0 // pred_fallthru
    _

</llo_original>
